<compile_context>
chip_gen: v6e
topology: v6e:2x2x1
jax: 0.10.0
libtpu: 0.0.40
codegen_flags: <defaults>
</compile_context>

<pallas_src>
import jax
import jax.numpy as jnp
from jax.experimental import pallas as pl
from jax.experimental.pallas import tpu as pltpu

NEG_SLOPE = 0.1                 # 'lrelu' => nn.LeakyReLU(0.1)
POOL_KS = (5, 9, 13)            # SPP max-pool kernel sizes (stride 1, pad k//2)
POOL_PAD = 2                    # cascaded 5x5 pools need pad 2
DW_PAD = 1                      # 3x3 depthwise conv pad 1
LANE = 128


def _lrelu(v):
    # LeakyReLU(0.1) == max(v, 0.1*v) for 0 < slope < 1: one vmax instead of cmp+select.
    return jnp.maximum(v, NEG_SLOPE * v)


def _make_kernel(H, W, C1, Ch, Cq, C2, pool_dtype, pack_spp):
    HW = H * W

    def conv1x1(x_hwc, w, b):                       # w: (Cin, Cout) bf16, b: (1, Cout) f32
        cin = x_hwc.shape[-1]
        cout = w.shape[1]
        y = jnp.dot(x_hwc.reshape(HW, cin).astype(jnp.bfloat16), w,
                    preferred_element_type=jnp.float32) + b
        return _lrelu(y).reshape(H, W, cout)

    def fill_rim(ref, p, value):
        # Initialise only the border rim; the interior is always fully overwritten by
        # the consumers, so the rim is invariant for the whole grid step.
        Hp, Wp, C = ref.shape
        row = jnp.full((p, Wp, C), value, ref.dtype)
        ref[0:p, :, :] = row
        ref[Hp - p:Hp, :, :] = row
        col = jnp.full((H, p, C), value, ref.dtype)
        ref[p:p + H, 0:p, :] = col
        ref[p:p + H, Wp - p:Wp, :] = col

    def dwconv3x3(pad_ref, x_hwc, wd, b):           # wd: (9, Ch) f32, b: (1, Ch) f32
        # depthwise 3x3, stride 1, zero padding 1 (groups == channels); zero rim is
        # already in place.
        pad_ref[DW_PAD:DW_PAD + H, DW_PAD:DW_PAD + W, :] = x_hwc
        acc = jnp.zeros((H, W, Ch), jnp.float32)
        for di in range(3):
            for dj in range(3):
                r = di * 3 + dj
                acc = acc + pad_ref[di:di + H, dj:dj + W, :] * wd[r:r + 1]
        return _lrelu(acc + b)

    def maxpool5(pad_ref, x_hwc):
        # 5x5 max pool, stride 1, "same" (-inf) padding; separable row/col max.
        # The -inf rim (p=2) is shared by the whole SPPF cascade.
        p = POOL_PAD
        Hp = H + 2 * p
        pad_ref[p:p + H, p:p + W, :] = x_hwc
        rowm = pad_ref[0:Hp, 0:W, :]
        for dj in range(1, 5):
            rowm = jnp.maximum(rowm, pad_ref[0:Hp, dj:dj + W, :])
        out = rowm[0:H]
        for di in range(1, 5):
            out = jnp.maximum(out, rowm[di:di + H])
        return out

    def branch2d(v):
        return v.reshape(HW, Cq).astype(jnp.bfloat16)

    def kernel(x_ref, w1, b1, wd1, bd1, wsp1, bsp1, wsp2, bsp2,
               wd2, bd2, w5, b5, out_ref, dwpad_ref, poolpad_ref):
        # Rims are invariant across the whole grid step (interiors always overwritten).
        fill_rim(dwpad_ref, DW_PAD, 0.0)
        fill_rim(poolpad_ref, POOL_PAD, -jnp.inf)

        x = x_ref[0]                                          # (H, W, C1)
        # m[0]: Conv(c1, c1//2, k=1)
        t = conv1x1(x, w1[...], b1[...])
        # m[1]: Conv(c1//2, c1//2, k=3, p=1, g=c1//2)  (depthwise)
        t = dwconv3x3(dwpad_ref, t, wd1[...], bd1[...])
        # m[2]: SPP(c1//2, c1//2): 1x1 conv -> concat[id, p5, p9, p13] -> 1x1 conv.
        # The k=5/9/13 pools are an SPPF cascade of three 5x5 pools.
        s = conv1x1(t, wsp1[...], bsp1[...]).astype(pool_dtype)   # (H, W, Cq)
        if pack_spp:
            # Lane-aligned slices: one packed MXU dot with K = 4*Cq.
            p5 = maxpool5(poolpad_ref, s)
            p9 = maxpool5(poolpad_ref, p5)
            p13 = maxpool5(poolpad_ref, p9)
            cat = jnp.concatenate([branch2d(v) for v in (s, p5, p9, p13)], axis=1)
            y = jnp.dot(cat, wsp2[...], preferred_element_type=jnp.float32)
        else:
            # Lane-misaligned Cq: interleave each branch's dot with the next pool
            # (only one pooled plane live; wsp2 is pre-split to (4, Cq, Ch), so no
            # in-kernel sublane slicing of the weight).
            # TODO(synk): benchmark the unaligned-lane packed concat for Cq in [8,128)
            # (e.g. c1=256 -> Cq=64) — it should still win on the v6e/v7x MXU fill.
            y = jnp.dot(branch2d(s), wsp2[0], preferred_element_type=jnp.float32)
            pcur = maxpool5(poolpad_ref, s)                        # effective k = 5
            y = y + jnp.dot(branch2d(pcur), wsp2[1], preferred_element_type=jnp.float32)
            pcur = maxpool5(poolpad_ref, pcur)                     # effective k = 9
            y = y + jnp.dot(branch2d(pcur), wsp2[2], preferred_element_type=jnp.float32)
            pcur = maxpool5(poolpad_ref, pcur)                     # effective k = 13
            y = y + jnp.dot(branch2d(pcur), wsp2[3], preferred_element_type=jnp.float32)
        t = _lrelu(y + bsp2[...]).reshape(H, W, Ch)
        # m[3]: depthwise 3x3
        t = dwconv3x3(dwpad_ref, t, wd2[...], bd2[...])
        # m[4]: Conv(c1//2, c2, k=1)
        o = conv1x1(t, w5[...], b5[...])
        out_ref[0] = o.astype(out_ref.dtype)

    return kernel


def _pool_dtype():
    # bf16 pooling halves VPU/vreg/scratch traffic and is bit-identical to
    # f32-pool-then-cast (cast is monotone, max picks one input), but only
    # v6e / v7x have a bf16 VPU — keep f32 on v5e and unknown chips.
    try:
        kind = jax.devices()[0].device_kind.lower()
    except Exception:
        kind = ""
    return jnp.bfloat16 if ("v6" in kind or "v7" in kind) else jnp.float32


def sppblockdw_forward(x_nchw, params):
    # NCHW (PyTorch) -> NHWC for the kernel.  (See TODO(synk) in the header about
    # removing these two whole-tensor HBM passes.)
    x = jnp.transpose(x_nchw, (0, 2, 3, 1)).astype(jnp.float32)
    N, H, W, C1 = x.shape
    Ch = params['w1'].shape[1]
    Cq = params['wsp1'].shape[1]
    C2 = params['w5'].shape[1]

    pool_dtype = _pool_dtype()
    pack_spp = (Cq % LANE == 0)          # packed cv2 dot when slices are lane-aligned

    kernel = _make_kernel(H, W, C1, Ch, Cq, C2, pool_dtype, pack_spp)

    bf16 = jnp.bfloat16
    wsp2 = params['wsp2'].astype(bf16)                     # (4*Cq, Ch)
    if not pack_spp:
        wsp2 = wsp2.reshape(4, Cq, Ch)                     # per-branch weights
    weights = [
        params['w1'].astype(bf16), params['b1'],           # 1x1 conv (bf16 MXU weights)
        params['wd1'], params['bd1'],                      # depthwise taps stay f32 (VPU)
        params['wsp1'].astype(bf16), params['bsp1'],
        wsp2, params['bsp2'],
        params['wd2'], params['bd2'],
        params['w5'].astype(bf16), params['b5'],
    ]

    def full_spec(a):
        return pl.BlockSpec(a.shape, lambda n, nd=a.ndim: (0,) * nd)

    scratch_shapes = [
        pltpu.VMEM((H + 2 * DW_PAD, W + 2 * DW_PAD, Ch), jnp.float32),   # dw-conv pad
        pltpu.VMEM((H + 2 * POOL_PAD, W + 2 * POOL_PAD, Cq), pool_dtype),  # pool pad
    ]

    def _nbytes(shape, dtype):
        n = 1
        for d in shape:
            n *= int(d)
        return n * jnp.dtype(dtype).itemsize

    est = (2 * _nbytes((1, H, W, C1), jnp.float32)          # double-buffered input block
           + 2 * _nbytes((1, H, W, C2), jnp.float32)        # double-buffered output block
           + 2 * sum(_nbytes(a.shape, a.dtype) for a in weights)
           + _nbytes((H + 2 * DW_PAD, W + 2 * DW_PAD, Ch), jnp.float32)
           + _nbytes((H + 2 * POOL_PAD, W + 2 * POOL_PAD, Cq), pool_dtype)
           + 10 * H * W * max(C1, Ch, C2, 4 * Cq) * 4)      # live intermediates + headroom
    vmem_limit = int(min(max(est, 32 * 1024 * 1024), 64 * 1024 * 1024))

    grid_spec = pltpu.PrefetchScalarGridSpec(
        num_scalar_prefetch=0,
        grid=(N,),
        in_specs=[pl.BlockSpec((1, H, W, C1), lambda n: (n, 0, 0, 0))]
                 + [full_spec(a) for a in weights],
        out_specs=pl.BlockSpec((1, H, W, C2), lambda n: (n, 0, 0, 0)),
        scratch_shapes=scratch_shapes,
    )
    out = pl.pallas_call(
        kernel,
        out_shape=jax.ShapeDtypeStruct((N, H, W, C2), jnp.float32),
        grid_spec=grid_spec,
        compiler_params=pltpu.CompilerParams(
            dimension_semantics=("parallel",),              # batch images are independent
            vmem_limit_bytes=vmem_limit),
    )(x, *weights)
    return jnp.transpose(out, (0, 3, 1, 2))                 # NHWC -> NCHW


# ------------------- deterministic synthetic parameters -------------------

def _conv_bn_params(key, cout, cin_per_group, k):
    """Conv2d(bias=False) weight + BatchNorm2d (eval) folded -> (w_eff, b_eff)."""
    k0, k1, k2, k3, k4 = jax.random.split(key, 5)
    w = 0.2 * jax.random.normal(k0, (cout, cin_per_group, k, k), jnp.float32)
    gamma = 1.0 + 0.1 * jax.random.normal(k1, (cout,), jnp.float32)
    beta = 0.1 * jax.random.normal(k2, (cout,), jnp.float32)
    mean = 0.1 * jax.random.normal(k3, (cout,), jnp.float32)
    var = 1.0 + 0.1 * jnp.abs(jax.random.normal(k4, (cout,), jnp.float32))
    s = gamma * jax.lax.rsqrt(var + 1e-5)
    return w * s[:, None, None, None], beta - mean * s


def make_params(key, c1, c2, e=0.5):
    ch = c1 // 2
    cq = int(ch * e)
    keys = jax.random.split(key, 6)
    p = {}
    w, b = _conv_bn_params(keys[0], ch, c1, 1)         # Conv(c1, c1//2, 1)
    p['w1'], p['b1'] = w[:, :, 0, 0].T, b.reshape(1, ch)
    w, b = _conv_bn_params(keys[1], ch, 1, 3)          # depthwise 3x3
    p['wd1'], p['bd1'] = w[:, 0].reshape(ch, 9).T, b.reshape(1, ch)
    w, b = _conv_bn_params(keys[2], cq, ch, 1)         # SPP.cv1
    p['wsp1'], p['bsp1'] = w[:, :, 0, 0].T, b.reshape(1, cq)
    w, b = _conv_bn_params(keys[3], ch, 4 * cq, 1)     # SPP.cv2
    p['wsp2'], p['bsp2'] = w[:, :, 0, 0].T, b.reshape(1, ch)
    w, b = _conv_bn_params(keys[4], ch, 1, 3)          # depthwise 3x3
    p['wd2'], p['bd2'] = w[:, 0].reshape(ch, 9).T, b.reshape(1, ch)
    w, b = _conv_bn_params(keys[5], c2, ch, 1)         # Conv(c1//2, c2, 1)
    p['w5'], p['b5'] = w[:, :, 0, 0].T, b.reshape(1, c2)
    return p


# ------------------------- pure-JAX reference ------------------------------

def ref_forward(x_nchw, p):
    x = jnp.transpose(x_nchw, (0, 2, 3, 1)).astype(jnp.float32)

    def c1x1(x, w, b):
        y = jnp.einsum('nhwc,cd->nhwd', x, w,
                       precision=jax.lax.Precision.HIGHEST)
        return _lrelu(y + b.reshape(-1))

    def dw(x, wd, b):
        C = x.shape[-1]
        kern = wd.reshape(3, 3, C)[:, :, None, :]           # HWIO
        y = jax.lax.conv_general_dilated(
            x, kern, window_strides=(1, 1), padding=((1, 1), (1, 1)),
            dimension_numbers=('NHWC', 'HWIO', 'NHWC'),
            feature_group_count=C,
            precision=jax.lax.Precision.HIGHEST)
        return _lrelu(y + b.reshape(-1))

    def mp(x, k):
        pad = k // 2
        return jax.lax.reduce_window(
            x, -jnp.inf, jax.lax.max, (1, k, k, 1), (1, 1, 1, 1),
            ((0, 0), (pad, pad), (pad, pad), (0, 0)))

    t = c1x1(x, p['w1'], p['b1'])
    t = dw(t, p['wd1'], p['bd1'])
    s = c1x1(t, p['wsp1'], p['bsp1'])
    cat = jnp.concatenate([s] + [mp(s, k) for k in POOL_KS], axis=-1)
    t = c1x1(cat, p['wsp2'], p['bsp2'])
    t = dw(t, p['wd2'], p['bd2'])
    o = c1x1(t, p['w5'], p['b5'])
    return jnp.transpose(o, (0, 3, 1, 2))


if __name__ == "__main__":
    key = jax.random.PRNGKey(0)
    kx, kp = jax.random.split(key)
    N, C1, C2, H, W = 2, 8, 8, 16, 16
    x = jax.random.normal(kx, (N, C1, H, W), jnp.float32)    # NCHW, like PyTorch
    params = make_params(kp, C1, C2)

    out = jax.block_until_ready(sppblockdw_forward(x, params))
    assert out.shape == (N, C2, H, W), out.shape

    ref = jax.block_until_ready(ref_forward(x, params))
    err = float(jnp.max(jnp.abs(out - ref)))
    tol = 5e-2 * (1.0 + float(jnp.max(jnp.abs(ref))))        # bf16-MXU-aware tolerance
    assert err < tol, f"mismatch vs reference: max abs err {err} (tol {tol})"
    print("KERNEL_OK")
</pallas_src>

<mosaic_0001>
module attributes {stable_mosaic.version = 11 : i64} {
  func.func @kernel(%arg0: i32, %arg1: memref<1x16x16x8xf32, #tpu.memory_space<vmem>>, %arg2: memref<8x4xbf16, #tpu.memory_space<vmem>>, %arg3: memref<1x4xf32, #tpu.memory_space<vmem>>, %arg4: memref<9x4xf32, #tpu.memory_space<vmem>>, %arg5: memref<1x4xf32, #tpu.memory_space<vmem>>, %arg6: memref<4x2xbf16, #tpu.memory_space<vmem>>, %arg7: memref<1x2xf32, #tpu.memory_space<vmem>>, %arg8: memref<4x2x4xbf16, #tpu.memory_space<vmem>>, %arg9: memref<1x4xf32, #tpu.memory_space<vmem>>, %arg10: memref<9x4xf32, #tpu.memory_space<vmem>>, %arg11: memref<1x4xf32, #tpu.memory_space<vmem>>, %arg12: memref<4x8xbf16, #tpu.memory_space<vmem>>, %arg13: memref<1x8xf32, #tpu.memory_space<vmem>>, %arg14: memref<1x16x16x8xf32, #tpu.memory_space<vmem>>, %arg15: memref<18x18x4xf32, #tpu.memory_space<vmem>>, %arg16: memref<20x20x2xf32, #tpu.memory_space<vmem>>) attributes {dimension_semantics = [#tpu.dimension_semantics<parallel>], iteration_bounds = array<i64: 2>, scalar_prefetch = 0 : i64, scratch_operands = 2 : i64, tpu.core_type = #tpu.core_type<tc>, window_params = [{transform_indices = @transform_0, window_bounds = array<i64: 1, 16, 16, 8>}, {pipeline_mode = #tpu.pipeline_mode<synchronous>, transform_indices = @transform_1, window_bounds = array<i64: 8, 4>}, {pipeline_mode = #tpu.pipeline_mode<synchronous>, transform_indices = @transform_2, window_bounds = array<i64: 1, 4>}, {pipeline_mode = #tpu.pipeline_mode<synchronous>, transform_indices = @transform_3, window_bounds = array<i64: 9, 4>}, {pipeline_mode = #tpu.pipeline_mode<synchronous>, transform_indices = @transform_4, window_bounds = array<i64: 1, 4>}, {pipeline_mode = #tpu.pipeline_mode<synchronous>, transform_indices = @transform_5, window_bounds = array<i64: 4, 2>}, {pipeline_mode = #tpu.pipeline_mode<synchronous>, transform_indices = @transform_6, window_bounds = array<i64: 1, 2>}, {pipeline_mode = #tpu.pipeline_mode<synchronous>, transform_indices = @transform_7, window_bounds = array<i64: 4, 2, 4>}, {pipeline_mode = #tpu.pipeline_mode<synchronous>, transform_indices = @transform_8, window_bounds = array<i64: 1, 4>}, {pipeline_mode = #tpu.pipeline_mode<synchronous>, transform_indices = @transform_9, window_bounds = array<i64: 9, 4>}, {pipeline_mode = #tpu.pipeline_mode<synchronous>, transform_indices = @transform_10, window_bounds = array<i64: 1, 4>}, {pipeline_mode = #tpu.pipeline_mode<synchronous>, transform_indices = @transform_11, window_bounds = array<i64: 4, 8>}, {pipeline_mode = #tpu.pipeline_mode<synchronous>, transform_indices = @transform_12, window_bounds = array<i64: 1, 8>}, {transform_indices = @transform_13, window_bounds = array<i64: 1, 16, 16, 8>}]} {
    %cst = arith.constant 0.000000e+00 : f32
    %0 = vector.broadcast %cst : f32 to vector<1x18x4xf32>
    %c0 = arith.constant 0 : index
    %c0_0 = arith.constant 0 : index
    %c0_1 = arith.constant 0 : index
    %1 = vector.load %arg15[%c0, %c0_0, %c0_1] : memref<18x18x4xf32, #tpu.memory_space<vmem>>, vector<1x18x4xf32>
    tpu.vector_store %arg15[%c0, %c0_0, %c0_1], %0 {strides = array<i32>} : memref<18x18x4xf32, #tpu.memory_space<vmem>>, vector<1x18x4xf32>,
    %c17 = arith.constant 17 : index
    %c0_2 = arith.constant 0 : index
    %c0_3 = arith.constant 0 : index
    %2 = vector.load %arg15[%c17, %c0_2, %c0_3] : memref<18x18x4xf32, #tpu.memory_space<vmem>>, vector<1x18x4xf32>
    tpu.vector_store %arg15[%c17, %c0_2, %c0_3], %0 {strides = array<i32>} : memref<18x18x4xf32, #tpu.memory_space<vmem>>, vector<1x18x4xf32>,
    %cst_4 = arith.constant 0.000000e+00 : f32
    %3 = vector.broadcast %cst_4 : f32 to vector<16x1x4xf32>
    %c1 = arith.constant 1 : index
    %c0_5 = arith.constant 0 : index
    %c0_6 = arith.constant 0 : index
    %4 = vector.load %arg15[%c1, %c0_5, %c0_6] : memref<18x18x4xf32, #tpu.memory_space<vmem>>, vector<16x1x4xf32>
    tpu.vector_store %arg15[%c1, %c0_5, %c0_6], %3 {strides = array<i32>} : memref<18x18x4xf32, #tpu.memory_space<vmem>>, vector<16x1x4xf32>,
    %c1_7 = arith.constant 1 : index
    %c17_8 = arith.constant 17 : index
    %c0_9 = arith.constant 0 : index
    %5 = vector.load %arg15[%c1_7, %c17_8, %c0_9] : memref<18x18x4xf32, #tpu.memory_space<vmem>>, vector<16x1x4xf32>
    tpu.vector_store %arg15[%c1_7, %c17_8, %c0_9], %3 {strides = array<i32>} : memref<18x18x4xf32, #tpu.memory_space<vmem>>, vector<16x1x4xf32>,
    %cst_10 = arith.constant 0xFF800000 : f32
    %6 = vector.broadcast %cst_10 : f32 to vector<2x20x2xf32>
    %c0_11 = arith.constant 0 : index
    %c0_12 = arith.constant 0 : index
    %c0_13 = arith.constant 0 : index
    %7 = vector.load %arg16[%c0_11, %c0_12, %c0_13] : memref<20x20x2xf32, #tpu.memory_space<vmem>>, vector<2x20x2xf32>
    tpu.vector_store %arg16[%c0_11, %c0_12, %c0_13], %6 {strides = array<i32>} : memref<20x20x2xf32, #tpu.memory_space<vmem>>, vector<2x20x2xf32>,
    %c18 = arith.constant 18 : index
    %c0_14 = arith.constant 0 : index
    %c0_15 = arith.constant 0 : index
    %8 = vector.load %arg16[%c18, %c0_14, %c0_15] : memref<20x20x2xf32, #tpu.memory_space<vmem>>, vector<2x20x2xf32>
    tpu.vector_store %arg16[%c18, %c0_14, %c0_15], %6 {strides = array<i32>} : memref<20x20x2xf32, #tpu.memory_space<vmem>>, vector<2x20x2xf32>,
    %cst_16 = arith.constant 0xFF800000 : f32
    %9 = vector.broadcast %cst_16 : f32 to vector<16x2x2xf32>
    %c2 = arith.constant 2 : index
    %c0_17 = arith.constant 0 : index
    %c0_18 = arith.constant 0 : index
    %10 = vector.load %arg16[%c2, %c0_17, %c0_18] : memref<20x20x2xf32, #tpu.memory_space<vmem>>, vector<16x2x2xf32>
    tpu.vector_store %arg16[%c2, %c0_17, %c0_18], %9 {strides = array<i32>} : memref<20x20x2xf32, #tpu.memory_space<vmem>>, vector<16x2x2xf32>,
    %c2_19 = arith.constant 2 : index
    %c18_20 = arith.constant 18 : index
    %c0_21 = arith.constant 0 : index
    %11 = vector.load %arg16[%c2_19, %c18_20, %c0_21] : memref<20x20x2xf32, #tpu.memory_space<vmem>>, vector<16x2x2xf32>
    tpu.vector_store %arg16[%c2_19, %c18_20, %c0_21], %9 {strides = array<i32>} : memref<20x20x2xf32, #tpu.memory_space<vmem>>, vector<16x2x2xf32>,
    %c0_22 = arith.constant 0 : index
    %c0_23 = arith.constant 0 : index
    %c0_24 = arith.constant 0 : index
    %c0_25 = arith.constant 0 : index
    %12 = vector.load %arg1[%c0_22, %c0_23, %c0_24, %c0_25] : memref<1x16x16x8xf32, #tpu.memory_space<vmem>>, vector<1x16x16x8xf32>
    %13 = vector.shape_cast %12 : vector<1x16x16x8xf32> to vector<16x16x8xf32>
    %c0_26 = arith.constant 0 : index
    %c0_27 = arith.constant 0 : index
    %14 = vector.load %arg2[%c0_26, %c0_27] : memref<8x4xbf16, #tpu.memory_space<vmem>>, vector<8x4xbf16>
    %c0_28 = arith.constant 0 : index
    %c0_29 = arith.constant 0 : index
    %15 = vector.load %arg3[%c0_28, %c0_29] : memref<1x4xf32, #tpu.memory_space<vmem>>, vector<1x4xf32>
    %16 = vector.shape_cast %13 : vector<16x16x8xf32> to vector<256x8xf32>
    %17 = arith.truncf %16 : vector<256x8xf32> to vector<256x8xbf16>
    %cst_30 = arith.constant dense<0.000000e+00> : vector<256x4xf32>
    %18 = tpu.matmul %17, %14, %cst_30 {dimension_numbers = #tpu.dot_dimension_numbers<[1], [0], [0], [1], [0, 0, 1, 1], [], []>} : vector<256x8xbf16>, vector<8x4xbf16>, vector<256x4xf32> -> vector<256x4xf32>
    %19 = vector.broadcast %15 : vector<1x4xf32> to vector<256x4xf32>
    %20 = arith.addf %18, %19 : vector<256x4xf32>
    %cst_31 = arith.constant 1.000000e-01 : f32
    %21 = vector.broadcast %cst_31 : f32 to vector<256x4xf32>
    %22 = arith.mulf %21, %20 : vector<256x4xf32>
    %23 = arith.maximumf %20, %22 : vector<256x4xf32>
    %24 = vector.shape_cast %23 : vector<256x4xf32> to vector<16x16x4xf32>
    %c0_32 = arith.constant 0 : index
    %c0_33 = arith.constant 0 : index
    %25 = vector.load %arg4[%c0_32, %c0_33] : memref<9x4xf32, #tpu.memory_space<vmem>>, vector<9x4xf32>
    %c0_34 = arith.constant 0 : index
    %c0_35 = arith.constant 0 : index
    %26 = vector.load %arg5[%c0_34, %c0_35] : memref<1x4xf32, #tpu.memory_space<vmem>>, vector<1x4xf32>
    %c1_36 = arith.constant 1 : index
    %c1_37 = arith.constant 1 : index
    %c0_38 = arith.constant 0 : index
    %27 = vector.load %arg15[%c1_36, %c1_37, %c0_38] : memref<18x18x4xf32, #tpu.memory_space<vmem>>, vector<16x16x4xf32>
    tpu.vector_store %arg15[%c1_36, %c1_37, %c0_38], %24 {strides = array<i32>} : memref<18x18x4xf32, #tpu.memory_space<vmem>>, vector<16x16x4xf32>,
    %cst_39 = arith.constant 0.000000e+00 : f32
    %28 = vector.broadcast %cst_39 : f32 to vector<16x16x4xf32>
    %c0_40 = arith.constant 0 : index
    %c0_41 = arith.constant 0 : index
    %c0_42 = arith.constant 0 : index
    %29 = vector.load %arg15[%c0_40, %c0_41, %c0_42] : memref<18x18x4xf32, #tpu.memory_space<vmem>>, vector<16x16x4xf32>
    %30 = vector.extract_strided_slice %25 {offsets = [0, 0], sizes = [1, 4], strides = [1, 1]} : vector<9x4xf32> to vector<1x4xf32>
    %31 = vector.shape_cast %30 : vector<1x4xf32> to vector<1x1x4xf32>
    %32 = vector.broadcast %31 : vector<1x1x4xf32> to vector<16x16x4xf32>
    %33 = arith.mulf %29, %32 : vector<16x16x4xf32>
    %34 = arith.addf %28, %33 : vector<16x16x4xf32>
    %c0_43 = arith.constant 0 : index
    %c1_44 = arith.constant 1 : index
    %c0_45 = arith.constant 0 : index
    %35 = vector.load %arg15[%c0_43, %c1_44, %c0_45] : memref<18x18x4xf32, #tpu.memory_space<vmem>>, vector<16x16x4xf32>
    %36 = vector.extract_strided_slice %25 {offsets = [1, 0], sizes = [1, 4], strides = [1, 1]} : vector<9x4xf32> to vector<1x4xf32>
    %37 = vector.shape_cast %36 : vector<1x4xf32> to vector<1x1x4xf32>
    %38 = vector.broadcast %37 : vector<1x1x4xf32> to vector<16x16x4xf32>
    %39 = arith.mulf %35, %38 : vector<16x16x4xf32>
    %40 = arith.addf %34, %39 : vector<16x16x4xf32>
    %c0_46 = arith.constant 0 : index
    %c2_47 = arith.constant 2 : index
    %c0_48 = arith.constant 0 : index
    %41 = vector.load %arg15[%c0_46, %c2_47, %c0_48] : memref<18x18x4xf32, #tpu.memory_space<vmem>>, vector<16x16x4xf32>
    %42 = vector.extract_strided_slice %25 {offsets = [2, 0], sizes = [1, 4], strides = [1, 1]} : vector<9x4xf32> to vector<1x4xf32>
    %43 = vector.shape_cast %42 : vector<1x4xf32> to vector<1x1x4xf32>
    %44 = vector.broadcast %43 : vector<1x1x4xf32> to vector<16x16x4xf32>
    %45 = arith.mulf %41, %44 : vector<16x16x4xf32>
    %46 = arith.addf %40, %45 : vector<16x16x4xf32>
    %c1_49 = arith.constant 1 : index
    %c0_50 = arith.constant 0 : index
    %c0_51 = arith.constant 0 : index
    %47 = vector.load %arg15[%c1_49, %c0_50, %c0_51] : memref<18x18x4xf32, #tpu.memory_space<vmem>>, vector<16x16x4xf32>
    %48 = vector.extract_strided_slice %25 {offsets = [3, 0], sizes = [1, 4], strides = [1, 1]} : vector<9x4xf32> to vector<1x4xf32>
    %49 = vector.shape_cast %48 : vector<1x4xf32> to vector<1x1x4xf32>
    %50 = vector.broadcast %49 : vector<1x1x4xf32> to vector<16x16x4xf32>
    %51 = arith.mulf %47, %50 : vector<16x16x4xf32>
    %52 = arith.addf %46, %51 : vector<16x16x4xf32>
    %c1_52 = arith.constant 1 : index
    %c1_53 = arith.constant 1 : index
    %c0_54 = arith.constant 0 : index
    %53 = vector.load %arg15[%c1_52, %c1_53, %c0_54] : memref<18x18x4xf32, #tpu.memory_space<vmem>>, vector<16x16x4xf32>
    %54 = vector.extract_strided_slice %25 {offsets = [4, 0], sizes = [1, 4], strides = [1, 1]} : vector<9x4xf32> to vector<1x4xf32>
    %55 = vector.shape_cast %54 : vector<1x4xf32> to vector<1x1x4xf32>
    %56 = vector.broadcast %55 : vector<1x1x4xf32> to vector<16x16x4xf32>
    %57 = arith.mulf %53, %56 : vector<16x16x4xf32>
    %58 = arith.addf %52, %57 : vector<16x16x4xf32>
    %c1_55 = arith.constant 1 : index
    %c2_56 = arith.constant 2 : index
    %c0_57 = arith.constant 0 : index
    %59 = vector.load %arg15[%c1_55, %c2_56, %c0_57] : memref<18x18x4xf32, #tpu.memory_space<vmem>>, vector<16x16x4xf32>
    %60 = vector.extract_strided_slice %25 {offsets = [5, 0], sizes = [1, 4], strides = [1, 1]} : vector<9x4xf32> to vector<1x4xf32>
    %61 = vector.shape_cast %60 : vector<1x4xf32> to vector<1x1x4xf32>
    %62 = vector.broadcast %61 : vector<1x1x4xf32> to vector<16x16x4xf32>
    %63 = arith.mulf %59, %62 : vector<16x16x4xf32>
    %64 = arith.addf %58, %63 : vector<16x16x4xf32>
    %c2_58 = arith.constant 2 : index
    %c0_59 = arith.constant 0 : index
    %c0_60 = arith.constant 0 : index
    %65 = vector.load %arg15[%c2_58, %c0_59, %c0_60] : memref<18x18x4xf32, #tpu.memory_space<vmem>>, vector<16x16x4xf32>
    %66 = vector.extract_strided_slice %25 {offsets = [6, 0], sizes = [1, 4], strides = [1, 1]} : vector<9x4xf32> to vector<1x4xf32>
    %67 = vector.shape_cast %66 : vector<1x4xf32> to vector<1x1x4xf32>
    %68 = vector.broadcast %67 : vector<1x1x4xf32> to vector<16x16x4xf32>
    %69 = arith.mulf %65, %68 : vector<16x16x4xf32>
    %70 = arith.addf %64, %69 : vector<16x16x4xf32>
    %c2_61 = arith.constant 2 : index
    %c1_62 = arith.constant 1 : index
    %c0_63 = arith.constant 0 : index
    %71 = vector.load %arg15[%c2_61, %c1_62, %c0_63] : memref<18x18x4xf32, #tpu.memory_space<vmem>>, vector<16x16x4xf32>
    %72 = vector.extract_strided_slice %25 {offsets = [7, 0], sizes = [1, 4], strides = [1, 1]} : vector<9x4xf32> to vector<1x4xf32>
    %73 = vector.shape_cast %72 : vector<1x4xf32> to vector<1x1x4xf32>
    %74 = vector.broadcast %73 : vector<1x1x4xf32> to vector<16x16x4xf32>
    %75 = arith.mulf %71, %74 : vector<16x16x4xf32>
    %76 = arith.addf %70, %75 : vector<16x16x4xf32>
    %c2_64 = arith.constant 2 : index
    %c2_65 = arith.constant 2 : index
    %c0_66 = arith.constant 0 : index
    %77 = vector.load %arg15[%c2_64, %c2_65, %c0_66] : memref<18x18x4xf32, #tpu.memory_space<vmem>>, vector<16x16x4xf32>
    %78 = vector.extract_strided_slice %25 {offsets = [8, 0], sizes = [1, 4], strides = [1, 1]} : vector<9x4xf32> to vector<1x4xf32>
    %79 = vector.shape_cast %78 : vector<1x4xf32> to vector<1x1x4xf32>
    %80 = vector.broadcast %79 : vector<1x1x4xf32> to vector<16x16x4xf32>
    %81 = arith.mulf %77, %80 : vector<16x16x4xf32>
    %82 = arith.addf %76, %81 : vector<16x16x4xf32>
    %83 = vector.shape_cast %26 : vector<1x4xf32> to vector<1x1x4xf32>
    %84 = vector.broadcast %83 : vector<1x1x4xf32> to vector<16x16x4xf32>
    %85 = arith.addf %82, %84 : vector<16x16x4xf32>
    %cst_67 = arith.constant 1.000000e-01 : f32
    %86 = vector.broadcast %cst_67 : f32 to vector<16x16x4xf32>
    %87 = arith.mulf %86, %85 : vector<16x16x4xf32>
    %88 = arith.maximumf %85, %87 : vector<16x16x4xf32>
    %c0_68 = arith.constant 0 : index
    %c0_69 = arith.constant 0 : index
    %89 = vector.load %arg6[%c0_68, %c0_69] : memref<4x2xbf16, #tpu.memory_space<vmem>>, vector<4x2xbf16>
    %c0_70 = arith.constant 0 : index
    %c0_71 = arith.constant 0 : index
    %90 = vector.load %arg7[%c0_70, %c0_71] : memref<1x2xf32, #tpu.memory_space<vmem>>, vector<1x2xf32>
    %91 = vector.shape_cast %88 : vector<16x16x4xf32> to vector<256x4xf32>
    %92 = arith.truncf %91 : vector<256x4xf32> to vector<256x4xbf16>
    %cst_72 = arith.constant dense<0.000000e+00> : vector<256x2xf32>
    %93 = tpu.matmul %92, %89, %cst_72 {dimension_numbers = #tpu.dot_dimension_numbers<[1], [0], [0], [1], [0, 0, 1, 1], [], []>} : vector<256x4xbf16>, vector<4x2xbf16>, vector<256x2xf32> -> vector<256x2xf32>
    %94 = vector.broadcast %90 : vector<1x2xf32> to vector<256x2xf32>
    %95 = arith.addf %93, %94 : vector<256x2xf32>
    %cst_73 = arith.constant 1.000000e-01 : f32
    %96 = vector.broadcast %cst_73 : f32 to vector<256x2xf32>
    %97 = arith.mulf %96, %95 : vector<256x2xf32>
    %98 = arith.maximumf %95, %97 : vector<256x2xf32>
    %99 = vector.shape_cast %98 : vector<256x2xf32> to vector<16x16x2xf32>
    %100 = vector.shape_cast %99 : vector<16x16x2xf32> to vector<256x2xf32>
    %101 = arith.truncf %100 : vector<256x2xf32> to vector<256x2xbf16>
    %c0_74 = arith.constant 0 : index
    %c0_75 = arith.constant 0 : index
    %c0_76 = arith.constant 0 : index
    %102 = vector.load %arg8[%c0_74, %c0_75, %c0_76] : memref<4x2x4xbf16, #tpu.memory_space<vmem>>, vector<1x2x4xbf16>
    %103 = vector.shape_cast %102 : vector<1x2x4xbf16> to vector<2x4xbf16>
    %cst_77 = arith.constant dense<0.000000e+00> : vector<256x4xf32>
    %104 = tpu.matmul %101, %103, %cst_77 {dimension_numbers = #tpu.dot_dimension_numbers<[1], [0], [0], [1], [0, 0, 1, 1], [], []>} : vector<256x2xbf16>, vector<2x4xbf16>, vector<256x4xf32> -> vector<256x4xf32>
    %c2_78 = arith.constant 2 : index
    %c2_79 = arith.constant 2 : index
    %c0_80 = arith.constant 0 : index
    %105 = vector.load %arg16[%c2_78, %c2_79, %c0_80] : memref<20x20x2xf32, #tpu.memory_space<vmem>>, vector<16x16x2xf32>
    tpu.vector_store %arg16[%c2_78, %c2_79, %c0_80], %99 {strides = array<i32>} : memref<20x20x2xf32, #tpu.memory_space<vmem>>, vector<16x16x2xf32>,
    %c0_81 = arith.constant 0 : index
    %c0_82 = arith.constant 0 : index
    %c0_83 = arith.constant 0 : index
    %106 = vector.load %arg16[%c0_81, %c0_82, %c0_83] : memref<20x20x2xf32, #tpu.memory_space<vmem>>, vector<20x16x2xf32>
    %c0_84 = arith.constant 0 : index
    %c1_85 = arith.constant 1 : index
    %c0_86 = arith.constant 0 : index
    %107 = vector.load %arg16[%c0_84, %c1_85, %c0_86] : memref<20x20x2xf32, #tpu.memory_space<vmem>>, vector<20x16x2xf32>
    %108 = arith.maximumf %106, %107 : vector<20x16x2xf32>
    %c0_87 = arith.constant 0 : index
    %c2_88 = arith.constant 2 : index
    %c0_89 = arith.constant 0 : index
    %109 = vector.load %arg16[%c0_87, %c2_88, %c0_89] : memref<20x20x2xf32, #tpu.memory_space<vmem>>, vector<20x16x2xf32>
    %110 = arith.maximumf %108, %109 : vector<20x16x2xf32>
    %c0_90 = arith.constant 0 : index
    %c3 = arith.constant 3 : index
    %c0_91 = arith.constant 0 : index
    %111 = vector.load %arg16[%c0_90, %c3, %c0_91] : memref<20x20x2xf32, #tpu.memory_space<vmem>>, vector<20x16x2xf32>
    %112 = arith.maximumf %110, %111 : vector<20x16x2xf32>
    %c0_92 = arith.constant 0 : index
    %c4 = arith.constant 4 : index
    %c0_93 = arith.constant 0 : index
    %113 = vector.load %arg16[%c0_92, %c4, %c0_93] : memref<20x20x2xf32, #tpu.memory_space<vmem>>, vector<20x16x2xf32>
    %114 = arith.maximumf %112, %113 : vector<20x16x2xf32>
    %115 = vector.extract_strided_slice %114 {offsets = [0, 0, 0], sizes = [16, 16, 2], strides = [1, 1, 1]} : vector<20x16x2xf32> to vector<16x16x2xf32>
    %116 = vector.extract_strided_slice %114 {offsets = [1, 0, 0], sizes = [16, 16, 2], strides = [1, 1, 1]} : vector<20x16x2xf32> to vector<16x16x2xf32>
    %117 = arith.maximumf %115, %116 : vector<16x16x2xf32>
    %118 = vector.extract_strided_slice %114 {offsets = [2, 0, 0], sizes = [16, 16, 2], strides = [1, 1, 1]} : vector<20x16x2xf32> to vector<16x16x2xf32>
    %119 = arith.maximumf %117, %118 : vector<16x16x2xf32>
    %120 = vector.extract_strided_slice %114 {offsets = [3, 0, 0], sizes = [16, 16, 2], strides = [1, 1, 1]} : vector<20x16x2xf32> to vector<16x16x2xf32>
    %121 = arith.maximumf %119, %120 : vector<16x16x2xf32>
    %122 = vector.extract_strided_slice %114 {offsets = [4, 0, 0], sizes = [16, 16, 2], strides = [1, 1, 1]} : vector<20x16x2xf32> to vector<16x16x2xf32>
    %123 = arith.maximumf %121, %122 : vector<16x16x2xf32>
    %124 = vector.shape_cast %123 : vector<16x16x2xf32> to vector<256x2xf32>
    %125 = arith.truncf %124 : vector<256x2xf32> to vector<256x2xbf16>
    %c1_94 = arith.constant 1 : index
    %c0_95 = arith.constant 0 : index
    %c0_96 = arith.constant 0 : index
    %126 = vector.load %arg8[%c1_94, %c0_95, %c0_96] : memref<4x2x4xbf16, #tpu.memory_space<vmem>>, vector<1x2x4xbf16>
    %127 = vector.shape_cast %126 : vector<1x2x4xbf16> to vector<2x4xbf16>
    %cst_97 = arith.constant dense<0.000000e+00> : vector<256x4xf32>
    %128 = tpu.matmul %125, %127, %cst_97 {dimension_numbers = #tpu.dot_dimension_numbers<[1], [0], [0], [1], [0, 0, 1, 1], [], []>} : vector<256x2xbf16>, vector<2x4xbf16>, vector<256x4xf32> -> vector<256x4xf32>
    %129 = arith.addf %104, %128 : vector<256x4xf32>
    %c2_98 = arith.constant 2 : index
    %c2_99 = arith.constant 2 : index
    %c0_100 = arith.constant 0 : index
    %130 = vector.load %arg16[%c2_98, %c2_99, %c0_100] : memref<20x20x2xf32, #tpu.memory_space<vmem>>, vector<16x16x2xf32>
    tpu.vector_store %arg16[%c2_98, %c2_99, %c0_100], %123 {strides = array<i32>} : memref<20x20x2xf32, #tpu.memory_space<vmem>>, vector<16x16x2xf32>,
    %c0_101 = arith.constant 0 : index
    %c0_102 = arith.constant 0 : index
    %c0_103 = arith.constant 0 : index
    %131 = vector.load %arg16[%c0_101, %c0_102, %c0_103] : memref<20x20x2xf32, #tpu.memory_space<vmem>>, vector<20x16x2xf32>
    %c0_104 = arith.constant 0 : index
    %c1_105 = arith.constant 1 : index
    %c0_106 = arith.constant 0 : index
    %132 = vector.load %arg16[%c0_104, %c1_105, %c0_106] : memref<20x20x2xf32, #tpu.memory_space<vmem>>, vector<20x16x2xf32>
    %133 = arith.maximumf %131, %132 : vector<20x16x2xf32>
    %c0_107 = arith.constant 0 : index
    %c2_108 = arith.constant 2 : index
    %c0_109 = arith.constant 0 : index
    %134 = vector.load %arg16[%c0_107, %c2_108, %c0_109] : memref<20x20x2xf32, #tpu.memory_space<vmem>>, vector<20x16x2xf32>
    %135 = arith.maximumf %133, %134 : vector<20x16x2xf32>
    %c0_110 = arith.constant 0 : index
    %c3_111 = arith.constant 3 : index
    %c0_112 = arith.constant 0 : index
    %136 = vector.load %arg16[%c0_110, %c3_111, %c0_112] : memref<20x20x2xf32, #tpu.memory_space<vmem>>, vector<20x16x2xf32>
    %137 = arith.maximumf %135, %136 : vector<20x16x2xf32>
    %c0_113 = arith.constant 0 : index
    %c4_114 = arith.constant 4 : index
    %c0_115 = arith.constant 0 : index
    %138 = vector.load %arg16[%c0_113, %c4_114, %c0_115] : memref<20x20x2xf32, #tpu.memory_space<vmem>>, vector<20x16x2xf32>
    %139 = arith.maximumf %137, %138 : vector<20x16x2xf32>
    %140 = vector.extract_strided_slice %139 {offsets = [0, 0, 0], sizes = [16, 16, 2], strides = [1, 1, 1]} : vector<20x16x2xf32> to vector<16x16x2xf32>
    %141 = vector.extract_strided_slice %139 {offsets = [1, 0, 0], sizes = [16, 16, 2], strides = [1, 1, 1]} : vector<20x16x2xf32> to vector<16x16x2xf32>
    %142 = arith.maximumf %140, %141 : vector<16x16x2xf32>
    %143 = vector.extract_strided_slice %139 {offsets = [2, 0, 0], sizes = [16, 16, 2], strides = [1, 1, 1]} : vector<20x16x2xf32> to vector<16x16x2xf32>
    %144 = arith.maximumf %142, %143 : vector<16x16x2xf32>
    %145 = vector.extract_strided_slice %139 {offsets = [3, 0, 0], sizes = [16, 16, 2], strides = [1, 1, 1]} : vector<20x16x2xf32> to vector<16x16x2xf32>
    %146 = arith.maximumf %144, %145 : vector<16x16x2xf32>
    %147 = vector.extract_strided_slice %139 {offsets = [4, 0, 0], sizes = [16, 16, 2], strides = [1, 1, 1]} : vector<20x16x2xf32> to vector<16x16x2xf32>
    %148 = arith.maximumf %146, %147 : vector<16x16x2xf32>
    %149 = vector.shape_cast %148 : vector<16x16x2xf32> to vector<256x2xf32>
    %150 = arith.truncf %149 : vector<256x2xf32> to vector<256x2xbf16>
    %c2_116 = arith.constant 2 : index
    %c0_117 = arith.constant 0 : index
    %c0_118 = arith.constant 0 : index
    %151 = vector.load %arg8[%c2_116, %c0_117, %c0_118] : memref<4x2x4xbf16, #tpu.memory_space<vmem>>, vector<1x2x4xbf16>
    %152 = vector.shape_cast %151 : vector<1x2x4xbf16> to vector<2x4xbf16>
    %cst_119 = arith.constant dense<0.000000e+00> : vector<256x4xf32>
    %153 = tpu.matmul %150, %152, %cst_119 {dimension_numbers = #tpu.dot_dimension_numbers<[1], [0], [0], [1], [0, 0, 1, 1], [], []>} : vector<256x2xbf16>, vector<2x4xbf16>, vector<256x4xf32> -> vector<256x4xf32>
    %154 = arith.addf %129, %153 : vector<256x4xf32>
    %c2_120 = arith.constant 2 : index
    %c2_121 = arith.constant 2 : index
    %c0_122 = arith.constant 0 : index
    %155 = vector.load %arg16[%c2_120, %c2_121, %c0_122] : memref<20x20x2xf32, #tpu.memory_space<vmem>>, vector<16x16x2xf32>
    tpu.vector_store %arg16[%c2_120, %c2_121, %c0_122], %148 {strides = array<i32>} : memref<20x20x2xf32, #tpu.memory_space<vmem>>, vector<16x16x2xf32>,
    %c0_123 = arith.constant 0 : index
    %c0_124 = arith.constant 0 : index
    %c0_125 = arith.constant 0 : index
    %156 = vector.load %arg16[%c0_123, %c0_124, %c0_125] : memref<20x20x2xf32, #tpu.memory_space<vmem>>, vector<20x16x2xf32>
    %c0_126 = arith.constant 0 : index
    %c1_127 = arith.constant 1 : index
    %c0_128 = arith.constant 0 : index
    %157 = vector.load %arg16[%c0_126, %c1_127, %c0_128] : memref<20x20x2xf32, #tpu.memory_space<vmem>>, vector<20x16x2xf32>
    %158 = arith.maximumf %156, %157 : vector<20x16x2xf32>
    %c0_129 = arith.constant 0 : index
    %c2_130 = arith.constant 2 : index
    %c0_131 = arith.constant 0 : index
    %159 = vector.load %arg16[%c0_129, %c2_130, %c0_131] : memref<20x20x2xf32, #tpu.memory_space<vmem>>, vector<20x16x2xf32>
    %160 = arith.maximumf %158, %159 : vector<20x16x2xf32>
    %c0_132 = arith.constant 0 : index
    %c3_133 = arith.constant 3 : index
    %c0_134 = arith.constant 0 : index
    %161 = vector.load %arg16[%c0_132, %c3_133, %c0_134] : memref<20x20x2xf32, #tpu.memory_space<vmem>>, vector<20x16x2xf32>
    %162 = arith.maximumf %160, %161 : vector<20x16x2xf32>
    %c0_135 = arith.constant 0 : index
    %c4_136 = arith.constant 4 : index
    %c0_137 = arith.constant 0 : index
    %163 = vector.load %arg16[%c0_135, %c4_136, %c0_137] : memref<20x20x2xf32, #tpu.memory_space<vmem>>, vector<20x16x2xf32>
    %164 = arith.maximumf %162, %163 : vector<20x16x2xf32>
    %165 = vector.extract_strided_slice %164 {offsets = [0, 0, 0], sizes = [16, 16, 2], strides = [1, 1, 1]} : vector<20x16x2xf32> to vector<16x16x2xf32>
    %166 = vector.extract_strided_slice %164 {offsets = [1, 0, 0], sizes = [16, 16, 2], strides = [1, 1, 1]} : vector<20x16x2xf32> to vector<16x16x2xf32>
    %167 = arith.maximumf %165, %166 : vector<16x16x2xf32>
    %168 = vector.extract_strided_slice %164 {offsets = [2, 0, 0], sizes = [16, 16, 2], strides = [1, 1, 1]} : vector<20x16x2xf32> to vector<16x16x2xf32>
    %169 = arith.maximumf %167, %168 : vector<16x16x2xf32>
    %170 = vector.extract_strided_slice %164 {offsets = [3, 0, 0], sizes = [16, 16, 2], strides = [1, 1, 1]} : vector<20x16x2xf32> to vector<16x16x2xf32>
    %171 = arith.maximumf %169, %170 : vector<16x16x2xf32>
    %172 = vector.extract_strided_slice %164 {offsets = [4, 0, 0], sizes = [16, 16, 2], strides = [1, 1, 1]} : vector<20x16x2xf32> to vector<16x16x2xf32>
    %173 = arith.maximumf %171, %172 : vector<16x16x2xf32>
    %174 = vector.shape_cast %173 : vector<16x16x2xf32> to vector<256x2xf32>
    %175 = arith.truncf %174 : vector<256x2xf32> to vector<256x2xbf16>
    %c3_138 = arith.constant 3 : index
    %c0_139 = arith.constant 0 : index
    %c0_140 = arith.constant 0 : index
    %176 = vector.load %arg8[%c3_138, %c0_139, %c0_140] : memref<4x2x4xbf16, #tpu.memory_space<vmem>>, vector<1x2x4xbf16>
    %177 = vector.shape_cast %176 : vector<1x2x4xbf16> to vector<2x4xbf16>
    %cst_141 = arith.constant dense<0.000000e+00> : vector<256x4xf32>
    %178 = tpu.matmul %175, %177, %cst_141 {dimension_numbers = #tpu.dot_dimension_numbers<[1], [0], [0], [1], [0, 0, 1, 1], [], []>} : vector<256x2xbf16>, vector<2x4xbf16>, vector<256x4xf32> -> vector<256x4xf32>
    %179 = arith.addf %154, %178 : vector<256x4xf32>
    %c0_142 = arith.constant 0 : index
    %c0_143 = arith.constant 0 : index
    %180 = vector.load %arg9[%c0_142, %c0_143] : memref<1x4xf32, #tpu.memory_space<vmem>>, vector<1x4xf32>
    %181 = vector.broadcast %180 : vector<1x4xf32> to vector<256x4xf32>
    %182 = arith.addf %179, %181 : vector<256x4xf32>
    %cst_144 = arith.constant 1.000000e-01 : f32
    %183 = vector.broadcast %cst_144 : f32 to vector<256x4xf32>
    %184 = arith.mulf %183, %182 : vector<256x4xf32>
    %185 = arith.maximumf %182, %184 : vector<256x4xf32>
    %186 = vector.shape_cast %185 : vector<256x4xf32> to vector<16x16x4xf32>
    %c0_145 = arith.constant 0 : index
    %c0_146 = arith.constant 0 : index
    %187 = vector.load %arg10[%c0_145, %c0_146] : memref<9x4xf32, #tpu.memory_space<vmem>>, vector<9x4xf32>
    %c0_147 = arith.constant 0 : index
    %c0_148 = arith.constant 0 : index
    %188 = vector.load %arg11[%c0_147, %c0_148] : memref<1x4xf32, #tpu.memory_space<vmem>>, vector<1x4xf32>
    %c1_149 = arith.constant 1 : index
    %c1_150 = arith.constant 1 : index
    %c0_151 = arith.constant 0 : index
    %189 = vector.load %arg15[%c1_149, %c1_150, %c0_151] : memref<18x18x4xf32, #tpu.memory_space<vmem>>, vector<16x16x4xf32>
    tpu.vector_store %arg15[%c1_149, %c1_150, %c0_151], %186 {strides = array<i32>} : memref<18x18x4xf32, #tpu.memory_space<vmem>>, vector<16x16x4xf32>,
    %cst_152 = arith.constant 0.000000e+00 : f32
    %190 = vector.broadcast %cst_152 : f32 to vector<16x16x4xf32>
    %c0_153 = arith.constant 0 : index
    %c0_154 = arith.constant 0 : index
    %c0_155 = arith.constant 0 : index
    %191 = vector.load %arg15[%c0_153, %c0_154, %c0_155] : memref<18x18x4xf32, #tpu.memory_space<vmem>>, vector<16x16x4xf32>
    %192 = vector.extract_strided_slice %187 {offsets = [0, 0], sizes = [1, 4], strides = [1, 1]} : vector<9x4xf32> to vector<1x4xf32>
    %193 = vector.shape_cast %192 : vector<1x4xf32> to vector<1x1x4xf32>
    %194 = vector.broadcast %193 : vector<1x1x4xf32> to vector<16x16x4xf32>
    %195 = arith.mulf %191, %194 : vector<16x16x4xf32>
    %196 = arith.addf %190, %195 : vector<16x16x4xf32>
    %c0_156 = arith.constant 0 : index
    %c1_157 = arith.constant 1 : index
    %c0_158 = arith.constant 0 : index
    %197 = vector.load %arg15[%c0_156, %c1_157, %c0_158] : memref<18x18x4xf32, #tpu.memory_space<vmem>>, vector<16x16x4xf32>
    %198 = vector.extract_strided_slice %187 {offsets = [1, 0], sizes = [1, 4], strides = [1, 1]} : vector<9x4xf32> to vector<1x4xf32>
    %199 = vector.shape_cast %198 : vector<1x4xf32> to vector<1x1x4xf32>
    %200 = vector.broadcast %199 : vector<1x1x4xf32> to vector<16x16x4xf32>
    %201 = arith.mulf %197, %200 : vector<16x16x4xf32>
    %202 = arith.addf %196, %201 : vector<16x16x4xf32>
    %c0_159 = arith.constant 0 : index
    %c2_160 = arith.constant 2 : index
    %c0_161 = arith.constant 0 : index
    %203 = vector.load %arg15[%c0_159, %c2_160, %c0_161] : memref<18x18x4xf32, #tpu.memory_space<vmem>>, vector<16x16x4xf32>
    %204 = vector.extract_strided_slice %187 {offsets = [2, 0], sizes = [1, 4], strides = [1, 1]} : vector<9x4xf32> to vector<1x4xf32>
    %205 = vector.shape_cast %204 : vector<1x4xf32> to vector<1x1x4xf32>
    %206 = vector.broadcast %205 : vector<1x1x4xf32> to vector<16x16x4xf32>
    %207 = arith.mulf %203, %206 : vector<16x16x4xf32>
    %208 = arith.addf %202, %207 : vector<16x16x4xf32>
    %c1_162 = arith.constant 1 : index
    %c0_163 = arith.constant 0 : index
    %c0_164 = arith.constant 0 : index
    %209 = vector.load %arg15[%c1_162, %c0_163, %c0_164] : memref<18x18x4xf32, #tpu.memory_space<vmem>>, vector<16x16x4xf32>
    %210 = vector.extract_strided_slice %187 {offsets = [3, 0], sizes = [1, 4], strides = [1, 1]} : vector<9x4xf32> to vector<1x4xf32>
    %211 = vector.shape_cast %210 : vector<1x4xf32> to vector<1x1x4xf32>
    %212 = vector.broadcast %211 : vector<1x1x4xf32> to vector<16x16x4xf32>
    %213 = arith.mulf %209, %212 : vector<16x16x4xf32>
    %214 = arith.addf %208, %213 : vector<16x16x4xf32>
    %c1_165 = arith.constant 1 : index
    %c1_166 = arith.constant 1 : index
    %c0_167 = arith.constant 0 : index
    %215 = vector.load %arg15[%c1_165, %c1_166, %c0_167] : memref<18x18x4xf32, #tpu.memory_space<vmem>>, vector<16x16x4xf32>
    %216 = vector.extract_strided_slice %187 {offsets = [4, 0], sizes = [1, 4], strides = [1, 1]} : vector<9x4xf32> to vector<1x4xf32>
    %217 = vector.shape_cast %216 : vector<1x4xf32> to vector<1x1x4xf32>
    %218 = vector.broadcast %217 : vector<1x1x4xf32> to vector<16x16x4xf32>
    %219 = arith.mulf %215, %218 : vector<16x16x4xf32>
    %220 = arith.addf %214, %219 : vector<16x16x4xf32>
    %c1_168 = arith.constant 1 : index
    %c2_169 = arith.constant 2 : index
    %c0_170 = arith.constant 0 : index
    %221 = vector.load %arg15[%c1_168, %c2_169, %c0_170] : memref<18x18x4xf32, #tpu.memory_space<vmem>>, vector<16x16x4xf32>
    %222 = vector.extract_strided_slice %187 {offsets = [5, 0], sizes = [1, 4], strides = [1, 1]} : vector<9x4xf32> to vector<1x4xf32>
    %223 = vector.shape_cast %222 : vector<1x4xf32> to vector<1x1x4xf32>
    %224 = vector.broadcast %223 : vector<1x1x4xf32> to vector<16x16x4xf32>
    %225 = arith.mulf %221, %224 : vector<16x16x4xf32>
    %226 = arith.addf %220, %225 : vector<16x16x4xf32>
    %c2_171 = arith.constant 2 : index
    %c0_172 = arith.constant 0 : index
    %c0_173 = arith.constant 0 : index
    %227 = vector.load %arg15[%c2_171, %c0_172, %c0_173] : memref<18x18x4xf32, #tpu.memory_space<vmem>>, vector<16x16x4xf32>
    %228 = vector.extract_strided_slice %187 {offsets = [6, 0], sizes = [1, 4], strides = [1, 1]} : vector<9x4xf32> to vector<1x4xf32>
    %229 = vector.shape_cast %228 : vector<1x4xf32> to vector<1x1x4xf32>
    %230 = vector.broadcast %229 : vector<1x1x4xf32> to vector<16x16x4xf32>
    %231 = arith.mulf %227, %230 : vector<16x16x4xf32>
    %232 = arith.addf %226, %231 : vector<16x16x4xf32>
    %c2_174 = arith.constant 2 : index
    %c1_175 = arith.constant 1 : index
    %c0_176 = arith.constant 0 : index
    %233 = vector.load %arg15[%c2_174, %c1_175, %c0_176] : memref<18x18x4xf32, #tpu.memory_space<vmem>>, vector<16x16x4xf32>
    %234 = vector.extract_strided_slice %187 {offsets = [7, 0], sizes = [1, 4], strides = [1, 1]} : vector<9x4xf32> to vector<1x4xf32>
    %235 = vector.shape_cast %234 : vector<1x4xf32> to vector<1x1x4xf32>
    %236 = vector.broadcast %235 : vector<1x1x4xf32> to vector<16x16x4xf32>
    %237 = arith.mulf %233, %236 : vector<16x16x4xf32>
    %238 = arith.addf %232, %237 : vector<16x16x4xf32>
    %c2_177 = arith.constant 2 : index
    %c2_178 = arith.constant 2 : index
    %c0_179 = arith.constant 0 : index
    %239 = vector.load %arg15[%c2_177, %c2_178, %c0_179] : memref<18x18x4xf32, #tpu.memory_space<vmem>>, vector<16x16x4xf32>
    %240 = vector.extract_strided_slice %187 {offsets = [8, 0], sizes = [1, 4], strides = [1, 1]} : vector<9x4xf32> to vector<1x4xf32>
    %241 = vector.shape_cast %240 : vector<1x4xf32> to vector<1x1x4xf32>
    %242 = vector.broadcast %241 : vector<1x1x4xf32> to vector<16x16x4xf32>
    %243 = arith.mulf %239, %242 : vector<16x16x4xf32>
    %244 = arith.addf %238, %243 : vector<16x16x4xf32>
    %245 = vector.shape_cast %188 : vector<1x4xf32> to vector<1x1x4xf32>
    %246 = vector.broadcast %245 : vector<1x1x4xf32> to vector<16x16x4xf32>
    %247 = arith.addf %244, %246 : vector<16x16x4xf32>
    %cst_180 = arith.constant 1.000000e-01 : f32
    %248 = vector.broadcast %cst_180 : f32 to vector<16x16x4xf32>
    %249 = arith.mulf %248, %247 : vector<16x16x4xf32>
    %250 = arith.maximumf %247, %249 : vector<16x16x4xf32>
    %c0_181 = arith.constant 0 : index
    %c0_182 = arith.constant 0 : index
    %251 = vector.load %arg12[%c0_181, %c0_182] : memref<4x8xbf16, #tpu.memory_space<vmem>>, vector<4x8xbf16>
    %c0_183 = arith.constant 0 : index
    %c0_184 = arith.constant 0 : index
    %252 = vector.load %arg13[%c0_183, %c0_184] : memref<1x8xf32, #tpu.memory_space<vmem>>, vector<1x8xf32>
    %253 = vector.shape_cast %250 : vector<16x16x4xf32> to vector<256x4xf32>
    %254 = arith.truncf %253 : vector<256x4xf32> to vector<256x4xbf16>
    %cst_185 = arith.constant dense<0.000000e+00> : vector<256x8xf32>
    %255 = tpu.matmul %254, %251, %cst_185 {dimension_numbers = #tpu.dot_dimension_numbers<[1], [0], [0], [1], [0, 0, 1, 1], [], []>} : vector<256x4xbf16>, vector<4x8xbf16>, vector<256x8xf32> -> vector<256x8xf32>
    %256 = vector.broadcast %252 : vector<1x8xf32> to vector<256x8xf32>
    %257 = arith.addf %255, %256 : vector<256x8xf32>
    %cst_186 = arith.constant 1.000000e-01 : f32
    %258 = vector.broadcast %cst_186 : f32 to vector<256x8xf32>
    %259 = arith.mulf %258, %257 : vector<256x8xf32>
    %260 = arith.maximumf %257, %259 : vector<256x8xf32>
    %261 = vector.shape_cast %260 : vector<256x8xf32> to vector<16x16x8xf32>
    %c0_187 = arith.constant 0 : index
    %c0_188 = arith.constant 0 : index
    %c0_189 = arith.constant 0 : index
    %c0_190 = arith.constant 0 : index
    %262 = vector.load %arg14[%c0_187, %c0_188, %c0_189, %c0_190] : memref<1x16x16x8xf32, #tpu.memory_space<vmem>>, vector<1x16x16x8xf32>
    %263 = vector.shape_cast %262 : vector<1x16x16x8xf32> to vector<16x16x8xf32>
    %264 = vector.shape_cast %261 : vector<16x16x8xf32> to vector<1x16x16x8xf32>
    tpu.vector_store %arg14[%c0_187, %c0_188, %c0_189, %c0_190], %264 {strides = array<i32>} : memref<1x16x16x8xf32, #tpu.memory_space<vmem>>, vector<1x16x16x8xf32>,
    return
  }
  func.func @transform_0(%arg0: i32) -> (i32, i32, i32, i32) {
    %c0_i32 = arith.constant 0 : i32
    %c0_i32_0 = arith.constant 0 : i32
    %c0_i32_1 = arith.constant 0 : i32
    %c0_i32_2 = arith.constant 0 : i32
    return %arg0, %c0_i32, %c0_i32_0, %c0_i32_1 : i32, i32, i32, i32
  }
  func.func @transform_1(%arg0: i32) -> (i32, i32) {
    %c0_i32 = arith.constant 0 : i32
    %c0_i32_0 = arith.constant 0 : i32
    %c0_i32_1 = arith.constant 0 : i32
    return %c0_i32, %c0_i32_0 : i32, i32
  }
  func.func @transform_2(%arg0: i32) -> (i32, i32) {
    %c0_i32 = arith.constant 0 : i32
    %c0_i32_0 = arith.constant 0 : i32
    %c0_i32_1 = arith.constant 0 : i32
    return %c0_i32, %c0_i32_0 : i32, i32
  }
  func.func @transform_3(%arg0: i32) -> (i32, i32) {
    %c0_i32 = arith.constant 0 : i32
    %c0_i32_0 = arith.constant 0 : i32
    %c0_i32_1 = arith.constant 0 : i32
    return %c0_i32, %c0_i32_0 : i32, i32
  }
  func.func @transform_4(%arg0: i32) -> (i32, i32) {
    %c0_i32 = arith.constant 0 : i32
    %c0_i32_0 = arith.constant 0 : i32
    %c0_i32_1 = arith.constant 0 : i32
    return %c0_i32, %c0_i32_0 : i32, i32
  }
  func.func @transform_5(%arg0: i32) -> (i32, i32) {
    %c0_i32 = arith.constant 0 : i32
    %c0_i32_0 = arith.constant 0 : i32
    %c0_i32_1 = arith.constant 0 : i32
    return %c0_i32, %c0_i32_0 : i32, i32
  }
  func.func @transform_6(%arg0: i32) -> (i32, i32) {
    %c0_i32 = arith.constant 0 : i32
    %c0_i32_0 = arith.constant 0 : i32
    %c0_i32_1 = arith.constant 0 : i32
    return %c0_i32, %c0_i32_0 : i32, i32
  }
  func.func @transform_7(%arg0: i32) -> (i32, i32, i32) {
    %c0_i32 = arith.constant 0 : i32
    %c0_i32_0 = arith.constant 0 : i32
    %c0_i32_1 = arith.constant 0 : i32
    %c0_i32_2 = arith.constant 0 : i32
    return %c0_i32, %c0_i32_0, %c0_i32_1 : i32, i32, i32
  }
  func.func @transform_8(%arg0: i32) -> (i32, i32) {
    %c0_i32 = arith.constant 0 : i32
    %c0_i32_0 = arith.constant 0 : i32
    %c0_i32_1 = arith.constant 0 : i32
    return %c0_i32, %c0_i32_0 : i32, i32
  }
  func.func @transform_9(%arg0: i32) -> (i32, i32) {
    %c0_i32 = arith.constant 0 : i32
    %c0_i32_0 = arith.constant 0 : i32
    %c0_i32_1 = arith.constant 0 : i32
    return %c0_i32, %c0_i32_0 : i32, i32
  }
  func.func @transform_10(%arg0: i32) -> (i32, i32) {
    %c0_i32 = arith.constant 0 : i32
    %c0_i32_0 = arith.constant 0 : i32
    %c0_i32_1 = arith.constant 0 : i32
    return %c0_i32, %c0_i32_0 : i32, i32
  }
  func.func @transform_11(%arg0: i32) -> (i32, i32) {
    %c0_i32 = arith.constant 0 : i32
    %c0_i32_0 = arith.constant 0 : i32
    %c0_i32_1 = arith.constant 0 : i32
    return %c0_i32, %c0_i32_0 : i32, i32
  }
  func.func @transform_12(%arg0: i32) -> (i32, i32) {
    %c0_i32 = arith.constant 0 : i32
    %c0_i32_0 = arith.constant 0 : i32
    %c0_i32_1 = arith.constant 0 : i32
    return %c0_i32, %c0_i32_0 : i32, i32
  }
  func.func @transform_13(%arg0: i32) -> (i32, i32, i32, i32) {
    %c0_i32 = arith.constant 0 : i32
    %c0_i32_0 = arith.constant 0 : i32
    %c0_i32_1 = arith.constant 0 : i32
    %c0_i32_2 = arith.constant 0 : i32
    return %arg0, %c0_i32, %c0_i32_0, %c0_i32_1 : i32, i32, i32, i32
  }
}

</mosaic_0001>

<llo_original>
// kernel: tpu_custom_call.1
$region0: #{tpu_custom_call.1}
  #allocation0 [shape = 'u32[]', space=smem, size = 0x4, offset = 0x4, fixed_abs, tag = 'smem constant byte address 0x4 - core index']
  #allocation1 [shape = 'u32[144,128]{1,0:T(1,128)}', space=vmem, size = 0x12000, scoped, tag = 'internal scratch']
  #allocation2 [shape = 'f32[18,18,4]{2,1,0:T(8,128)}', space=vmem, size = 0x36000, scoped, tag = 'scratch operand']
  #allocation3 [shape = 'f32[20,20,2]{2,1,0:T(8,128)}', space=vmem, size = 0x3c000, scoped, tag = 'scratch operand']
  %s0 = inlined_call_operand.vmem [shape: f32[2,16,16,8], index: 0, kind: input, shape index: {}]
  %s1 = inlined_call_operand.vmem [shape: bf16[8,4], index: 1, kind: input, shape index: {}]
  %s2 = inlined_call_operand.vmem [shape: f32[1,4], index: 2, kind: input, shape index: {}]
  %s3 = inlined_call_operand.vmem [shape: f32[9,4], index: 3, kind: input, shape index: {}]
  %s4 = inlined_call_operand.vmem [shape: f32[1,4], index: 4, kind: input, shape index: {}]
  %s5 = inlined_call_operand.vmem [shape: bf16[4,2], index: 5, kind: input, shape index: {}]
  %s6 = inlined_call_operand.vmem [shape: f32[1,2], index: 6, kind: input, shape index: {}]
  %s7 = inlined_call_operand.vmem [shape: bf16[4,2,4], index: 7, kind: input, shape index: {}]
  %s8 = inlined_call_operand.vmem [shape: f32[1,4], index: 8, kind: input, shape index: {}]
  %s9 = inlined_call_operand.vmem [shape: f32[9,4], index: 9, kind: input, shape index: {}]
  %s10 = inlined_call_operand.vmem [shape: f32[1,4], index: 10, kind: input, shape index: {}]
  %s11 = inlined_call_operand.vmem [shape: bf16[4,8], index: 11, kind: input, shape index: {}]
  %s12 = inlined_call_operand.vmem [shape: f32[1,8], index: 12, kind: input, shape index: {}]
  %s13 = inlined_call_operand.vmem [shape: f32[2,16,16,8], index: 13, kind: output, shape index: {}]
  %s14 = sld [smem:[#allocation0]]
  $region85: #{tpu_custom_call.1} parent=0
    _
  %s16 = ssub.s32 1, %s14
  %s17 = scalar_select 0, %s16, %s14
  loop: start=0, step=1, limit=4
  $region2: #{tpu_custom_call.1} parent=0 // loop_pre_header
    _
  $region3: #{tpu_custom_call.1} parent=0 // loop_header
    %s19 = sphi 0, %s23
    %p20 = scmp.ge.s32.totalorder %s19, 4
    %s29 = sphi 0, %s31
    %s32 = sphi 0, %s29
    %s33 = sphi 0, %s32
    %s49 = sphi 0, %s33
    %s53 = sphi 0, %s53
    %s55 = sphi 0, %s53
    %s56 = sphi 0, %s55
    %s70 = sphi 0, %s56
    %s74 = sphi 0, %s74
    %s76 = sphi 0, %s74
    %s77 = sphi 0, %s76
    %s91 = sphi 0, %s77
    %s95 = sphi 0, %s95
    %s97 = sphi 0, %s95
    %s98 = sphi 0, %s97
    %s112 = sphi 0, %s98
    %s116 = sphi 0, %s116
    %s118 = sphi 0, %s116
    %s119 = sphi 0, %s118
    %s133 = sphi 0, %s119
    %s137 = sphi 0, %s137
    %s139 = sphi 0, %s137
    %s140 = sphi 0, %s139
    %s154 = sphi 0, %s140
    %s158 = sphi 0, %s158
    %s160 = sphi 0, %s158
    %s161 = sphi 0, %s160
    %s175 = sphi 0, %s161
    %s179 = sphi 0, %s179
    %s181 = sphi 0, %s179
    %s182 = sphi 0, %s181
    %s196 = sphi 0, %s182
    %s200 = sphi 0, %s200
    %s202 = sphi 0, %s200
    %s203 = sphi 0, %s202
    %s217 = sphi 0, %s203
    %s221 = sphi 0, %s221
    %s223 = sphi 0, %s221
    %s224 = sphi 0, %s223
    %s238 = sphi 0, %s224
    %s242 = sphi 0, %s242
    %s244 = sphi 0, %s242
    %s245 = sphi 0, %s244
    %s259 = sphi 0, %s245
    %s263 = sphi 0, %s263
    %s265 = sphi 0, %s263
    %s266 = sphi 0, %s265
    %s280 = sphi 0, %s266
    %s284 = sphi 0, %s284
    %s286 = sphi 0, %s284
    %s287 = sphi 0, %s286
    %s301 = sphi 0, %s287
    %s307 = sphi 0, %s309
    %s310 = sphi 0, %s307
    %s311 = sphi 0, %s310
    %s327 = sphi 0, %s311
  $region4: #{tpu_custom_call.1} parent=0 // loop_header_branch
    %22 = sbr.rel (%p20) target = $region8
  $region5: #{tpu_custom_call.1} parent=0 // loop_body
    %s24 = ssub.s32 %s19, 1
    %s25 = ssub.s32 %s19, 2
    %s26 = sadd.s32 %s19, 1
    %s27 = ssub.s32 %s19, %s26
    %p28 = scmp.eq.s32.totalorder %s27, 0
    %s30 = sadd.s32 %s29, 1
    %s31 = scalar_select %p28, %s29, %s30
    %p34 = pneg %p28
    %p35 = scmp.eq.s32.totalorder %s19, 1
    %p36 = por %p34, %p35
    %p37 = scmp.ne.s32.totalorder %s29, %s32
    %p38 = scmp.eq.s32.totalorder %s19, 0
    %p39 = por %p37, %p38
    %p40 = scmp.ne.s32.totalorder %s29, %s32
    %p41 = scmp.eq.s32.totalorder %s24, 1
    %p42 = por %p40, %p41
    %p43 = scmp.ne.s32.totalorder %s32, %s33
    %p44 = scmp.eq.s32.totalorder %s24, 0
    %p45 = por %p43, %p44
    %p46 = scmp.ne.s32.totalorder %s32, %s33
    %p47 = scmp.eq.s32.totalorder %s25, 1
    %p48 = por %p46, %p47
    %p50 = scmp.ne.s32.totalorder %s33, %s49
    %p51 = scmp.eq.s32.totalorder %s25, 0
    %p52 = por %p50, %p51
    %s54 = sadd.s32 %s53, 1
    %p57 = scmp.eq.s32.totalorder %s19, 1
    %p58 = scmp.ne.s32.totalorder %s53, %s55
    %p59 = scmp.eq.s32.totalorder %s19, 0
    %p60 = por %p58, %p59
    %p61 = scmp.ne.s32.totalorder %s53, %s55
    %p62 = scmp.eq.s32.totalorder %s24, 1
    %p63 = por %p61, %p62
    %p64 = scmp.ne.s32.totalorder %s55, %s56
    %p65 = scmp.eq.s32.totalorder %s24, 0
    %p66 = por %p64, %p65
    %p67 = scmp.ne.s32.totalorder %s55, %s56
    %p68 = scmp.eq.s32.totalorder %s25, 1
    %p69 = por %p67, %p68
    %p71 = scmp.ne.s32.totalorder %s56, %s70
    %p72 = scmp.eq.s32.totalorder %s25, 0
    %p73 = por %p71, %p72
    %s75 = sadd.s32 %s74, 1
    %p78 = scmp.eq.s32.totalorder %s19, 1
    %p79 = scmp.ne.s32.totalorder %s74, %s76
    %p80 = scmp.eq.s32.totalorder %s19, 0
    %p81 = por %p79, %p80
    %p82 = scmp.ne.s32.totalorder %s74, %s76
    %p83 = scmp.eq.s32.totalorder %s24, 1
    %p84 = por %p82, %p83
    %p85 = scmp.ne.s32.totalorder %s76, %s77
    %p86 = scmp.eq.s32.totalorder %s24, 0
    %p87 = por %p85, %p86
    %p88 = scmp.ne.s32.totalorder %s76, %s77
    %p89 = scmp.eq.s32.totalorder %s25, 1
    %p90 = por %p88, %p89
    %p92 = scmp.ne.s32.totalorder %s77, %s91
    %p93 = scmp.eq.s32.totalorder %s25, 0
    %p94 = por %p92, %p93
    %s96 = sadd.s32 %s95, 1
    %p99 = scmp.eq.s32.totalorder %s19, 1
    %p100 = scmp.ne.s32.totalorder %s95, %s97
    %p101 = scmp.eq.s32.totalorder %s19, 0
    %p102 = por %p100, %p101
    %p103 = scmp.ne.s32.totalorder %s95, %s97
    %p104 = scmp.eq.s32.totalorder %s24, 1
    %p105 = por %p103, %p104
    %p106 = scmp.ne.s32.totalorder %s97, %s98
    %p107 = scmp.eq.s32.totalorder %s24, 0
    %p108 = por %p106, %p107
    %p109 = scmp.ne.s32.totalorder %s97, %s98
    %p110 = scmp.eq.s32.totalorder %s25, 1
    %p111 = por %p109, %p110
    %p113 = scmp.ne.s32.totalorder %s98, %s112
    %p114 = scmp.eq.s32.totalorder %s25, 0
    %p115 = por %p113, %p114
    %s117 = sadd.s32 %s116, 1
    %p120 = scmp.eq.s32.totalorder %s19, 1
    %p121 = scmp.ne.s32.totalorder %s116, %s118
    %p122 = scmp.eq.s32.totalorder %s19, 0
    %p123 = por %p121, %p122
    %p124 = scmp.ne.s32.totalorder %s116, %s118
    %p125 = scmp.eq.s32.totalorder %s24, 1
    %p126 = por %p124, %p125
    %p127 = scmp.ne.s32.totalorder %s118, %s119
    %p128 = scmp.eq.s32.totalorder %s24, 0
    %p129 = por %p127, %p128
    %p130 = scmp.ne.s32.totalorder %s118, %s119
    %p131 = scmp.eq.s32.totalorder %s25, 1
    %p132 = por %p130, %p131
    %p134 = scmp.ne.s32.totalorder %s119, %s133
    %p135 = scmp.eq.s32.totalorder %s25, 0
    %p136 = por %p134, %p135
    %s138 = sadd.s32 %s137, 1
    %p141 = scmp.eq.s32.totalorder %s19, 1
    %p142 = scmp.ne.s32.totalorder %s137, %s139
    %p143 = scmp.eq.s32.totalorder %s19, 0
    %p144 = por %p142, %p143
    %p145 = scmp.ne.s32.totalorder %s137, %s139
    %p146 = scmp.eq.s32.totalorder %s24, 1
    %p147 = por %p145, %p146
    %p148 = scmp.ne.s32.totalorder %s139, %s140
    %p149 = scmp.eq.s32.totalorder %s24, 0
    %p150 = por %p148, %p149
    %p151 = scmp.ne.s32.totalorder %s139, %s140
    %p152 = scmp.eq.s32.totalorder %s25, 1
    %p153 = por %p151, %p152
    %p155 = scmp.ne.s32.totalorder %s140, %s154
    %p156 = scmp.eq.s32.totalorder %s25, 0
    %p157 = por %p155, %p156
    %s159 = sadd.s32 %s158, 1
    %p162 = scmp.eq.s32.totalorder %s19, 1
    %p163 = scmp.ne.s32.totalorder %s158, %s160
    %p164 = scmp.eq.s32.totalorder %s19, 0
    %p165 = por %p163, %p164
    %p166 = scmp.ne.s32.totalorder %s158, %s160
    %p167 = scmp.eq.s32.totalorder %s24, 1
    %p168 = por %p166, %p167
    %p169 = scmp.ne.s32.totalorder %s160, %s161
    %p170 = scmp.eq.s32.totalorder %s24, 0
    %p171 = por %p169, %p170
    %p172 = scmp.ne.s32.totalorder %s160, %s161
    %p173 = scmp.eq.s32.totalorder %s25, 1
    %p174 = por %p172, %p173
    %p176 = scmp.ne.s32.totalorder %s161, %s175
    %p177 = scmp.eq.s32.totalorder %s25, 0
    %p178 = por %p176, %p177
    %s180 = sadd.s32 %s179, 1
    %p183 = scmp.eq.s32.totalorder %s19, 1
    %p184 = scmp.ne.s32.totalorder %s179, %s181
    %p185 = scmp.eq.s32.totalorder %s19, 0
    %p186 = por %p184, %p185
    %p187 = scmp.ne.s32.totalorder %s179, %s181
    %p188 = scmp.eq.s32.totalorder %s24, 1
    %p189 = por %p187, %p188
    %p190 = scmp.ne.s32.totalorder %s181, %s182
    %p191 = scmp.eq.s32.totalorder %s24, 0
    %p192 = por %p190, %p191
    %p193 = scmp.ne.s32.totalorder %s181, %s182
    %p194 = scmp.eq.s32.totalorder %s25, 1
    %p195 = por %p193, %p194
    %p197 = scmp.ne.s32.totalorder %s182, %s196
    %p198 = scmp.eq.s32.totalorder %s25, 0
    %p199 = por %p197, %p198
    %s201 = sadd.s32 %s200, 1
    %p204 = scmp.eq.s32.totalorder %s19, 1
    %p205 = scmp.ne.s32.totalorder %s200, %s202
    %p206 = scmp.eq.s32.totalorder %s19, 0
    %p207 = por %p205, %p206
    %p208 = scmp.ne.s32.totalorder %s200, %s202
    %p209 = scmp.eq.s32.totalorder %s24, 1
    %p210 = por %p208, %p209
    %p211 = scmp.ne.s32.totalorder %s202, %s203
    %p212 = scmp.eq.s32.totalorder %s24, 0
    %p213 = por %p211, %p212
    %p214 = scmp.ne.s32.totalorder %s202, %s203
    %p215 = scmp.eq.s32.totalorder %s25, 1
    %p216 = por %p214, %p215
    %p218 = scmp.ne.s32.totalorder %s203, %s217
    %p219 = scmp.eq.s32.totalorder %s25, 0
    %p220 = por %p218, %p219
    %s222 = sadd.s32 %s221, 1
    %p225 = scmp.eq.s32.totalorder %s19, 1
    %p226 = scmp.ne.s32.totalorder %s221, %s223
    %p227 = scmp.eq.s32.totalorder %s19, 0
    %p228 = por %p226, %p227
    %p229 = scmp.ne.s32.totalorder %s221, %s223
    %p230 = scmp.eq.s32.totalorder %s24, 1
    %p231 = por %p229, %p230
    %p232 = scmp.ne.s32.totalorder %s223, %s224
    %p233 = scmp.eq.s32.totalorder %s24, 0
    %p234 = por %p232, %p233
    %p235 = scmp.ne.s32.totalorder %s223, %s224
    %p236 = scmp.eq.s32.totalorder %s25, 1
    %p237 = por %p235, %p236
    %p239 = scmp.ne.s32.totalorder %s224, %s238
    %p240 = scmp.eq.s32.totalorder %s25, 0
    %p241 = por %p239, %p240
    %s243 = sadd.s32 %s242, 1
    %p246 = scmp.eq.s32.totalorder %s19, 1
    %p247 = scmp.ne.s32.totalorder %s242, %s244
    %p248 = scmp.eq.s32.totalorder %s19, 0
    %p249 = por %p247, %p248
    %p250 = scmp.ne.s32.totalorder %s242, %s244
    %p251 = scmp.eq.s32.totalorder %s24, 1
    %p252 = por %p250, %p251
    %p253 = scmp.ne.s32.totalorder %s244, %s245
    %p254 = scmp.eq.s32.totalorder %s24, 0
    %p255 = por %p253, %p254
    %p256 = scmp.ne.s32.totalorder %s244, %s245
    %p257 = scmp.eq.s32.totalorder %s25, 1
    %p258 = por %p256, %p257
    %p260 = scmp.ne.s32.totalorder %s245, %s259
    %p261 = scmp.eq.s32.totalorder %s25, 0
    %p262 = por %p260, %p261
    %s264 = sadd.s32 %s263, 1
    %p267 = scmp.eq.s32.totalorder %s19, 1
    %p268 = scmp.ne.s32.totalorder %s263, %s265
    %p269 = scmp.eq.s32.totalorder %s19, 0
    %p270 = por %p268, %p269
    %p271 = scmp.ne.s32.totalorder %s263, %s265
    %p272 = scmp.eq.s32.totalorder %s24, 1
    %p273 = por %p271, %p272
    %p274 = scmp.ne.s32.totalorder %s265, %s266
    %p275 = scmp.eq.s32.totalorder %s24, 0
    %p276 = por %p274, %p275
    %p277 = scmp.ne.s32.totalorder %s265, %s266
    %p278 = scmp.eq.s32.totalorder %s25, 1
    %p279 = por %p277, %p278
    %p281 = scmp.ne.s32.totalorder %s266, %s280
    %p282 = scmp.eq.s32.totalorder %s25, 0
    %p283 = por %p281, %p282
    %s285 = sadd.s32 %s284, 1
    %p288 = scmp.eq.s32.totalorder %s19, 1
    %p289 = scmp.ne.s32.totalorder %s284, %s286
    %p290 = scmp.eq.s32.totalorder %s19, 0
    %p291 = por %p289, %p290
    %p292 = scmp.ne.s32.totalorder %s284, %s286
    %p293 = scmp.eq.s32.totalorder %s24, 1
    %p294 = por %p292, %p293
    %p295 = scmp.ne.s32.totalorder %s286, %s287
    %p296 = scmp.eq.s32.totalorder %s24, 0
    %p297 = por %p295, %p296
    %p298 = scmp.ne.s32.totalorder %s286, %s287
    %p299 = scmp.eq.s32.totalorder %s25, 1
    %p300 = por %p298, %p299
    %p302 = scmp.ne.s32.totalorder %s287, %s301
    %p303 = scmp.eq.s32.totalorder %s25, 0
    %p304 = por %p302, %p303
    %s305 = ssub.s32 %s19, %s26
    %p306 = scmp.eq.s32.totalorder %s305, 0
    %s308 = sadd.s32 %s307, 1
    %s309 = scalar_select %p306, %s307, %s308
    %p312 = pneg %p306
    %p313 = scmp.eq.s32.totalorder %s19, 1
    %p314 = por %p312, %p313
    %p315 = scmp.ne.s32.totalorder %s307, %s310
    %p316 = scmp.eq.s32.totalorder %s19, 0
    %p317 = por %p315, %p316
    %p318 = scmp.ne.s32.totalorder %s307, %s310
    %p319 = scmp.eq.s32.totalorder %s24, 1
    %p320 = por %p318, %p319
    %p321 = scmp.ne.s32.totalorder %s310, %s311
    %p322 = scmp.eq.s32.totalorder %s24, 0
    %p323 = por %p321, %p322
    %p324 = scmp.ne.s32.totalorder %s310, %s311
    %p325 = scmp.eq.s32.totalorder %s25, 1
    %p326 = por %p324, %p325
    %p328 = scmp.ne.s32.totalorder %s311, %s327
    %p329 = scmp.eq.s32.totalorder %s25, 0
    %p330 = por %p328, %p329
    %p331 = scmp.le.s32.totalorder 1, %s19
    %p332 = scmp.lt.s32.totalorder %s19, 3
    %p333 = pnand %p331, %p332
    %p334 = pneg %p333
    // Predicated region
    $region9: #{tpu_custom_call.1} parent=5 // pred_check
      _
    $region10: #{tpu_custom_call.1} parent=5 // pred_check_branch
      %336 = sbr.rel (%p333) target = $region12
    $region11: #{tpu_custom_call.1} parent=5 // pred_region
      %s337 = ssub.s32 %s19, 1
      // Predicated region
      $region13: #{tpu_custom_call.1} parent=11 // pred_check
        %p338 = pneg %p66
      $region14: #{tpu_custom_call.1} parent=11 // pred_check_branch
        %340 = sbr.rel (%p338) target = $region16
      $region15: #{tpu_custom_call.1} parent=11 // pred_region
        _
      $region16: #{tpu_custom_call.1} parent=11 // pred_fallthru
        _
      // Predicated region
      $region17: #{tpu_custom_call.1} parent=11 // pred_check
        %p341 = pneg %p87
      $region18: #{tpu_custom_call.1} parent=11 // pred_check_branch
        %343 = sbr.rel (%p341) target = $region20
      $region19: #{tpu_custom_call.1} parent=11 // pred_region
        _
      $region20: #{tpu_custom_call.1} parent=11 // pred_fallthru
        _
      // Predicated region
      $region21: #{tpu_custom_call.1} parent=11 // pred_check
        %p344 = pneg %p108
      $region22: #{tpu_custom_call.1} parent=11 // pred_check_branch
        %346 = sbr.rel (%p344) target = $region24
      $region23: #{tpu_custom_call.1} parent=11 // pred_region
        _
      $region24: #{tpu_custom_call.1} parent=11 // pred_fallthru
        _
      // Predicated region
      $region25: #{tpu_custom_call.1} parent=11 // pred_check
        %p347 = pneg %p129
      $region26: #{tpu_custom_call.1} parent=11 // pred_check_branch
        %349 = sbr.rel (%p347) target = $region28
      $region27: #{tpu_custom_call.1} parent=11 // pred_region
        _
      $region28: #{tpu_custom_call.1} parent=11 // pred_fallthru
        _
      // Predicated region
      $region29: #{tpu_custom_call.1} parent=11 // pred_check
        %p350 = pneg %p150
      $region30: #{tpu_custom_call.1} parent=11 // pred_check_branch
        %352 = sbr.rel (%p350) target = $region32
      $region31: #{tpu_custom_call.1} parent=11 // pred_region
        _
      $region32: #{tpu_custom_call.1} parent=11 // pred_fallthru
        _
      // Predicated region
      $region33: #{tpu_custom_call.1} parent=11 // pred_check
        %p353 = pneg %p171
      $region34: #{tpu_custom_call.1} parent=11 // pred_check_branch
        %355 = sbr.rel (%p353) target = $region36
      $region35: #{tpu_custom_call.1} parent=11 // pred_region
        _
      $region36: #{tpu_custom_call.1} parent=11 // pred_fallthru
        _
      // Predicated region
      $region37: #{tpu_custom_call.1} parent=11 // pred_check
        %p356 = pneg %p192
      $region38: #{tpu_custom_call.1} parent=11 // pred_check_branch
        %358 = sbr.rel (%p356) target = $region40
      $region39: #{tpu_custom_call.1} parent=11 // pred_region
        _
      $region40: #{tpu_custom_call.1} parent=11 // pred_fallthru
        _
      // Predicated region
      $region41: #{tpu_custom_call.1} parent=11 // pred_check
        %p359 = pneg %p213
      $region42: #{tpu_custom_call.1} parent=11 // pred_check_branch
        %361 = sbr.rel (%p359) target = $region44
      $region43: #{tpu_custom_call.1} parent=11 // pred_region
        _
      $region44: #{tpu_custom_call.1} parent=11 // pred_fallthru
        _
      // Predicated region
      $region45: #{tpu_custom_call.1} parent=11 // pred_check
        %p362 = pneg %p234
      $region46: #{tpu_custom_call.1} parent=11 // pred_check_branch
        %364 = sbr.rel (%p362) target = $region48
      $region47: #{tpu_custom_call.1} parent=11 // pred_region
        _
      $region48: #{tpu_custom_call.1} parent=11 // pred_fallthru
        _
      // Predicated region
      $region49: #{tpu_custom_call.1} parent=11 // pred_check
        %p365 = pneg %p255
      $region50: #{tpu_custom_call.1} parent=11 // pred_check_branch
        %367 = sbr.rel (%p365) target = $region52
      $region51: #{tpu_custom_call.1} parent=11 // pred_region
        _
      $region52: #{tpu_custom_call.1} parent=11 // pred_fallthru
        _
      // Predicated region
      $region53: #{tpu_custom_call.1} parent=11 // pred_check
        %p368 = pneg %p276
      $region54: #{tpu_custom_call.1} parent=11 // pred_check_branch
        %370 = sbr.rel (%p368) target = $region56
      $region55: #{tpu_custom_call.1} parent=11 // pred_region
        _
      $region56: #{tpu_custom_call.1} parent=11 // pred_fallthru
        _
      // Predicated region
      $region57: #{tpu_custom_call.1} parent=11 // pred_check
        %p371 = pneg %p297
      $region58: #{tpu_custom_call.1} parent=11 // pred_check_branch
        %373 = sbr.rel (%p371) target = $region60
      $region59: #{tpu_custom_call.1} parent=11 // pred_region
        _
      $region60: #{tpu_custom_call.1} parent=11 // pred_fallthru
        _
    $region12: #{tpu_custom_call.1} parent=5 // pred_fallthru
      _
    %p374 = scmp.lt.s32.totalorder %s19, 2
    // Predicated region
    $region61: #{tpu_custom_call.1} parent=5 // pred_check
      %p375 = pneg %p374
    $region62: #{tpu_custom_call.1} parent=5 // pred_check_branch
      %377 = sbr.rel (%p375) target = $region64
    $region63: #{tpu_custom_call.1} parent=5 // pred_region
      // Predicated region
      $region65: #{tpu_custom_call.1} parent=63 // pred_check
        %p378 = pneg %p39
      $region66: #{tpu_custom_call.1} parent=63 // pred_check_branch
        %380 = sbr.rel (%p378) target = $region68
      $region67: #{tpu_custom_call.1} parent=63 // pred_region
        %p381 = scmp.lt.s32.totalorder %s19, 1
        %s382 = scalar_select %p381, %s19, 1
        %s383 = smul.addr %s382, 32
        %s384 = smul.addr %s383, 8
        %s385 = scalar_lea.vmem %s0, %s384
      $region68: #{tpu_custom_call.1} parent=63 // pred_fallthru
        _
    $region64: #{tpu_custom_call.1} parent=5 // pred_fallthru
      _
    %p386 = scmp.le.s32.totalorder 1, %s19
    %p387 = scmp.lt.s32.totalorder %s19, 3
    %p388 = pnand %p386, %p387
    %p389 = pneg %p388
    // Predicated region
    $region69: #{tpu_custom_call.1} parent=5 // pred_check
      _
    $region70: #{tpu_custom_call.1} parent=5 // pred_check_branch
      %391 = sbr.rel (%p388) target = $region72
    $region71: #{tpu_custom_call.1} parent=5 // pred_region
      %s392 = ssub.s32 %s19, 1
      %p393 = scmp.lt.s32.totalorder %s24, 1
      %s394 = scalar_select %p393, %s24, 1
      %s395 = smul.addr %s394, 32
      %s396 = smul.addr %s395, 8
      %s397 = scalar_lea.vmem %s0, %s396
      %p398 = pneg %p45
      %p399 = pneg %p42
      %p400 = pneg %p66
      %p401 = pneg %p63
      %p402 = pneg %p87
      %p403 = pneg %p84
      %p404 = pneg %p108
      %p405 = pneg %p105
      %p406 = pneg %p129
      %p407 = pneg %p126
      %p408 = pneg %p150
      %p409 = pneg %p147
      %p410 = pneg %p171
      %p411 = pneg %p168
      %p412 = pneg %p192
      %p413 = pneg %p189
      %p414 = pneg %p213
      %p415 = pneg %p210
      %p416 = pneg %p234
      %p417 = pneg %p231
      %p418 = pneg %p255
      %p419 = pneg %p252
      %p420 = pneg %p276
      %p421 = pneg %p273
      %p422 = pneg %p297
      %p423 = pneg %p294
      %p424 = pneg %p323
      %p425 = pneg %p320
      %p426 = scmp.lt.s32.totalorder %s24, 1
      %s427 = scalar_select %p426, %s24, 1
      %s428 = smul.addr %s427, 32
      %s429 = smul.addr %s428, 8
      %s430 = scalar_lea.vmem %s13, %s429
      %p431 = scmp.lt.s32.totalorder %s24, 1
      %s432 = scalar_select %p431, %s24, 1
      %s433 = smul.addr %s432, 32
      %s434 = smul.addr %s433, 8
      %s435 = scalar_lea.vmem %s0, %s434
      %p436 = scmp.lt.s32.totalorder %s24, 1
      %s437 = scalar_select %p436, %s24, 1
      %s438 = smul.addr %s437, 32
      %s439 = smul.addr %s438, 8
      %s440 = scalar_lea.vmem %s13, %s439
      %vm442 = vcmask 31744
      %443 = vst.msk [vmem:[#allocation2] sm:$0xff] %vm442, 0.0
      %444 = vst.msk [vmem:[#allocation2 + $0x8] sm:$0xff] %vm442, 0.0
      %vm445 = vcmask 25600
      %446 = vst.msk [vmem:[#allocation2 + $0x10] sm:$0x3] %vm445, 0.0
      %s447 = scalar_lea.vmem [#allocation2], 408
      %448 = vst.msk [vmem:[%s447] sm:$0xff] %vm442, 0.0
      %449 = vst.msk [vmem:[%s447 + $0x8] sm:$0xff] %vm442, 0.0
      %450 = vst.msk [vmem:[%s447 + $0x10] sm:$0x3] %vm445, 0.0
      %s451 = scalar_lea.vmem [#allocation2], 24
      %vm452 = vcmask 24576
      %453 = vst.msk [vmem:[%s451] sm:$0x1] %vm452, 0.0
      %454 = vst.msk [vmem:[%s451 + $0x18] sm:$0x1] %vm452, 0.0
      %455 = vst.msk [vmem:[%s451 + $0x30] sm:$0x1] %vm452, 0.0
      %456 = vst.msk [vmem:[%s451 + $0x48] sm:$0x1] %vm452, 0.0
      %457 = vst.msk [vmem:[%s451 + $0x60] sm:$0x1] %vm452, 0.0
      %458 = vst.msk [vmem:[%s451 + $0x78] sm:$0x1] %vm452, 0.0
      %459 = vst.msk [vmem:[%s451 + $0x90] sm:$0x1] %vm452, 0.0
      %460 = vst.msk [vmem:[%s451 + $0xa8] sm:$0x1] %vm452, 0.0
      %461 = vst.msk [vmem:[%s451 + $0xc0] sm:$0x1] %vm452, 0.0
      %462 = vst.msk [vmem:[%s451 + $0xd8] sm:$0x1] %vm452, 0.0
      %463 = vst.msk [vmem:[%s451 + $0xf0] sm:$0x1] %vm452, 0.0
      %464 = vst.msk [vmem:[%s451 + $0x108] sm:$0x1] %vm452, 0.0
      %465 = vst.msk [vmem:[%s451 + $0x120] sm:$0x1] %vm452, 0.0
      %466 = vst.msk [vmem:[%s451 + $0x138] sm:$0x1] %vm452, 0.0
      %467 = vst.msk [vmem:[%s451 + $0x150] sm:$0x1] %vm452, 0.0
      %468 = vst.msk [vmem:[%s451 + $0x168] sm:$0x1] %vm452, 0.0
      %469 = vst.msk [vmem:[%s451 + $0x11] sm:$0x1] %vm452, 0.0
      %470 = vst.msk [vmem:[%s451 + $0x29] sm:$0x1] %vm452, 0.0
      %471 = vst.msk [vmem:[%s451 + $0x41] sm:$0x1] %vm452, 0.0
      %472 = vst.msk [vmem:[%s451 + $0x59] sm:$0x1] %vm452, 0.0
      %473 = vst.msk [vmem:[%s451 + $0x71] sm:$0x1] %vm452, 0.0
      %474 = vst.msk [vmem:[%s451 + $0x89] sm:$0x1] %vm452, 0.0
      %475 = vst.msk [vmem:[%s451 + $0xa1] sm:$0x1] %vm452, 0.0
      %476 = vst.msk [vmem:[%s451 + $0xb9] sm:$0x1] %vm452, 0.0
      %477 = vst.msk [vmem:[%s451 + $0xd1] sm:$0x1] %vm452, 0.0
      %478 = vst.msk [vmem:[%s451 + $0xe9] sm:$0x1] %vm452, 0.0
      %479 = vst.msk [vmem:[%s451 + $0x101] sm:$0x1] %vm452, 0.0
      %480 = vst.msk [vmem:[%s451 + $0x119] sm:$0x1] %vm452, 0.0
      %481 = vst.msk [vmem:[%s451 + $0x131] sm:$0x1] %vm452, 0.0
      %482 = vst.msk [vmem:[%s451 + $0x149] sm:$0x1] %vm452, 0.0
      %483 = vst.msk [vmem:[%s451 + $0x161] sm:$0x1] %vm452, 0.0
      %484 = vst.msk [vmem:[%s451 + $0x179] sm:$0x1] %vm452, 0.0
      %vm485 = vcmask 15360
      %486 = vst.msk [vmem:[#allocation3] sm:$0xff] %vm485, -inf
      %487 = vst.msk [vmem:[#allocation3 + $0x8] sm:$0xff] %vm485, -inf
      %vm488 = vcmask 11264
      %489 = vst.msk [vmem:[#allocation3 + $0x10] sm:$0xf] %vm488, -inf
      %490 = vst.msk [vmem:[#allocation3 + $0x18] sm:$0xff] %vm485, -inf
      %491 = vst.msk [vmem:[#allocation3 + $0x20] sm:$0xff] %vm485, -inf
      %492 = vst.msk [vmem:[#allocation3 + $0x28] sm:$0xf] %vm488, -inf
      %s493 = scalar_lea.vmem [#allocation3], 432
      %494 = vst.msk [vmem:[%s493] sm:$0xff] %vm485, -inf
      %495 = vst.msk [vmem:[%s493 + $0x8] sm:$0xff] %vm485, -inf
      %496 = vst.msk [vmem:[%s493 + $0x10] sm:$0xf] %vm488, -inf
      %497 = vst.msk [vmem:[%s493 + $0x18] sm:$0xff] %vm485, -inf
      %498 = vst.msk [vmem:[%s493 + $0x20] sm:$0xff] %vm485, -inf
      %499 = vst.msk [vmem:[%s493 + $0x28] sm:$0xf] %vm488, -inf
      %s500 = scalar_lea.vmem [#allocation3], 48
      %vm501 = vcmask 9216
      %502 = vst.msk [vmem:[%s500] sm:$0x3] %vm501, -inf
      %503 = vst.msk [vmem:[%s500 + $0x18] sm:$0x3] %vm501, -inf
      %504 = vst.msk [vmem:[%s500 + $0x30] sm:$0x3] %vm501, -inf
      %505 = vst.msk [vmem:[%s500 + $0x48] sm:$0x3] %vm501, -inf
      %506 = vst.msk [vmem:[%s500 + $0x60] sm:$0x3] %vm501, -inf
      %507 = vst.msk [vmem:[%s500 + $0x78] sm:$0x3] %vm501, -inf
      %508 = vst.msk [vmem:[%s500 + $0x90] sm:$0x3] %vm501, -inf
      %509 = vst.msk [vmem:[%s500 + $0xa8] sm:$0x3] %vm501, -inf
      %510 = vst.msk [vmem:[%s500 + $0xc0] sm:$0x3] %vm501, -inf
      %511 = vst.msk [vmem:[%s500 + $0xd8] sm:$0x3] %vm501, -inf
      %512 = vst.msk [vmem:[%s500 + $0xf0] sm:$0x3] %vm501, -inf
      %513 = vst.msk [vmem:[%s500 + $0x108] sm:$0x3] %vm501, -inf
      %514 = vst.msk [vmem:[%s500 + $0x120] sm:$0x3] %vm501, -inf
      %515 = vst.msk [vmem:[%s500 + $0x138] sm:$0x3] %vm501, -inf
      %516 = vst.msk [vmem:[%s500 + $0x150] sm:$0x3] %vm501, -inf
      %517 = vst.msk [vmem:[%s500 + $0x168] sm:$0x3] %vm501, -inf
      %518 = vst.msk [vmem:[%s500 + $0x12] sm:$0x3] %vm501, -inf
      %519 = vst.msk [vmem:[%s500 + $0x2a] sm:$0x3] %vm501, -inf
      %520 = vst.msk [vmem:[%s500 + $0x42] sm:$0x3] %vm501, -inf
      %521 = vst.msk [vmem:[%s500 + $0x5a] sm:$0x3] %vm501, -inf
      %522 = vst.msk [vmem:[%s500 + $0x72] sm:$0x3] %vm501, -inf
      %523 = vst.msk [vmem:[%s500 + $0x8a] sm:$0x3] %vm501, -inf
      %524 = vst.msk [vmem:[%s500 + $0xa2] sm:$0x3] %vm501, -inf
      %525 = vst.msk [vmem:[%s500 + $0xba] sm:$0x3] %vm501, -inf
      %526 = vst.msk [vmem:[%s500 + $0xd2] sm:$0x3] %vm501, -inf
      %527 = vst.msk [vmem:[%s500 + $0xea] sm:$0x3] %vm501, -inf
      %528 = vst.msk [vmem:[%s500 + $0x102] sm:$0x3] %vm501, -inf
      %529 = vst.msk [vmem:[%s500 + $0x11a] sm:$0x3] %vm501, -inf
      %530 = vst.msk [vmem:[%s500 + $0x132] sm:$0x3] %vm501, -inf
      %531 = vst.msk [vmem:[%s500 + $0x14a] sm:$0x3] %vm501, -inf
      %532 = vst.msk [vmem:[%s500 + $0x162] sm:$0x3] %vm501, -inf
      %533 = vst.msk [vmem:[%s500 + $0x17a] sm:$0x3] %vm501, -inf
      %v534 = vld [vmem:[%s435] sm:$0xff]
      %v535 = vld [vmem:[%s435 + $0x8] sm:$0xff]
      %v536 = vld [vmem:[%s435 + $0x10] sm:$0xff]
      %v537 = vld [vmem:[%s435 + $0x18] sm:$0xff]
      %v538 = vld [vmem:[%s435 + $0x20] sm:$0xff]
      %v539 = vld [vmem:[%s435 + $0x28] sm:$0xff]
      %v540 = vld [vmem:[%s435 + $0x30] sm:$0xff]
      %v541 = vld [vmem:[%s435 + $0x38] sm:$0xff]
      %v542 = vld [vmem:[%s435 + $0x40] sm:$0xff]
      %v543 = vld [vmem:[%s435 + $0x48] sm:$0xff]
      %v544 = vld [vmem:[%s435 + $0x50] sm:$0xff]
      %v545 = vld [vmem:[%s435 + $0x58] sm:$0xff]
      %v546 = vld [vmem:[%s435 + $0x60] sm:$0xff]
      %v547 = vld [vmem:[%s435 + $0x68] sm:$0xff]
      %v548 = vld [vmem:[%s435 + $0x70] sm:$0xff]
      %v549 = vld [vmem:[%s435 + $0x78] sm:$0xff]
      %v550 = vld [vmem:[%s435 + $0x80] sm:$0xff]
      %v551 = vld [vmem:[%s435 + $0x88] sm:$0xff]
      %v552 = vld [vmem:[%s435 + $0x90] sm:$0xff]
      %v553 = vld [vmem:[%s435 + $0x98] sm:$0xff]
      %v554 = vld [vmem:[%s435 + $0xa0] sm:$0xff]
      %v555 = vld [vmem:[%s435 + $0xa8] sm:$0xff]
      %v556 = vld [vmem:[%s435 + $0xb0] sm:$0xff]
      %v557 = vld [vmem:[%s435 + $0xb8] sm:$0xff]
      %v558 = vld [vmem:[%s435 + $0xc0] sm:$0xff]
      %v559 = vld [vmem:[%s435 + $0xc8] sm:$0xff]
      %v560 = vld [vmem:[%s435 + $0xd0] sm:$0xff]
      %v561 = vld [vmem:[%s435 + $0xd8] sm:$0xff]
      %v562 = vld [vmem:[%s435 + $0xe0] sm:$0xff]
      %v563 = vld [vmem:[%s435 + $0xe8] sm:$0xff]
      %v564 = vld [vmem:[%s435 + $0xf0] sm:$0xff]
      %v565 = vld [vmem:[%s435 + $0xf8] sm:$0xff]
      %v566 = vld [vmem:[%s1] sm:$0xf]
      %v567 = vld [vmem:[%s2] sm:$0x1]
      %v568 = vpack.c.bf16 %v535, %v534
      %v569 = vpack.c.bf16 %v537, %v536
      %v570 = vpack.c.bf16 %v539, %v538
      %v571 = vpack.c.bf16 %v541, %v540
      %v572 = vpack.c.bf16 %v543, %v542
      %v573 = vpack.c.bf16 %v545, %v544
      %v574 = vpack.c.bf16 %v547, %v546
      %v575 = vpack.c.bf16 %v549, %v548
      %v576 = vpack.c.bf16 %v551, %v550
      %v577 = vpack.c.bf16 %v553, %v552
      %v578 = vpack.c.bf16 %v555, %v554
      %v579 = vpack.c.bf16 %v557, %v556
      %v580 = vpack.c.bf16 %v559, %v558
      %v581 = vpack.c.bf16 %v561, %v560
      %v582 = vpack.c.bf16 %v563, %v562
      %v583 = vpack.c.bf16 %v565, %v564
      %v585 = vlaneseq
      %v586 = vshrl.u32 %v585, 7
      %v587 = vsub.s32 0, %v586
      %v588 = vrot.slane %v567, %v587
      %vm590 = vcmask 64512
      %v592 = vsel %vm590, %v568, 0
      %v595 = vsel %vm590, %v569, 0
      %v598 = vsel %vm590, %v570, 0
      %v601 = vsel %vm590, %v571, 0
      %v604 = vsel %vm590, %v572, 0
      %v607 = vsel %vm590, %v573, 0
      %v610 = vsel %vm590, %v574, 0
      %v613 = vsel %vm590, %v575, 0
      %v616 = vsel %vm590, %v576, 0
      %v619 = vsel %vm590, %v577, 0
      %v622 = vsel %vm590, %v578, 0
      %v625 = vsel %vm590, %v579, 0
      %v628 = vsel %vm590, %v580, 0
      %v631 = vsel %vm590, %v581, 0
      %v634 = vsel %vm590, %v582, 0
      %v637 = vsel %vm590, %v583, 0
      %vm639 = vcmask 1043456
      %v641 = vsel %vm639, %v566, 0
      %643 = vmatprep.subr.bf16.mxu0 0
      %644 = vmatpush1.bf16.msra.mxu0 0
      %645 = vmatprep.subr.bf16.mxu0 0
      %646 = vmatpush1.bf16.msra.mxu0 0
      %647 = vmatprep.subr.bf16.mxu0 0
      %648 = vmatpush1.bf16.msra.mxu0 0
      %649 = vmatprep.subr.bf16.mxu0 0
      %650 = vmatpush1.bf16.msra.mxu0 0
      %651 = vmatprep.subr.bf16.mxu0 0
      %652 = vmatpush1.bf16.msra.mxu0 0
      %653 = vmatprep.subr.bf16.mxu0 0
      %654 = vmatpush1.bf16.msra.mxu0 0
      %655 = vmatprep.subr.bf16.mxu0 0
      %656 = vmatpush1.bf16.msra.mxu0 0
      %657 = vmatprep.subr.bf16.mxu0 0
      %658 = vmatpush1.bf16.msra.mxu0 %v641
      %659 = vmatprep.subr.bf16.mxu0 0
      %660 = vmatpush2.bf16.msra.mxu0 0
      %661 = vmatprep.subr.bf16.mxu0 0
      %662 = vmatpush2.bf16.msra.mxu0 0
      %663 = vmatprep.subr.bf16.mxu0 0
      %664 = vmatpush2.bf16.msra.mxu0 0
      %665 = vmatprep.subr.bf16.mxu0 0
      %666 = vmatpush2.bf16.msra.mxu0 0
      %667 = vmatprep.subr.bf16.mxu0 0
      %668 = vmatpush2.bf16.msra.mxu0 0
      %669 = vmatprep.subr.bf16.mxu0 0
      %670 = vmatpush2.bf16.msra.mxu0 0
      %671 = vmatprep.subr.bf16.mxu0 0
      %672 = vmatpush2.bf16.msra.mxu0 0
      %673 = vmatprep.subr.bf16.mxu0 0
      %674 = vmatpush2.bf16.msra.mxu0 0
      %675 = vmatprep.mubr.bf16.mxu0 0
      %676 = vmatmul.mubr.bf16.gmra.mxu0 %v592
      %v677 = vpop.f32.mrf.mxu0
      %v678 = vadd.f32 %v588, %v677
      %v679 = vpop.f32.mrf.mxu0
      %v680 = vpop.f32.mrf.mxu0
      %v681 = vadd.f32 %v588, %v680
      %v682 = vpop.f32.mrf.mxu0
      %683 = vmatprep.mubr.bf16.mxu0 0
      %684 = vmatmul.mubr.bf16.gmra.mxu0 %v595
      %v685 = vpop.f32.mrf.mxu0
      %v686 = vadd.f32 %v588, %v685
      %v687 = vpop.f32.mrf.mxu0
      %v688 = vpop.f32.mrf.mxu0
      %v689 = vadd.f32 %v588, %v688
      %v690 = vpop.f32.mrf.mxu0
      %691 = vmatprep.mubr.bf16.mxu0 0
      %692 = vmatmul.mubr.bf16.gmra.mxu0 %v598
      %v693 = vpop.f32.mrf.mxu0
      %v694 = vadd.f32 %v588, %v693
      %v695 = vpop.f32.mrf.mxu0
      %v696 = vpop.f32.mrf.mxu0
      %v697 = vadd.f32 %v588, %v696
      %v698 = vpop.f32.mrf.mxu0
      %699 = vmatprep.mubr.bf16.mxu0 0
      %700 = vmatmul.mubr.bf16.gmra.mxu0 %v601
      %v701 = vpop.f32.mrf.mxu0
      %v702 = vadd.f32 %v588, %v701
      %v703 = vpop.f32.mrf.mxu0
      %v704 = vpop.f32.mrf.mxu0
      %v705 = vadd.f32 %v588, %v704
      %v706 = vpop.f32.mrf.mxu0
      %707 = vmatprep.mubr.bf16.mxu0 0
      %708 = vmatmul.mubr.bf16.gmra.mxu0 %v604
      %v709 = vpop.f32.mrf.mxu0
      %v710 = vadd.f32 %v588, %v709
      %v711 = vpop.f32.mrf.mxu0
      %v712 = vpop.f32.mrf.mxu0
      %v713 = vadd.f32 %v588, %v712
      %v714 = vpop.f32.mrf.mxu0
      %715 = vmatprep.mubr.bf16.mxu0 0
      %716 = vmatmul.mubr.bf16.gmra.mxu0 %v607
      %v717 = vpop.f32.mrf.mxu0
      %v718 = vadd.f32 %v588, %v717
      %v719 = vpop.f32.mrf.mxu0
      %v720 = vpop.f32.mrf.mxu0
      %v721 = vadd.f32 %v588, %v720
      %v722 = vpop.f32.mrf.mxu0
      %723 = vmatprep.mubr.bf16.mxu0 0
      %724 = vmatmul.mubr.bf16.gmra.mxu0 %v610
      %v725 = vpop.f32.mrf.mxu0
      %v726 = vadd.f32 %v588, %v725
      %v727 = vpop.f32.mrf.mxu0
      %v728 = vpop.f32.mrf.mxu0
      %v729 = vadd.f32 %v588, %v728
      %v730 = vpop.f32.mrf.mxu0
      %731 = vmatprep.mubr.bf16.mxu0 0
      %732 = vmatmul.mubr.bf16.gmra.mxu0 %v613
      %v733 = vpop.f32.mrf.mxu0
      %v734 = vadd.f32 %v588, %v733
      %v735 = vpop.f32.mrf.mxu0
      %v736 = vpop.f32.mrf.mxu0
      %v737 = vadd.f32 %v588, %v736
      %v738 = vpop.f32.mrf.mxu0
      %739 = vmatprep.mubr.bf16.mxu0 0
      %740 = vmatmul.mubr.bf16.gmra.mxu0 %v616
      %v741 = vpop.f32.mrf.mxu0
      %v742 = vadd.f32 %v588, %v741
      %v743 = vpop.f32.mrf.mxu0
      %v744 = vpop.f32.mrf.mxu0
      %v745 = vadd.f32 %v588, %v744
      %v746 = vpop.f32.mrf.mxu0
      %747 = vmatprep.mubr.bf16.mxu0 0
      %748 = vmatmul.mubr.bf16.gmra.mxu0 %v619
      %v749 = vpop.f32.mrf.mxu0
      %v750 = vadd.f32 %v588, %v749
      %v751 = vpop.f32.mrf.mxu0
      %v752 = vpop.f32.mrf.mxu0
      %v753 = vadd.f32 %v588, %v752
      %v754 = vpop.f32.mrf.mxu0
      %755 = vmatprep.mubr.bf16.mxu0 0
      %756 = vmatmul.mubr.bf16.gmra.mxu0 %v622
      %v757 = vpop.f32.mrf.mxu0
      %v758 = vadd.f32 %v588, %v757
      %v759 = vpop.f32.mrf.mxu0
      %v760 = vpop.f32.mrf.mxu0
      %v761 = vadd.f32 %v588, %v760
      %v762 = vpop.f32.mrf.mxu0
      %763 = vmatprep.mubr.bf16.mxu0 0
      %764 = vmatmul.mubr.bf16.gmra.mxu0 %v625
      %v765 = vpop.f32.mrf.mxu0
      %v766 = vadd.f32 %v588, %v765
      %v767 = vpop.f32.mrf.mxu0
      %v768 = vpop.f32.mrf.mxu0
      %v769 = vadd.f32 %v588, %v768
      %v770 = vpop.f32.mrf.mxu0
      %771 = vmatprep.mubr.bf16.mxu0 0
      %772 = vmatmul.mubr.bf16.gmra.mxu0 %v628
      %v773 = vpop.f32.mrf.mxu0
      %v774 = vadd.f32 %v588, %v773
      %v775 = vpop.f32.mrf.mxu0
      %v776 = vpop.f32.mrf.mxu0
      %v777 = vadd.f32 %v588, %v776
      %v778 = vpop.f32.mrf.mxu0
      %779 = vmatprep.mubr.bf16.mxu0 0
      %780 = vmatmul.mubr.bf16.gmra.mxu0 %v631
      %v781 = vpop.f32.mrf.mxu0
      %v782 = vadd.f32 %v588, %v781
      %v783 = vpop.f32.mrf.mxu0
      %v784 = vpop.f32.mrf.mxu0
      %v785 = vadd.f32 %v588, %v784
      %v786 = vpop.f32.mrf.mxu0
      %787 = vmatprep.mubr.bf16.mxu0 0
      %788 = vmatmul.mubr.bf16.gmra.mxu0 %v634
      %v789 = vpop.f32.mrf.mxu0
      %v790 = vadd.f32 %v588, %v789
      %v791 = vpop.f32.mrf.mxu0
      %v792 = vpop.f32.mrf.mxu0
      %v793 = vadd.f32 %v588, %v792
      %v794 = vpop.f32.mrf.mxu0
      %795 = vmatprep.mubr.bf16.mxu0 0
      %796 = vmatmul.mubr.bf16.gmra.mxu0 %v637
      %v797 = vpop.f32.mrf.mxu0
      %v798 = vadd.f32 %v588, %v797
      %v799 = vpop.f32.mrf.mxu0
      %v800 = vpop.f32.mrf.mxu0
      %v801 = vadd.f32 %v588, %v800
      %v802 = vpop.f32.mrf.mxu0
      %803 = vdwg.mxu0
      %v804 = vmul.f32 %v678, 0.1
      %v805 = vmul.f32 %v681, 0.1
      %v806 = vmul.f32 %v686, 0.1
      %v807 = vmul.f32 %v689, 0.1
      %v808 = vmul.f32 %v694, 0.1
      %v809 = vmul.f32 %v697, 0.1
      %v810 = vmul.f32 %v702, 0.1
      %v811 = vmul.f32 %v705, 0.1
      %v812 = vmul.f32 %v710, 0.1
      %v813 = vmul.f32 %v713, 0.1
      %v814 = vmul.f32 %v718, 0.1
      %v815 = vmul.f32 %v721, 0.1
      %v816 = vmul.f32 %v726, 0.1
      %v817 = vmul.f32 %v729, 0.1
      %v818 = vmul.f32 %v734, 0.1
      %v819 = vmul.f32 %v737, 0.1
      %v820 = vmul.f32 %v742, 0.1
      %v821 = vmul.f32 %v745, 0.1
      %v822 = vmul.f32 %v750, 0.1
      %v823 = vmul.f32 %v753, 0.1
      %v824 = vmul.f32 %v758, 0.1
      %v825 = vmul.f32 %v761, 0.1
      %v826 = vmul.f32 %v766, 0.1
      %v827 = vmul.f32 %v769, 0.1
      %v828 = vmul.f32 %v774, 0.1
      %v829 = vmul.f32 %v777, 0.1
      %v830 = vmul.f32 %v782, 0.1
      %v831 = vmul.f32 %v785, 0.1
      %v832 = vmul.f32 %v790, 0.1
      %v833 = vmul.f32 %v793, 0.1
      %v834 = vmul.f32 %v798, 0.1
      %v835 = vmul.f32 %v801, 0.1
      %v836 = vmax.f32 %v678, %v804
      %v837 = vmax.f32 %v681, %v805
      %v838 = vmax.f32 %v686, %v806
      %v839 = vmax.f32 %v689, %v807
      %v840 = vmax.f32 %v694, %v808
      %v841 = vmax.f32 %v697, %v809
      %v842 = vmax.f32 %v702, %v810
      %v843 = vmax.f32 %v705, %v811
      %v844 = vmax.f32 %v710, %v812
      %v845 = vmax.f32 %v713, %v813
      %v846 = vmax.f32 %v718, %v814
      %v847 = vmax.f32 %v721, %v815
      %v848 = vmax.f32 %v726, %v816
      %v849 = vmax.f32 %v729, %v817
      %v850 = vmax.f32 %v734, %v818
      %v851 = vmax.f32 %v737, %v819
      %v852 = vmax.f32 %v742, %v820
      %v853 = vmax.f32 %v745, %v821
      %v854 = vmax.f32 %v750, %v822
      %v855 = vmax.f32 %v753, %v823
      %v856 = vmax.f32 %v758, %v824
      %v857 = vmax.f32 %v761, %v825
      %v858 = vmax.f32 %v766, %v826
      %v859 = vmax.f32 %v769, %v827
      %v860 = vmax.f32 %v774, %v828
      %v861 = vmax.f32 %v777, %v829
      %v862 = vmax.f32 %v782, %v830
      %v863 = vmax.f32 %v785, %v831
      %v864 = vmax.f32 %v790, %v832
      %v865 = vmax.f32 %v793, %v833
      %v866 = vmax.f32 %v798, %v834
      %v867 = vmax.f32 %v801, %v835
      %v868 = vld [vmem:[%s3] sm:$0xff]
      %v869 = vld [vmem:[%s3 + $0x8] sm:$0x1]
      %v870 = vld [vmem:[%s4] sm:$0x1]
      %871 = vst.msk [vmem:[%s451 + $0x1] sm:$0xff] %vm442, %v836
      %872 = vst.msk [vmem:[%s451 + $0x9] sm:$0xff] %vm442, %v837
      %873 = vst.msk [vmem:[%s451 + $0x19] sm:$0xff] %vm442, %v838
      %874 = vst.msk [vmem:[%s451 + $0x21] sm:$0xff] %vm442, %v839
      %875 = vst.msk [vmem:[%s451 + $0x31] sm:$0xff] %vm442, %v840
      %876 = vst.msk [vmem:[%s451 + $0x39] sm:$0xff] %vm442, %v841
      %877 = vst.msk [vmem:[%s451 + $0x49] sm:$0xff] %vm442, %v842
      %878 = vst.msk [vmem:[%s451 + $0x51] sm:$0xff] %vm442, %v843
      %879 = vst.msk [vmem:[%s451 + $0x61] sm:$0xff] %vm442, %v844
      %880 = vst.msk [vmem:[%s451 + $0x69] sm:$0xff] %vm442, %v845
      %881 = vst.msk [vmem:[%s451 + $0x79] sm:$0xff] %vm442, %v846
      %882 = vst.msk [vmem:[%s451 + $0x81] sm:$0xff] %vm442, %v847
      %883 = vst.msk [vmem:[%s451 + $0x91] sm:$0xff] %vm442, %v848
      %884 = vst.msk [vmem:[%s451 + $0x99] sm:$0xff] %vm442, %v849
      %885 = vst.msk [vmem:[%s451 + $0xa9] sm:$0xff] %vm442, %v850
      %886 = vst.msk [vmem:[%s451 + $0xb1] sm:$0xff] %vm442, %v851
      %887 = vst.msk [vmem:[%s451 + $0xc1] sm:$0xff] %vm442, %v852
      %888 = vst.msk [vmem:[%s451 + $0xc9] sm:$0xff] %vm442, %v853
      %889 = vst.msk [vmem:[%s451 + $0xd9] sm:$0xff] %vm442, %v854
      %890 = vst.msk [vmem:[%s451 + $0xe1] sm:$0xff] %vm442, %v855
      %891 = vst.msk [vmem:[%s451 + $0xf1] sm:$0xff] %vm442, %v856
      %892 = vst.msk [vmem:[%s451 + $0xf9] sm:$0xff] %vm442, %v857
      %893 = vst.msk [vmem:[%s451 + $0x109] sm:$0xff] %vm442, %v858
      %894 = vst.msk [vmem:[%s451 + $0x111] sm:$0xff] %vm442, %v859
      %895 = vst.msk [vmem:[%s451 + $0x121] sm:$0xff] %vm442, %v860
      %896 = vst.msk [vmem:[%s451 + $0x129] sm:$0xff] %vm442, %v861
      %897 = vst.msk [vmem:[%s451 + $0x139] sm:$0xff] %vm442, %v862
      %898 = vst.msk [vmem:[%s451 + $0x141] sm:$0xff] %vm442, %v863
      %899 = vst.msk [vmem:[%s451 + $0x151] sm:$0xff] %vm442, %v864
      %900 = vst.msk [vmem:[%s451 + $0x159] sm:$0xff] %vm442, %v865
      %901 = vst.msk [vmem:[%s451 + $0x169] sm:$0xff] %vm442, %v866
      %902 = vst.msk [vmem:[%s451 + $0x171] sm:$0xff] %vm442, %v867
      %v903 = vld [vmem:[#allocation2] sm:$0xff]
      %v904 = vld [vmem:[#allocation2 + $0x8] sm:$0xff]
      %v905 = vld [vmem:[#allocation2 + $0x18] sm:$0xff]
      %v906 = vld [vmem:[#allocation2 + $0x20] sm:$0xff]
      %v907 = vld [vmem:[#allocation2 + $0x30] sm:$0xff]
      %v908 = vld [vmem:[#allocation2 + $0x38] sm:$0xff]
      %v909 = vld [vmem:[#allocation2 + $0x48] sm:$0xff]
      %v910 = vld [vmem:[#allocation2 + $0x50] sm:$0xff]
      %v911 = vld [vmem:[#allocation2 + $0x60] sm:$0xff]
      %v912 = vld [vmem:[#allocation2 + $0x68] sm:$0xff]
      %v913 = vld [vmem:[#allocation2 + $0x78] sm:$0xff]
      %v914 = vld [vmem:[#allocation2 + $0x80] sm:$0xff]
      %v915 = vld [vmem:[#allocation2 + $0x90] sm:$0xff]
      %v916 = vld [vmem:[#allocation2 + $0x98] sm:$0xff]
      %v917 = vld [vmem:[#allocation2 + $0xa8] sm:$0xff]
      %v918 = vld [vmem:[#allocation2 + $0xb0] sm:$0xff]
      %v919 = vld [vmem:[#allocation2 + $0xc0] sm:$0xff]
      %v920 = vld [vmem:[#allocation2 + $0xc8] sm:$0xff]
      %v921 = vld [vmem:[#allocation2 + $0xd8] sm:$0xff]
      %v922 = vld [vmem:[#allocation2 + $0xe0] sm:$0xff]
      %v923 = vld [vmem:[#allocation2 + $0xf0] sm:$0xff]
      %v924 = vld [vmem:[#allocation2 + $0xf8] sm:$0xff]
      %v925 = vld [vmem:[#allocation2 + $0x108] sm:$0xff]
      %v926 = vld [vmem:[#allocation2 + $0x110] sm:$0xff]
      %v927 = vld [vmem:[#allocation2 + $0x120] sm:$0xff]
      %v928 = vld [vmem:[#allocation2 + $0x128] sm:$0xff]
      %v929 = vld [vmem:[#allocation2 + $0x138] sm:$0xff]
      %v930 = vld [vmem:[#allocation2 + $0x140] sm:$0xff]
      %v931 = vld [vmem:[#allocation2 + $0x150] sm:$0xff]
      %v932 = vld [vmem:[#allocation2 + $0x158] sm:$0xff]
      %v933 = vld [vmem:[#allocation2 + $0x168] sm:$0xff]
      %v934 = vld [vmem:[#allocation2 + $0x170] sm:$0xff]
      %v935 = vlaneseq
      %v936 = vshrl.u32 %v935, 7
      %v937 = vsub.s32 0, %v936
      %v938 = vrot.slane %v868, %v937
      %v939 = vmul.f32 %v903, %v938
      %v940 = vmul.f32 %v904, %v938
      %v941 = vmul.f32 %v905, %v938
      %v942 = vmul.f32 %v906, %v938
      %v943 = vmul.f32 %v907, %v938
      %v944 = vmul.f32 %v908, %v938
      %v945 = vmul.f32 %v909, %v938
      %v946 = vmul.f32 %v910, %v938
      %v947 = vmul.f32 %v911, %v938
      %v948 = vmul.f32 %v912, %v938
      %v949 = vmul.f32 %v913, %v938
      %v950 = vmul.f32 %v914, %v938
      %v951 = vmul.f32 %v915, %v938
      %v952 = vmul.f32 %v916, %v938
      %v953 = vmul.f32 %v917, %v938
      %v954 = vmul.f32 %v918, %v938
      %v955 = vmul.f32 %v919, %v938
      %v956 = vmul.f32 %v920, %v938
      %v957 = vmul.f32 %v921, %v938
      %v958 = vmul.f32 %v922, %v938
      %v959 = vmul.f32 %v923, %v938
      %v960 = vmul.f32 %v924, %v938
      %v961 = vmul.f32 %v925, %v938
      %v962 = vmul.f32 %v926, %v938
      %v963 = vmul.f32 %v927, %v938
      %v964 = vmul.f32 %v928, %v938
      %v965 = vmul.f32 %v929, %v938
      %v966 = vmul.f32 %v930, %v938
      %v967 = vmul.f32 %v931, %v938
      %v968 = vmul.f32 %v932, %v938
      %v969 = vmul.f32 %v933, %v938
      %v970 = vmul.f32 %v934, %v938
      %v971 = vadd.f32 %v939, 0.0
      %v972 = vadd.f32 %v940, 0.0
      %v973 = vadd.f32 %v941, 0.0
      %v974 = vadd.f32 %v942, 0.0
      %v975 = vadd.f32 %v943, 0.0
      %v976 = vadd.f32 %v944, 0.0
      %v977 = vadd.f32 %v945, 0.0
      %v978 = vadd.f32 %v946, 0.0
      %v979 = vadd.f32 %v947, 0.0
      %v980 = vadd.f32 %v948, 0.0
      %v981 = vadd.f32 %v949, 0.0
      %v982 = vadd.f32 %v950, 0.0
      %v983 = vadd.f32 %v951, 0.0
      %v984 = vadd.f32 %v952, 0.0
      %v985 = vadd.f32 %v953, 0.0
      %v986 = vadd.f32 %v954, 0.0
      %v987 = vadd.f32 %v955, 0.0
      %v988 = vadd.f32 %v956, 0.0
      %v989 = vadd.f32 %v957, 0.0
      %v990 = vadd.f32 %v958, 0.0
      %v991 = vadd.f32 %v959, 0.0
      %v992 = vadd.f32 %v960, 0.0
      %v993 = vadd.f32 %v961, 0.0
      %v994 = vadd.f32 %v962, 0.0
      %v995 = vadd.f32 %v963, 0.0
      %v996 = vadd.f32 %v964, 0.0
      %v997 = vadd.f32 %v965, 0.0
      %v998 = vadd.f32 %v966, 0.0
      %v999 = vadd.f32 %v967, 0.0
      %v1000 = vadd.f32 %v968, 0.0
      %v1001 = vadd.f32 %v969, 0.0
      %v1002 = vadd.f32 %v970, 0.0
      %v1003 = vld [vmem:[#allocation2 + $0x1] sm:$0xff]
      %v1004 = vld [vmem:[#allocation2 + $0x9] sm:$0xff]
      %v1005 = vld [vmem:[#allocation2 + $0x19] sm:$0xff]
      %v1006 = vld [vmem:[#allocation2 + $0x21] sm:$0xff]
      %v1007 = vld [vmem:[#allocation2 + $0x31] sm:$0xff]
      %v1008 = vld [vmem:[#allocation2 + $0x39] sm:$0xff]
      %v1009 = vld [vmem:[#allocation2 + $0x49] sm:$0xff]
      %v1010 = vld [vmem:[#allocation2 + $0x51] sm:$0xff]
      %v1011 = vld [vmem:[#allocation2 + $0x61] sm:$0xff]
      %v1012 = vld [vmem:[#allocation2 + $0x69] sm:$0xff]
      %v1013 = vld [vmem:[#allocation2 + $0x79] sm:$0xff]
      %v1014 = vld [vmem:[#allocation2 + $0x81] sm:$0xff]
      %v1015 = vld [vmem:[#allocation2 + $0x91] sm:$0xff]
      %v1016 = vld [vmem:[#allocation2 + $0x99] sm:$0xff]
      %v1017 = vld [vmem:[#allocation2 + $0xa9] sm:$0xff]
      %v1018 = vld [vmem:[#allocation2 + $0xb1] sm:$0xff]
      %v1019 = vld [vmem:[#allocation2 + $0xc1] sm:$0xff]
      %v1020 = vld [vmem:[#allocation2 + $0xc9] sm:$0xff]
      %v1021 = vld [vmem:[#allocation2 + $0xd9] sm:$0xff]
      %v1022 = vld [vmem:[#allocation2 + $0xe1] sm:$0xff]
      %v1023 = vld [vmem:[#allocation2 + $0xf1] sm:$0xff]
      %v1024 = vld [vmem:[#allocation2 + $0xf9] sm:$0xff]
      %v1025 = vld [vmem:[#allocation2 + $0x109] sm:$0xff]
      %v1026 = vld [vmem:[#allocation2 + $0x111] sm:$0xff]
      %v1027 = vld [vmem:[#allocation2 + $0x121] sm:$0xff]
      %v1028 = vld [vmem:[#allocation2 + $0x129] sm:$0xff]
      %v1029 = vld [vmem:[#allocation2 + $0x139] sm:$0xff]
      %v1030 = vld [vmem:[#allocation2 + $0x141] sm:$0xff]
      %v1031 = vld [vmem:[#allocation2 + $0x151] sm:$0xff]
      %v1032 = vld [vmem:[#allocation2 + $0x159] sm:$0xff]
      %v1033 = vld [vmem:[#allocation2 + $0x169] sm:$0xff]
      %v1034 = vld [vmem:[#allocation2 + $0x171] sm:$0xff]
      %v1035 = vlaneseq
      %v1036 = vshrl.u32 %v1035, 7
      %v1037 = vsub.s32 1, %v1036
      %v1038 = vrot.slane %v868, %v1037
      %v1039 = vmul.f32 %v1003, %v1038
      %v1040 = vmul.f32 %v1004, %v1038
      %v1041 = vmul.f32 %v1005, %v1038
      %v1042 = vmul.f32 %v1006, %v1038
      %v1043 = vmul.f32 %v1007, %v1038
      %v1044 = vmul.f32 %v1008, %v1038
      %v1045 = vmul.f32 %v1009, %v1038
      %v1046 = vmul.f32 %v1010, %v1038
      %v1047 = vmul.f32 %v1011, %v1038
      %v1048 = vmul.f32 %v1012, %v1038
      %v1049 = vmul.f32 %v1013, %v1038
      %v1050 = vmul.f32 %v1014, %v1038
      %v1051 = vmul.f32 %v1015, %v1038
      %v1052 = vmul.f32 %v1016, %v1038
      %v1053 = vmul.f32 %v1017, %v1038
      %v1054 = vmul.f32 %v1018, %v1038
      %v1055 = vmul.f32 %v1019, %v1038
      %v1056 = vmul.f32 %v1020, %v1038
      %v1057 = vmul.f32 %v1021, %v1038
      %v1058 = vmul.f32 %v1022, %v1038
      %v1059 = vmul.f32 %v1023, %v1038
      %v1060 = vmul.f32 %v1024, %v1038
      %v1061 = vmul.f32 %v1025, %v1038
      %v1062 = vmul.f32 %v1026, %v1038
      %v1063 = vmul.f32 %v1027, %v1038
      %v1064 = vmul.f32 %v1028, %v1038
      %v1065 = vmul.f32 %v1029, %v1038
      %v1066 = vmul.f32 %v1030, %v1038
      %v1067 = vmul.f32 %v1031, %v1038
      %v1068 = vmul.f32 %v1032, %v1038
      %v1069 = vmul.f32 %v1033, %v1038
      %v1070 = vmul.f32 %v1034, %v1038
      %v1071 = vadd.f32 %v971, %v1039
      %v1072 = vadd.f32 %v972, %v1040
      %v1073 = vadd.f32 %v973, %v1041
      %v1074 = vadd.f32 %v974, %v1042
      %v1075 = vadd.f32 %v975, %v1043
      %v1076 = vadd.f32 %v976, %v1044
      %v1077 = vadd.f32 %v977, %v1045
      %v1078 = vadd.f32 %v978, %v1046
      %v1079 = vadd.f32 %v979, %v1047
      %v1080 = vadd.f32 %v980, %v1048
      %v1081 = vadd.f32 %v981, %v1049
      %v1082 = vadd.f32 %v982, %v1050
      %v1083 = vadd.f32 %v983, %v1051
      %v1084 = vadd.f32 %v984, %v1052
      %v1085 = vadd.f32 %v985, %v1053
      %v1086 = vadd.f32 %v986, %v1054
      %v1087 = vadd.f32 %v987, %v1055
      %v1088 = vadd.f32 %v988, %v1056
      %v1089 = vadd.f32 %v989, %v1057
      %v1090 = vadd.f32 %v990, %v1058
      %v1091 = vadd.f32 %v991, %v1059
      %v1092 = vadd.f32 %v992, %v1060
      %v1093 = vadd.f32 %v993, %v1061
      %v1094 = vadd.f32 %v994, %v1062
      %v1095 = vadd.f32 %v995, %v1063
      %v1096 = vadd.f32 %v996, %v1064
      %v1097 = vadd.f32 %v997, %v1065
      %v1098 = vadd.f32 %v998, %v1066
      %v1099 = vadd.f32 %v999, %v1067
      %v1100 = vadd.f32 %v1000, %v1068
      %v1101 = vadd.f32 %v1001, %v1069
      %v1102 = vadd.f32 %v1002, %v1070
      %v1103 = vld [vmem:[#allocation2 + $0x2] sm:$0xff]
      %v1104 = vld [vmem:[#allocation2 + $0xa] sm:$0xff]
      %v1105 = vld [vmem:[#allocation2 + $0x1a] sm:$0xff]
      %v1106 = vld [vmem:[#allocation2 + $0x22] sm:$0xff]
      %v1107 = vld [vmem:[#allocation2 + $0x32] sm:$0xff]
      %v1108 = vld [vmem:[#allocation2 + $0x3a] sm:$0xff]
      %v1109 = vld [vmem:[#allocation2 + $0x4a] sm:$0xff]
      %v1110 = vld [vmem:[#allocation2 + $0x52] sm:$0xff]
      %v1111 = vld [vmem:[#allocation2 + $0x62] sm:$0xff]
      %v1112 = vld [vmem:[#allocation2 + $0x6a] sm:$0xff]
      %v1113 = vld [vmem:[#allocation2 + $0x7a] sm:$0xff]
      %v1114 = vld [vmem:[#allocation2 + $0x82] sm:$0xff]
      %v1115 = vld [vmem:[#allocation2 + $0x92] sm:$0xff]
      %v1116 = vld [vmem:[#allocation2 + $0x9a] sm:$0xff]
      %v1117 = vld [vmem:[#allocation2 + $0xaa] sm:$0xff]
      %v1118 = vld [vmem:[#allocation2 + $0xb2] sm:$0xff]
      %v1119 = vld [vmem:[#allocation2 + $0xc2] sm:$0xff]
      %v1120 = vld [vmem:[#allocation2 + $0xca] sm:$0xff]
      %v1121 = vld [vmem:[#allocation2 + $0xda] sm:$0xff]
      %v1122 = vld [vmem:[#allocation2 + $0xe2] sm:$0xff]
      %v1123 = vld [vmem:[#allocation2 + $0xf2] sm:$0xff]
      %v1124 = vld [vmem:[#allocation2 + $0xfa] sm:$0xff]
      %v1125 = vld [vmem:[#allocation2 + $0x10a] sm:$0xff]
      %v1126 = vld [vmem:[#allocation2 + $0x112] sm:$0xff]
      %v1127 = vld [vmem:[#allocation2 + $0x122] sm:$0xff]
      %v1128 = vld [vmem:[#allocation2 + $0x12a] sm:$0xff]
      %v1129 = vld [vmem:[#allocation2 + $0x13a] sm:$0xff]
      %v1130 = vld [vmem:[#allocation2 + $0x142] sm:$0xff]
      %v1131 = vld [vmem:[#allocation2 + $0x152] sm:$0xff]
      %v1132 = vld [vmem:[#allocation2 + $0x15a] sm:$0xff]
      %v1133 = vld [vmem:[#allocation2 + $0x16a] sm:$0xff]
      %v1134 = vld [vmem:[#allocation2 + $0x172] sm:$0xff]
      %v1135 = vlaneseq
      %v1136 = vshrl.u32 %v1135, 7
      %v1137 = vsub.s32 2, %v1136
      %v1138 = vrot.slane %v868, %v1137
      %v1139 = vmul.f32 %v1103, %v1138
      %v1140 = vmul.f32 %v1104, %v1138
      %v1141 = vmul.f32 %v1105, %v1138
      %v1142 = vmul.f32 %v1106, %v1138
      %v1143 = vmul.f32 %v1107, %v1138
      %v1144 = vmul.f32 %v1108, %v1138
      %v1145 = vmul.f32 %v1109, %v1138
      %v1146 = vmul.f32 %v1110, %v1138
      %v1147 = vmul.f32 %v1111, %v1138
      %v1148 = vmul.f32 %v1112, %v1138
      %v1149 = vmul.f32 %v1113, %v1138
      %v1150 = vmul.f32 %v1114, %v1138
      %v1151 = vmul.f32 %v1115, %v1138
      %v1152 = vmul.f32 %v1116, %v1138
      %v1153 = vmul.f32 %v1117, %v1138
      %v1154 = vmul.f32 %v1118, %v1138
      %v1155 = vmul.f32 %v1119, %v1138
      %v1156 = vmul.f32 %v1120, %v1138
      %v1157 = vmul.f32 %v1121, %v1138
      %v1158 = vmul.f32 %v1122, %v1138
      %v1159 = vmul.f32 %v1123, %v1138
      %v1160 = vmul.f32 %v1124, %v1138
      %v1161 = vmul.f32 %v1125, %v1138
      %v1162 = vmul.f32 %v1126, %v1138
      %v1163 = vmul.f32 %v1127, %v1138
      %v1164 = vmul.f32 %v1128, %v1138
      %v1165 = vmul.f32 %v1129, %v1138
      %v1166 = vmul.f32 %v1130, %v1138
      %v1167 = vmul.f32 %v1131, %v1138
      %v1168 = vmul.f32 %v1132, %v1138
      %v1169 = vmul.f32 %v1133, %v1138
      %v1170 = vmul.f32 %v1134, %v1138
      %v1171 = vadd.f32 %v1071, %v1139
      %v1172 = vadd.f32 %v1072, %v1140
      %v1173 = vadd.f32 %v1073, %v1141
      %v1174 = vadd.f32 %v1074, %v1142
      %v1175 = vadd.f32 %v1075, %v1143
      %v1176 = vadd.f32 %v1076, %v1144
      %v1177 = vadd.f32 %v1077, %v1145
      %v1178 = vadd.f32 %v1078, %v1146
      %v1179 = vadd.f32 %v1079, %v1147
      %v1180 = vadd.f32 %v1080, %v1148
      %v1181 = vadd.f32 %v1081, %v1149
      %v1182 = vadd.f32 %v1082, %v1150
      %v1183 = vadd.f32 %v1083, %v1151
      %v1184 = vadd.f32 %v1084, %v1152
      %v1185 = vadd.f32 %v1085, %v1153
      %v1186 = vadd.f32 %v1086, %v1154
      %v1187 = vadd.f32 %v1087, %v1155
      %v1188 = vadd.f32 %v1088, %v1156
      %v1189 = vadd.f32 %v1089, %v1157
      %v1190 = vadd.f32 %v1090, %v1158
      %v1191 = vadd.f32 %v1091, %v1159
      %v1192 = vadd.f32 %v1092, %v1160
      %v1193 = vadd.f32 %v1093, %v1161
      %v1194 = vadd.f32 %v1094, %v1162
      %v1195 = vadd.f32 %v1095, %v1163
      %v1196 = vadd.f32 %v1096, %v1164
      %v1197 = vadd.f32 %v1097, %v1165
      %v1198 = vadd.f32 %v1098, %v1166
      %v1199 = vadd.f32 %v1099, %v1167
      %v1200 = vadd.f32 %v1100, %v1168
      %v1201 = vadd.f32 %v1101, %v1169
      %v1202 = vadd.f32 %v1102, %v1170
      %v1203 = vld [vmem:[%s451] sm:$0xff]
      %v1204 = vld [vmem:[%s451 + $0x8] sm:$0xff]
      %v1205 = vld [vmem:[%s451 + $0x18] sm:$0xff]
      %v1206 = vld [vmem:[%s451 + $0x20] sm:$0xff]
      %v1207 = vld [vmem:[%s451 + $0x30] sm:$0xff]
      %v1208 = vld [vmem:[%s451 + $0x38] sm:$0xff]
      %v1209 = vld [vmem:[%s451 + $0x48] sm:$0xff]
      %v1210 = vld [vmem:[%s451 + $0x50] sm:$0xff]
      %v1211 = vld [vmem:[%s451 + $0x60] sm:$0xff]
      %v1212 = vld [vmem:[%s451 + $0x68] sm:$0xff]
      %v1213 = vld [vmem:[%s451 + $0x78] sm:$0xff]
      %v1214 = vld [vmem:[%s451 + $0x80] sm:$0xff]
      %v1215 = vld [vmem:[%s451 + $0x90] sm:$0xff]
      %v1216 = vld [vmem:[%s451 + $0x98] sm:$0xff]
      %v1217 = vld [vmem:[%s451 + $0xa8] sm:$0xff]
      %v1218 = vld [vmem:[%s451 + $0xb0] sm:$0xff]
      %v1219 = vld [vmem:[%s451 + $0xc0] sm:$0xff]
      %v1220 = vld [vmem:[%s451 + $0xc8] sm:$0xff]
      %v1221 = vld [vmem:[%s451 + $0xd8] sm:$0xff]
      %v1222 = vld [vmem:[%s451 + $0xe0] sm:$0xff]
      %v1223 = vld [vmem:[%s451 + $0xf0] sm:$0xff]
      %v1224 = vld [vmem:[%s451 + $0xf8] sm:$0xff]
      %v1225 = vld [vmem:[%s451 + $0x108] sm:$0xff]
      %v1226 = vld [vmem:[%s451 + $0x110] sm:$0xff]
      %v1227 = vld [vmem:[%s451 + $0x120] sm:$0xff]
      %v1228 = vld [vmem:[%s451 + $0x128] sm:$0xff]
      %v1229 = vld [vmem:[%s451 + $0x138] sm:$0xff]
      %v1230 = vld [vmem:[%s451 + $0x140] sm:$0xff]
      %v1231 = vld [vmem:[%s451 + $0x150] sm:$0xff]
      %v1232 = vld [vmem:[%s451 + $0x158] sm:$0xff]
      %v1233 = vld [vmem:[%s451 + $0x168] sm:$0xff]
      %v1234 = vld [vmem:[%s451 + $0x170] sm:$0xff]
      %v1235 = vlaneseq
      %v1236 = vshrl.u32 %v1235, 7
      %v1237 = vsub.s32 3, %v1236
      %v1238 = vrot.slane %v868, %v1237
      %v1239 = vmul.f32 %v1203, %v1238
      %v1240 = vmul.f32 %v1204, %v1238
      %v1241 = vmul.f32 %v1205, %v1238
      %v1242 = vmul.f32 %v1206, %v1238
      %v1243 = vmul.f32 %v1207, %v1238
      %v1244 = vmul.f32 %v1208, %v1238
      %v1245 = vmul.f32 %v1209, %v1238
      %v1246 = vmul.f32 %v1210, %v1238
      %v1247 = vmul.f32 %v1211, %v1238
      %v1248 = vmul.f32 %v1212, %v1238
      %v1249 = vmul.f32 %v1213, %v1238
      %v1250 = vmul.f32 %v1214, %v1238
      %v1251 = vmul.f32 %v1215, %v1238
      %v1252 = vmul.f32 %v1216, %v1238
      %v1253 = vmul.f32 %v1217, %v1238
      %v1254 = vmul.f32 %v1218, %v1238
      %v1255 = vmul.f32 %v1219, %v1238
      %v1256 = vmul.f32 %v1220, %v1238
      %v1257 = vmul.f32 %v1221, %v1238
      %v1258 = vmul.f32 %v1222, %v1238
      %v1259 = vmul.f32 %v1223, %v1238
      %v1260 = vmul.f32 %v1224, %v1238
      %v1261 = vmul.f32 %v1225, %v1238
      %v1262 = vmul.f32 %v1226, %v1238
      %v1263 = vmul.f32 %v1227, %v1238
      %v1264 = vmul.f32 %v1228, %v1238
      %v1265 = vmul.f32 %v1229, %v1238
      %v1266 = vmul.f32 %v1230, %v1238
      %v1267 = vmul.f32 %v1231, %v1238
      %v1268 = vmul.f32 %v1232, %v1238
      %v1269 = vmul.f32 %v1233, %v1238
      %v1270 = vmul.f32 %v1234, %v1238
      %v1271 = vadd.f32 %v1171, %v1239
      %v1272 = vadd.f32 %v1172, %v1240
      %v1273 = vadd.f32 %v1173, %v1241
      %v1274 = vadd.f32 %v1174, %v1242
      %v1275 = vadd.f32 %v1175, %v1243
      %v1276 = vadd.f32 %v1176, %v1244
      %v1277 = vadd.f32 %v1177, %v1245
      %v1278 = vadd.f32 %v1178, %v1246
      %v1279 = vadd.f32 %v1179, %v1247
      %v1280 = vadd.f32 %v1180, %v1248
      %v1281 = vadd.f32 %v1181, %v1249
      %v1282 = vadd.f32 %v1182, %v1250
      %v1283 = vadd.f32 %v1183, %v1251
      %v1284 = vadd.f32 %v1184, %v1252
      %v1285 = vadd.f32 %v1185, %v1253
      %v1286 = vadd.f32 %v1186, %v1254
      %v1287 = vadd.f32 %v1187, %v1255
      %v1288 = vadd.f32 %v1188, %v1256
      %v1289 = vadd.f32 %v1189, %v1257
      %v1290 = vadd.f32 %v1190, %v1258
      %v1291 = vadd.f32 %v1191, %v1259
      %v1292 = vadd.f32 %v1192, %v1260
      %v1293 = vadd.f32 %v1193, %v1261
      %v1294 = vadd.f32 %v1194, %v1262
      %v1295 = vadd.f32 %v1195, %v1263
      %v1296 = vadd.f32 %v1196, %v1264
      %v1297 = vadd.f32 %v1197, %v1265
      %v1298 = vadd.f32 %v1198, %v1266
      %v1299 = vadd.f32 %v1199, %v1267
      %v1300 = vadd.f32 %v1200, %v1268
      %v1301 = vadd.f32 %v1201, %v1269
      %v1302 = vadd.f32 %v1202, %v1270
      %v1303 = vld [vmem:[%s451 + $0x1] sm:$0xff]
      %v1304 = vld [vmem:[%s451 + $0x9] sm:$0xff]
      %v1305 = vld [vmem:[%s451 + $0x19] sm:$0xff]
      %v1306 = vld [vmem:[%s451 + $0x21] sm:$0xff]
      %v1307 = vld [vmem:[%s451 + $0x31] sm:$0xff]
      %v1308 = vld [vmem:[%s451 + $0x39] sm:$0xff]
      %v1309 = vld [vmem:[%s451 + $0x49] sm:$0xff]
      %v1310 = vld [vmem:[%s451 + $0x51] sm:$0xff]
      %v1311 = vld [vmem:[%s451 + $0x61] sm:$0xff]
      %v1312 = vld [vmem:[%s451 + $0x69] sm:$0xff]
      %v1313 = vld [vmem:[%s451 + $0x79] sm:$0xff]
      %v1314 = vld [vmem:[%s451 + $0x81] sm:$0xff]
      %v1315 = vld [vmem:[%s451 + $0x91] sm:$0xff]
      %v1316 = vld [vmem:[%s451 + $0x99] sm:$0xff]
      %v1317 = vld [vmem:[%s451 + $0xa9] sm:$0xff]
      %v1318 = vld [vmem:[%s451 + $0xb1] sm:$0xff]
      %v1319 = vld [vmem:[%s451 + $0xc1] sm:$0xff]
      %v1320 = vld [vmem:[%s451 + $0xc9] sm:$0xff]
      %v1321 = vld [vmem:[%s451 + $0xd9] sm:$0xff]
      %v1322 = vld [vmem:[%s451 + $0xe1] sm:$0xff]
      %v1323 = vld [vmem:[%s451 + $0xf1] sm:$0xff]
      %v1324 = vld [vmem:[%s451 + $0xf9] sm:$0xff]
      %v1325 = vld [vmem:[%s451 + $0x109] sm:$0xff]
      %v1326 = vld [vmem:[%s451 + $0x111] sm:$0xff]
      %v1327 = vld [vmem:[%s451 + $0x121] sm:$0xff]
      %v1328 = vld [vmem:[%s451 + $0x129] sm:$0xff]
      %v1329 = vld [vmem:[%s451 + $0x139] sm:$0xff]
      %v1330 = vld [vmem:[%s451 + $0x141] sm:$0xff]
      %v1331 = vld [vmem:[%s451 + $0x151] sm:$0xff]
      %v1332 = vld [vmem:[%s451 + $0x159] sm:$0xff]
      %v1333 = vld [vmem:[%s451 + $0x169] sm:$0xff]
      %v1334 = vld [vmem:[%s451 + $0x171] sm:$0xff]
      %v1335 = vlaneseq
      %v1336 = vshrl.u32 %v1335, 7
      %v1337 = vsub.s32 4, %v1336
      %v1338 = vrot.slane %v868, %v1337
      %v1339 = vmul.f32 %v1303, %v1338
      %v1340 = vmul.f32 %v1304, %v1338
      %v1341 = vmul.f32 %v1305, %v1338
      %v1342 = vmul.f32 %v1306, %v1338
      %v1343 = vmul.f32 %v1307, %v1338
      %v1344 = vmul.f32 %v1308, %v1338
      %v1345 = vmul.f32 %v1309, %v1338
      %v1346 = vmul.f32 %v1310, %v1338
      %v1347 = vmul.f32 %v1311, %v1338
      %v1348 = vmul.f32 %v1312, %v1338
      %v1349 = vmul.f32 %v1313, %v1338
      %v1350 = vmul.f32 %v1314, %v1338
      %v1351 = vmul.f32 %v1315, %v1338
      %v1352 = vmul.f32 %v1316, %v1338
      %v1353 = vmul.f32 %v1317, %v1338
      %v1354 = vmul.f32 %v1318, %v1338
      %v1355 = vmul.f32 %v1319, %v1338
      %v1356 = vmul.f32 %v1320, %v1338
      %v1357 = vmul.f32 %v1321, %v1338
      %v1358 = vmul.f32 %v1322, %v1338
      %v1359 = vmul.f32 %v1323, %v1338
      %v1360 = vmul.f32 %v1324, %v1338
      %v1361 = vmul.f32 %v1325, %v1338
      %v1362 = vmul.f32 %v1326, %v1338
      %v1363 = vmul.f32 %v1327, %v1338
      %v1364 = vmul.f32 %v1328, %v1338
      %v1365 = vmul.f32 %v1329, %v1338
      %v1366 = vmul.f32 %v1330, %v1338
      %v1367 = vmul.f32 %v1331, %v1338
      %v1368 = vmul.f32 %v1332, %v1338
      %v1369 = vmul.f32 %v1333, %v1338
      %v1370 = vmul.f32 %v1334, %v1338
      %v1371 = vadd.f32 %v1271, %v1339
      %v1372 = vadd.f32 %v1272, %v1340
      %v1373 = vadd.f32 %v1273, %v1341
      %v1374 = vadd.f32 %v1274, %v1342
      %v1375 = vadd.f32 %v1275, %v1343
      %v1376 = vadd.f32 %v1276, %v1344
      %v1377 = vadd.f32 %v1277, %v1345
      %v1378 = vadd.f32 %v1278, %v1346
      %v1379 = vadd.f32 %v1279, %v1347
      %v1380 = vadd.f32 %v1280, %v1348
      %v1381 = vadd.f32 %v1281, %v1349
      %v1382 = vadd.f32 %v1282, %v1350
      %v1383 = vadd.f32 %v1283, %v1351
      %v1384 = vadd.f32 %v1284, %v1352
      %v1385 = vadd.f32 %v1285, %v1353
      %v1386 = vadd.f32 %v1286, %v1354
      %v1387 = vadd.f32 %v1287, %v1355
      %v1388 = vadd.f32 %v1288, %v1356
      %v1389 = vadd.f32 %v1289, %v1357
      %v1390 = vadd.f32 %v1290, %v1358
      %v1391 = vadd.f32 %v1291, %v1359
      %v1392 = vadd.f32 %v1292, %v1360
      %v1393 = vadd.f32 %v1293, %v1361
      %v1394 = vadd.f32 %v1294, %v1362
      %v1395 = vadd.f32 %v1295, %v1363
      %v1396 = vadd.f32 %v1296, %v1364
      %v1397 = vadd.f32 %v1297, %v1365
      %v1398 = vadd.f32 %v1298, %v1366
      %v1399 = vadd.f32 %v1299, %v1367
      %v1400 = vadd.f32 %v1300, %v1368
      %v1401 = vadd.f32 %v1301, %v1369
      %v1402 = vadd.f32 %v1302, %v1370
      %v1403 = vld [vmem:[%s451 + $0x2] sm:$0xff]
      %v1404 = vld [vmem:[%s451 + $0xa] sm:$0xff]
      %v1405 = vld [vmem:[%s451 + $0x1a] sm:$0xff]
      %v1406 = vld [vmem:[%s451 + $0x22] sm:$0xff]
      %v1407 = vld [vmem:[%s451 + $0x32] sm:$0xff]
      %v1408 = vld [vmem:[%s451 + $0x3a] sm:$0xff]
      %v1409 = vld [vmem:[%s451 + $0x4a] sm:$0xff]
      %v1410 = vld [vmem:[%s451 + $0x52] sm:$0xff]
      %v1411 = vld [vmem:[%s451 + $0x62] sm:$0xff]
      %v1412 = vld [vmem:[%s451 + $0x6a] sm:$0xff]
      %v1413 = vld [vmem:[%s451 + $0x7a] sm:$0xff]
      %v1414 = vld [vmem:[%s451 + $0x82] sm:$0xff]
      %v1415 = vld [vmem:[%s451 + $0x92] sm:$0xff]
      %v1416 = vld [vmem:[%s451 + $0x9a] sm:$0xff]
      %v1417 = vld [vmem:[%s451 + $0xaa] sm:$0xff]
      %v1418 = vld [vmem:[%s451 + $0xb2] sm:$0xff]
      %v1419 = vld [vmem:[%s451 + $0xc2] sm:$0xff]
      %v1420 = vld [vmem:[%s451 + $0xca] sm:$0xff]
      %v1421 = vld [vmem:[%s451 + $0xda] sm:$0xff]
      %v1422 = vld [vmem:[%s451 + $0xe2] sm:$0xff]
      %v1423 = vld [vmem:[%s451 + $0xf2] sm:$0xff]
      %v1424 = vld [vmem:[%s451 + $0xfa] sm:$0xff]
      %v1425 = vld [vmem:[%s451 + $0x10a] sm:$0xff]
      %v1426 = vld [vmem:[%s451 + $0x112] sm:$0xff]
      %v1427 = vld [vmem:[%s451 + $0x122] sm:$0xff]
      %v1428 = vld [vmem:[%s451 + $0x12a] sm:$0xff]
      %v1429 = vld [vmem:[%s451 + $0x13a] sm:$0xff]
      %v1430 = vld [vmem:[%s451 + $0x142] sm:$0xff]
      %v1431 = vld [vmem:[%s451 + $0x152] sm:$0xff]
      %v1432 = vld [vmem:[%s451 + $0x15a] sm:$0xff]
      %v1433 = vld [vmem:[%s451 + $0x16a] sm:$0xff]
      %v1434 = vld [vmem:[%s451 + $0x172] sm:$0xff]
      %v1435 = vlaneseq
      %v1436 = vshrl.u32 %v1435, 7
      %v1437 = vsub.s32 5, %v1436
      %v1438 = vrot.slane %v868, %v1437
      %v1439 = vmul.f32 %v1403, %v1438
      %v1440 = vmul.f32 %v1404, %v1438
      %v1441 = vmul.f32 %v1405, %v1438
      %v1442 = vmul.f32 %v1406, %v1438
      %v1443 = vmul.f32 %v1407, %v1438
      %v1444 = vmul.f32 %v1408, %v1438
      %v1445 = vmul.f32 %v1409, %v1438
      %v1446 = vmul.f32 %v1410, %v1438
      %v1447 = vmul.f32 %v1411, %v1438
      %v1448 = vmul.f32 %v1412, %v1438
      %v1449 = vmul.f32 %v1413, %v1438
      %v1450 = vmul.f32 %v1414, %v1438
      %v1451 = vmul.f32 %v1415, %v1438
      %v1452 = vmul.f32 %v1416, %v1438
      %v1453 = vmul.f32 %v1417, %v1438
      %v1454 = vmul.f32 %v1418, %v1438
      %v1455 = vmul.f32 %v1419, %v1438
      %v1456 = vmul.f32 %v1420, %v1438
      %v1457 = vmul.f32 %v1421, %v1438
      %v1458 = vmul.f32 %v1422, %v1438
      %v1459 = vmul.f32 %v1423, %v1438
      %v1460 = vmul.f32 %v1424, %v1438
      %v1461 = vmul.f32 %v1425, %v1438
      %v1462 = vmul.f32 %v1426, %v1438
      %v1463 = vmul.f32 %v1427, %v1438
      %v1464 = vmul.f32 %v1428, %v1438
      %v1465 = vmul.f32 %v1429, %v1438
      %v1466 = vmul.f32 %v1430, %v1438
      %v1467 = vmul.f32 %v1431, %v1438
      %v1468 = vmul.f32 %v1432, %v1438
      %v1469 = vmul.f32 %v1433, %v1438
      %v1470 = vmul.f32 %v1434, %v1438
      %v1471 = vadd.f32 %v1371, %v1439
      %v1472 = vadd.f32 %v1372, %v1440
      %v1473 = vadd.f32 %v1373, %v1441
      %v1474 = vadd.f32 %v1374, %v1442
      %v1475 = vadd.f32 %v1375, %v1443
      %v1476 = vadd.f32 %v1376, %v1444
      %v1477 = vadd.f32 %v1377, %v1445
      %v1478 = vadd.f32 %v1378, %v1446
      %v1479 = vadd.f32 %v1379, %v1447
      %v1480 = vadd.f32 %v1380, %v1448
      %v1481 = vadd.f32 %v1381, %v1449
      %v1482 = vadd.f32 %v1382, %v1450
      %v1483 = vadd.f32 %v1383, %v1451
      %v1484 = vadd.f32 %v1384, %v1452
      %v1485 = vadd.f32 %v1385, %v1453
      %v1486 = vadd.f32 %v1386, %v1454
      %v1487 = vadd.f32 %v1387, %v1455
      %v1488 = vadd.f32 %v1388, %v1456
      %v1489 = vadd.f32 %v1389, %v1457
      %v1490 = vadd.f32 %v1390, %v1458
      %v1491 = vadd.f32 %v1391, %v1459
      %v1492 = vadd.f32 %v1392, %v1460
      %v1493 = vadd.f32 %v1393, %v1461
      %v1494 = vadd.f32 %v1394, %v1462
      %v1495 = vadd.f32 %v1395, %v1463
      %v1496 = vadd.f32 %v1396, %v1464
      %v1497 = vadd.f32 %v1397, %v1465
      %v1498 = vadd.f32 %v1398, %v1466
      %v1499 = vadd.f32 %v1399, %v1467
      %v1500 = vadd.f32 %v1400, %v1468
      %v1501 = vadd.f32 %v1401, %v1469
      %v1502 = vadd.f32 %v1402, %v1470
      %s1503 = scalar_lea.vmem [#allocation2], 48
      %v1504 = vld [vmem:[%s1503] sm:$0xff]
      %v1505 = vld [vmem:[%s1503 + $0x8] sm:$0xff]
      %v1506 = vld [vmem:[%s1503 + $0x18] sm:$0xff]
      %v1507 = vld [vmem:[%s1503 + $0x20] sm:$0xff]
      %v1508 = vld [vmem:[%s1503 + $0x30] sm:$0xff]
      %v1509 = vld [vmem:[%s1503 + $0x38] sm:$0xff]
      %v1510 = vld [vmem:[%s1503 + $0x48] sm:$0xff]
      %v1511 = vld [vmem:[%s1503 + $0x50] sm:$0xff]
      %v1512 = vld [vmem:[%s1503 + $0x60] sm:$0xff]
      %v1513 = vld [vmem:[%s1503 + $0x68] sm:$0xff]
      %v1514 = vld [vmem:[%s1503 + $0x78] sm:$0xff]
      %v1515 = vld [vmem:[%s1503 + $0x80] sm:$0xff]
      %v1516 = vld [vmem:[%s1503 + $0x90] sm:$0xff]
      %v1517 = vld [vmem:[%s1503 + $0x98] sm:$0xff]
      %v1518 = vld [vmem:[%s1503 + $0xa8] sm:$0xff]
      %v1519 = vld [vmem:[%s1503 + $0xb0] sm:$0xff]
      %v1520 = vld [vmem:[%s1503 + $0xc0] sm:$0xff]
      %v1521 = vld [vmem:[%s1503 + $0xc8] sm:$0xff]
      %v1522 = vld [vmem:[%s1503 + $0xd8] sm:$0xff]
      %v1523 = vld [vmem:[%s1503 + $0xe0] sm:$0xff]
      %v1524 = vld [vmem:[%s1503 + $0xf0] sm:$0xff]
      %v1525 = vld [vmem:[%s1503 + $0xf8] sm:$0xff]
      %v1526 = vld [vmem:[%s1503 + $0x108] sm:$0xff]
      %v1527 = vld [vmem:[%s1503 + $0x110] sm:$0xff]
      %v1528 = vld [vmem:[%s1503 + $0x120] sm:$0xff]
      %v1529 = vld [vmem:[%s1503 + $0x128] sm:$0xff]
      %v1530 = vld [vmem:[%s1503 + $0x138] sm:$0xff]
      %v1531 = vld [vmem:[%s1503 + $0x140] sm:$0xff]
      %v1532 = vld [vmem:[%s1503 + $0x150] sm:$0xff]
      %v1533 = vld [vmem:[%s1503 + $0x158] sm:$0xff]
      %v1534 = vld [vmem:[%s1503 + $0x168] sm:$0xff]
      %v1535 = vld [vmem:[%s1503 + $0x170] sm:$0xff]
      %v1536 = vlaneseq
      %v1537 = vshrl.u32 %v1536, 7
      %v1538 = vsub.s32 6, %v1537
      %v1539 = vrot.slane %v868, %v1538
      %v1540 = vmul.f32 %v1504, %v1539
      %v1541 = vmul.f32 %v1505, %v1539
      %v1542 = vmul.f32 %v1506, %v1539
      %v1543 = vmul.f32 %v1507, %v1539
      %v1544 = vmul.f32 %v1508, %v1539
      %v1545 = vmul.f32 %v1509, %v1539
      %v1546 = vmul.f32 %v1510, %v1539
      %v1547 = vmul.f32 %v1511, %v1539
      %v1548 = vmul.f32 %v1512, %v1539
      %v1549 = vmul.f32 %v1513, %v1539
      %v1550 = vmul.f32 %v1514, %v1539
      %v1551 = vmul.f32 %v1515, %v1539
      %v1552 = vmul.f32 %v1516, %v1539
      %v1553 = vmul.f32 %v1517, %v1539
      %v1554 = vmul.f32 %v1518, %v1539
      %v1555 = vmul.f32 %v1519, %v1539
      %v1556 = vmul.f32 %v1520, %v1539
      %v1557 = vmul.f32 %v1521, %v1539
      %v1558 = vmul.f32 %v1522, %v1539
      %v1559 = vmul.f32 %v1523, %v1539
      %v1560 = vmul.f32 %v1524, %v1539
      %v1561 = vmul.f32 %v1525, %v1539
      %v1562 = vmul.f32 %v1526, %v1539
      %v1563 = vmul.f32 %v1527, %v1539
      %v1564 = vmul.f32 %v1528, %v1539
      %v1565 = vmul.f32 %v1529, %v1539
      %v1566 = vmul.f32 %v1530, %v1539
      %v1567 = vmul.f32 %v1531, %v1539
      %v1568 = vmul.f32 %v1532, %v1539
      %v1569 = vmul.f32 %v1533, %v1539
      %v1570 = vmul.f32 %v1534, %v1539
      %v1571 = vmul.f32 %v1535, %v1539
      %v1572 = vadd.f32 %v1471, %v1540
      %v1573 = vadd.f32 %v1472, %v1541
      %v1574 = vadd.f32 %v1473, %v1542
      %v1575 = vadd.f32 %v1474, %v1543
      %v1576 = vadd.f32 %v1475, %v1544
      %v1577 = vadd.f32 %v1476, %v1545
      %v1578 = vadd.f32 %v1477, %v1546
      %v1579 = vadd.f32 %v1478, %v1547
      %v1580 = vadd.f32 %v1479, %v1548
      %v1581 = vadd.f32 %v1480, %v1549
      %v1582 = vadd.f32 %v1481, %v1550
      %v1583 = vadd.f32 %v1482, %v1551
      %v1584 = vadd.f32 %v1483, %v1552
      %v1585 = vadd.f32 %v1484, %v1553
      %v1586 = vadd.f32 %v1485, %v1554
      %v1587 = vadd.f32 %v1486, %v1555
      %v1588 = vadd.f32 %v1487, %v1556
      %v1589 = vadd.f32 %v1488, %v1557
      %v1590 = vadd.f32 %v1489, %v1558
      %v1591 = vadd.f32 %v1490, %v1559
      %v1592 = vadd.f32 %v1491, %v1560
      %v1593 = vadd.f32 %v1492, %v1561
      %v1594 = vadd.f32 %v1493, %v1562
      %v1595 = vadd.f32 %v1494, %v1563
      %v1596 = vadd.f32 %v1495, %v1564
      %v1597 = vadd.f32 %v1496, %v1565
      %v1598 = vadd.f32 %v1497, %v1566
      %v1599 = vadd.f32 %v1498, %v1567
      %v1600 = vadd.f32 %v1499, %v1568
      %v1601 = vadd.f32 %v1500, %v1569
      %v1602 = vadd.f32 %v1501, %v1570
      %v1603 = vadd.f32 %v1502, %v1571
      %v1604 = vld [vmem:[%s1503 + $0x1] sm:$0xff]
      %v1605 = vld [vmem:[%s1503 + $0x9] sm:$0xff]
      %v1606 = vld [vmem:[%s1503 + $0x19] sm:$0xff]
      %v1607 = vld [vmem:[%s1503 + $0x21] sm:$0xff]
      %v1608 = vld [vmem:[%s1503 + $0x31] sm:$0xff]
      %v1609 = vld [vmem:[%s1503 + $0x39] sm:$0xff]
      %v1610 = vld [vmem:[%s1503 + $0x49] sm:$0xff]
      %v1611 = vld [vmem:[%s1503 + $0x51] sm:$0xff]
      %v1612 = vld [vmem:[%s1503 + $0x61] sm:$0xff]
      %v1613 = vld [vmem:[%s1503 + $0x69] sm:$0xff]
      %v1614 = vld [vmem:[%s1503 + $0x79] sm:$0xff]
      %v1615 = vld [vmem:[%s1503 + $0x81] sm:$0xff]
      %v1616 = vld [vmem:[%s1503 + $0x91] sm:$0xff]
      %v1617 = vld [vmem:[%s1503 + $0x99] sm:$0xff]
      %v1618 = vld [vmem:[%s1503 + $0xa9] sm:$0xff]
      %v1619 = vld [vmem:[%s1503 + $0xb1] sm:$0xff]
      %v1620 = vld [vmem:[%s1503 + $0xc1] sm:$0xff]
      %v1621 = vld [vmem:[%s1503 + $0xc9] sm:$0xff]
      %v1622 = vld [vmem:[%s1503 + $0xd9] sm:$0xff]
      %v1623 = vld [vmem:[%s1503 + $0xe1] sm:$0xff]
      %v1624 = vld [vmem:[%s1503 + $0xf1] sm:$0xff]
      %v1625 = vld [vmem:[%s1503 + $0xf9] sm:$0xff]
      %v1626 = vld [vmem:[%s1503 + $0x109] sm:$0xff]
      %v1627 = vld [vmem:[%s1503 + $0x111] sm:$0xff]
      %v1628 = vld [vmem:[%s1503 + $0x121] sm:$0xff]
      %v1629 = vld [vmem:[%s1503 + $0x129] sm:$0xff]
      %v1630 = vld [vmem:[%s1503 + $0x139] sm:$0xff]
      %v1631 = vld [vmem:[%s1503 + $0x141] sm:$0xff]
      %v1632 = vld [vmem:[%s1503 + $0x151] sm:$0xff]
      %v1633 = vld [vmem:[%s1503 + $0x159] sm:$0xff]
      %v1634 = vld [vmem:[%s1503 + $0x169] sm:$0xff]
      %v1635 = vld [vmem:[%s1503 + $0x171] sm:$0xff]
      %v1636 = vlaneseq
      %v1637 = vshrl.u32 %v1636, 7
      %v1638 = vsub.s32 7, %v1637
      %v1639 = vrot.slane %v868, %v1638
      %v1640 = vmul.f32 %v1604, %v1639
      %v1641 = vmul.f32 %v1605, %v1639
      %v1642 = vmul.f32 %v1606, %v1639
      %v1643 = vmul.f32 %v1607, %v1639
      %v1644 = vmul.f32 %v1608, %v1639
      %v1645 = vmul.f32 %v1609, %v1639
      %v1646 = vmul.f32 %v1610, %v1639
      %v1647 = vmul.f32 %v1611, %v1639
      %v1648 = vmul.f32 %v1612, %v1639
      %v1649 = vmul.f32 %v1613, %v1639
      %v1650 = vmul.f32 %v1614, %v1639
      %v1651 = vmul.f32 %v1615, %v1639
      %v1652 = vmul.f32 %v1616, %v1639
      %v1653 = vmul.f32 %v1617, %v1639
      %v1654 = vmul.f32 %v1618, %v1639
      %v1655 = vmul.f32 %v1619, %v1639
      %v1656 = vmul.f32 %v1620, %v1639
      %v1657 = vmul.f32 %v1621, %v1639
      %v1658 = vmul.f32 %v1622, %v1639
      %v1659 = vmul.f32 %v1623, %v1639
      %v1660 = vmul.f32 %v1624, %v1639
      %v1661 = vmul.f32 %v1625, %v1639
      %v1662 = vmul.f32 %v1626, %v1639
      %v1663 = vmul.f32 %v1627, %v1639
      %v1664 = vmul.f32 %v1628, %v1639
      %v1665 = vmul.f32 %v1629, %v1639
      %v1666 = vmul.f32 %v1630, %v1639
      %v1667 = vmul.f32 %v1631, %v1639
      %v1668 = vmul.f32 %v1632, %v1639
      %v1669 = vmul.f32 %v1633, %v1639
      %v1670 = vmul.f32 %v1634, %v1639
      %v1671 = vmul.f32 %v1635, %v1639
      %v1672 = vadd.f32 %v1572, %v1640
      %v1673 = vadd.f32 %v1573, %v1641
      %v1674 = vadd.f32 %v1574, %v1642
      %v1675 = vadd.f32 %v1575, %v1643
      %v1676 = vadd.f32 %v1576, %v1644
      %v1677 = vadd.f32 %v1577, %v1645
      %v1678 = vadd.f32 %v1578, %v1646
      %v1679 = vadd.f32 %v1579, %v1647
      %v1680 = vadd.f32 %v1580, %v1648
      %v1681 = vadd.f32 %v1581, %v1649
      %v1682 = vadd.f32 %v1582, %v1650
      %v1683 = vadd.f32 %v1583, %v1651
      %v1684 = vadd.f32 %v1584, %v1652
      %v1685 = vadd.f32 %v1585, %v1653
      %v1686 = vadd.f32 %v1586, %v1654
      %v1687 = vadd.f32 %v1587, %v1655
      %v1688 = vadd.f32 %v1588, %v1656
      %v1689 = vadd.f32 %v1589, %v1657
      %v1690 = vadd.f32 %v1590, %v1658
      %v1691 = vadd.f32 %v1591, %v1659
      %v1692 = vadd.f32 %v1592, %v1660
      %v1693 = vadd.f32 %v1593, %v1661
      %v1694 = vadd.f32 %v1594, %v1662
      %v1695 = vadd.f32 %v1595, %v1663
      %v1696 = vadd.f32 %v1596, %v1664
      %v1697 = vadd.f32 %v1597, %v1665
      %v1698 = vadd.f32 %v1598, %v1666
      %v1699 = vadd.f32 %v1599, %v1667
      %v1700 = vadd.f32 %v1600, %v1668
      %v1701 = vadd.f32 %v1601, %v1669
      %v1702 = vadd.f32 %v1602, %v1670
      %v1703 = vadd.f32 %v1603, %v1671
      %v1704 = vld [vmem:[%s1503 + $0x2] sm:$0xff]
      %v1705 = vld [vmem:[%s1503 + $0xa] sm:$0xff]
      %v1706 = vld [vmem:[%s1503 + $0x1a] sm:$0xff]
      %v1707 = vld [vmem:[%s1503 + $0x22] sm:$0xff]
      %v1708 = vld [vmem:[%s1503 + $0x32] sm:$0xff]
      %v1709 = vld [vmem:[%s1503 + $0x3a] sm:$0xff]
      %v1710 = vld [vmem:[%s1503 + $0x4a] sm:$0xff]
      %v1711 = vld [vmem:[%s1503 + $0x52] sm:$0xff]
      %v1712 = vld [vmem:[%s1503 + $0x62] sm:$0xff]
      %v1713 = vld [vmem:[%s1503 + $0x6a] sm:$0xff]
      %v1714 = vld [vmem:[%s1503 + $0x7a] sm:$0xff]
      %v1715 = vld [vmem:[%s1503 + $0x82] sm:$0xff]
      %v1716 = vld [vmem:[%s1503 + $0x92] sm:$0xff]
      %v1717 = vld [vmem:[%s1503 + $0x9a] sm:$0xff]
      %v1718 = vld [vmem:[%s1503 + $0xaa] sm:$0xff]
      %v1719 = vld [vmem:[%s1503 + $0xb2] sm:$0xff]
      %v1720 = vld [vmem:[%s1503 + $0xc2] sm:$0xff]
      %v1721 = vld [vmem:[%s1503 + $0xca] sm:$0xff]
      %v1722 = vld [vmem:[%s1503 + $0xda] sm:$0xff]
      %v1723 = vld [vmem:[%s1503 + $0xe2] sm:$0xff]
      %v1724 = vld [vmem:[%s1503 + $0xf2] sm:$0xff]
      %v1725 = vld [vmem:[%s1503 + $0xfa] sm:$0xff]
      %v1726 = vld [vmem:[%s1503 + $0x10a] sm:$0xff]
      %v1727 = vld [vmem:[%s1503 + $0x112] sm:$0xff]
      %v1728 = vld [vmem:[%s1503 + $0x122] sm:$0xff]
      %v1729 = vld [vmem:[%s1503 + $0x12a] sm:$0xff]
      %v1730 = vld [vmem:[%s1503 + $0x13a] sm:$0xff]
      %v1731 = vld [vmem:[%s1503 + $0x142] sm:$0xff]
      %v1732 = vld [vmem:[%s1503 + $0x152] sm:$0xff]
      %v1733 = vld [vmem:[%s1503 + $0x15a] sm:$0xff]
      %v1734 = vld [vmem:[%s1503 + $0x16a] sm:$0xff]
      %v1735 = vld [vmem:[%s1503 + $0x172] sm:$0xff]
      %v1736 = vlaneseq
      %v1737 = vshrl.u32 %v1736, 7
      %v1738 = vsub.s32 0, %v1737
      %v1739 = vrot.slane %v869, %v1738
      %v1740 = vmul.f32 %v1704, %v1739
      %v1741 = vmul.f32 %v1705, %v1739
      %v1742 = vmul.f32 %v1706, %v1739
      %v1743 = vmul.f32 %v1707, %v1739
      %v1744 = vmul.f32 %v1708, %v1739
      %v1745 = vmul.f32 %v1709, %v1739
      %v1746 = vmul.f32 %v1710, %v1739
      %v1747 = vmul.f32 %v1711, %v1739
      %v1748 = vmul.f32 %v1712, %v1739
      %v1749 = vmul.f32 %v1713, %v1739
      %v1750 = vmul.f32 %v1714, %v1739
      %v1751 = vmul.f32 %v1715, %v1739
      %v1752 = vmul.f32 %v1716, %v1739
      %v1753 = vmul.f32 %v1717, %v1739
      %v1754 = vmul.f32 %v1718, %v1739
      %v1755 = vmul.f32 %v1719, %v1739
      %v1756 = vmul.f32 %v1720, %v1739
      %v1757 = vmul.f32 %v1721, %v1739
      %v1758 = vmul.f32 %v1722, %v1739
      %v1759 = vmul.f32 %v1723, %v1739
      %v1760 = vmul.f32 %v1724, %v1739
      %v1761 = vmul.f32 %v1725, %v1739
      %v1762 = vmul.f32 %v1726, %v1739
      %v1763 = vmul.f32 %v1727, %v1739
      %v1764 = vmul.f32 %v1728, %v1739
      %v1765 = vmul.f32 %v1729, %v1739
      %v1766 = vmul.f32 %v1730, %v1739
      %v1767 = vmul.f32 %v1731, %v1739
      %v1768 = vmul.f32 %v1732, %v1739
      %v1769 = vmul.f32 %v1733, %v1739
      %v1770 = vmul.f32 %v1734, %v1739
      %v1771 = vmul.f32 %v1735, %v1739
      %v1772 = vadd.f32 %v1672, %v1740
      %v1773 = vadd.f32 %v1673, %v1741
      %v1774 = vadd.f32 %v1674, %v1742
      %v1775 = vadd.f32 %v1675, %v1743
      %v1776 = vadd.f32 %v1676, %v1744
      %v1777 = vadd.f32 %v1677, %v1745
      %v1778 = vadd.f32 %v1678, %v1746
      %v1779 = vadd.f32 %v1679, %v1747
      %v1780 = vadd.f32 %v1680, %v1748
      %v1781 = vadd.f32 %v1681, %v1749
      %v1782 = vadd.f32 %v1682, %v1750
      %v1783 = vadd.f32 %v1683, %v1751
      %v1784 = vadd.f32 %v1684, %v1752
      %v1785 = vadd.f32 %v1685, %v1753
      %v1786 = vadd.f32 %v1686, %v1754
      %v1787 = vadd.f32 %v1687, %v1755
      %v1788 = vadd.f32 %v1688, %v1756
      %v1789 = vadd.f32 %v1689, %v1757
      %v1790 = vadd.f32 %v1690, %v1758
      %v1791 = vadd.f32 %v1691, %v1759
      %v1792 = vadd.f32 %v1692, %v1760
      %v1793 = vadd.f32 %v1693, %v1761
      %v1794 = vadd.f32 %v1694, %v1762
      %v1795 = vadd.f32 %v1695, %v1763
      %v1796 = vadd.f32 %v1696, %v1764
      %v1797 = vadd.f32 %v1697, %v1765
      %v1798 = vadd.f32 %v1698, %v1766
      %v1799 = vadd.f32 %v1699, %v1767
      %v1800 = vadd.f32 %v1700, %v1768
      %v1801 = vadd.f32 %v1701, %v1769
      %v1802 = vadd.f32 %v1702, %v1770
      %v1803 = vadd.f32 %v1703, %v1771
      %v1805 = vlaneseq
      %v1806 = vshrl.u32 %v1805, 7
      %v1807 = vsub.s32 0, %v1806
      %v1808 = vrot.slane %v870, %v1807
      %v1810 = vadd.f32 %v1772, %v1808
      %v1811 = vadd.f32 %v1773, %v1808
      %v1812 = vadd.f32 %v1774, %v1808
      %v1813 = vadd.f32 %v1775, %v1808
      %v1814 = vadd.f32 %v1776, %v1808
      %v1815 = vadd.f32 %v1777, %v1808
      %v1816 = vadd.f32 %v1778, %v1808
      %v1817 = vadd.f32 %v1779, %v1808
      %v1818 = vadd.f32 %v1780, %v1808
      %v1819 = vadd.f32 %v1781, %v1808
      %v1820 = vadd.f32 %v1782, %v1808
      %v1821 = vadd.f32 %v1783, %v1808
      %v1822 = vadd.f32 %v1784, %v1808
      %v1823 = vadd.f32 %v1785, %v1808
      %v1824 = vadd.f32 %v1786, %v1808
      %v1825 = vadd.f32 %v1787, %v1808
      %v1826 = vadd.f32 %v1788, %v1808
      %v1827 = vadd.f32 %v1789, %v1808
      %v1828 = vadd.f32 %v1790, %v1808
      %v1829 = vadd.f32 %v1791, %v1808
      %v1830 = vadd.f32 %v1792, %v1808
      %v1831 = vadd.f32 %v1793, %v1808
      %v1832 = vadd.f32 %v1794, %v1808
      %v1833 = vadd.f32 %v1795, %v1808
      %v1834 = vadd.f32 %v1796, %v1808
      %v1835 = vadd.f32 %v1797, %v1808
      %v1836 = vadd.f32 %v1798, %v1808
      %v1837 = vadd.f32 %v1799, %v1808
      %v1838 = vadd.f32 %v1800, %v1808
      %v1839 = vadd.f32 %v1801, %v1808
      %v1840 = vadd.f32 %v1802, %v1808
      %v1841 = vadd.f32 %v1803, %v1808
      %v1842 = vmul.f32 %v1810, 0.1
      %v1843 = vmul.f32 %v1811, 0.1
      %v1844 = vmul.f32 %v1812, 0.1
      %v1845 = vmul.f32 %v1813, 0.1
      %v1846 = vmul.f32 %v1814, 0.1
      %v1847 = vmul.f32 %v1815, 0.1
      %v1848 = vmul.f32 %v1816, 0.1
      %v1849 = vmul.f32 %v1817, 0.1
      %v1850 = vmul.f32 %v1818, 0.1
      %v1851 = vmul.f32 %v1819, 0.1
      %v1852 = vmul.f32 %v1820, 0.1
      %v1853 = vmul.f32 %v1821, 0.1
      %v1854 = vmul.f32 %v1822, 0.1
      %v1855 = vmul.f32 %v1823, 0.1
      %v1856 = vmul.f32 %v1824, 0.1
      %v1857 = vmul.f32 %v1825, 0.1
      %v1858 = vmul.f32 %v1826, 0.1
      %v1859 = vmul.f32 %v1827, 0.1
      %v1860 = vmul.f32 %v1828, 0.1
      %v1861 = vmul.f32 %v1829, 0.1
      %v1862 = vmul.f32 %v1830, 0.1
      %v1863 = vmul.f32 %v1831, 0.1
      %v1864 = vmul.f32 %v1832, 0.1
      %v1865 = vmul.f32 %v1833, 0.1
      %v1866 = vmul.f32 %v1834, 0.1
      %v1867 = vmul.f32 %v1835, 0.1
      %v1868 = vmul.f32 %v1836, 0.1
      %v1869 = vmul.f32 %v1837, 0.1
      %v1870 = vmul.f32 %v1838, 0.1
      %v1871 = vmul.f32 %v1839, 0.1
      %v1872 = vmul.f32 %v1840, 0.1
      %v1873 = vmul.f32 %v1841, 0.1
      %v1874 = vmax.f32 %v1810, %v1842
      %v1875 = vmax.f32 %v1811, %v1843
      %v1876 = vmax.f32 %v1812, %v1844
      %v1877 = vmax.f32 %v1813, %v1845
      %v1878 = vmax.f32 %v1814, %v1846
      %v1879 = vmax.f32 %v1815, %v1847
      %v1880 = vmax.f32 %v1816, %v1848
      %v1881 = vmax.f32 %v1817, %v1849
      %v1882 = vmax.f32 %v1818, %v1850
      %v1883 = vmax.f32 %v1819, %v1851
      %v1884 = vmax.f32 %v1820, %v1852
      %v1885 = vmax.f32 %v1821, %v1853
      %v1886 = vmax.f32 %v1822, %v1854
      %v1887 = vmax.f32 %v1823, %v1855
      %v1888 = vmax.f32 %v1824, %v1856
      %v1889 = vmax.f32 %v1825, %v1857
      %v1890 = vmax.f32 %v1826, %v1858
      %v1891 = vmax.f32 %v1827, %v1859
      %v1892 = vmax.f32 %v1828, %v1860
      %v1893 = vmax.f32 %v1829, %v1861
      %v1894 = vmax.f32 %v1830, %v1862
      %v1895 = vmax.f32 %v1831, %v1863
      %v1896 = vmax.f32 %v1832, %v1864
      %v1897 = vmax.f32 %v1833, %v1865
      %v1898 = vmax.f32 %v1834, %v1866
      %v1899 = vmax.f32 %v1835, %v1867
      %v1900 = vmax.f32 %v1836, %v1868
      %v1901 = vmax.f32 %v1837, %v1869
      %v1902 = vmax.f32 %v1838, %v1870
      %v1903 = vmax.f32 %v1839, %v1871
      %v1904 = vmax.f32 %v1840, %v1872
      %v1905 = vmax.f32 %v1841, %v1873
      %v1906 = vld [vmem:[%s5] sm:$0x3]
      %v1907 = vld [vmem:[%s6] sm:$0x1]
      %v1908 = vpack.c.bf16 %v1875, %v1874
      %v1909 = vpack.c.bf16 %v1877, %v1876
      %v1910 = vpack.c.bf16 %v1879, %v1878
      %v1911 = vpack.c.bf16 %v1881, %v1880
      %v1912 = vpack.c.bf16 %v1883, %v1882
      %v1913 = vpack.c.bf16 %v1885, %v1884
      %v1914 = vpack.c.bf16 %v1887, %v1886
      %v1915 = vpack.c.bf16 %v1889, %v1888
      %v1916 = vpack.c.bf16 %v1891, %v1890
      %v1917 = vpack.c.bf16 %v1893, %v1892
      %v1918 = vpack.c.bf16 %v1895, %v1894
      %v1919 = vpack.c.bf16 %v1897, %v1896
      %v1920 = vpack.c.bf16 %v1899, %v1898
      %v1921 = vpack.c.bf16 %v1901, %v1900
      %v1922 = vpack.c.bf16 %v1903, %v1902
      %v1923 = vpack.c.bf16 %v1905, %v1904
      %v1925 = vlaneseq
      %v1926 = vshrl.u32 %v1925, 7
      %v1927 = vsub.s32 0, %v1926
      %v1928 = vrot.slane %v1907, %v1927
      %v1931 = vsel %vm442, %v1908, 0
      %v1934 = vsel %vm442, %v1909, 0
      %v1937 = vsel %vm442, %v1910, 0
      %v1940 = vsel %vm442, %v1911, 0
      %v1943 = vsel %vm442, %v1912, 0
      %v1946 = vsel %vm442, %v1913, 0
      %v1949 = vsel %vm442, %v1914, 0
      %v1952 = vsel %vm442, %v1915, 0
      %v1955 = vsel %vm442, %v1916, 0
      %v1958 = vsel %vm442, %v1917, 0
      %v1961 = vsel %vm442, %v1918, 0
      %v1964 = vsel %vm442, %v1919, 0
      %v1967 = vsel %vm442, %v1920, 0
      %v1970 = vsel %vm442, %v1921, 0
      %v1973 = vsel %vm442, %v1922, 0
      %v1976 = vsel %vm442, %v1923, 0
      %vm1978 = vcmask 1041408
      %v1980 = vsel %vm1978, %v1906, 0
      %1982 = vmatprep.subr.bf16.mxu0 0
      %1983 = vmatpush1.bf16.msra.mxu0 0
      %1984 = vmatprep.subr.bf16.mxu0 0
      %1985 = vmatpush1.bf16.msra.mxu0 0
      %1986 = vmatprep.subr.bf16.mxu0 0
      %1987 = vmatpush1.bf16.msra.mxu0 0
      %1988 = vmatprep.subr.bf16.mxu0 0
      %1989 = vmatpush1.bf16.msra.mxu0 0
      %1990 = vmatprep.subr.bf16.mxu0 0
      %1991 = vmatpush1.bf16.msra.mxu0 0
      %1992 = vmatprep.subr.bf16.mxu0 0
      %1993 = vmatpush1.bf16.msra.mxu0 0
      %1994 = vmatprep.subr.bf16.mxu0 0
      %1995 = vmatpush1.bf16.msra.mxu0 0
      %1996 = vmatprep.subr.bf16.mxu0 0
      %1997 = vmatpush1.bf16.msra.mxu0 %v1980
      %1998 = vmatprep.subr.bf16.mxu0 0
      %1999 = vmatpush2.bf16.msra.mxu0 0
      %2000 = vmatprep.subr.bf16.mxu0 0
      %2001 = vmatpush2.bf16.msra.mxu0 0
      %2002 = vmatprep.subr.bf16.mxu0 0
      %2003 = vmatpush2.bf16.msra.mxu0 0
      %2004 = vmatprep.subr.bf16.mxu0 0
      %2005 = vmatpush2.bf16.msra.mxu0 0
      %2006 = vmatprep.subr.bf16.mxu0 0
      %2007 = vmatpush2.bf16.msra.mxu0 0
      %2008 = vmatprep.subr.bf16.mxu0 0
      %2009 = vmatpush2.bf16.msra.mxu0 0
      %2010 = vmatprep.subr.bf16.mxu0 0
      %2011 = vmatpush2.bf16.msra.mxu0 0
      %2012 = vmatprep.subr.bf16.mxu0 0
      %2013 = vmatpush2.bf16.msra.mxu0 0
      %2014 = vmatprep.mubr.bf16.mxu0 0
      %2015 = vmatmul.mubr.bf16.gmra.mxu0 %v1931
      %v2016 = vpop.f32.mrf.mxu0
      %v2017 = vadd.f32 %v1928, %v2016
      %v2018 = vpop.f32.mrf.mxu0
      %v2019 = vpop.f32.mrf.mxu0
      %v2020 = vadd.f32 %v1928, %v2019
      %v2021 = vpop.f32.mrf.mxu0
      %2022 = vmatprep.mubr.bf16.mxu0 0
      %2023 = vmatmul.mubr.bf16.gmra.mxu0 %v1934
      %v2024 = vpop.f32.mrf.mxu0
      %v2025 = vadd.f32 %v1928, %v2024
      %v2026 = vpop.f32.mrf.mxu0
      %v2027 = vpop.f32.mrf.mxu0
      %v2028 = vadd.f32 %v1928, %v2027
      %v2029 = vpop.f32.mrf.mxu0
      %2030 = vmatprep.mubr.bf16.mxu0 0
      %2031 = vmatmul.mubr.bf16.gmra.mxu0 %v1937
      %v2032 = vpop.f32.mrf.mxu0
      %v2033 = vadd.f32 %v1928, %v2032
      %v2034 = vpop.f32.mrf.mxu0
      %v2035 = vpop.f32.mrf.mxu0
      %v2036 = vadd.f32 %v1928, %v2035
      %v2037 = vpop.f32.mrf.mxu0
      %2038 = vmatprep.mubr.bf16.mxu0 0
      %2039 = vmatmul.mubr.bf16.gmra.mxu0 %v1940
      %v2040 = vpop.f32.mrf.mxu0
      %v2041 = vadd.f32 %v1928, %v2040
      %v2042 = vpop.f32.mrf.mxu0
      %v2043 = vpop.f32.mrf.mxu0
      %v2044 = vadd.f32 %v1928, %v2043
      %v2045 = vpop.f32.mrf.mxu0
      %2046 = vmatprep.mubr.bf16.mxu0 0
      %2047 = vmatmul.mubr.bf16.gmra.mxu0 %v1943
      %v2048 = vpop.f32.mrf.mxu0
      %v2049 = vadd.f32 %v1928, %v2048
      %v2050 = vpop.f32.mrf.mxu0
      %v2051 = vpop.f32.mrf.mxu0
      %v2052 = vadd.f32 %v1928, %v2051
      %v2053 = vpop.f32.mrf.mxu0
      %2054 = vmatprep.mubr.bf16.mxu0 0
      %2055 = vmatmul.mubr.bf16.gmra.mxu0 %v1946
      %v2056 = vpop.f32.mrf.mxu0
      %v2057 = vadd.f32 %v1928, %v2056
      %v2058 = vpop.f32.mrf.mxu0
      %v2059 = vpop.f32.mrf.mxu0
      %v2060 = vadd.f32 %v1928, %v2059
      %v2061 = vpop.f32.mrf.mxu0
      %2062 = vmatprep.mubr.bf16.mxu0 0
      %2063 = vmatmul.mubr.bf16.gmra.mxu0 %v1949
      %v2064 = vpop.f32.mrf.mxu0
      %v2065 = vadd.f32 %v1928, %v2064
      %v2066 = vpop.f32.mrf.mxu0
      %v2067 = vpop.f32.mrf.mxu0
      %v2068 = vadd.f32 %v1928, %v2067
      %v2069 = vpop.f32.mrf.mxu0
      %2070 = vmatprep.mubr.bf16.mxu0 0
      %2071 = vmatmul.mubr.bf16.gmra.mxu0 %v1952
      %v2072 = vpop.f32.mrf.mxu0
      %v2073 = vadd.f32 %v1928, %v2072
      %v2074 = vpop.f32.mrf.mxu0
      %v2075 = vpop.f32.mrf.mxu0
      %v2076 = vadd.f32 %v1928, %v2075
      %v2077 = vpop.f32.mrf.mxu0
      %2078 = vmatprep.mubr.bf16.mxu0 0
      %2079 = vmatmul.mubr.bf16.gmra.mxu0 %v1955
      %v2080 = vpop.f32.mrf.mxu0
      %v2081 = vadd.f32 %v1928, %v2080
      %v2082 = vpop.f32.mrf.mxu0
      %v2083 = vpop.f32.mrf.mxu0
      %v2084 = vadd.f32 %v1928, %v2083
      %v2085 = vpop.f32.mrf.mxu0
      %2086 = vmatprep.mubr.bf16.mxu0 0
      %2087 = vmatmul.mubr.bf16.gmra.mxu0 %v1958
      %v2088 = vpop.f32.mrf.mxu0
      %v2089 = vadd.f32 %v1928, %v2088
      %v2090 = vpop.f32.mrf.mxu0
      %v2091 = vpop.f32.mrf.mxu0
      %v2092 = vadd.f32 %v1928, %v2091
      %v2093 = vpop.f32.mrf.mxu0
      %2094 = vmatprep.mubr.bf16.mxu0 0
      %2095 = vmatmul.mubr.bf16.gmra.mxu0 %v1961
      %v2096 = vpop.f32.mrf.mxu0
      %v2097 = vadd.f32 %v1928, %v2096
      %v2098 = vpop.f32.mrf.mxu0
      %v2099 = vpop.f32.mrf.mxu0
      %v2100 = vadd.f32 %v1928, %v2099
      %v2101 = vpop.f32.mrf.mxu0
      %2102 = vmatprep.mubr.bf16.mxu0 0
      %2103 = vmatmul.mubr.bf16.gmra.mxu0 %v1964
      %v2104 = vpop.f32.mrf.mxu0
      %v2105 = vadd.f32 %v1928, %v2104
      %v2106 = vpop.f32.mrf.mxu0
      %v2107 = vpop.f32.mrf.mxu0
      %v2108 = vadd.f32 %v1928, %v2107
      %v2109 = vpop.f32.mrf.mxu0
      %2110 = vmatprep.mubr.bf16.mxu0 0
      %2111 = vmatmul.mubr.bf16.gmra.mxu0 %v1967
      %v2112 = vpop.f32.mrf.mxu0
      %v2113 = vadd.f32 %v1928, %v2112
      %v2114 = vpop.f32.mrf.mxu0
      %v2115 = vpop.f32.mrf.mxu0
      %v2116 = vadd.f32 %v1928, %v2115
      %v2117 = vpop.f32.mrf.mxu0
      %2118 = vmatprep.mubr.bf16.mxu0 0
      %2119 = vmatmul.mubr.bf16.gmra.mxu0 %v1970
      %v2120 = vpop.f32.mrf.mxu0
      %v2121 = vadd.f32 %v1928, %v2120
      %v2122 = vpop.f32.mrf.mxu0
      %v2123 = vpop.f32.mrf.mxu0
      %v2124 = vadd.f32 %v1928, %v2123
      %v2125 = vpop.f32.mrf.mxu0
      %2126 = vmatprep.mubr.bf16.mxu0 0
      %2127 = vmatmul.mubr.bf16.gmra.mxu0 %v1973
      %v2128 = vpop.f32.mrf.mxu0
      %v2129 = vadd.f32 %v1928, %v2128
      %v2130 = vpop.f32.mrf.mxu0
      %v2131 = vpop.f32.mrf.mxu0
      %v2132 = vadd.f32 %v1928, %v2131
      %v2133 = vpop.f32.mrf.mxu0
      %2134 = vmatprep.mubr.bf16.mxu0 0
      %2135 = vmatmul.mubr.bf16.gmra.mxu0 %v1976
      %v2136 = vpop.f32.mrf.mxu0
      %v2137 = vadd.f32 %v1928, %v2136
      %v2138 = vpop.f32.mrf.mxu0
      %v2139 = vpop.f32.mrf.mxu0
      %v2140 = vadd.f32 %v1928, %v2139
      %v2141 = vpop.f32.mrf.mxu0
      %2142 = vdwg.mxu0
      %v2143 = vmul.f32 %v2017, 0.1
      %v2144 = vmul.f32 %v2020, 0.1
      %v2145 = vmul.f32 %v2025, 0.1
      %v2146 = vmul.f32 %v2028, 0.1
      %v2147 = vmul.f32 %v2033, 0.1
      %v2148 = vmul.f32 %v2036, 0.1
      %v2149 = vmul.f32 %v2041, 0.1
      %v2150 = vmul.f32 %v2044, 0.1
      %v2151 = vmul.f32 %v2049, 0.1
      %v2152 = vmul.f32 %v2052, 0.1
      %v2153 = vmul.f32 %v2057, 0.1
      %v2154 = vmul.f32 %v2060, 0.1
      %v2155 = vmul.f32 %v2065, 0.1
      %v2156 = vmul.f32 %v2068, 0.1
      %v2157 = vmul.f32 %v2073, 0.1
      %v2158 = vmul.f32 %v2076, 0.1
      %v2159 = vmul.f32 %v2081, 0.1
      %v2160 = vmul.f32 %v2084, 0.1
      %v2161 = vmul.f32 %v2089, 0.1
      %v2162 = vmul.f32 %v2092, 0.1
      %v2163 = vmul.f32 %v2097, 0.1
      %v2164 = vmul.f32 %v2100, 0.1
      %v2165 = vmul.f32 %v2105, 0.1
      %v2166 = vmul.f32 %v2108, 0.1
      %v2167 = vmul.f32 %v2113, 0.1
      %v2168 = vmul.f32 %v2116, 0.1
      %v2169 = vmul.f32 %v2121, 0.1
      %v2170 = vmul.f32 %v2124, 0.1
      %v2171 = vmul.f32 %v2129, 0.1
      %v2172 = vmul.f32 %v2132, 0.1
      %v2173 = vmul.f32 %v2137, 0.1
      %v2174 = vmul.f32 %v2140, 0.1
      %v2175 = vmax.f32 %v2017, %v2143
      %v2176 = vmax.f32 %v2020, %v2144
      %v2177 = vmax.f32 %v2025, %v2145
      %v2178 = vmax.f32 %v2028, %v2146
      %v2179 = vmax.f32 %v2033, %v2147
      %v2180 = vmax.f32 %v2036, %v2148
      %v2181 = vmax.f32 %v2041, %v2149
      %v2182 = vmax.f32 %v2044, %v2150
      %v2183 = vmax.f32 %v2049, %v2151
      %v2184 = vmax.f32 %v2052, %v2152
      %v2185 = vmax.f32 %v2057, %v2153
      %v2186 = vmax.f32 %v2060, %v2154
      %v2187 = vmax.f32 %v2065, %v2155
      %v2188 = vmax.f32 %v2068, %v2156
      %v2189 = vmax.f32 %v2073, %v2157
      %v2190 = vmax.f32 %v2076, %v2158
      %v2191 = vmax.f32 %v2081, %v2159
      %v2192 = vmax.f32 %v2084, %v2160
      %v2193 = vmax.f32 %v2089, %v2161
      %v2194 = vmax.f32 %v2092, %v2162
      %v2195 = vmax.f32 %v2097, %v2163
      %v2196 = vmax.f32 %v2100, %v2164
      %v2197 = vmax.f32 %v2105, %v2165
      %v2198 = vmax.f32 %v2108, %v2166
      %v2199 = vmax.f32 %v2113, %v2167
      %v2200 = vmax.f32 %v2116, %v2168
      %v2201 = vmax.f32 %v2121, %v2169
      %v2202 = vmax.f32 %v2124, %v2170
      %v2203 = vmax.f32 %v2129, %v2171
      %v2204 = vmax.f32 %v2132, %v2172
      %v2205 = vmax.f32 %v2137, %v2173
      %v2206 = vmax.f32 %v2140, %v2174
      %v2207 = vpack.c.bf16 %v2176, %v2175
      %v2208 = vpack.c.bf16 %v2178, %v2177
      %v2209 = vpack.c.bf16 %v2180, %v2179
      %v2210 = vpack.c.bf16 %v2182, %v2181
      %v2211 = vpack.c.bf16 %v2184, %v2183
      %v2212 = vpack.c.bf16 %v2186, %v2185
      %v2213 = vpack.c.bf16 %v2188, %v2187
      %v2214 = vpack.c.bf16 %v2190, %v2189
      %v2215 = vpack.c.bf16 %v2192, %v2191
      %v2216 = vpack.c.bf16 %v2194, %v2193
      %v2217 = vpack.c.bf16 %v2196, %v2195
      %v2218 = vpack.c.bf16 %v2198, %v2197
      %v2219 = vpack.c.bf16 %v2200, %v2199
      %v2220 = vpack.c.bf16 %v2202, %v2201
      %v2221 = vpack.c.bf16 %v2204, %v2203
      %v2222 = vpack.c.bf16 %v2206, %v2205
      %v2223 = vld [vmem:[%s7] sm:$0x1]
      %2224 = vst.msk [vmem:[%s500 + $0x2] sm:$0xff] %vm485, %v2175
      %2225 = vst.msk [vmem:[%s500 + $0xa] sm:$0xff] %vm485, %v2176
      %2226 = vst.msk [vmem:[%s500 + $0x1a] sm:$0xff] %vm485, %v2177
      %2227 = vst.msk [vmem:[%s500 + $0x22] sm:$0xff] %vm485, %v2178
      %2228 = vst.msk [vmem:[%s500 + $0x32] sm:$0xff] %vm485, %v2179
      %2229 = vst.msk [vmem:[%s500 + $0x3a] sm:$0xff] %vm485, %v2180
      %2230 = vst.msk [vmem:[%s500 + $0x4a] sm:$0xff] %vm485, %v2181
      %2231 = vst.msk [vmem:[%s500 + $0x52] sm:$0xff] %vm485, %v2182
      %2232 = vst.msk [vmem:[%s500 + $0x62] sm:$0xff] %vm485, %v2183
      %2233 = vst.msk [vmem:[%s500 + $0x6a] sm:$0xff] %vm485, %v2184
      %2234 = vst.msk [vmem:[%s500 + $0x7a] sm:$0xff] %vm485, %v2185
      %2235 = vst.msk [vmem:[%s500 + $0x82] sm:$0xff] %vm485, %v2186
      %2236 = vst.msk [vmem:[%s500 + $0x92] sm:$0xff] %vm485, %v2187
      %2237 = vst.msk [vmem:[%s500 + $0x9a] sm:$0xff] %vm485, %v2188
      %2238 = vst.msk [vmem:[%s500 + $0xaa] sm:$0xff] %vm485, %v2189
      %2239 = vst.msk [vmem:[%s500 + $0xb2] sm:$0xff] %vm485, %v2190
      %2240 = vst.msk [vmem:[%s500 + $0xc2] sm:$0xff] %vm485, %v2191
      %2241 = vst.msk [vmem:[%s500 + $0xca] sm:$0xff] %vm485, %v2192
      %2242 = vst.msk [vmem:[%s500 + $0xda] sm:$0xff] %vm485, %v2193
      %2243 = vst.msk [vmem:[%s500 + $0xe2] sm:$0xff] %vm485, %v2194
      %2244 = vst.msk [vmem:[%s500 + $0xf2] sm:$0xff] %vm485, %v2195
      %2245 = vst.msk [vmem:[%s500 + $0xfa] sm:$0xff] %vm485, %v2196
      %2246 = vst.msk [vmem:[%s500 + $0x10a] sm:$0xff] %vm485, %v2197
      %2247 = vst.msk [vmem:[%s500 + $0x112] sm:$0xff] %vm485, %v2198
      %2248 = vst.msk [vmem:[%s500 + $0x122] sm:$0xff] %vm485, %v2199
      %2249 = vst.msk [vmem:[%s500 + $0x12a] sm:$0xff] %vm485, %v2200
      %2250 = vst.msk [vmem:[%s500 + $0x13a] sm:$0xff] %vm485, %v2201
      %2251 = vst.msk [vmem:[%s500 + $0x142] sm:$0xff] %vm485, %v2202
      %2252 = vst.msk [vmem:[%s500 + $0x152] sm:$0xff] %vm485, %v2203
      %2253 = vst.msk [vmem:[%s500 + $0x15a] sm:$0xff] %vm485, %v2204
      %2254 = vst.msk [vmem:[%s500 + $0x16a] sm:$0xff] %vm485, %v2205
      %2255 = vst.msk [vmem:[%s500 + $0x172] sm:$0xff] %vm485, %v2206
      %v2256 = vld [vmem:[#allocation3] sm:$0xff]
      %v2257 = vld [vmem:[#allocation3 + $0x8] sm:$0xff]
      %v2258 = vld [vmem:[#allocation3 + $0x18] sm:$0xff]
      %v2259 = vld [vmem:[#allocation3 + $0x20] sm:$0xff]
      %v2260 = vld [vmem:[#allocation3 + $0x30] sm:$0xff]
      %v2261 = vld [vmem:[#allocation3 + $0x38] sm:$0xff]
      %v2262 = vld [vmem:[#allocation3 + $0x48] sm:$0xff]
      %v2263 = vld [vmem:[#allocation3 + $0x50] sm:$0xff]
      %v2264 = vld [vmem:[#allocation3 + $0x60] sm:$0xff]
      %v2265 = vld [vmem:[#allocation3 + $0x68] sm:$0xff]
      %v2266 = vld [vmem:[#allocation3 + $0x78] sm:$0xff]
      %v2267 = vld [vmem:[#allocation3 + $0x80] sm:$0xff]
      %v2268 = vld [vmem:[#allocation3 + $0x90] sm:$0xff]
      %v2269 = vld [vmem:[#allocation3 + $0x98] sm:$0xff]
      %v2270 = vld [vmem:[#allocation3 + $0xa8] sm:$0xff]
      %v2271 = vld [vmem:[#allocation3 + $0xb0] sm:$0xff]
      %v2272 = vld [vmem:[#allocation3 + $0xc0] sm:$0xff]
      %v2273 = vld [vmem:[#allocation3 + $0xc8] sm:$0xff]
      %v2274 = vld [vmem:[#allocation3 + $0xd8] sm:$0xff]
      %v2275 = vld [vmem:[#allocation3 + $0xe0] sm:$0xff]
      %v2276 = vld [vmem:[#allocation3 + $0xf0] sm:$0xff]
      %v2277 = vld [vmem:[#allocation3 + $0xf8] sm:$0xff]
      %v2278 = vld [vmem:[#allocation3 + $0x108] sm:$0xff]
      %v2279 = vld [vmem:[#allocation3 + $0x110] sm:$0xff]
      %v2280 = vld [vmem:[#allocation3 + $0x120] sm:$0xff]
      %v2281 = vld [vmem:[#allocation3 + $0x128] sm:$0xff]
      %v2282 = vld [vmem:[#allocation3 + $0x138] sm:$0xff]
      %v2283 = vld [vmem:[#allocation3 + $0x140] sm:$0xff]
      %v2284 = vld [vmem:[#allocation3 + $0x150] sm:$0xff]
      %v2285 = vld [vmem:[#allocation3 + $0x158] sm:$0xff]
      %v2286 = vld [vmem:[#allocation3 + $0x168] sm:$0xff]
      %v2287 = vld [vmem:[#allocation3 + $0x170] sm:$0xff]
      %v2288 = vld [vmem:[#allocation3 + $0x180] sm:$0xff]
      %v2289 = vld [vmem:[#allocation3 + $0x188] sm:$0xff]
      %v2290 = vld [vmem:[#allocation3 + $0x198] sm:$0xff]
      %v2291 = vld [vmem:[#allocation3 + $0x1a0] sm:$0xff]
      %v2292 = vld [vmem:[#allocation3 + $0x1b0] sm:$0xff]
      %v2293 = vld [vmem:[#allocation3 + $0x1b8] sm:$0xff]
      %v2294 = vld [vmem:[#allocation3 + $0x1c8] sm:$0xff]
      %v2295 = vld [vmem:[#allocation3 + $0x1d0] sm:$0xff]
      %v2296 = vld [vmem:[#allocation3 + $0x1] sm:$0xff]
      %v2297 = vld [vmem:[#allocation3 + $0x9] sm:$0xff]
      %v2298 = vld [vmem:[#allocation3 + $0x19] sm:$0xff]
      %v2299 = vld [vmem:[#allocation3 + $0x21] sm:$0xff]
      %v2300 = vld [vmem:[#allocation3 + $0x31] sm:$0xff]
      %v2301 = vld [vmem:[#allocation3 + $0x39] sm:$0xff]
      %v2302 = vld [vmem:[#allocation3 + $0x49] sm:$0xff]
      %v2303 = vld [vmem:[#allocation3 + $0x51] sm:$0xff]
      %v2304 = vld [vmem:[#allocation3 + $0x61] sm:$0xff]
      %v2305 = vld [vmem:[#allocation3 + $0x69] sm:$0xff]
      %v2306 = vld [vmem:[#allocation3 + $0x79] sm:$0xff]
      %v2307 = vld [vmem:[#allocation3 + $0x81] sm:$0xff]
      %v2308 = vld [vmem:[#allocation3 + $0x91] sm:$0xff]
      %v2309 = vld [vmem:[#allocation3 + $0x99] sm:$0xff]
      %v2310 = vld [vmem:[#allocation3 + $0xa9] sm:$0xff]
      %v2311 = vld [vmem:[#allocation3 + $0xb1] sm:$0xff]
      %v2312 = vld [vmem:[#allocation3 + $0xc1] sm:$0xff]
      %v2313 = vld [vmem:[#allocation3 + $0xc9] sm:$0xff]
      %v2314 = vld [vmem:[#allocation3 + $0xd9] sm:$0xff]
      %v2315 = vld [vmem:[#allocation3 + $0xe1] sm:$0xff]
      %v2316 = vld [vmem:[#allocation3 + $0xf1] sm:$0xff]
      %v2317 = vld [vmem:[#allocation3 + $0xf9] sm:$0xff]
      %v2318 = vld [vmem:[#allocation3 + $0x109] sm:$0xff]
      %v2319 = vld [vmem:[#allocation3 + $0x111] sm:$0xff]
      %v2320 = vld [vmem:[#allocation3 + $0x121] sm:$0xff]
      %v2321 = vld [vmem:[#allocation3 + $0x129] sm:$0xff]
      %v2322 = vld [vmem:[#allocation3 + $0x139] sm:$0xff]
      %v2323 = vld [vmem:[#allocation3 + $0x141] sm:$0xff]
      %v2324 = vld [vmem:[#allocation3 + $0x151] sm:$0xff]
      %v2325 = vld [vmem:[#allocation3 + $0x159] sm:$0xff]
      %v2326 = vld [vmem:[#allocation3 + $0x169] sm:$0xff]
      %v2327 = vld [vmem:[#allocation3 + $0x171] sm:$0xff]
      %v2328 = vld [vmem:[#allocation3 + $0x181] sm:$0xff]
      %v2329 = vld [vmem:[#allocation3 + $0x189] sm:$0xff]
      %v2330 = vld [vmem:[#allocation3 + $0x199] sm:$0xff]
      %v2331 = vld [vmem:[#allocation3 + $0x1a1] sm:$0xff]
      %v2332 = vld [vmem:[#allocation3 + $0x1b1] sm:$0xff]
      %v2333 = vld [vmem:[#allocation3 + $0x1b9] sm:$0xff]
      %v2334 = vld [vmem:[#allocation3 + $0x1c9] sm:$0xff]
      %v2335 = vld [vmem:[#allocation3 + $0x1d1] sm:$0xff]
      %v2336 = vmax.f32 %v2256, %v2296
      %v2337 = vmax.f32 %v2257, %v2297
      %v2338 = vmax.f32 %v2258, %v2298
      %v2339 = vmax.f32 %v2259, %v2299
      %v2340 = vmax.f32 %v2260, %v2300
      %v2341 = vmax.f32 %v2261, %v2301
      %v2342 = vmax.f32 %v2262, %v2302
      %v2343 = vmax.f32 %v2263, %v2303
      %v2344 = vmax.f32 %v2264, %v2304
      %v2345 = vmax.f32 %v2265, %v2305
      %v2346 = vmax.f32 %v2266, %v2306
      %v2347 = vmax.f32 %v2267, %v2307
      %v2348 = vmax.f32 %v2268, %v2308
      %v2349 = vmax.f32 %v2269, %v2309
      %v2350 = vmax.f32 %v2270, %v2310
      %v2351 = vmax.f32 %v2271, %v2311
      %v2352 = vmax.f32 %v2272, %v2312
      %v2353 = vmax.f32 %v2273, %v2313
      %v2354 = vmax.f32 %v2274, %v2314
      %v2355 = vmax.f32 %v2275, %v2315
      %v2356 = vmax.f32 %v2276, %v2316
      %v2357 = vmax.f32 %v2277, %v2317
      %v2358 = vmax.f32 %v2278, %v2318
      %v2359 = vmax.f32 %v2279, %v2319
      %v2360 = vmax.f32 %v2280, %v2320
      %v2361 = vmax.f32 %v2281, %v2321
      %v2362 = vmax.f32 %v2282, %v2322
      %v2363 = vmax.f32 %v2283, %v2323
      %v2364 = vmax.f32 %v2284, %v2324
      %v2365 = vmax.f32 %v2285, %v2325
      %v2366 = vmax.f32 %v2286, %v2326
      %v2367 = vmax.f32 %v2287, %v2327
      %v2368 = vmax.f32 %v2288, %v2328
      %v2369 = vmax.f32 %v2289, %v2329
      %v2370 = vmax.f32 %v2290, %v2330
      %v2371 = vmax.f32 %v2291, %v2331
      %v2372 = vmax.f32 %v2292, %v2332
      %v2373 = vmax.f32 %v2293, %v2333
      %v2374 = vmax.f32 %v2294, %v2334
      %v2375 = vmax.f32 %v2295, %v2335
      %v2376 = vld [vmem:[#allocation3 + $0x2] sm:$0xff]
      %v2377 = vld [vmem:[#allocation3 + $0xa] sm:$0xff]
      %v2378 = vld [vmem:[#allocation3 + $0x1a] sm:$0xff]
      %v2379 = vld [vmem:[#allocation3 + $0x22] sm:$0xff]
      %v2380 = vld [vmem:[#allocation3 + $0x32] sm:$0xff]
      %v2381 = vld [vmem:[#allocation3 + $0x3a] sm:$0xff]
      %v2382 = vld [vmem:[#allocation3 + $0x4a] sm:$0xff]
      %v2383 = vld [vmem:[#allocation3 + $0x52] sm:$0xff]
      %v2384 = vld [vmem:[#allocation3 + $0x62] sm:$0xff]
      %v2385 = vld [vmem:[#allocation3 + $0x6a] sm:$0xff]
      %v2386 = vld [vmem:[#allocation3 + $0x7a] sm:$0xff]
      %v2387 = vld [vmem:[#allocation3 + $0x82] sm:$0xff]
      %v2388 = vld [vmem:[#allocation3 + $0x92] sm:$0xff]
      %v2389 = vld [vmem:[#allocation3 + $0x9a] sm:$0xff]
      %v2390 = vld [vmem:[#allocation3 + $0xaa] sm:$0xff]
      %v2391 = vld [vmem:[#allocation3 + $0xb2] sm:$0xff]
      %v2392 = vld [vmem:[#allocation3 + $0xc2] sm:$0xff]
      %v2393 = vld [vmem:[#allocation3 + $0xca] sm:$0xff]
      %v2394 = vld [vmem:[#allocation3 + $0xda] sm:$0xff]
      %v2395 = vld [vmem:[#allocation3 + $0xe2] sm:$0xff]
      %v2396 = vld [vmem:[#allocation3 + $0xf2] sm:$0xff]
      %v2397 = vld [vmem:[#allocation3 + $0xfa] sm:$0xff]
      %v2398 = vld [vmem:[#allocation3 + $0x10a] sm:$0xff]
      %v2399 = vld [vmem:[#allocation3 + $0x112] sm:$0xff]
      %v2400 = vld [vmem:[#allocation3 + $0x122] sm:$0xff]
      %v2401 = vld [vmem:[#allocation3 + $0x12a] sm:$0xff]
      %v2402 = vld [vmem:[#allocation3 + $0x13a] sm:$0xff]
      %v2403 = vld [vmem:[#allocation3 + $0x142] sm:$0xff]
      %v2404 = vld [vmem:[#allocation3 + $0x152] sm:$0xff]
      %v2405 = vld [vmem:[#allocation3 + $0x15a] sm:$0xff]
      %v2406 = vld [vmem:[#allocation3 + $0x16a] sm:$0xff]
      %v2407 = vld [vmem:[#allocation3 + $0x172] sm:$0xff]
      %v2408 = vld [vmem:[#allocation3 + $0x182] sm:$0xff]
      %v2409 = vld [vmem:[#allocation3 + $0x18a] sm:$0xff]
      %v2410 = vld [vmem:[#allocation3 + $0x19a] sm:$0xff]
      %v2411 = vld [vmem:[#allocation3 + $0x1a2] sm:$0xff]
      %v2412 = vld [vmem:[#allocation3 + $0x1b2] sm:$0xff]
      %v2413 = vld [vmem:[#allocation3 + $0x1ba] sm:$0xff]
      %v2414 = vld [vmem:[#allocation3 + $0x1ca] sm:$0xff]
      %v2415 = vld [vmem:[#allocation3 + $0x1d2] sm:$0xff]
      %v2416 = vmax.f32 %v2336, %v2376
      %v2417 = vmax.f32 %v2337, %v2377
      %v2418 = vmax.f32 %v2338, %v2378
      %v2419 = vmax.f32 %v2339, %v2379
      %v2420 = vmax.f32 %v2340, %v2380
      %v2421 = vmax.f32 %v2341, %v2381
      %v2422 = vmax.f32 %v2342, %v2382
      %v2423 = vmax.f32 %v2343, %v2383
      %v2424 = vmax.f32 %v2344, %v2384
      %v2425 = vmax.f32 %v2345, %v2385
      %v2426 = vmax.f32 %v2346, %v2386
      %v2427 = vmax.f32 %v2347, %v2387
      %v2428 = vmax.f32 %v2348, %v2388
      %v2429 = vmax.f32 %v2349, %v2389
      %v2430 = vmax.f32 %v2350, %v2390
      %v2431 = vmax.f32 %v2351, %v2391
      %v2432 = vmax.f32 %v2352, %v2392
      %v2433 = vmax.f32 %v2353, %v2393
      %v2434 = vmax.f32 %v2354, %v2394
      %v2435 = vmax.f32 %v2355, %v2395
      %v2436 = vmax.f32 %v2356, %v2396
      %v2437 = vmax.f32 %v2357, %v2397
      %v2438 = vmax.f32 %v2358, %v2398
      %v2439 = vmax.f32 %v2359, %v2399
      %v2440 = vmax.f32 %v2360, %v2400
      %v2441 = vmax.f32 %v2361, %v2401
      %v2442 = vmax.f32 %v2362, %v2402
      %v2443 = vmax.f32 %v2363, %v2403
      %v2444 = vmax.f32 %v2364, %v2404
      %v2445 = vmax.f32 %v2365, %v2405
      %v2446 = vmax.f32 %v2366, %v2406
      %v2447 = vmax.f32 %v2367, %v2407
      %v2448 = vmax.f32 %v2368, %v2408
      %v2449 = vmax.f32 %v2369, %v2409
      %v2450 = vmax.f32 %v2370, %v2410
      %v2451 = vmax.f32 %v2371, %v2411
      %v2452 = vmax.f32 %v2372, %v2412
      %v2453 = vmax.f32 %v2373, %v2413
      %v2454 = vmax.f32 %v2374, %v2414
      %v2455 = vmax.f32 %v2375, %v2415
      %v2456 = vld [vmem:[#allocation3 + $0x3] sm:$0xff]
      %v2457 = vld [vmem:[#allocation3 + $0xb] sm:$0xff]
      %v2458 = vld [vmem:[#allocation3 + $0x1b] sm:$0xff]
      %v2459 = vld [vmem:[#allocation3 + $0x23] sm:$0xff]
      %v2460 = vld [vmem:[#allocation3 + $0x33] sm:$0xff]
      %v2461 = vld [vmem:[#allocation3 + $0x3b] sm:$0xff]
      %v2462 = vld [vmem:[#allocation3 + $0x4b] sm:$0xff]
      %v2463 = vld [vmem:[#allocation3 + $0x53] sm:$0xff]
      %v2464 = vld [vmem:[#allocation3 + $0x63] sm:$0xff]
      %v2465 = vld [vmem:[#allocation3 + $0x6b] sm:$0xff]
      %v2466 = vld [vmem:[#allocation3 + $0x7b] sm:$0xff]
      %v2467 = vld [vmem:[#allocation3 + $0x83] sm:$0xff]
      %v2468 = vld [vmem:[#allocation3 + $0x93] sm:$0xff]
      %v2469 = vld [vmem:[#allocation3 + $0x9b] sm:$0xff]
      %v2470 = vld [vmem:[#allocation3 + $0xab] sm:$0xff]
      %v2471 = vld [vmem:[#allocation3 + $0xb3] sm:$0xff]
      %v2472 = vld [vmem:[#allocation3 + $0xc3] sm:$0xff]
      %v2473 = vld [vmem:[#allocation3 + $0xcb] sm:$0xff]
      %v2474 = vld [vmem:[#allocation3 + $0xdb] sm:$0xff]
      %v2475 = vld [vmem:[#allocation3 + $0xe3] sm:$0xff]
      %v2476 = vld [vmem:[#allocation3 + $0xf3] sm:$0xff]
      %v2477 = vld [vmem:[#allocation3 + $0xfb] sm:$0xff]
      %v2478 = vld [vmem:[#allocation3 + $0x10b] sm:$0xff]
      %v2479 = vld [vmem:[#allocation3 + $0x113] sm:$0xff]
      %v2480 = vld [vmem:[#allocation3 + $0x123] sm:$0xff]
      %v2481 = vld [vmem:[#allocation3 + $0x12b] sm:$0xff]
      %v2482 = vld [vmem:[#allocation3 + $0x13b] sm:$0xff]
      %v2483 = vld [vmem:[#allocation3 + $0x143] sm:$0xff]
      %v2484 = vld [vmem:[#allocation3 + $0x153] sm:$0xff]
      %v2485 = vld [vmem:[#allocation3 + $0x15b] sm:$0xff]
      %v2486 = vld [vmem:[#allocation3 + $0x16b] sm:$0xff]
      %v2487 = vld [vmem:[#allocation3 + $0x173] sm:$0xff]
      %v2488 = vld [vmem:[#allocation3 + $0x183] sm:$0xff]
      %v2489 = vld [vmem:[#allocation3 + $0x18b] sm:$0xff]
      %v2490 = vld [vmem:[#allocation3 + $0x19b] sm:$0xff]
      %v2491 = vld [vmem:[#allocation3 + $0x1a3] sm:$0xff]
      %v2492 = vld [vmem:[#allocation3 + $0x1b3] sm:$0xff]
      %v2493 = vld [vmem:[#allocation3 + $0x1bb] sm:$0xff]
      %v2494 = vld [vmem:[#allocation3 + $0x1cb] sm:$0xff]
      %v2495 = vld [vmem:[#allocation3 + $0x1d3] sm:$0xff]
      %v2496 = vmax.f32 %v2416, %v2456
      %v2497 = vmax.f32 %v2417, %v2457
      %v2498 = vmax.f32 %v2418, %v2458
      %v2499 = vmax.f32 %v2419, %v2459
      %v2500 = vmax.f32 %v2420, %v2460
      %v2501 = vmax.f32 %v2421, %v2461
      %v2502 = vmax.f32 %v2422, %v2462
      %v2503 = vmax.f32 %v2423, %v2463
      %v2504 = vmax.f32 %v2424, %v2464
      %v2505 = vmax.f32 %v2425, %v2465
      %v2506 = vmax.f32 %v2426, %v2466
      %v2507 = vmax.f32 %v2427, %v2467
      %v2508 = vmax.f32 %v2428, %v2468
      %v2509 = vmax.f32 %v2429, %v2469
      %v2510 = vmax.f32 %v2430, %v2470
      %v2511 = vmax.f32 %v2431, %v2471
      %v2512 = vmax.f32 %v2432, %v2472
      %v2513 = vmax.f32 %v2433, %v2473
      %v2514 = vmax.f32 %v2434, %v2474
      %v2515 = vmax.f32 %v2435, %v2475
      %v2516 = vmax.f32 %v2436, %v2476
      %v2517 = vmax.f32 %v2437, %v2477
      %v2518 = vmax.f32 %v2438, %v2478
      %v2519 = vmax.f32 %v2439, %v2479
      %v2520 = vmax.f32 %v2440, %v2480
      %v2521 = vmax.f32 %v2441, %v2481
      %v2522 = vmax.f32 %v2442, %v2482
      %v2523 = vmax.f32 %v2443, %v2483
      %v2524 = vmax.f32 %v2444, %v2484
      %v2525 = vmax.f32 %v2445, %v2485
      %v2526 = vmax.f32 %v2446, %v2486
      %v2527 = vmax.f32 %v2447, %v2487
      %v2528 = vmax.f32 %v2448, %v2488
      %v2529 = vmax.f32 %v2449, %v2489
      %v2530 = vmax.f32 %v2450, %v2490
      %v2531 = vmax.f32 %v2451, %v2491
      %v2532 = vmax.f32 %v2452, %v2492
      %v2533 = vmax.f32 %v2453, %v2493
      %v2534 = vmax.f32 %v2454, %v2494
      %v2535 = vmax.f32 %v2455, %v2495
      %v2536 = vld [vmem:[#allocation3 + $0x4] sm:$0xff]
      %v2537 = vld [vmem:[#allocation3 + $0xc] sm:$0xff]
      %v2538 = vld [vmem:[#allocation3 + $0x1c] sm:$0xff]
      %v2539 = vld [vmem:[#allocation3 + $0x24] sm:$0xff]
      %v2540 = vld [vmem:[#allocation3 + $0x34] sm:$0xff]
      %v2541 = vld [vmem:[#allocation3 + $0x3c] sm:$0xff]
      %v2542 = vld [vmem:[#allocation3 + $0x4c] sm:$0xff]
      %v2543 = vld [vmem:[#allocation3 + $0x54] sm:$0xff]
      %v2544 = vld [vmem:[#allocation3 + $0x64] sm:$0xff]
      %v2545 = vld [vmem:[#allocation3 + $0x6c] sm:$0xff]
      %v2546 = vld [vmem:[#allocation3 + $0x7c] sm:$0xff]
      %v2547 = vld [vmem:[#allocation3 + $0x84] sm:$0xff]
      %v2548 = vld [vmem:[#allocation3 + $0x94] sm:$0xff]
      %v2549 = vld [vmem:[#allocation3 + $0x9c] sm:$0xff]
      %v2550 = vld [vmem:[#allocation3 + $0xac] sm:$0xff]
      %v2551 = vld [vmem:[#allocation3 + $0xb4] sm:$0xff]
      %v2552 = vld [vmem:[#allocation3 + $0xc4] sm:$0xff]
      %v2553 = vld [vmem:[#allocation3 + $0xcc] sm:$0xff]
      %v2554 = vld [vmem:[#allocation3 + $0xdc] sm:$0xff]
      %v2555 = vld [vmem:[#allocation3 + $0xe4] sm:$0xff]
      %v2556 = vld [vmem:[#allocation3 + $0xf4] sm:$0xff]
      %v2557 = vld [vmem:[#allocation3 + $0xfc] sm:$0xff]
      %v2558 = vld [vmem:[#allocation3 + $0x10c] sm:$0xff]
      %v2559 = vld [vmem:[#allocation3 + $0x114] sm:$0xff]
      %v2560 = vld [vmem:[#allocation3 + $0x124] sm:$0xff]
      %v2561 = vld [vmem:[#allocation3 + $0x12c] sm:$0xff]
      %v2562 = vld [vmem:[#allocation3 + $0x13c] sm:$0xff]
      %v2563 = vld [vmem:[#allocation3 + $0x144] sm:$0xff]
      %v2564 = vld [vmem:[#allocation3 + $0x154] sm:$0xff]
      %v2565 = vld [vmem:[#allocation3 + $0x15c] sm:$0xff]
      %v2566 = vld [vmem:[#allocation3 + $0x16c] sm:$0xff]
      %v2567 = vld [vmem:[#allocation3 + $0x174] sm:$0xff]
      %v2568 = vld [vmem:[#allocation3 + $0x184] sm:$0xff]
      %v2569 = vld [vmem:[#allocation3 + $0x18c] sm:$0xff]
      %v2570 = vld [vmem:[#allocation3 + $0x19c] sm:$0xff]
      %v2571 = vld [vmem:[#allocation3 + $0x1a4] sm:$0xff]
      %v2572 = vld [vmem:[#allocation3 + $0x1b4] sm:$0xff]
      %v2573 = vld [vmem:[#allocation3 + $0x1bc] sm:$0xff]
      %v2574 = vld [vmem:[#allocation3 + $0x1cc] sm:$0xff]
      %v2575 = vld [vmem:[#allocation3 + $0x1d4] sm:$0xff]
      %v2576 = vmax.f32 %v2496, %v2536
      %v2577 = vmax.f32 %v2497, %v2537
      %v2578 = vmax.f32 %v2498, %v2538
      %v2579 = vmax.f32 %v2499, %v2539
      %v2580 = vmax.f32 %v2500, %v2540
      %v2581 = vmax.f32 %v2501, %v2541
      %v2582 = vmax.f32 %v2502, %v2542
      %v2583 = vmax.f32 %v2503, %v2543
      %v2584 = vmax.f32 %v2504, %v2544
      %v2585 = vmax.f32 %v2505, %v2545
      %v2586 = vmax.f32 %v2506, %v2546
      %v2587 = vmax.f32 %v2507, %v2547
      %v2588 = vmax.f32 %v2508, %v2548
      %v2589 = vmax.f32 %v2509, %v2549
      %v2590 = vmax.f32 %v2510, %v2550
      %v2591 = vmax.f32 %v2511, %v2551
      %v2592 = vmax.f32 %v2512, %v2552
      %v2593 = vmax.f32 %v2513, %v2553
      %v2594 = vmax.f32 %v2514, %v2554
      %v2595 = vmax.f32 %v2515, %v2555
      %v2596 = vmax.f32 %v2516, %v2556
      %v2597 = vmax.f32 %v2517, %v2557
      %v2598 = vmax.f32 %v2518, %v2558
      %v2599 = vmax.f32 %v2519, %v2559
      %v2600 = vmax.f32 %v2520, %v2560
      %v2601 = vmax.f32 %v2521, %v2561
      %v2602 = vmax.f32 %v2522, %v2562
      %v2603 = vmax.f32 %v2523, %v2563
      %v2604 = vmax.f32 %v2524, %v2564
      %v2605 = vmax.f32 %v2525, %v2565
      %v2606 = vmax.f32 %v2526, %v2566
      %v2607 = vmax.f32 %v2527, %v2567
      %v2608 = vmax.f32 %v2528, %v2568
      %v2609 = vmax.f32 %v2529, %v2569
      %v2610 = vmax.f32 %v2530, %v2570
      %v2611 = vmax.f32 %v2531, %v2571
      %v2612 = vmax.f32 %v2532, %v2572
      %v2613 = vmax.f32 %v2533, %v2573
      %v2614 = vmax.f32 %v2534, %v2574
      %v2615 = vmax.f32 %v2535, %v2575
      %v2616 = vmax.f32 %v2576, %v2578
      %v2617 = vmax.f32 %v2577, %v2579
      %v2618 = vmax.f32 %v2578, %v2580
      %v2619 = vmax.f32 %v2579, %v2581
      %v2620 = vmax.f32 %v2580, %v2582
      %v2621 = vmax.f32 %v2581, %v2583
      %v2622 = vmax.f32 %v2582, %v2584
      %v2623 = vmax.f32 %v2583, %v2585
      %v2624 = vmax.f32 %v2584, %v2586
      %v2625 = vmax.f32 %v2585, %v2587
      %v2626 = vmax.f32 %v2586, %v2588
      %v2627 = vmax.f32 %v2587, %v2589
      %v2628 = vmax.f32 %v2588, %v2590
      %v2629 = vmax.f32 %v2589, %v2591
      %v2630 = vmax.f32 %v2590, %v2592
      %v2631 = vmax.f32 %v2591, %v2593
      %v2632 = vmax.f32 %v2592, %v2594
      %v2633 = vmax.f32 %v2593, %v2595
      %v2634 = vmax.f32 %v2594, %v2596
      %v2635 = vmax.f32 %v2595, %v2597
      %v2636 = vmax.f32 %v2596, %v2598
      %v2637 = vmax.f32 %v2597, %v2599
      %v2638 = vmax.f32 %v2598, %v2600
      %v2639 = vmax.f32 %v2599, %v2601
      %v2640 = vmax.f32 %v2600, %v2602
      %v2641 = vmax.f32 %v2601, %v2603
      %v2642 = vmax.f32 %v2602, %v2604
      %v2643 = vmax.f32 %v2603, %v2605
      %v2644 = vmax.f32 %v2604, %v2606
      %v2645 = vmax.f32 %v2605, %v2607
      %v2646 = vmax.f32 %v2606, %v2608
      %v2647 = vmax.f32 %v2607, %v2609
      %v2648 = vmax.f32 %v2616, %v2580
      %v2649 = vmax.f32 %v2617, %v2581
      %v2650 = vmax.f32 %v2618, %v2582
      %v2651 = vmax.f32 %v2619, %v2583
      %v2652 = vmax.f32 %v2620, %v2584
      %v2653 = vmax.f32 %v2621, %v2585
      %v2654 = vmax.f32 %v2622, %v2586
      %v2655 = vmax.f32 %v2623, %v2587
      %v2656 = vmax.f32 %v2624, %v2588
      %v2657 = vmax.f32 %v2625, %v2589
      %v2658 = vmax.f32 %v2626, %v2590
      %v2659 = vmax.f32 %v2627, %v2591
      %v2660 = vmax.f32 %v2628, %v2592
      %v2661 = vmax.f32 %v2629, %v2593
      %v2662 = vmax.f32 %v2630, %v2594
      %v2663 = vmax.f32 %v2631, %v2595
      %v2664 = vmax.f32 %v2632, %v2596
      %v2665 = vmax.f32 %v2633, %v2597
      %v2666 = vmax.f32 %v2634, %v2598
      %v2667 = vmax.f32 %v2635, %v2599
      %v2668 = vmax.f32 %v2636, %v2600
      %v2669 = vmax.f32 %v2637, %v2601
      %v2670 = vmax.f32 %v2638, %v2602
      %v2671 = vmax.f32 %v2639, %v2603
      %v2672 = vmax.f32 %v2640, %v2604
      %v2673 = vmax.f32 %v2641, %v2605
      %v2674 = vmax.f32 %v2642, %v2606
      %v2675 = vmax.f32 %v2643, %v2607
      %v2676 = vmax.f32 %v2644, %v2608
      %v2677 = vmax.f32 %v2645, %v2609
      %v2678 = vmax.f32 %v2646, %v2610
      %v2679 = vmax.f32 %v2647, %v2611
      %v2680 = vmax.f32 %v2648, %v2582
      %v2681 = vmax.f32 %v2649, %v2583
      %v2682 = vmax.f32 %v2650, %v2584
      %v2683 = vmax.f32 %v2651, %v2585
      %v2684 = vmax.f32 %v2652, %v2586
      %v2685 = vmax.f32 %v2653, %v2587
      %v2686 = vmax.f32 %v2654, %v2588
      %v2687 = vmax.f32 %v2655, %v2589
      %v2688 = vmax.f32 %v2656, %v2590
      %v2689 = vmax.f32 %v2657, %v2591
      %v2690 = vmax.f32 %v2658, %v2592
      %v2691 = vmax.f32 %v2659, %v2593
      %v2692 = vmax.f32 %v2660, %v2594
      %v2693 = vmax.f32 %v2661, %v2595
      %v2694 = vmax.f32 %v2662, %v2596
      %v2695 = vmax.f32 %v2663, %v2597
      %v2696 = vmax.f32 %v2664, %v2598
      %v2697 = vmax.f32 %v2665, %v2599
      %v2698 = vmax.f32 %v2666, %v2600
      %v2699 = vmax.f32 %v2667, %v2601
      %v2700 = vmax.f32 %v2668, %v2602
      %v2701 = vmax.f32 %v2669, %v2603
      %v2702 = vmax.f32 %v2670, %v2604
      %v2703 = vmax.f32 %v2671, %v2605
      %v2704 = vmax.f32 %v2672, %v2606
      %v2705 = vmax.f32 %v2673, %v2607
      %v2706 = vmax.f32 %v2674, %v2608
      %v2707 = vmax.f32 %v2675, %v2609
      %v2708 = vmax.f32 %v2676, %v2610
      %v2709 = vmax.f32 %v2677, %v2611
      %v2710 = vmax.f32 %v2678, %v2612
      %v2711 = vmax.f32 %v2679, %v2613
      %v2712 = vmax.f32 %v2680, %v2584
      %v2713 = vmax.f32 %v2681, %v2585
      %v2714 = vmax.f32 %v2682, %v2586
      %v2715 = vmax.f32 %v2683, %v2587
      %v2716 = vmax.f32 %v2684, %v2588
      %v2717 = vmax.f32 %v2685, %v2589
      %v2718 = vmax.f32 %v2686, %v2590
      %v2719 = vmax.f32 %v2687, %v2591
      %v2720 = vmax.f32 %v2688, %v2592
      %v2721 = vmax.f32 %v2689, %v2593
      %v2722 = vmax.f32 %v2690, %v2594
      %v2723 = vmax.f32 %v2691, %v2595
      %v2724 = vmax.f32 %v2692, %v2596
      %v2725 = vmax.f32 %v2693, %v2597
      %v2726 = vmax.f32 %v2694, %v2598
      %v2727 = vmax.f32 %v2695, %v2599
      %v2728 = vmax.f32 %v2696, %v2600
      %v2729 = vmax.f32 %v2697, %v2601
      %v2730 = vmax.f32 %v2698, %v2602
      %v2731 = vmax.f32 %v2699, %v2603
      %v2732 = vmax.f32 %v2700, %v2604
      %v2733 = vmax.f32 %v2701, %v2605
      %v2734 = vmax.f32 %v2702, %v2606
      %v2735 = vmax.f32 %v2703, %v2607
      %v2736 = vmax.f32 %v2704, %v2608
      %v2737 = vmax.f32 %v2705, %v2609
      %v2738 = vmax.f32 %v2706, %v2610
      %v2739 = vmax.f32 %v2707, %v2611
      %v2740 = vmax.f32 %v2708, %v2612
      %v2741 = vmax.f32 %v2709, %v2613
      %v2742 = vmax.f32 %v2710, %v2614
      %v2743 = vmax.f32 %v2711, %v2615
      %v2744 = vpack.c.bf16 %v2713, %v2712
      %v2745 = vpack.c.bf16 %v2715, %v2714
      %v2746 = vpack.c.bf16 %v2717, %v2716
      %v2747 = vpack.c.bf16 %v2719, %v2718
      %v2748 = vpack.c.bf16 %v2721, %v2720
      %v2749 = vpack.c.bf16 %v2723, %v2722
      %v2750 = vpack.c.bf16 %v2725, %v2724
      %v2751 = vpack.c.bf16 %v2727, %v2726
      %v2752 = vpack.c.bf16 %v2729, %v2728
      %v2753 = vpack.c.bf16 %v2731, %v2730
      %v2754 = vpack.c.bf16 %v2733, %v2732
      %v2755 = vpack.c.bf16 %v2735, %v2734
      %v2756 = vpack.c.bf16 %v2737, %v2736
      %v2757 = vpack.c.bf16 %v2739, %v2738
      %v2758 = vpack.c.bf16 %v2741, %v2740
      %v2759 = vpack.c.bf16 %v2743, %v2742
      %s2760 = scalar_lea.vmem %s7, 1
      %v2761 = vld [vmem:[%s2760] sm:$0x1]
      %v2763 = vsel %vm485, %v2744, 0
      %v2766 = vsel %vm485, %v2745, 0
      %v2769 = vsel %vm485, %v2746, 0
      %v2772 = vsel %vm485, %v2747, 0
      %v2775 = vsel %vm485, %v2748, 0
      %v2778 = vsel %vm485, %v2749, 0
      %v2781 = vsel %vm485, %v2750, 0
      %v2784 = vsel %vm485, %v2751, 0
      %v2787 = vsel %vm485, %v2752, 0
      %v2790 = vsel %vm485, %v2753, 0
      %v2793 = vsel %vm485, %v2754, 0
      %v2796 = vsel %vm485, %v2755, 0
      %v2799 = vsel %vm485, %v2756, 0
      %v2802 = vsel %vm485, %v2757, 0
      %v2805 = vsel %vm485, %v2758, 0
      %v2808 = vsel %vm485, %v2759, 0
      %vm2810 = vcmask 1040384
      %v2812 = vsel %vm2810, %v2761, 0
      %2814 = vmatprep.subr.bf16.mxu0 0
      %2815 = vmatpush1.bf16.msra.mxu0 0
      %2816 = vmatprep.subr.bf16.mxu0 0
      %2817 = vmatpush1.bf16.msra.mxu0 0
      %2818 = vmatprep.subr.bf16.mxu0 0
      %2819 = vmatpush1.bf16.msra.mxu0 0
      %2820 = vmatprep.subr.bf16.mxu0 0
      %2821 = vmatpush1.bf16.msra.mxu0 0
      %2822 = vmatprep.subr.bf16.mxu0 0
      %2823 = vmatpush1.bf16.msra.mxu0 0
      %2824 = vmatprep.subr.bf16.mxu0 0
      %2825 = vmatpush1.bf16.msra.mxu0 0
      %2826 = vmatprep.subr.bf16.mxu0 0
      %2827 = vmatpush1.bf16.msra.mxu0 0
      %2828 = vmatprep.subr.bf16.mxu0 0
      %2829 = vmatpush1.bf16.msra.mxu0 %v2812
      %2830 = vmatprep.subr.bf16.mxu0 0
      %2831 = vmatpush2.bf16.msra.mxu0 0
      %2832 = vmatprep.subr.bf16.mxu0 0
      %2833 = vmatpush2.bf16.msra.mxu0 0
      %2834 = vmatprep.subr.bf16.mxu0 0
      %2835 = vmatpush2.bf16.msra.mxu0 0
      %2836 = vmatprep.subr.bf16.mxu0 0
      %2837 = vmatpush2.bf16.msra.mxu0 0
      %2838 = vmatprep.subr.bf16.mxu0 0
      %2839 = vmatpush2.bf16.msra.mxu0 0
      %2840 = vmatprep.subr.bf16.mxu0 0
      %2841 = vmatpush2.bf16.msra.mxu0 0
      %2842 = vmatprep.subr.bf16.mxu0 0
      %2843 = vmatpush2.bf16.msra.mxu0 0
      %2844 = vmatprep.subr.bf16.mxu0 0
      %2845 = vmatpush2.bf16.msra.mxu0 0
      %2846 = vmatprep.mubr.bf16.mxu0 0
      %2847 = vmatmul.mubr.bf16.gmra.mxu0 %v2763
      %v2848 = vpop.f32.mrf.mxu0
      %v2849 = vadd.f32 0.0, %v2848
      %v2850 = vpop.f32.mrf.mxu0
      %v2851 = vpop.f32.mrf.mxu0
      %v2852 = vadd.f32 0.0, %v2851
      %v2853 = vpop.f32.mrf.mxu0
      %2854 = vmatprep.mubr.bf16.mxu0 0
      %2855 = vmatmul.mubr.bf16.gmra.mxu0 %v2766
      %v2856 = vpop.f32.mrf.mxu0
      %v2857 = vadd.f32 0.0, %v2856
      %v2858 = vpop.f32.mrf.mxu0
      %v2859 = vpop.f32.mrf.mxu0
      %v2860 = vadd.f32 0.0, %v2859
      %v2861 = vpop.f32.mrf.mxu0
      %2862 = vmatprep.mubr.bf16.mxu0 0
      %2863 = vmatmul.mubr.bf16.gmra.mxu0 %v2769
      %v2864 = vpop.f32.mrf.mxu0
      %v2865 = vadd.f32 0.0, %v2864
      %v2866 = vpop.f32.mrf.mxu0
      %v2867 = vpop.f32.mrf.mxu0
      %v2868 = vadd.f32 0.0, %v2867
      %v2869 = vpop.f32.mrf.mxu0
      %2870 = vmatprep.mubr.bf16.mxu0 0
      %2871 = vmatmul.mubr.bf16.gmra.mxu0 %v2772
      %v2872 = vpop.f32.mrf.mxu0
      %v2873 = vadd.f32 0.0, %v2872
      %v2874 = vpop.f32.mrf.mxu0
      %v2875 = vpop.f32.mrf.mxu0
      %v2876 = vadd.f32 0.0, %v2875
      %v2877 = vpop.f32.mrf.mxu0
      %2878 = vmatprep.mubr.bf16.mxu0 0
      %2879 = vmatmul.mubr.bf16.gmra.mxu0 %v2775
      %v2880 = vpop.f32.mrf.mxu0
      %v2881 = vadd.f32 0.0, %v2880
      %v2882 = vpop.f32.mrf.mxu0
      %v2883 = vpop.f32.mrf.mxu0
      %v2884 = vadd.f32 0.0, %v2883
      %v2885 = vpop.f32.mrf.mxu0
      %2886 = vmatprep.mubr.bf16.mxu0 0
      %2887 = vmatmul.mubr.bf16.gmra.mxu0 %v2778
      %v2888 = vpop.f32.mrf.mxu0
      %v2889 = vadd.f32 0.0, %v2888
      %v2890 = vpop.f32.mrf.mxu0
      %v2891 = vpop.f32.mrf.mxu0
      %v2892 = vadd.f32 0.0, %v2891
      %v2893 = vpop.f32.mrf.mxu0
      %2894 = vmatprep.mubr.bf16.mxu0 0
      %2895 = vmatmul.mubr.bf16.gmra.mxu0 %v2781
      %v2896 = vpop.f32.mrf.mxu0
      %v2897 = vadd.f32 0.0, %v2896
      %v2898 = vpop.f32.mrf.mxu0
      %v2899 = vpop.f32.mrf.mxu0
      %v2900 = vadd.f32 0.0, %v2899
      %v2901 = vpop.f32.mrf.mxu0
      %2902 = vmatprep.mubr.bf16.mxu0 0
      %2903 = vmatmul.mubr.bf16.gmra.mxu0 %v2784
      %v2904 = vpop.f32.mrf.mxu0
      %v2905 = vadd.f32 0.0, %v2904
      %v2906 = vpop.f32.mrf.mxu0
      %v2907 = vpop.f32.mrf.mxu0
      %v2908 = vadd.f32 0.0, %v2907
      %v2909 = vpop.f32.mrf.mxu0
      %2910 = vmatprep.mubr.bf16.mxu0 0
      %2911 = vmatmul.mubr.bf16.gmra.mxu0 %v2787
      %v2912 = vpop.f32.mrf.mxu0
      %v2913 = vadd.f32 0.0, %v2912
      %v2914 = vpop.f32.mrf.mxu0
      %v2915 = vpop.f32.mrf.mxu0
      %v2916 = vadd.f32 0.0, %v2915
      %v2917 = vpop.f32.mrf.mxu0
      %2918 = vmatprep.mubr.bf16.mxu0 0
      %2919 = vmatmul.mubr.bf16.gmra.mxu0 %v2790
      %v2920 = vpop.f32.mrf.mxu0
      %v2921 = vadd.f32 0.0, %v2920
      %v2922 = vpop.f32.mrf.mxu0
      %v2923 = vpop.f32.mrf.mxu0
      %v2924 = vadd.f32 0.0, %v2923
      %v2925 = vpop.f32.mrf.mxu0
      %2926 = vmatprep.mubr.bf16.mxu0 0
      %2927 = vmatmul.mubr.bf16.gmra.mxu0 %v2793
      %v2928 = vpop.f32.mrf.mxu0
      %v2929 = vadd.f32 0.0, %v2928
      %v2930 = vpop.f32.mrf.mxu0
      %v2931 = vpop.f32.mrf.mxu0
      %v2932 = vadd.f32 0.0, %v2931
      %v2933 = vpop.f32.mrf.mxu0
      %2934 = vmatprep.mubr.bf16.mxu0 0
      %2935 = vmatmul.mubr.bf16.gmra.mxu0 %v2796
      %v2936 = vpop.f32.mrf.mxu0
      %v2937 = vadd.f32 0.0, %v2936
      %v2938 = vpop.f32.mrf.mxu0
      %v2939 = vpop.f32.mrf.mxu0
      %v2940 = vadd.f32 0.0, %v2939
      %v2941 = vpop.f32.mrf.mxu0
      %2942 = vmatprep.mubr.bf16.mxu0 0
      %2943 = vmatmul.mubr.bf16.gmra.mxu0 %v2799
      %v2944 = vpop.f32.mrf.mxu0
      %v2945 = vadd.f32 0.0, %v2944
      %v2946 = vpop.f32.mrf.mxu0
      %v2947 = vpop.f32.mrf.mxu0
      %v2948 = vadd.f32 0.0, %v2947
      %v2949 = vpop.f32.mrf.mxu0
      %2950 = vmatprep.mubr.bf16.mxu0 0
      %2951 = vmatmul.mubr.bf16.gmra.mxu0 %v2802
      %v2952 = vpop.f32.mrf.mxu0
      %v2953 = vadd.f32 0.0, %v2952
      %v2954 = vpop.f32.mrf.mxu0
      %v2955 = vpop.f32.mrf.mxu0
      %v2956 = vadd.f32 0.0, %v2955
      %v2957 = vpop.f32.mrf.mxu0
      %2958 = vmatprep.mubr.bf16.mxu0 0
      %2959 = vmatmul.mubr.bf16.gmra.mxu0 %v2805
      %v2960 = vpop.f32.mrf.mxu0
      %v2961 = vadd.f32 0.0, %v2960
      %v2962 = vpop.f32.mrf.mxu0
      %v2963 = vpop.f32.mrf.mxu0
      %v2964 = vadd.f32 0.0, %v2963
      %v2965 = vpop.f32.mrf.mxu0
      %2966 = vmatprep.mubr.bf16.mxu0 0
      %2967 = vmatmul.mubr.bf16.gmra.mxu0 %v2808
      %v2968 = vpop.f32.mrf.mxu0
      %v2969 = vadd.f32 0.0, %v2968
      %v2970 = vpop.f32.mrf.mxu0
      %v2971 = vpop.f32.mrf.mxu0
      %v2972 = vadd.f32 0.0, %v2971
      %v2973 = vpop.f32.mrf.mxu0
      %2974 = vdwg.mxu0
      %v2976 = vsel %vm485, %v2207, 0
      %v2979 = vsel %vm485, %v2208, 0
      %v2982 = vsel %vm485, %v2209, 0
      %v2985 = vsel %vm485, %v2210, 0
      %v2988 = vsel %vm485, %v2211, 0
      %v2991 = vsel %vm485, %v2212, 0
      %v2994 = vsel %vm485, %v2213, 0
      %v2997 = vsel %vm485, %v2214, 0
      %v3000 = vsel %vm485, %v2215, 0
      %v3003 = vsel %vm485, %v2216, 0
      %v3006 = vsel %vm485, %v2217, 0
      %v3009 = vsel %vm485, %v2218, 0
      %v3012 = vsel %vm485, %v2219, 0
      %v3015 = vsel %vm485, %v2220, 0
      %v3018 = vsel %vm485, %v2221, 0
      %v3021 = vsel %vm485, %v2222, 0
      %v3024 = vsel %vm2810, %v2223, 0
      %3026 = vmatprep.subr.bf16.mxu0 0
      %3027 = vmatpush1.bf16.msra.mxu0 0
      %3028 = vmatprep.subr.bf16.mxu0 0
      %3029 = vmatpush1.bf16.msra.mxu0 0
      %3030 = vmatprep.subr.bf16.mxu0 0
      %3031 = vmatpush1.bf16.msra.mxu0 0
      %3032 = vmatprep.subr.bf16.mxu0 0
      %3033 = vmatpush1.bf16.msra.mxu0 0
      %3034 = vmatprep.subr.bf16.mxu0 0
      %3035 = vmatpush1.bf16.msra.mxu0 0
      %3036 = vmatprep.subr.bf16.mxu0 0
      %3037 = vmatpush1.bf16.msra.mxu0 0
      %3038 = vmatprep.subr.bf16.mxu0 0
      %3039 = vmatpush1.bf16.msra.mxu0 0
      %3040 = vmatprep.subr.bf16.mxu0 0
      %3041 = vmatpush1.bf16.msra.mxu0 %v3024
      %3042 = vmatprep.subr.bf16.mxu0 0
      %3043 = vmatpush2.bf16.msra.mxu0 0
      %3044 = vmatprep.subr.bf16.mxu0 0
      %3045 = vmatpush2.bf16.msra.mxu0 0
      %3046 = vmatprep.subr.bf16.mxu0 0
      %3047 = vmatpush2.bf16.msra.mxu0 0
      %3048 = vmatprep.subr.bf16.mxu0 0
      %3049 = vmatpush2.bf16.msra.mxu0 0
      %3050 = vmatprep.subr.bf16.mxu0 0
      %3051 = vmatpush2.bf16.msra.mxu0 0
      %3052 = vmatprep.subr.bf16.mxu0 0
      %3053 = vmatpush2.bf16.msra.mxu0 0
      %3054 = vmatprep.subr.bf16.mxu0 0
      %3055 = vmatpush2.bf16.msra.mxu0 0
      %3056 = vmatprep.subr.bf16.mxu0 0
      %3057 = vmatpush2.bf16.msra.mxu0 0
      %3058 = vmatprep.mubr.bf16.mxu0 0
      %3059 = vmatmul.mubr.bf16.gmra.mxu0 %v2976
      %v3060 = vpop.f32.mrf.mxu0
      %v3061 = vadd.f32 %v2849, %v3060
      %v3062 = vpop.f32.mrf.mxu0
      %v3063 = vpop.f32.mrf.mxu0
      %v3064 = vadd.f32 %v2852, %v3063
      %v3065 = vpop.f32.mrf.mxu0
      %3066 = vmatprep.mubr.bf16.mxu0 0
      %3067 = vmatmul.mubr.bf16.gmra.mxu0 %v2979
      %v3068 = vpop.f32.mrf.mxu0
      %v3069 = vadd.f32 %v2857, %v3068
      %v3070 = vpop.f32.mrf.mxu0
      %v3071 = vpop.f32.mrf.mxu0
      %v3072 = vadd.f32 %v2860, %v3071
      %v3073 = vpop.f32.mrf.mxu0
      %3074 = vmatprep.mubr.bf16.mxu0 0
      %3075 = vmatmul.mubr.bf16.gmra.mxu0 %v2982
      %v3076 = vpop.f32.mrf.mxu0
      %v3077 = vadd.f32 %v2865, %v3076
      %v3078 = vpop.f32.mrf.mxu0
      %v3079 = vpop.f32.mrf.mxu0
      %v3080 = vadd.f32 %v2868, %v3079
      %v3081 = vpop.f32.mrf.mxu0
      %3082 = vmatprep.mubr.bf16.mxu0 0
      %3083 = vmatmul.mubr.bf16.gmra.mxu0 %v2985
      %v3084 = vpop.f32.mrf.mxu0
      %v3085 = vadd.f32 %v2873, %v3084
      %v3086 = vpop.f32.mrf.mxu0
      %v3087 = vpop.f32.mrf.mxu0
      %v3088 = vadd.f32 %v2876, %v3087
      %v3089 = vpop.f32.mrf.mxu0
      %3090 = vmatprep.mubr.bf16.mxu0 0
      %3091 = vmatmul.mubr.bf16.gmra.mxu0 %v2988
      %v3092 = vpop.f32.mrf.mxu0
      %v3093 = vadd.f32 %v2881, %v3092
      %v3094 = vpop.f32.mrf.mxu0
      %v3095 = vpop.f32.mrf.mxu0
      %v3096 = vadd.f32 %v2884, %v3095
      %v3097 = vpop.f32.mrf.mxu0
      %3098 = vmatprep.mubr.bf16.mxu0 0
      %3099 = vmatmul.mubr.bf16.gmra.mxu0 %v2991
      %v3100 = vpop.f32.mrf.mxu0
      %v3101 = vadd.f32 %v2889, %v3100
      %v3102 = vpop.f32.mrf.mxu0
      %v3103 = vpop.f32.mrf.mxu0
      %v3104 = vadd.f32 %v2892, %v3103
      %v3105 = vpop.f32.mrf.mxu0
      %3106 = vmatprep.mubr.bf16.mxu0 0
      %3107 = vmatmul.mubr.bf16.gmra.mxu0 %v2994
      %v3108 = vpop.f32.mrf.mxu0
      %v3109 = vadd.f32 %v2897, %v3108
      %v3110 = vpop.f32.mrf.mxu0
      %v3111 = vpop.f32.mrf.mxu0
      %v3112 = vadd.f32 %v2900, %v3111
      %v3113 = vpop.f32.mrf.mxu0
      %3114 = vmatprep.mubr.bf16.mxu0 0
      %3115 = vmatmul.mubr.bf16.gmra.mxu0 %v2997
      %v3116 = vpop.f32.mrf.mxu0
      %v3117 = vadd.f32 %v2905, %v3116
      %v3118 = vpop.f32.mrf.mxu0
      %v3119 = vpop.f32.mrf.mxu0
      %v3120 = vadd.f32 %v2908, %v3119
      %v3121 = vpop.f32.mrf.mxu0
      %3122 = vmatprep.mubr.bf16.mxu0 0
      %3123 = vmatmul.mubr.bf16.gmra.mxu0 %v3000
      %v3124 = vpop.f32.mrf.mxu0
      %v3125 = vadd.f32 %v2913, %v3124
      %v3126 = vpop.f32.mrf.mxu0
      %v3127 = vpop.f32.mrf.mxu0
      %v3128 = vadd.f32 %v2916, %v3127
      %v3129 = vpop.f32.mrf.mxu0
      %3130 = vmatprep.mubr.bf16.mxu0 0
      %3131 = vmatmul.mubr.bf16.gmra.mxu0 %v3003
      %v3132 = vpop.f32.mrf.mxu0
      %v3133 = vadd.f32 %v2921, %v3132
      %v3134 = vpop.f32.mrf.mxu0
      %v3135 = vpop.f32.mrf.mxu0
      %v3136 = vadd.f32 %v2924, %v3135
      %v3137 = vpop.f32.mrf.mxu0
      %3138 = vmatprep.mubr.bf16.mxu0 0
      %3139 = vmatmul.mubr.bf16.gmra.mxu0 %v3006
      %v3140 = vpop.f32.mrf.mxu0
      %v3141 = vadd.f32 %v2929, %v3140
      %v3142 = vpop.f32.mrf.mxu0
      %v3143 = vpop.f32.mrf.mxu0
      %v3144 = vadd.f32 %v2932, %v3143
      %v3145 = vpop.f32.mrf.mxu0
      %3146 = vmatprep.mubr.bf16.mxu0 0
      %3147 = vmatmul.mubr.bf16.gmra.mxu0 %v3009
      %v3148 = vpop.f32.mrf.mxu0
      %v3149 = vadd.f32 %v2937, %v3148
      %v3150 = vpop.f32.mrf.mxu0
      %v3151 = vpop.f32.mrf.mxu0
      %v3152 = vadd.f32 %v2940, %v3151
      %v3153 = vpop.f32.mrf.mxu0
      %3154 = vmatprep.mubr.bf16.mxu0 0
      %3155 = vmatmul.mubr.bf16.gmra.mxu0 %v3012
      %v3156 = vpop.f32.mrf.mxu0
      %v3157 = vadd.f32 %v2945, %v3156
      %v3158 = vpop.f32.mrf.mxu0
      %v3159 = vpop.f32.mrf.mxu0
      %v3160 = vadd.f32 %v2948, %v3159
      %v3161 = vpop.f32.mrf.mxu0
      %3162 = vmatprep.mubr.bf16.mxu0 0
      %3163 = vmatmul.mubr.bf16.gmra.mxu0 %v3015
      %v3164 = vpop.f32.mrf.mxu0
      %v3165 = vadd.f32 %v2953, %v3164
      %v3166 = vpop.f32.mrf.mxu0
      %v3167 = vpop.f32.mrf.mxu0
      %v3168 = vadd.f32 %v2956, %v3167
      %v3169 = vpop.f32.mrf.mxu0
      %3170 = vmatprep.mubr.bf16.mxu0 0
      %3171 = vmatmul.mubr.bf16.gmra.mxu0 %v3018
      %v3172 = vpop.f32.mrf.mxu0
      %v3173 = vadd.f32 %v2961, %v3172
      %v3174 = vpop.f32.mrf.mxu0
      %v3175 = vpop.f32.mrf.mxu0
      %v3176 = vadd.f32 %v2964, %v3175
      %v3177 = vpop.f32.mrf.mxu0
      %3178 = vmatprep.mubr.bf16.mxu0 0
      %3179 = vmatmul.mubr.bf16.gmra.mxu0 %v3021
      %v3180 = vpop.f32.mrf.mxu0
      %v3181 = vadd.f32 %v2969, %v3180
      %v3182 = vpop.f32.mrf.mxu0
      %v3183 = vpop.f32.mrf.mxu0
      %v3184 = vadd.f32 %v2972, %v3183
      %v3185 = vpop.f32.mrf.mxu0
      %3186 = vdwg.mxu0
      %3187 = vst.msk [vmem:[%s500 + $0x2] sm:$0xff] %vm485, %v2712
      %3188 = vst.msk [vmem:[%s500 + $0xa] sm:$0xff] %vm485, %v2713
      %3189 = vst.msk [vmem:[%s500 + $0x1a] sm:$0xff] %vm485, %v2714
      %3190 = vst.msk [vmem:[%s500 + $0x22] sm:$0xff] %vm485, %v2715
      %3191 = vst.msk [vmem:[%s500 + $0x32] sm:$0xff] %vm485, %v2716
      %3192 = vst.msk [vmem:[%s500 + $0x3a] sm:$0xff] %vm485, %v2717
      %3193 = vst.msk [vmem:[%s500 + $0x4a] sm:$0xff] %vm485, %v2718
      %3194 = vst.msk [vmem:[%s500 + $0x52] sm:$0xff] %vm485, %v2719
      %3195 = vst.msk [vmem:[%s500 + $0x62] sm:$0xff] %vm485, %v2720
      %3196 = vst.msk [vmem:[%s500 + $0x6a] sm:$0xff] %vm485, %v2721
      %3197 = vst.msk [vmem:[%s500 + $0x7a] sm:$0xff] %vm485, %v2722
      %3198 = vst.msk [vmem:[%s500 + $0x82] sm:$0xff] %vm485, %v2723
      %3199 = vst.msk [vmem:[%s500 + $0x92] sm:$0xff] %vm485, %v2724
      %3200 = vst.msk [vmem:[%s500 + $0x9a] sm:$0xff] %vm485, %v2725
      %3201 = vst.msk [vmem:[%s500 + $0xaa] sm:$0xff] %vm485, %v2726
      %3202 = vst.msk [vmem:[%s500 + $0xb2] sm:$0xff] %vm485, %v2727
      %3203 = vst.msk [vmem:[%s500 + $0xc2] sm:$0xff] %vm485, %v2728
      %3204 = vst.msk [vmem:[%s500 + $0xca] sm:$0xff] %vm485, %v2729
      %3205 = vst.msk [vmem:[%s500 + $0xda] sm:$0xff] %vm485, %v2730
      %3206 = vst.msk [vmem:[%s500 + $0xe2] sm:$0xff] %vm485, %v2731
      %3207 = vst.msk [vmem:[%s500 + $0xf2] sm:$0xff] %vm485, %v2732
      %3208 = vst.msk [vmem:[%s500 + $0xfa] sm:$0xff] %vm485, %v2733
      %3209 = vst.msk [vmem:[%s500 + $0x10a] sm:$0xff] %vm485, %v2734
      %3210 = vst.msk [vmem:[%s500 + $0x112] sm:$0xff] %vm485, %v2735
      %3211 = vst.msk [vmem:[%s500 + $0x122] sm:$0xff] %vm485, %v2736
      %3212 = vst.msk [vmem:[%s500 + $0x12a] sm:$0xff] %vm485, %v2737
      %3213 = vst.msk [vmem:[%s500 + $0x13a] sm:$0xff] %vm485, %v2738
      %3214 = vst.msk [vmem:[%s500 + $0x142] sm:$0xff] %vm485, %v2739
      %3215 = vst.msk [vmem:[%s500 + $0x152] sm:$0xff] %vm485, %v2740
      %3216 = vst.msk [vmem:[%s500 + $0x15a] sm:$0xff] %vm485, %v2741
      %3217 = vst.msk [vmem:[%s500 + $0x16a] sm:$0xff] %vm485, %v2742
      %3218 = vst.msk [vmem:[%s500 + $0x172] sm:$0xff] %vm485, %v2743
      %v3219 = vld [vmem:[#allocation3] sm:$0xff]
      %v3220 = vld [vmem:[#allocation3 + $0x8] sm:$0xff]
      %v3221 = vld [vmem:[#allocation3 + $0x18] sm:$0xff]
      %v3222 = vld [vmem:[#allocation3 + $0x20] sm:$0xff]
      %v3223 = vld [vmem:[#allocation3 + $0x30] sm:$0xff]
      %v3224 = vld [vmem:[#allocation3 + $0x38] sm:$0xff]
      %v3225 = vld [vmem:[#allocation3 + $0x48] sm:$0xff]
      %v3226 = vld [vmem:[#allocation3 + $0x50] sm:$0xff]
      %v3227 = vld [vmem:[#allocation3 + $0x60] sm:$0xff]
      %v3228 = vld [vmem:[#allocation3 + $0x68] sm:$0xff]
      %v3229 = vld [vmem:[#allocation3 + $0x78] sm:$0xff]
      %v3230 = vld [vmem:[#allocation3 + $0x80] sm:$0xff]
      %v3231 = vld [vmem:[#allocation3 + $0x90] sm:$0xff]
      %v3232 = vld [vmem:[#allocation3 + $0x98] sm:$0xff]
      %v3233 = vld [vmem:[#allocation3 + $0xa8] sm:$0xff]
      %v3234 = vld [vmem:[#allocation3 + $0xb0] sm:$0xff]
      %v3235 = vld [vmem:[#allocation3 + $0xc0] sm:$0xff]
      %v3236 = vld [vmem:[#allocation3 + $0xc8] sm:$0xff]
      %v3237 = vld [vmem:[#allocation3 + $0xd8] sm:$0xff]
      %v3238 = vld [vmem:[#allocation3 + $0xe0] sm:$0xff]
      %v3239 = vld [vmem:[#allocation3 + $0xf0] sm:$0xff]
      %v3240 = vld [vmem:[#allocation3 + $0xf8] sm:$0xff]
      %v3241 = vld [vmem:[#allocation3 + $0x108] sm:$0xff]
      %v3242 = vld [vmem:[#allocation3 + $0x110] sm:$0xff]
      %v3243 = vld [vmem:[#allocation3 + $0x120] sm:$0xff]
      %v3244 = vld [vmem:[#allocation3 + $0x128] sm:$0xff]
      %v3245 = vld [vmem:[#allocation3 + $0x138] sm:$0xff]
      %v3246 = vld [vmem:[#allocation3 + $0x140] sm:$0xff]
      %v3247 = vld [vmem:[#allocation3 + $0x150] sm:$0xff]
      %v3248 = vld [vmem:[#allocation3 + $0x158] sm:$0xff]
      %v3249 = vld [vmem:[#allocation3 + $0x168] sm:$0xff]
      %v3250 = vld [vmem:[#allocation3 + $0x170] sm:$0xff]
      %v3251 = vld [vmem:[#allocation3 + $0x180] sm:$0xff]
      %v3252 = vld [vmem:[#allocation3 + $0x188] sm:$0xff]
      %v3253 = vld [vmem:[#allocation3 + $0x198] sm:$0xff]
      %v3254 = vld [vmem:[#allocation3 + $0x1a0] sm:$0xff]
      %v3255 = vld [vmem:[#allocation3 + $0x1b0] sm:$0xff]
      %v3256 = vld [vmem:[#allocation3 + $0x1b8] sm:$0xff]
      %v3257 = vld [vmem:[#allocation3 + $0x1c8] sm:$0xff]
      %v3258 = vld [vmem:[#allocation3 + $0x1d0] sm:$0xff]
      %v3259 = vld [vmem:[#allocation3 + $0x1] sm:$0xff]
      %v3260 = vld [vmem:[#allocation3 + $0x9] sm:$0xff]
      %v3261 = vld [vmem:[#allocation3 + $0x19] sm:$0xff]
      %v3262 = vld [vmem:[#allocation3 + $0x21] sm:$0xff]
      %v3263 = vld [vmem:[#allocation3 + $0x31] sm:$0xff]
      %v3264 = vld [vmem:[#allocation3 + $0x39] sm:$0xff]
      %v3265 = vld [vmem:[#allocation3 + $0x49] sm:$0xff]
      %v3266 = vld [vmem:[#allocation3 + $0x51] sm:$0xff]
      %v3267 = vld [vmem:[#allocation3 + $0x61] sm:$0xff]
      %v3268 = vld [vmem:[#allocation3 + $0x69] sm:$0xff]
      %v3269 = vld [vmem:[#allocation3 + $0x79] sm:$0xff]
      %v3270 = vld [vmem:[#allocation3 + $0x81] sm:$0xff]
      %v3271 = vld [vmem:[#allocation3 + $0x91] sm:$0xff]
      %v3272 = vld [vmem:[#allocation3 + $0x99] sm:$0xff]
      %v3273 = vld [vmem:[#allocation3 + $0xa9] sm:$0xff]
      %v3274 = vld [vmem:[#allocation3 + $0xb1] sm:$0xff]
      %v3275 = vld [vmem:[#allocation3 + $0xc1] sm:$0xff]
      %v3276 = vld [vmem:[#allocation3 + $0xc9] sm:$0xff]
      %v3277 = vld [vmem:[#allocation3 + $0xd9] sm:$0xff]
      %v3278 = vld [vmem:[#allocation3 + $0xe1] sm:$0xff]
      %v3279 = vld [vmem:[#allocation3 + $0xf1] sm:$0xff]
      %v3280 = vld [vmem:[#allocation3 + $0xf9] sm:$0xff]
      %v3281 = vld [vmem:[#allocation3 + $0x109] sm:$0xff]
      %v3282 = vld [vmem:[#allocation3 + $0x111] sm:$0xff]
      %v3283 = vld [vmem:[#allocation3 + $0x121] sm:$0xff]
      %v3284 = vld [vmem:[#allocation3 + $0x129] sm:$0xff]
      %v3285 = vld [vmem:[#allocation3 + $0x139] sm:$0xff]
      %v3286 = vld [vmem:[#allocation3 + $0x141] sm:$0xff]
      %v3287 = vld [vmem:[#allocation3 + $0x151] sm:$0xff]
      %v3288 = vld [vmem:[#allocation3 + $0x159] sm:$0xff]
      %v3289 = vld [vmem:[#allocation3 + $0x169] sm:$0xff]
      %v3290 = vld [vmem:[#allocation3 + $0x171] sm:$0xff]
      %v3291 = vld [vmem:[#allocation3 + $0x181] sm:$0xff]
      %v3292 = vld [vmem:[#allocation3 + $0x189] sm:$0xff]
      %v3293 = vld [vmem:[#allocation3 + $0x199] sm:$0xff]
      %v3294 = vld [vmem:[#allocation3 + $0x1a1] sm:$0xff]
      %v3295 = vld [vmem:[#allocation3 + $0x1b1] sm:$0xff]
      %v3296 = vld [vmem:[#allocation3 + $0x1b9] sm:$0xff]
      %v3297 = vld [vmem:[#allocation3 + $0x1c9] sm:$0xff]
      %v3298 = vld [vmem:[#allocation3 + $0x1d1] sm:$0xff]
      %v3299 = vmax.f32 %v3219, %v3259
      %v3300 = vmax.f32 %v3220, %v3260
      %v3301 = vmax.f32 %v3221, %v3261
      %v3302 = vmax.f32 %v3222, %v3262
      %v3303 = vmax.f32 %v3223, %v3263
      %v3304 = vmax.f32 %v3224, %v3264
      %v3305 = vmax.f32 %v3225, %v3265
      %v3306 = vmax.f32 %v3226, %v3266
      %v3307 = vmax.f32 %v3227, %v3267
      %v3308 = vmax.f32 %v3228, %v3268
      %v3309 = vmax.f32 %v3229, %v3269
      %v3310 = vmax.f32 %v3230, %v3270
      %v3311 = vmax.f32 %v3231, %v3271
      %v3312 = vmax.f32 %v3232, %v3272
      %v3313 = vmax.f32 %v3233, %v3273
      %v3314 = vmax.f32 %v3234, %v3274
      %v3315 = vmax.f32 %v3235, %v3275
      %v3316 = vmax.f32 %v3236, %v3276
      %v3317 = vmax.f32 %v3237, %v3277
      %v3318 = vmax.f32 %v3238, %v3278
      %v3319 = vmax.f32 %v3239, %v3279
      %v3320 = vmax.f32 %v3240, %v3280
      %v3321 = vmax.f32 %v3241, %v3281
      %v3322 = vmax.f32 %v3242, %v3282
      %v3323 = vmax.f32 %v3243, %v3283
      %v3324 = vmax.f32 %v3244, %v3284
      %v3325 = vmax.f32 %v3245, %v3285
      %v3326 = vmax.f32 %v3246, %v3286
      %v3327 = vmax.f32 %v3247, %v3287
      %v3328 = vmax.f32 %v3248, %v3288
      %v3329 = vmax.f32 %v3249, %v3289
      %v3330 = vmax.f32 %v3250, %v3290
      %v3331 = vmax.f32 %v3251, %v3291
      %v3332 = vmax.f32 %v3252, %v3292
      %v3333 = vmax.f32 %v3253, %v3293
      %v3334 = vmax.f32 %v3254, %v3294
      %v3335 = vmax.f32 %v3255, %v3295
      %v3336 = vmax.f32 %v3256, %v3296
      %v3337 = vmax.f32 %v3257, %v3297
      %v3338 = vmax.f32 %v3258, %v3298
      %v3339 = vld [vmem:[#allocation3 + $0x2] sm:$0xff]
      %v3340 = vld [vmem:[#allocation3 + $0xa] sm:$0xff]
      %v3341 = vld [vmem:[#allocation3 + $0x1a] sm:$0xff]
      %v3342 = vld [vmem:[#allocation3 + $0x22] sm:$0xff]
      %v3343 = vld [vmem:[#allocation3 + $0x32] sm:$0xff]
      %v3344 = vld [vmem:[#allocation3 + $0x3a] sm:$0xff]
      %v3345 = vld [vmem:[#allocation3 + $0x4a] sm:$0xff]
      %v3346 = vld [vmem:[#allocation3 + $0x52] sm:$0xff]
      %v3347 = vld [vmem:[#allocation3 + $0x62] sm:$0xff]
      %v3348 = vld [vmem:[#allocation3 + $0x6a] sm:$0xff]
      %v3349 = vld [vmem:[#allocation3 + $0x7a] sm:$0xff]
      %v3350 = vld [vmem:[#allocation3 + $0x82] sm:$0xff]
      %v3351 = vld [vmem:[#allocation3 + $0x92] sm:$0xff]
      %v3352 = vld [vmem:[#allocation3 + $0x9a] sm:$0xff]
      %v3353 = vld [vmem:[#allocation3 + $0xaa] sm:$0xff]
      %v3354 = vld [vmem:[#allocation3 + $0xb2] sm:$0xff]
      %v3355 = vld [vmem:[#allocation3 + $0xc2] sm:$0xff]
      %v3356 = vld [vmem:[#allocation3 + $0xca] sm:$0xff]
      %v3357 = vld [vmem:[#allocation3 + $0xda] sm:$0xff]
      %v3358 = vld [vmem:[#allocation3 + $0xe2] sm:$0xff]
      %v3359 = vld [vmem:[#allocation3 + $0xf2] sm:$0xff]
      %v3360 = vld [vmem:[#allocation3 + $0xfa] sm:$0xff]
      %v3361 = vld [vmem:[#allocation3 + $0x10a] sm:$0xff]
      %v3362 = vld [vmem:[#allocation3 + $0x112] sm:$0xff]
      %v3363 = vld [vmem:[#allocation3 + $0x122] sm:$0xff]
      %v3364 = vld [vmem:[#allocation3 + $0x12a] sm:$0xff]
      %v3365 = vld [vmem:[#allocation3 + $0x13a] sm:$0xff]
      %v3366 = vld [vmem:[#allocation3 + $0x142] sm:$0xff]
      %v3367 = vld [vmem:[#allocation3 + $0x152] sm:$0xff]
      %v3368 = vld [vmem:[#allocation3 + $0x15a] sm:$0xff]
      %v3369 = vld [vmem:[#allocation3 + $0x16a] sm:$0xff]
      %v3370 = vld [vmem:[#allocation3 + $0x172] sm:$0xff]
      %v3371 = vld [vmem:[#allocation3 + $0x182] sm:$0xff]
      %v3372 = vld [vmem:[#allocation3 + $0x18a] sm:$0xff]
      %v3373 = vld [vmem:[#allocation3 + $0x19a] sm:$0xff]
      %v3374 = vld [vmem:[#allocation3 + $0x1a2] sm:$0xff]
      %v3375 = vld [vmem:[#allocation3 + $0x1b2] sm:$0xff]
      %v3376 = vld [vmem:[#allocation3 + $0x1ba] sm:$0xff]
      %v3377 = vld [vmem:[#allocation3 + $0x1ca] sm:$0xff]
      %v3378 = vld [vmem:[#allocation3 + $0x1d2] sm:$0xff]
      %v3379 = vmax.f32 %v3299, %v3339
      %v3380 = vmax.f32 %v3300, %v3340
      %v3381 = vmax.f32 %v3301, %v3341
      %v3382 = vmax.f32 %v3302, %v3342
      %v3383 = vmax.f32 %v3303, %v3343
      %v3384 = vmax.f32 %v3304, %v3344
      %v3385 = vmax.f32 %v3305, %v3345
      %v3386 = vmax.f32 %v3306, %v3346
      %v3387 = vmax.f32 %v3307, %v3347
      %v3388 = vmax.f32 %v3308, %v3348
      %v3389 = vmax.f32 %v3309, %v3349
      %v3390 = vmax.f32 %v3310, %v3350
      %v3391 = vmax.f32 %v3311, %v3351
      %v3392 = vmax.f32 %v3312, %v3352
      %v3393 = vmax.f32 %v3313, %v3353
      %v3394 = vmax.f32 %v3314, %v3354
      %v3395 = vmax.f32 %v3315, %v3355
      %v3396 = vmax.f32 %v3316, %v3356
      %v3397 = vmax.f32 %v3317, %v3357
      %v3398 = vmax.f32 %v3318, %v3358
      %v3399 = vmax.f32 %v3319, %v3359
      %v3400 = vmax.f32 %v3320, %v3360
      %v3401 = vmax.f32 %v3321, %v3361
      %v3402 = vmax.f32 %v3322, %v3362
      %v3403 = vmax.f32 %v3323, %v3363
      %v3404 = vmax.f32 %v3324, %v3364
      %v3405 = vmax.f32 %v3325, %v3365
      %v3406 = vmax.f32 %v3326, %v3366
      %v3407 = vmax.f32 %v3327, %v3367
      %v3408 = vmax.f32 %v3328, %v3368
      %v3409 = vmax.f32 %v3329, %v3369
      %v3410 = vmax.f32 %v3330, %v3370
      %v3411 = vmax.f32 %v3331, %v3371
      %v3412 = vmax.f32 %v3332, %v3372
      %v3413 = vmax.f32 %v3333, %v3373
      %v3414 = vmax.f32 %v3334, %v3374
      %v3415 = vmax.f32 %v3335, %v3375
      %v3416 = vmax.f32 %v3336, %v3376
      %v3417 = vmax.f32 %v3337, %v3377
      %v3418 = vmax.f32 %v3338, %v3378
      %v3419 = vld [vmem:[#allocation3 + $0x3] sm:$0xff]
      %v3420 = vld [vmem:[#allocation3 + $0xb] sm:$0xff]
      %v3421 = vld [vmem:[#allocation3 + $0x1b] sm:$0xff]
      %v3422 = vld [vmem:[#allocation3 + $0x23] sm:$0xff]
      %v3423 = vld [vmem:[#allocation3 + $0x33] sm:$0xff]
      %v3424 = vld [vmem:[#allocation3 + $0x3b] sm:$0xff]
      %v3425 = vld [vmem:[#allocation3 + $0x4b] sm:$0xff]
      %v3426 = vld [vmem:[#allocation3 + $0x53] sm:$0xff]
      %v3427 = vld [vmem:[#allocation3 + $0x63] sm:$0xff]
      %v3428 = vld [vmem:[#allocation3 + $0x6b] sm:$0xff]
      %v3429 = vld [vmem:[#allocation3 + $0x7b] sm:$0xff]
      %v3430 = vld [vmem:[#allocation3 + $0x83] sm:$0xff]
      %v3431 = vld [vmem:[#allocation3 + $0x93] sm:$0xff]
      %v3432 = vld [vmem:[#allocation3 + $0x9b] sm:$0xff]
      %v3433 = vld [vmem:[#allocation3 + $0xab] sm:$0xff]
      %v3434 = vld [vmem:[#allocation3 + $0xb3] sm:$0xff]
      %v3435 = vld [vmem:[#allocation3 + $0xc3] sm:$0xff]
      %v3436 = vld [vmem:[#allocation3 + $0xcb] sm:$0xff]
      %v3437 = vld [vmem:[#allocation3 + $0xdb] sm:$0xff]
      %v3438 = vld [vmem:[#allocation3 + $0xe3] sm:$0xff]
      %v3439 = vld [vmem:[#allocation3 + $0xf3] sm:$0xff]
      %v3440 = vld [vmem:[#allocation3 + $0xfb] sm:$0xff]
      %v3441 = vld [vmem:[#allocation3 + $0x10b] sm:$0xff]
      %v3442 = vld [vmem:[#allocation3 + $0x113] sm:$0xff]
      %v3443 = vld [vmem:[#allocation3 + $0x123] sm:$0xff]
      %v3444 = vld [vmem:[#allocation3 + $0x12b] sm:$0xff]
      %v3445 = vld [vmem:[#allocation3 + $0x13b] sm:$0xff]
      %v3446 = vld [vmem:[#allocation3 + $0x143] sm:$0xff]
      %v3447 = vld [vmem:[#allocation3 + $0x153] sm:$0xff]
      %v3448 = vld [vmem:[#allocation3 + $0x15b] sm:$0xff]
      %v3449 = vld [vmem:[#allocation3 + $0x16b] sm:$0xff]
      %v3450 = vld [vmem:[#allocation3 + $0x173] sm:$0xff]
      %v3451 = vld [vmem:[#allocation3 + $0x183] sm:$0xff]
      %v3452 = vld [vmem:[#allocation3 + $0x18b] sm:$0xff]
      %v3453 = vld [vmem:[#allocation3 + $0x19b] sm:$0xff]
      %v3454 = vld [vmem:[#allocation3 + $0x1a3] sm:$0xff]
      %v3455 = vld [vmem:[#allocation3 + $0x1b3] sm:$0xff]
      %v3456 = vld [vmem:[#allocation3 + $0x1bb] sm:$0xff]
      %v3457 = vld [vmem:[#allocation3 + $0x1cb] sm:$0xff]
      %v3458 = vld [vmem:[#allocation3 + $0x1d3] sm:$0xff]
      %v3459 = vmax.f32 %v3379, %v3419
      %v3460 = vmax.f32 %v3380, %v3420
      %v3461 = vmax.f32 %v3381, %v3421
      %v3462 = vmax.f32 %v3382, %v3422
      %v3463 = vmax.f32 %v3383, %v3423
      %v3464 = vmax.f32 %v3384, %v3424
      %v3465 = vmax.f32 %v3385, %v3425
      %v3466 = vmax.f32 %v3386, %v3426
      %v3467 = vmax.f32 %v3387, %v3427
      %v3468 = vmax.f32 %v3388, %v3428
      %v3469 = vmax.f32 %v3389, %v3429
      %v3470 = vmax.f32 %v3390, %v3430
      %v3471 = vmax.f32 %v3391, %v3431
      %v3472 = vmax.f32 %v3392, %v3432
      %v3473 = vmax.f32 %v3393, %v3433
      %v3474 = vmax.f32 %v3394, %v3434
      %v3475 = vmax.f32 %v3395, %v3435
      %v3476 = vmax.f32 %v3396, %v3436
      %v3477 = vmax.f32 %v3397, %v3437
      %v3478 = vmax.f32 %v3398, %v3438
      %v3479 = vmax.f32 %v3399, %v3439
      %v3480 = vmax.f32 %v3400, %v3440
      %v3481 = vmax.f32 %v3401, %v3441
      %v3482 = vmax.f32 %v3402, %v3442
      %v3483 = vmax.f32 %v3403, %v3443
      %v3484 = vmax.f32 %v3404, %v3444
      %v3485 = vmax.f32 %v3405, %v3445
      %v3486 = vmax.f32 %v3406, %v3446
      %v3487 = vmax.f32 %v3407, %v3447
      %v3488 = vmax.f32 %v3408, %v3448
      %v3489 = vmax.f32 %v3409, %v3449
      %v3490 = vmax.f32 %v3410, %v3450
      %v3491 = vmax.f32 %v3411, %v3451
      %v3492 = vmax.f32 %v3412, %v3452
      %v3493 = vmax.f32 %v3413, %v3453
      %v3494 = vmax.f32 %v3414, %v3454
      %v3495 = vmax.f32 %v3415, %v3455
      %v3496 = vmax.f32 %v3416, %v3456
      %v3497 = vmax.f32 %v3417, %v3457
      %v3498 = vmax.f32 %v3418, %v3458
      %v3499 = vld [vmem:[#allocation3 + $0x4] sm:$0xff]
      %v3500 = vld [vmem:[#allocation3 + $0xc] sm:$0xff]
      %v3501 = vld [vmem:[#allocation3 + $0x1c] sm:$0xff]
      %v3502 = vld [vmem:[#allocation3 + $0x24] sm:$0xff]
      %v3503 = vld [vmem:[#allocation3 + $0x34] sm:$0xff]
      %v3504 = vld [vmem:[#allocation3 + $0x3c] sm:$0xff]
      %v3505 = vld [vmem:[#allocation3 + $0x4c] sm:$0xff]
      %v3506 = vld [vmem:[#allocation3 + $0x54] sm:$0xff]
      %v3507 = vld [vmem:[#allocation3 + $0x64] sm:$0xff]
      %v3508 = vld [vmem:[#allocation3 + $0x6c] sm:$0xff]
      %v3509 = vld [vmem:[#allocation3 + $0x7c] sm:$0xff]
      %v3510 = vld [vmem:[#allocation3 + $0x84] sm:$0xff]
      %v3511 = vld [vmem:[#allocation3 + $0x94] sm:$0xff]
      %v3512 = vld [vmem:[#allocation3 + $0x9c] sm:$0xff]
      %v3513 = vld [vmem:[#allocation3 + $0xac] sm:$0xff]
      %v3514 = vld [vmem:[#allocation3 + $0xb4] sm:$0xff]
      %v3515 = vld [vmem:[#allocation3 + $0xc4] sm:$0xff]
      %v3516 = vld [vmem:[#allocation3 + $0xcc] sm:$0xff]
      %v3517 = vld [vmem:[#allocation3 + $0xdc] sm:$0xff]
      %v3518 = vld [vmem:[#allocation3 + $0xe4] sm:$0xff]
      %v3519 = vld [vmem:[#allocation3 + $0xf4] sm:$0xff]
      %v3520 = vld [vmem:[#allocation3 + $0xfc] sm:$0xff]
      %v3521 = vld [vmem:[#allocation3 + $0x10c] sm:$0xff]
      %v3522 = vld [vmem:[#allocation3 + $0x114] sm:$0xff]
      %v3523 = vld [vmem:[#allocation3 + $0x124] sm:$0xff]
      %v3524 = vld [vmem:[#allocation3 + $0x12c] sm:$0xff]
      %v3525 = vld [vmem:[#allocation3 + $0x13c] sm:$0xff]
      %v3526 = vld [vmem:[#allocation3 + $0x144] sm:$0xff]
      %v3527 = vld [vmem:[#allocation3 + $0x154] sm:$0xff]
      %v3528 = vld [vmem:[#allocation3 + $0x15c] sm:$0xff]
      %v3529 = vld [vmem:[#allocation3 + $0x16c] sm:$0xff]
      %v3530 = vld [vmem:[#allocation3 + $0x174] sm:$0xff]
      %v3531 = vld [vmem:[#allocation3 + $0x184] sm:$0xff]
      %v3532 = vld [vmem:[#allocation3 + $0x18c] sm:$0xff]
      %v3533 = vld [vmem:[#allocation3 + $0x19c] sm:$0xff]
      %v3534 = vld [vmem:[#allocation3 + $0x1a4] sm:$0xff]
      %v3535 = vld [vmem:[#allocation3 + $0x1b4] sm:$0xff]
      %v3536 = vld [vmem:[#allocation3 + $0x1bc] sm:$0xff]
      %v3537 = vld [vmem:[#allocation3 + $0x1cc] sm:$0xff]
      %v3538 = vld [vmem:[#allocation3 + $0x1d4] sm:$0xff]
      %v3539 = vmax.f32 %v3459, %v3499
      %v3540 = vmax.f32 %v3460, %v3500
      %v3541 = vmax.f32 %v3461, %v3501
      %v3542 = vmax.f32 %v3462, %v3502
      %v3543 = vmax.f32 %v3463, %v3503
      %v3544 = vmax.f32 %v3464, %v3504
      %v3545 = vmax.f32 %v3465, %v3505
      %v3546 = vmax.f32 %v3466, %v3506
      %v3547 = vmax.f32 %v3467, %v3507
      %v3548 = vmax.f32 %v3468, %v3508
      %v3549 = vmax.f32 %v3469, %v3509
      %v3550 = vmax.f32 %v3470, %v3510
      %v3551 = vmax.f32 %v3471, %v3511
      %v3552 = vmax.f32 %v3472, %v3512
      %v3553 = vmax.f32 %v3473, %v3513
      %v3554 = vmax.f32 %v3474, %v3514
      %v3555 = vmax.f32 %v3475, %v3515
      %v3556 = vmax.f32 %v3476, %v3516
      %v3557 = vmax.f32 %v3477, %v3517
      %v3558 = vmax.f32 %v3478, %v3518
      %v3559 = vmax.f32 %v3479, %v3519
      %v3560 = vmax.f32 %v3480, %v3520
      %v3561 = vmax.f32 %v3481, %v3521
      %v3562 = vmax.f32 %v3482, %v3522
      %v3563 = vmax.f32 %v3483, %v3523
      %v3564 = vmax.f32 %v3484, %v3524
      %v3565 = vmax.f32 %v3485, %v3525
      %v3566 = vmax.f32 %v3486, %v3526
      %v3567 = vmax.f32 %v3487, %v3527
      %v3568 = vmax.f32 %v3488, %v3528
      %v3569 = vmax.f32 %v3489, %v3529
      %v3570 = vmax.f32 %v3490, %v3530
      %v3571 = vmax.f32 %v3491, %v3531
      %v3572 = vmax.f32 %v3492, %v3532
      %v3573 = vmax.f32 %v3493, %v3533
      %v3574 = vmax.f32 %v3494, %v3534
      %v3575 = vmax.f32 %v3495, %v3535
      %v3576 = vmax.f32 %v3496, %v3536
      %v3577 = vmax.f32 %v3497, %v3537
      %v3578 = vmax.f32 %v3498, %v3538
      %v3579 = vmax.f32 %v3539, %v3541
      %v3580 = vmax.f32 %v3540, %v3542
      %v3581 = vmax.f32 %v3541, %v3543
      %v3582 = vmax.f32 %v3542, %v3544
      %v3583 = vmax.f32 %v3543, %v3545
      %v3584 = vmax.f32 %v3544, %v3546
      %v3585 = vmax.f32 %v3545, %v3547
      %v3586 = vmax.f32 %v3546, %v3548
      %v3587 = vmax.f32 %v3547, %v3549
      %v3588 = vmax.f32 %v3548, %v3550
      %v3589 = vmax.f32 %v3549, %v3551
      %v3590 = vmax.f32 %v3550, %v3552
      %v3591 = vmax.f32 %v3551, %v3553
      %v3592 = vmax.f32 %v3552, %v3554
      %v3593 = vmax.f32 %v3553, %v3555
      %v3594 = vmax.f32 %v3554, %v3556
      %v3595 = vmax.f32 %v3555, %v3557
      %v3596 = vmax.f32 %v3556, %v3558
      %v3597 = vmax.f32 %v3557, %v3559
      %v3598 = vmax.f32 %v3558, %v3560
      %v3599 = vmax.f32 %v3559, %v3561
      %v3600 = vmax.f32 %v3560, %v3562
      %v3601 = vmax.f32 %v3561, %v3563
      %v3602 = vmax.f32 %v3562, %v3564
      %v3603 = vmax.f32 %v3563, %v3565
      %v3604 = vmax.f32 %v3564, %v3566
      %v3605 = vmax.f32 %v3565, %v3567
      %v3606 = vmax.f32 %v3566, %v3568
      %v3607 = vmax.f32 %v3567, %v3569
      %v3608 = vmax.f32 %v3568, %v3570
      %v3609 = vmax.f32 %v3569, %v3571
      %v3610 = vmax.f32 %v3570, %v3572
      %v3611 = vmax.f32 %v3579, %v3543
      %v3612 = vmax.f32 %v3580, %v3544
      %v3613 = vmax.f32 %v3581, %v3545
      %v3614 = vmax.f32 %v3582, %v3546
      %v3615 = vmax.f32 %v3583, %v3547
      %v3616 = vmax.f32 %v3584, %v3548
      %v3617 = vmax.f32 %v3585, %v3549
      %v3618 = vmax.f32 %v3586, %v3550
      %v3619 = vmax.f32 %v3587, %v3551
      %v3620 = vmax.f32 %v3588, %v3552
      %v3621 = vmax.f32 %v3589, %v3553
      %v3622 = vmax.f32 %v3590, %v3554
      %v3623 = vmax.f32 %v3591, %v3555
      %v3624 = vmax.f32 %v3592, %v3556
      %v3625 = vmax.f32 %v3593, %v3557
      %v3626 = vmax.f32 %v3594, %v3558
      %v3627 = vmax.f32 %v3595, %v3559
      %v3628 = vmax.f32 %v3596, %v3560
      %v3629 = vmax.f32 %v3597, %v3561
      %v3630 = vmax.f32 %v3598, %v3562
      %v3631 = vmax.f32 %v3599, %v3563
      %v3632 = vmax.f32 %v3600, %v3564
      %v3633 = vmax.f32 %v3601, %v3565
      %v3634 = vmax.f32 %v3602, %v3566
      %v3635 = vmax.f32 %v3603, %v3567
      %v3636 = vmax.f32 %v3604, %v3568
      %v3637 = vmax.f32 %v3605, %v3569
      %v3638 = vmax.f32 %v3606, %v3570
      %v3639 = vmax.f32 %v3607, %v3571
      %v3640 = vmax.f32 %v3608, %v3572
      %v3641 = vmax.f32 %v3609, %v3573
      %v3642 = vmax.f32 %v3610, %v3574
      %v3643 = vmax.f32 %v3611, %v3545
      %v3644 = vmax.f32 %v3612, %v3546
      %v3645 = vmax.f32 %v3613, %v3547
      %v3646 = vmax.f32 %v3614, %v3548
      %v3647 = vmax.f32 %v3615, %v3549
      %v3648 = vmax.f32 %v3616, %v3550
      %v3649 = vmax.f32 %v3617, %v3551
      %v3650 = vmax.f32 %v3618, %v3552
      %v3651 = vmax.f32 %v3619, %v3553
      %v3652 = vmax.f32 %v3620, %v3554
      %v3653 = vmax.f32 %v3621, %v3555
      %v3654 = vmax.f32 %v3622, %v3556
      %v3655 = vmax.f32 %v3623, %v3557
      %v3656 = vmax.f32 %v3624, %v3558
      %v3657 = vmax.f32 %v3625, %v3559
      %v3658 = vmax.f32 %v3626, %v3560
      %v3659 = vmax.f32 %v3627, %v3561
      %v3660 = vmax.f32 %v3628, %v3562
      %v3661 = vmax.f32 %v3629, %v3563
      %v3662 = vmax.f32 %v3630, %v3564
      %v3663 = vmax.f32 %v3631, %v3565
      %v3664 = vmax.f32 %v3632, %v3566
      %v3665 = vmax.f32 %v3633, %v3567
      %v3666 = vmax.f32 %v3634, %v3568
      %v3667 = vmax.f32 %v3635, %v3569
      %v3668 = vmax.f32 %v3636, %v3570
      %v3669 = vmax.f32 %v3637, %v3571
      %v3670 = vmax.f32 %v3638, %v3572
      %v3671 = vmax.f32 %v3639, %v3573
      %v3672 = vmax.f32 %v3640, %v3574
      %v3673 = vmax.f32 %v3641, %v3575
      %v3674 = vmax.f32 %v3642, %v3576
      %v3675 = vmax.f32 %v3643, %v3547
      %v3676 = vmax.f32 %v3644, %v3548
      %v3677 = vmax.f32 %v3645, %v3549
      %v3678 = vmax.f32 %v3646, %v3550
      %v3679 = vmax.f32 %v3647, %v3551
      %v3680 = vmax.f32 %v3648, %v3552
      %v3681 = vmax.f32 %v3649, %v3553
      %v3682 = vmax.f32 %v3650, %v3554
      %v3683 = vmax.f32 %v3651, %v3555
      %v3684 = vmax.f32 %v3652, %v3556
      %v3685 = vmax.f32 %v3653, %v3557
      %v3686 = vmax.f32 %v3654, %v3558
      %v3687 = vmax.f32 %v3655, %v3559
      %v3688 = vmax.f32 %v3656, %v3560
      %v3689 = vmax.f32 %v3657, %v3561
      %v3690 = vmax.f32 %v3658, %v3562
      %v3691 = vmax.f32 %v3659, %v3563
      %v3692 = vmax.f32 %v3660, %v3564
      %v3693 = vmax.f32 %v3661, %v3565
      %v3694 = vmax.f32 %v3662, %v3566
      %v3695 = vmax.f32 %v3663, %v3567
      %v3696 = vmax.f32 %v3664, %v3568
      %v3697 = vmax.f32 %v3665, %v3569
      %v3698 = vmax.f32 %v3666, %v3570
      %v3699 = vmax.f32 %v3667, %v3571
      %v3700 = vmax.f32 %v3668, %v3572
      %v3701 = vmax.f32 %v3669, %v3573
      %v3702 = vmax.f32 %v3670, %v3574
      %v3703 = vmax.f32 %v3671, %v3575
      %v3704 = vmax.f32 %v3672, %v3576
      %v3705 = vmax.f32 %v3673, %v3577
      %v3706 = vmax.f32 %v3674, %v3578
      %v3707 = vpack.c.bf16 %v3676, %v3675
      %v3708 = vpack.c.bf16 %v3678, %v3677
      %v3709 = vpack.c.bf16 %v3680, %v3679
      %v3710 = vpack.c.bf16 %v3682, %v3681
      %v3711 = vpack.c.bf16 %v3684, %v3683
      %v3712 = vpack.c.bf16 %v3686, %v3685
      %v3713 = vpack.c.bf16 %v3688, %v3687
      %v3714 = vpack.c.bf16 %v3690, %v3689
      %v3715 = vpack.c.bf16 %v3692, %v3691
      %v3716 = vpack.c.bf16 %v3694, %v3693
      %v3717 = vpack.c.bf16 %v3696, %v3695
      %v3718 = vpack.c.bf16 %v3698, %v3697
      %v3719 = vpack.c.bf16 %v3700, %v3699
      %v3720 = vpack.c.bf16 %v3702, %v3701
      %v3721 = vpack.c.bf16 %v3704, %v3703
      %v3722 = vpack.c.bf16 %v3706, %v3705
      %s3723 = scalar_lea.vmem %s7, 2
      %v3724 = vld [vmem:[%s3723] sm:$0x1]
      %v3726 = vsel %vm485, %v3707, 0
      %v3729 = vsel %vm485, %v3708, 0
      %v3732 = vsel %vm485, %v3709, 0
      %v3735 = vsel %vm485, %v3710, 0
      %v3738 = vsel %vm485, %v3711, 0
      %v3741 = vsel %vm485, %v3712, 0
      %v3744 = vsel %vm485, %v3713, 0
      %v3747 = vsel %vm485, %v3714, 0
      %v3750 = vsel %vm485, %v3715, 0
      %v3753 = vsel %vm485, %v3716, 0
      %v3756 = vsel %vm485, %v3717, 0
      %v3759 = vsel %vm485, %v3718, 0
      %v3762 = vsel %vm485, %v3719, 0
      %v3765 = vsel %vm485, %v3720, 0
      %v3768 = vsel %vm485, %v3721, 0
      %v3771 = vsel %vm485, %v3722, 0
      %v3774 = vsel %vm2810, %v3724, 0
      %3776 = vmatprep.subr.bf16.mxu0 0
      %3777 = vmatpush1.bf16.msra.mxu0 0
      %3778 = vmatprep.subr.bf16.mxu0 0
      %3779 = vmatpush1.bf16.msra.mxu0 0
      %3780 = vmatprep.subr.bf16.mxu0 0
      %3781 = vmatpush1.bf16.msra.mxu0 0
      %3782 = vmatprep.subr.bf16.mxu0 0
      %3783 = vmatpush1.bf16.msra.mxu0 0
      %3784 = vmatprep.subr.bf16.mxu0 0
      %3785 = vmatpush1.bf16.msra.mxu0 0
      %3786 = vmatprep.subr.bf16.mxu0 0
      %3787 = vmatpush1.bf16.msra.mxu0 0
      %3788 = vmatprep.subr.bf16.mxu0 0
      %3789 = vmatpush1.bf16.msra.mxu0 0
      %3790 = vmatprep.subr.bf16.mxu0 0
      %3791 = vmatpush1.bf16.msra.mxu0 %v3774
      %3792 = vmatprep.subr.bf16.mxu0 0
      %3793 = vmatpush2.bf16.msra.mxu0 0
      %3794 = vmatprep.subr.bf16.mxu0 0
      %3795 = vmatpush2.bf16.msra.mxu0 0
      %3796 = vmatprep.subr.bf16.mxu0 0
      %3797 = vmatpush2.bf16.msra.mxu0 0
      %3798 = vmatprep.subr.bf16.mxu0 0
      %3799 = vmatpush2.bf16.msra.mxu0 0
      %3800 = vmatprep.subr.bf16.mxu0 0
      %3801 = vmatpush2.bf16.msra.mxu0 0
      %3802 = vmatprep.subr.bf16.mxu0 0
      %3803 = vmatpush2.bf16.msra.mxu0 0
      %3804 = vmatprep.subr.bf16.mxu0 0
      %3805 = vmatpush2.bf16.msra.mxu0 0
      %3806 = vmatprep.subr.bf16.mxu0 0
      %3807 = vmatpush2.bf16.msra.mxu0 0
      %3808 = vmatprep.mubr.bf16.mxu0 0
      %3809 = vmatmul.mubr.bf16.gmra.mxu0 %v3726
      %v3810 = vpop.f32.mrf.mxu0
      %v3811 = vadd.f32 0.0, %v3810
      %v3812 = vpop.f32.mrf.mxu0
      %v3813 = vpop.f32.mrf.mxu0
      %v3814 = vadd.f32 0.0, %v3813
      %v3815 = vpop.f32.mrf.mxu0
      %3816 = vmatprep.mubr.bf16.mxu0 0
      %3817 = vmatmul.mubr.bf16.gmra.mxu0 %v3729
      %v3818 = vpop.f32.mrf.mxu0
      %v3819 = vadd.f32 0.0, %v3818
      %v3820 = vpop.f32.mrf.mxu0
      %v3821 = vpop.f32.mrf.mxu0
      %v3822 = vadd.f32 0.0, %v3821
      %v3823 = vpop.f32.mrf.mxu0
      %3824 = vmatprep.mubr.bf16.mxu0 0
      %3825 = vmatmul.mubr.bf16.gmra.mxu0 %v3732
      %v3826 = vpop.f32.mrf.mxu0
      %v3827 = vadd.f32 0.0, %v3826
      %v3828 = vpop.f32.mrf.mxu0
      %v3829 = vpop.f32.mrf.mxu0
      %v3830 = vadd.f32 0.0, %v3829
      %v3831 = vpop.f32.mrf.mxu0
      %3832 = vmatprep.mubr.bf16.mxu0 0
      %3833 = vmatmul.mubr.bf16.gmra.mxu0 %v3735
      %v3834 = vpop.f32.mrf.mxu0
      %v3835 = vadd.f32 0.0, %v3834
      %v3836 = vpop.f32.mrf.mxu0
      %v3837 = vpop.f32.mrf.mxu0
      %v3838 = vadd.f32 0.0, %v3837
      %v3839 = vpop.f32.mrf.mxu0
      %3840 = vmatprep.mubr.bf16.mxu0 0
      %3841 = vmatmul.mubr.bf16.gmra.mxu0 %v3738
      %v3842 = vpop.f32.mrf.mxu0
      %v3843 = vadd.f32 0.0, %v3842
      %v3844 = vpop.f32.mrf.mxu0
      %v3845 = vpop.f32.mrf.mxu0
      %v3846 = vadd.f32 0.0, %v3845
      %v3847 = vpop.f32.mrf.mxu0
      %3848 = vmatprep.mubr.bf16.mxu0 0
      %3849 = vmatmul.mubr.bf16.gmra.mxu0 %v3741
      %v3850 = vpop.f32.mrf.mxu0
      %v3851 = vadd.f32 0.0, %v3850
      %v3852 = vpop.f32.mrf.mxu0
      %v3853 = vpop.f32.mrf.mxu0
      %v3854 = vadd.f32 0.0, %v3853
      %v3855 = vpop.f32.mrf.mxu0
      %3856 = vmatprep.mubr.bf16.mxu0 0
      %3857 = vmatmul.mubr.bf16.gmra.mxu0 %v3744
      %v3858 = vpop.f32.mrf.mxu0
      %v3859 = vadd.f32 0.0, %v3858
      %v3860 = vpop.f32.mrf.mxu0
      %v3861 = vpop.f32.mrf.mxu0
      %v3862 = vadd.f32 0.0, %v3861
      %v3863 = vpop.f32.mrf.mxu0
      %3864 = vmatprep.mubr.bf16.mxu0 0
      %3865 = vmatmul.mubr.bf16.gmra.mxu0 %v3747
      %v3866 = vpop.f32.mrf.mxu0
      %v3867 = vadd.f32 0.0, %v3866
      %v3868 = vpop.f32.mrf.mxu0
      %v3869 = vpop.f32.mrf.mxu0
      %v3870 = vadd.f32 0.0, %v3869
      %v3871 = vpop.f32.mrf.mxu0
      %3872 = vmatprep.mubr.bf16.mxu0 0
      %3873 = vmatmul.mubr.bf16.gmra.mxu0 %v3750
      %v3874 = vpop.f32.mrf.mxu0
      %v3875 = vadd.f32 0.0, %v3874
      %v3876 = vpop.f32.mrf.mxu0
      %v3877 = vpop.f32.mrf.mxu0
      %v3878 = vadd.f32 0.0, %v3877
      %v3879 = vpop.f32.mrf.mxu0
      %3880 = vmatprep.mubr.bf16.mxu0 0
      %3881 = vmatmul.mubr.bf16.gmra.mxu0 %v3753
      %v3882 = vpop.f32.mrf.mxu0
      %v3883 = vadd.f32 0.0, %v3882
      %v3884 = vpop.f32.mrf.mxu0
      %v3885 = vpop.f32.mrf.mxu0
      %v3886 = vadd.f32 0.0, %v3885
      %v3887 = vpop.f32.mrf.mxu0
      %3888 = vmatprep.mubr.bf16.mxu0 0
      %3889 = vmatmul.mubr.bf16.gmra.mxu0 %v3756
      %v3890 = vpop.f32.mrf.mxu0
      %v3891 = vadd.f32 0.0, %v3890
      %v3892 = vpop.f32.mrf.mxu0
      %v3893 = vpop.f32.mrf.mxu0
      %v3894 = vadd.f32 0.0, %v3893
      %v3895 = vpop.f32.mrf.mxu0
      %3896 = vmatprep.mubr.bf16.mxu0 0
      %3897 = vmatmul.mubr.bf16.gmra.mxu0 %v3759
      %v3898 = vpop.f32.mrf.mxu0
      %v3899 = vadd.f32 0.0, %v3898
      %v3900 = vpop.f32.mrf.mxu0
      %v3901 = vpop.f32.mrf.mxu0
      %v3902 = vadd.f32 0.0, %v3901
      %v3903 = vpop.f32.mrf.mxu0
      %3904 = vmatprep.mubr.bf16.mxu0 0
      %3905 = vmatmul.mubr.bf16.gmra.mxu0 %v3762
      %v3906 = vpop.f32.mrf.mxu0
      %v3907 = vadd.f32 0.0, %v3906
      %v3908 = vpop.f32.mrf.mxu0
      %v3909 = vpop.f32.mrf.mxu0
      %v3910 = vadd.f32 0.0, %v3909
      %v3911 = vpop.f32.mrf.mxu0
      %3912 = vmatprep.mubr.bf16.mxu0 0
      %3913 = vmatmul.mubr.bf16.gmra.mxu0 %v3765
      %v3914 = vpop.f32.mrf.mxu0
      %v3915 = vadd.f32 0.0, %v3914
      %v3916 = vpop.f32.mrf.mxu0
      %v3917 = vpop.f32.mrf.mxu0
      %v3918 = vadd.f32 0.0, %v3917
      %v3919 = vpop.f32.mrf.mxu0
      %3920 = vmatprep.mubr.bf16.mxu0 0
      %3921 = vmatmul.mubr.bf16.gmra.mxu0 %v3768
      %v3922 = vpop.f32.mrf.mxu0
      %v3923 = vadd.f32 0.0, %v3922
      %v3924 = vpop.f32.mrf.mxu0
      %v3925 = vpop.f32.mrf.mxu0
      %v3926 = vadd.f32 0.0, %v3925
      %v3927 = vpop.f32.mrf.mxu0
      %3928 = vmatprep.mubr.bf16.mxu0 0
      %3929 = vmatmul.mubr.bf16.gmra.mxu0 %v3771
      %v3930 = vpop.f32.mrf.mxu0
      %v3931 = vadd.f32 0.0, %v3930
      %v3932 = vpop.f32.mrf.mxu0
      %v3933 = vpop.f32.mrf.mxu0
      %v3934 = vadd.f32 0.0, %v3933
      %v3935 = vpop.f32.mrf.mxu0
      %3936 = vdwg.mxu0
      %v3937 = vadd.f32 %v3061, %v3811
      %v3938 = vadd.f32 %v3064, %v3814
      %v3939 = vadd.f32 %v3069, %v3819
      %v3940 = vadd.f32 %v3072, %v3822
      %v3941 = vadd.f32 %v3077, %v3827
      %v3942 = vadd.f32 %v3080, %v3830
      %v3943 = vadd.f32 %v3085, %v3835
      %v3944 = vadd.f32 %v3088, %v3838
      %v3945 = vadd.f32 %v3093, %v3843
      %v3946 = vadd.f32 %v3096, %v3846
      %v3947 = vadd.f32 %v3101, %v3851
      %v3948 = vadd.f32 %v3104, %v3854
      %v3949 = vadd.f32 %v3109, %v3859
      %v3950 = vadd.f32 %v3112, %v3862
      %v3951 = vadd.f32 %v3117, %v3867
      %v3952 = vadd.f32 %v3120, %v3870
      %v3953 = vadd.f32 %v3125, %v3875
      %v3954 = vadd.f32 %v3128, %v3878
      %v3955 = vadd.f32 %v3133, %v3883
      %v3956 = vadd.f32 %v3136, %v3886
      %v3957 = vadd.f32 %v3141, %v3891
      %v3958 = vadd.f32 %v3144, %v3894
      %v3959 = vadd.f32 %v3149, %v3899
      %v3960 = vadd.f32 %v3152, %v3902
      %v3961 = vadd.f32 %v3157, %v3907
      %v3962 = vadd.f32 %v3160, %v3910
      %v3963 = vadd.f32 %v3165, %v3915
      %v3964 = vadd.f32 %v3168, %v3918
      %v3965 = vadd.f32 %v3173, %v3923
      %v3966 = vadd.f32 %v3176, %v3926
      %v3967 = vadd.f32 %v3181, %v3931
      %v3968 = vadd.f32 %v3184, %v3934
      %3969 = vst.msk [vmem:[%s500 + $0x2] sm:$0xff] %vm485, %v3675
      %3970 = vst.msk [vmem:[%s500 + $0xa] sm:$0xff] %vm485, %v3676
      %3971 = vst.msk [vmem:[%s500 + $0x1a] sm:$0xff] %vm485, %v3677
      %3972 = vst.msk [vmem:[%s500 + $0x22] sm:$0xff] %vm485, %v3678
      %3973 = vst.msk [vmem:[%s500 + $0x32] sm:$0xff] %vm485, %v3679
      %3974 = vst.msk [vmem:[%s500 + $0x3a] sm:$0xff] %vm485, %v3680
      %3975 = vst.msk [vmem:[%s500 + $0x4a] sm:$0xff] %vm485, %v3681
      %3976 = vst.msk [vmem:[%s500 + $0x52] sm:$0xff] %vm485, %v3682
      %3977 = vst.msk [vmem:[%s500 + $0x62] sm:$0xff] %vm485, %v3683
      %3978 = vst.msk [vmem:[%s500 + $0x6a] sm:$0xff] %vm485, %v3684
      %3979 = vst.msk [vmem:[%s500 + $0x7a] sm:$0xff] %vm485, %v3685
      %3980 = vst.msk [vmem:[%s500 + $0x82] sm:$0xff] %vm485, %v3686
      %3981 = vst.msk [vmem:[%s500 + $0x92] sm:$0xff] %vm485, %v3687
      %3982 = vst.msk [vmem:[%s500 + $0x9a] sm:$0xff] %vm485, %v3688
      %3983 = vst.msk [vmem:[%s500 + $0xaa] sm:$0xff] %vm485, %v3689
      %3984 = vst.msk [vmem:[%s500 + $0xb2] sm:$0xff] %vm485, %v3690
      %3985 = vst.msk [vmem:[%s500 + $0xc2] sm:$0xff] %vm485, %v3691
      %3986 = vst.msk [vmem:[%s500 + $0xca] sm:$0xff] %vm485, %v3692
      %3987 = vst.msk [vmem:[%s500 + $0xda] sm:$0xff] %vm485, %v3693
      %3988 = vst.msk [vmem:[%s500 + $0xe2] sm:$0xff] %vm485, %v3694
      %3989 = vst.msk [vmem:[%s500 + $0xf2] sm:$0xff] %vm485, %v3695
      %3990 = vst.msk [vmem:[%s500 + $0xfa] sm:$0xff] %vm485, %v3696
      %3991 = vst.msk [vmem:[%s500 + $0x10a] sm:$0xff] %vm485, %v3697
      %3992 = vst.msk [vmem:[%s500 + $0x112] sm:$0xff] %vm485, %v3698
      %3993 = vst.msk [vmem:[%s500 + $0x122] sm:$0xff] %vm485, %v3699
      %3994 = vst.msk [vmem:[%s500 + $0x12a] sm:$0xff] %vm485, %v3700
      %3995 = vst.msk [vmem:[%s500 + $0x13a] sm:$0xff] %vm485, %v3701
      %3996 = vst.msk [vmem:[%s500 + $0x142] sm:$0xff] %vm485, %v3702
      %3997 = vst.msk [vmem:[%s500 + $0x152] sm:$0xff] %vm485, %v3703
      %3998 = vst.msk [vmem:[%s500 + $0x15a] sm:$0xff] %vm485, %v3704
      %3999 = vst.msk [vmem:[%s500 + $0x16a] sm:$0xff] %vm485, %v3705
      %4000 = vst.msk [vmem:[%s500 + $0x172] sm:$0xff] %vm485, %v3706
      %v4001 = vld [vmem:[#allocation3] sm:$0xff]
      %v4002 = vld [vmem:[#allocation3 + $0x8] sm:$0xff]
      %v4003 = vld [vmem:[#allocation3 + $0x18] sm:$0xff]
      %v4004 = vld [vmem:[#allocation3 + $0x20] sm:$0xff]
      %v4005 = vld [vmem:[#allocation3 + $0x30] sm:$0xff]
      %v4006 = vld [vmem:[#allocation3 + $0x38] sm:$0xff]
      %v4007 = vld [vmem:[#allocation3 + $0x48] sm:$0xff]
      %v4008 = vld [vmem:[#allocation3 + $0x50] sm:$0xff]
      %v4009 = vld [vmem:[#allocation3 + $0x60] sm:$0xff]
      %v4010 = vld [vmem:[#allocation3 + $0x68] sm:$0xff]
      %v4011 = vld [vmem:[#allocation3 + $0x78] sm:$0xff]
      %v4012 = vld [vmem:[#allocation3 + $0x80] sm:$0xff]
      %v4013 = vld [vmem:[#allocation3 + $0x90] sm:$0xff]
      %v4014 = vld [vmem:[#allocation3 + $0x98] sm:$0xff]
      %v4015 = vld [vmem:[#allocation3 + $0xa8] sm:$0xff]
      %v4016 = vld [vmem:[#allocation3 + $0xb0] sm:$0xff]
      %v4017 = vld [vmem:[#allocation3 + $0xc0] sm:$0xff]
      %v4018 = vld [vmem:[#allocation3 + $0xc8] sm:$0xff]
      %v4019 = vld [vmem:[#allocation3 + $0xd8] sm:$0xff]
      %v4020 = vld [vmem:[#allocation3 + $0xe0] sm:$0xff]
      %v4021 = vld [vmem:[#allocation3 + $0xf0] sm:$0xff]
      %v4022 = vld [vmem:[#allocation3 + $0xf8] sm:$0xff]
      %v4023 = vld [vmem:[#allocation3 + $0x108] sm:$0xff]
      %v4024 = vld [vmem:[#allocation3 + $0x110] sm:$0xff]
      %v4025 = vld [vmem:[#allocation3 + $0x120] sm:$0xff]
      %v4026 = vld [vmem:[#allocation3 + $0x128] sm:$0xff]
      %v4027 = vld [vmem:[#allocation3 + $0x138] sm:$0xff]
      %v4028 = vld [vmem:[#allocation3 + $0x140] sm:$0xff]
      %v4029 = vld [vmem:[#allocation3 + $0x150] sm:$0xff]
      %v4030 = vld [vmem:[#allocation3 + $0x158] sm:$0xff]
      %v4031 = vld [vmem:[#allocation3 + $0x168] sm:$0xff]
      %v4032 = vld [vmem:[#allocation3 + $0x170] sm:$0xff]
      %v4033 = vld [vmem:[#allocation3 + $0x180] sm:$0xff]
      %v4034 = vld [vmem:[#allocation3 + $0x188] sm:$0xff]
      %v4035 = vld [vmem:[#allocation3 + $0x198] sm:$0xff]
      %v4036 = vld [vmem:[#allocation3 + $0x1a0] sm:$0xff]
      %v4037 = vld [vmem:[#allocation3 + $0x1b0] sm:$0xff]
      %v4038 = vld [vmem:[#allocation3 + $0x1b8] sm:$0xff]
      %v4039 = vld [vmem:[#allocation3 + $0x1c8] sm:$0xff]
      %v4040 = vld [vmem:[#allocation3 + $0x1d0] sm:$0xff]
      %v4041 = vld [vmem:[#allocation3 + $0x1] sm:$0xff]
      %v4042 = vld [vmem:[#allocation3 + $0x9] sm:$0xff]
      %v4043 = vld [vmem:[#allocation3 + $0x19] sm:$0xff]
      %v4044 = vld [vmem:[#allocation3 + $0x21] sm:$0xff]
      %v4045 = vld [vmem:[#allocation3 + $0x31] sm:$0xff]
      %v4046 = vld [vmem:[#allocation3 + $0x39] sm:$0xff]
      %v4047 = vld [vmem:[#allocation3 + $0x49] sm:$0xff]
      %v4048 = vld [vmem:[#allocation3 + $0x51] sm:$0xff]
      %v4049 = vld [vmem:[#allocation3 + $0x61] sm:$0xff]
      %v4050 = vld [vmem:[#allocation3 + $0x69] sm:$0xff]
      %v4051 = vld [vmem:[#allocation3 + $0x79] sm:$0xff]
      %v4052 = vld [vmem:[#allocation3 + $0x81] sm:$0xff]
      %v4053 = vld [vmem:[#allocation3 + $0x91] sm:$0xff]
      %v4054 = vld [vmem:[#allocation3 + $0x99] sm:$0xff]
      %v4055 = vld [vmem:[#allocation3 + $0xa9] sm:$0xff]
      %v4056 = vld [vmem:[#allocation3 + $0xb1] sm:$0xff]
      %v4057 = vld [vmem:[#allocation3 + $0xc1] sm:$0xff]
      %v4058 = vld [vmem:[#allocation3 + $0xc9] sm:$0xff]
      %v4059 = vld [vmem:[#allocation3 + $0xd9] sm:$0xff]
      %v4060 = vld [vmem:[#allocation3 + $0xe1] sm:$0xff]
      %v4061 = vld [vmem:[#allocation3 + $0xf1] sm:$0xff]
      %v4062 = vld [vmem:[#allocation3 + $0xf9] sm:$0xff]
      %v4063 = vld [vmem:[#allocation3 + $0x109] sm:$0xff]
      %v4064 = vld [vmem:[#allocation3 + $0x111] sm:$0xff]
      %v4065 = vld [vmem:[#allocation3 + $0x121] sm:$0xff]
      %v4066 = vld [vmem:[#allocation3 + $0x129] sm:$0xff]
      %v4067 = vld [vmem:[#allocation3 + $0x139] sm:$0xff]
      %v4068 = vld [vmem:[#allocation3 + $0x141] sm:$0xff]
      %v4069 = vld [vmem:[#allocation3 + $0x151] sm:$0xff]
      %v4070 = vld [vmem:[#allocation3 + $0x159] sm:$0xff]
      %v4071 = vld [vmem:[#allocation3 + $0x169] sm:$0xff]
      %v4072 = vld [vmem:[#allocation3 + $0x171] sm:$0xff]
      %v4073 = vld [vmem:[#allocation3 + $0x181] sm:$0xff]
      %v4074 = vld [vmem:[#allocation3 + $0x189] sm:$0xff]
      %v4075 = vld [vmem:[#allocation3 + $0x199] sm:$0xff]
      %v4076 = vld [vmem:[#allocation3 + $0x1a1] sm:$0xff]
      %v4077 = vld [vmem:[#allocation3 + $0x1b1] sm:$0xff]
      %v4078 = vld [vmem:[#allocation3 + $0x1b9] sm:$0xff]
      %v4079 = vld [vmem:[#allocation3 + $0x1c9] sm:$0xff]
      %v4080 = vld [vmem:[#allocation3 + $0x1d1] sm:$0xff]
      %v4081 = vmax.f32 %v4001, %v4041
      %v4082 = vmax.f32 %v4002, %v4042
      %v4083 = vmax.f32 %v4003, %v4043
      %v4084 = vmax.f32 %v4004, %v4044
      %v4085 = vmax.f32 %v4005, %v4045
      %v4086 = vmax.f32 %v4006, %v4046
      %v4087 = vmax.f32 %v4007, %v4047
      %v4088 = vmax.f32 %v4008, %v4048
      %v4089 = vmax.f32 %v4009, %v4049
      %v4090 = vmax.f32 %v4010, %v4050
      %v4091 = vmax.f32 %v4011, %v4051
      %v4092 = vmax.f32 %v4012, %v4052
      %v4093 = vmax.f32 %v4013, %v4053
      %v4094 = vmax.f32 %v4014, %v4054
      %v4095 = vmax.f32 %v4015, %v4055
      %v4096 = vmax.f32 %v4016, %v4056
      %v4097 = vmax.f32 %v4017, %v4057
      %v4098 = vmax.f32 %v4018, %v4058
      %v4099 = vmax.f32 %v4019, %v4059
      %v4100 = vmax.f32 %v4020, %v4060
      %v4101 = vmax.f32 %v4021, %v4061
      %v4102 = vmax.f32 %v4022, %v4062
      %v4103 = vmax.f32 %v4023, %v4063
      %v4104 = vmax.f32 %v4024, %v4064
      %v4105 = vmax.f32 %v4025, %v4065
      %v4106 = vmax.f32 %v4026, %v4066
      %v4107 = vmax.f32 %v4027, %v4067
      %v4108 = vmax.f32 %v4028, %v4068
      %v4109 = vmax.f32 %v4029, %v4069
      %v4110 = vmax.f32 %v4030, %v4070
      %v4111 = vmax.f32 %v4031, %v4071
      %v4112 = vmax.f32 %v4032, %v4072
      %v4113 = vmax.f32 %v4033, %v4073
      %v4114 = vmax.f32 %v4034, %v4074
      %v4115 = vmax.f32 %v4035, %v4075
      %v4116 = vmax.f32 %v4036, %v4076
      %v4117 = vmax.f32 %v4037, %v4077
      %v4118 = vmax.f32 %v4038, %v4078
      %v4119 = vmax.f32 %v4039, %v4079
      %v4120 = vmax.f32 %v4040, %v4080
      %v4121 = vld [vmem:[#allocation3 + $0x2] sm:$0xff]
      %v4122 = vld [vmem:[#allocation3 + $0xa] sm:$0xff]
      %v4123 = vld [vmem:[#allocation3 + $0x1a] sm:$0xff]
      %v4124 = vld [vmem:[#allocation3 + $0x22] sm:$0xff]
      %v4125 = vld [vmem:[#allocation3 + $0x32] sm:$0xff]
      %v4126 = vld [vmem:[#allocation3 + $0x3a] sm:$0xff]
      %v4127 = vld [vmem:[#allocation3 + $0x4a] sm:$0xff]
      %v4128 = vld [vmem:[#allocation3 + $0x52] sm:$0xff]
      %v4129 = vld [vmem:[#allocation3 + $0x62] sm:$0xff]
      %v4130 = vld [vmem:[#allocation3 + $0x6a] sm:$0xff]
      %v4131 = vld [vmem:[#allocation3 + $0x7a] sm:$0xff]
      %v4132 = vld [vmem:[#allocation3 + $0x82] sm:$0xff]
      %v4133 = vld [vmem:[#allocation3 + $0x92] sm:$0xff]
      %v4134 = vld [vmem:[#allocation3 + $0x9a] sm:$0xff]
      %v4135 = vld [vmem:[#allocation3 + $0xaa] sm:$0xff]
      %v4136 = vld [vmem:[#allocation3 + $0xb2] sm:$0xff]
      %v4137 = vld [vmem:[#allocation3 + $0xc2] sm:$0xff]
      %v4138 = vld [vmem:[#allocation3 + $0xca] sm:$0xff]
      %v4139 = vld [vmem:[#allocation3 + $0xda] sm:$0xff]
      %v4140 = vld [vmem:[#allocation3 + $0xe2] sm:$0xff]
      %v4141 = vld [vmem:[#allocation3 + $0xf2] sm:$0xff]
      %v4142 = vld [vmem:[#allocation3 + $0xfa] sm:$0xff]
      %v4143 = vld [vmem:[#allocation3 + $0x10a] sm:$0xff]
      %v4144 = vld [vmem:[#allocation3 + $0x112] sm:$0xff]
      %v4145 = vld [vmem:[#allocation3 + $0x122] sm:$0xff]
      %v4146 = vld [vmem:[#allocation3 + $0x12a] sm:$0xff]
      %v4147 = vld [vmem:[#allocation3 + $0x13a] sm:$0xff]
      %v4148 = vld [vmem:[#allocation3 + $0x142] sm:$0xff]
      %v4149 = vld [vmem:[#allocation3 + $0x152] sm:$0xff]
      %v4150 = vld [vmem:[#allocation3 + $0x15a] sm:$0xff]
      %v4151 = vld [vmem:[#allocation3 + $0x16a] sm:$0xff]
      %v4152 = vld [vmem:[#allocation3 + $0x172] sm:$0xff]
      %v4153 = vld [vmem:[#allocation3 + $0x182] sm:$0xff]
      %v4154 = vld [vmem:[#allocation3 + $0x18a] sm:$0xff]
      %v4155 = vld [vmem:[#allocation3 + $0x19a] sm:$0xff]
      %v4156 = vld [vmem:[#allocation3 + $0x1a2] sm:$0xff]
      %v4157 = vld [vmem:[#allocation3 + $0x1b2] sm:$0xff]
      %v4158 = vld [vmem:[#allocation3 + $0x1ba] sm:$0xff]
      %v4159 = vld [vmem:[#allocation3 + $0x1ca] sm:$0xff]
      %v4160 = vld [vmem:[#allocation3 + $0x1d2] sm:$0xff]
      %v4161 = vmax.f32 %v4081, %v4121
      %v4162 = vmax.f32 %v4082, %v4122
      %v4163 = vmax.f32 %v4083, %v4123
      %v4164 = vmax.f32 %v4084, %v4124
      %v4165 = vmax.f32 %v4085, %v4125
      %v4166 = vmax.f32 %v4086, %v4126
      %v4167 = vmax.f32 %v4087, %v4127
      %v4168 = vmax.f32 %v4088, %v4128
      %v4169 = vmax.f32 %v4089, %v4129
      %v4170 = vmax.f32 %v4090, %v4130
      %v4171 = vmax.f32 %v4091, %v4131
      %v4172 = vmax.f32 %v4092, %v4132
      %v4173 = vmax.f32 %v4093, %v4133
      %v4174 = vmax.f32 %v4094, %v4134
      %v4175 = vmax.f32 %v4095, %v4135
      %v4176 = vmax.f32 %v4096, %v4136
      %v4177 = vmax.f32 %v4097, %v4137
      %v4178 = vmax.f32 %v4098, %v4138
      %v4179 = vmax.f32 %v4099, %v4139
      %v4180 = vmax.f32 %v4100, %v4140
      %v4181 = vmax.f32 %v4101, %v4141
      %v4182 = vmax.f32 %v4102, %v4142
      %v4183 = vmax.f32 %v4103, %v4143
      %v4184 = vmax.f32 %v4104, %v4144
      %v4185 = vmax.f32 %v4105, %v4145
      %v4186 = vmax.f32 %v4106, %v4146
      %v4187 = vmax.f32 %v4107, %v4147
      %v4188 = vmax.f32 %v4108, %v4148
      %v4189 = vmax.f32 %v4109, %v4149
      %v4190 = vmax.f32 %v4110, %v4150
      %v4191 = vmax.f32 %v4111, %v4151
      %v4192 = vmax.f32 %v4112, %v4152
      %v4193 = vmax.f32 %v4113, %v4153
      %v4194 = vmax.f32 %v4114, %v4154
      %v4195 = vmax.f32 %v4115, %v4155
      %v4196 = vmax.f32 %v4116, %v4156
      %v4197 = vmax.f32 %v4117, %v4157
      %v4198 = vmax.f32 %v4118, %v4158
      %v4199 = vmax.f32 %v4119, %v4159
      %v4200 = vmax.f32 %v4120, %v4160
      %v4201 = vld [vmem:[#allocation3 + $0x3] sm:$0xff]
      %v4202 = vld [vmem:[#allocation3 + $0xb] sm:$0xff]
      %v4203 = vld [vmem:[#allocation3 + $0x1b] sm:$0xff]
      %v4204 = vld [vmem:[#allocation3 + $0x23] sm:$0xff]
      %v4205 = vld [vmem:[#allocation3 + $0x33] sm:$0xff]
      %v4206 = vld [vmem:[#allocation3 + $0x3b] sm:$0xff]
      %v4207 = vld [vmem:[#allocation3 + $0x4b] sm:$0xff]
      %v4208 = vld [vmem:[#allocation3 + $0x53] sm:$0xff]
      %v4209 = vld [vmem:[#allocation3 + $0x63] sm:$0xff]
      %v4210 = vld [vmem:[#allocation3 + $0x6b] sm:$0xff]
      %v4211 = vld [vmem:[#allocation3 + $0x7b] sm:$0xff]
      %v4212 = vld [vmem:[#allocation3 + $0x83] sm:$0xff]
      %v4213 = vld [vmem:[#allocation3 + $0x93] sm:$0xff]
      %v4214 = vld [vmem:[#allocation3 + $0x9b] sm:$0xff]
      %v4215 = vld [vmem:[#allocation3 + $0xab] sm:$0xff]
      %v4216 = vld [vmem:[#allocation3 + $0xb3] sm:$0xff]
      %v4217 = vld [vmem:[#allocation3 + $0xc3] sm:$0xff]
      %v4218 = vld [vmem:[#allocation3 + $0xcb] sm:$0xff]
      %v4219 = vld [vmem:[#allocation3 + $0xdb] sm:$0xff]
      %v4220 = vld [vmem:[#allocation3 + $0xe3] sm:$0xff]
      %v4221 = vld [vmem:[#allocation3 + $0xf3] sm:$0xff]
      %v4222 = vld [vmem:[#allocation3 + $0xfb] sm:$0xff]
      %v4223 = vld [vmem:[#allocation3 + $0x10b] sm:$0xff]
      %v4224 = vld [vmem:[#allocation3 + $0x113] sm:$0xff]
      %v4225 = vld [vmem:[#allocation3 + $0x123] sm:$0xff]
      %v4226 = vld [vmem:[#allocation3 + $0x12b] sm:$0xff]
      %v4227 = vld [vmem:[#allocation3 + $0x13b] sm:$0xff]
      %v4228 = vld [vmem:[#allocation3 + $0x143] sm:$0xff]
      %v4229 = vld [vmem:[#allocation3 + $0x153] sm:$0xff]
      %v4230 = vld [vmem:[#allocation3 + $0x15b] sm:$0xff]
      %v4231 = vld [vmem:[#allocation3 + $0x16b] sm:$0xff]
      %v4232 = vld [vmem:[#allocation3 + $0x173] sm:$0xff]
      %v4233 = vld [vmem:[#allocation3 + $0x183] sm:$0xff]
      %v4234 = vld [vmem:[#allocation3 + $0x18b] sm:$0xff]
      %v4235 = vld [vmem:[#allocation3 + $0x19b] sm:$0xff]
      %v4236 = vld [vmem:[#allocation3 + $0x1a3] sm:$0xff]
      %v4237 = vld [vmem:[#allocation3 + $0x1b3] sm:$0xff]
      %v4238 = vld [vmem:[#allocation3 + $0x1bb] sm:$0xff]
      %v4239 = vld [vmem:[#allocation3 + $0x1cb] sm:$0xff]
      %v4240 = vld [vmem:[#allocation3 + $0x1d3] sm:$0xff]
      %v4241 = vmax.f32 %v4161, %v4201
      %v4242 = vmax.f32 %v4162, %v4202
      %v4243 = vmax.f32 %v4163, %v4203
      %v4244 = vmax.f32 %v4164, %v4204
      %v4245 = vmax.f32 %v4165, %v4205
      %v4246 = vmax.f32 %v4166, %v4206
      %v4247 = vmax.f32 %v4167, %v4207
      %v4248 = vmax.f32 %v4168, %v4208
      %v4249 = vmax.f32 %v4169, %v4209
      %v4250 = vmax.f32 %v4170, %v4210
      %v4251 = vmax.f32 %v4171, %v4211
      %v4252 = vmax.f32 %v4172, %v4212
      %v4253 = vmax.f32 %v4173, %v4213
      %v4254 = vmax.f32 %v4174, %v4214
      %v4255 = vmax.f32 %v4175, %v4215
      %v4256 = vmax.f32 %v4176, %v4216
      %v4257 = vmax.f32 %v4177, %v4217
      %v4258 = vmax.f32 %v4178, %v4218
      %v4259 = vmax.f32 %v4179, %v4219
      %v4260 = vmax.f32 %v4180, %v4220
      %v4261 = vmax.f32 %v4181, %v4221
      %v4262 = vmax.f32 %v4182, %v4222
      %v4263 = vmax.f32 %v4183, %v4223
      %v4264 = vmax.f32 %v4184, %v4224
      %v4265 = vmax.f32 %v4185, %v4225
      %v4266 = vmax.f32 %v4186, %v4226
      %v4267 = vmax.f32 %v4187, %v4227
      %v4268 = vmax.f32 %v4188, %v4228
      %v4269 = vmax.f32 %v4189, %v4229
      %v4270 = vmax.f32 %v4190, %v4230
      %v4271 = vmax.f32 %v4191, %v4231
      %v4272 = vmax.f32 %v4192, %v4232
      %v4273 = vmax.f32 %v4193, %v4233
      %v4274 = vmax.f32 %v4194, %v4234
      %v4275 = vmax.f32 %v4195, %v4235
      %v4276 = vmax.f32 %v4196, %v4236
      %v4277 = vmax.f32 %v4197, %v4237
      %v4278 = vmax.f32 %v4198, %v4238
      %v4279 = vmax.f32 %v4199, %v4239
      %v4280 = vmax.f32 %v4200, %v4240
      %v4281 = vld [vmem:[#allocation3 + $0x4] sm:$0xff]
      %v4282 = vld [vmem:[#allocation3 + $0xc] sm:$0xff]
      %v4283 = vld [vmem:[#allocation3 + $0x1c] sm:$0xff]
      %v4284 = vld [vmem:[#allocation3 + $0x24] sm:$0xff]
      %v4285 = vld [vmem:[#allocation3 + $0x34] sm:$0xff]
      %v4286 = vld [vmem:[#allocation3 + $0x3c] sm:$0xff]
      %v4287 = vld [vmem:[#allocation3 + $0x4c] sm:$0xff]
      %v4288 = vld [vmem:[#allocation3 + $0x54] sm:$0xff]
      %v4289 = vld [vmem:[#allocation3 + $0x64] sm:$0xff]
      %v4290 = vld [vmem:[#allocation3 + $0x6c] sm:$0xff]
      %v4291 = vld [vmem:[#allocation3 + $0x7c] sm:$0xff]
      %v4292 = vld [vmem:[#allocation3 + $0x84] sm:$0xff]
      %v4293 = vld [vmem:[#allocation3 + $0x94] sm:$0xff]
      %v4294 = vld [vmem:[#allocation3 + $0x9c] sm:$0xff]
      %v4295 = vld [vmem:[#allocation3 + $0xac] sm:$0xff]
      %v4296 = vld [vmem:[#allocation3 + $0xb4] sm:$0xff]
      %v4297 = vld [vmem:[#allocation3 + $0xc4] sm:$0xff]
      %v4298 = vld [vmem:[#allocation3 + $0xcc] sm:$0xff]
      %v4299 = vld [vmem:[#allocation3 + $0xdc] sm:$0xff]
      %v4300 = vld [vmem:[#allocation3 + $0xe4] sm:$0xff]
      %v4301 = vld [vmem:[#allocation3 + $0xf4] sm:$0xff]
      %v4302 = vld [vmem:[#allocation3 + $0xfc] sm:$0xff]
      %v4303 = vld [vmem:[#allocation3 + $0x10c] sm:$0xff]
      %v4304 = vld [vmem:[#allocation3 + $0x114] sm:$0xff]
      %v4305 = vld [vmem:[#allocation3 + $0x124] sm:$0xff]
      %v4306 = vld [vmem:[#allocation3 + $0x12c] sm:$0xff]
      %v4307 = vld [vmem:[#allocation3 + $0x13c] sm:$0xff]
      %v4308 = vld [vmem:[#allocation3 + $0x144] sm:$0xff]
      %v4309 = vld [vmem:[#allocation3 + $0x154] sm:$0xff]
      %v4310 = vld [vmem:[#allocation3 + $0x15c] sm:$0xff]
      %v4311 = vld [vmem:[#allocation3 + $0x16c] sm:$0xff]
      %v4312 = vld [vmem:[#allocation3 + $0x174] sm:$0xff]
      %v4313 = vld [vmem:[#allocation3 + $0x184] sm:$0xff]
      %v4314 = vld [vmem:[#allocation3 + $0x18c] sm:$0xff]
      %v4315 = vld [vmem:[#allocation3 + $0x19c] sm:$0xff]
      %v4316 = vld [vmem:[#allocation3 + $0x1a4] sm:$0xff]
      %v4317 = vld [vmem:[#allocation3 + $0x1b4] sm:$0xff]
      %v4318 = vld [vmem:[#allocation3 + $0x1bc] sm:$0xff]
      %v4319 = vld [vmem:[#allocation3 + $0x1cc] sm:$0xff]
      %v4320 = vld [vmem:[#allocation3 + $0x1d4] sm:$0xff]
      %v4321 = vmax.f32 %v4241, %v4281
      %v4322 = vmax.f32 %v4242, %v4282
      %v4323 = vmax.f32 %v4243, %v4283
      %v4324 = vmax.f32 %v4244, %v4284
      %v4325 = vmax.f32 %v4245, %v4285
      %v4326 = vmax.f32 %v4246, %v4286
      %v4327 = vmax.f32 %v4247, %v4287
      %v4328 = vmax.f32 %v4248, %v4288
      %v4329 = vmax.f32 %v4249, %v4289
      %v4330 = vmax.f32 %v4250, %v4290
      %v4331 = vmax.f32 %v4251, %v4291
      %v4332 = vmax.f32 %v4252, %v4292
      %v4333 = vmax.f32 %v4253, %v4293
      %v4334 = vmax.f32 %v4254, %v4294
      %v4335 = vmax.f32 %v4255, %v4295
      %v4336 = vmax.f32 %v4256, %v4296
      %v4337 = vmax.f32 %v4257, %v4297
      %v4338 = vmax.f32 %v4258, %v4298
      %v4339 = vmax.f32 %v4259, %v4299
      %v4340 = vmax.f32 %v4260, %v4300
      %v4341 = vmax.f32 %v4261, %v4301
      %v4342 = vmax.f32 %v4262, %v4302
      %v4343 = vmax.f32 %v4263, %v4303
      %v4344 = vmax.f32 %v4264, %v4304
      %v4345 = vmax.f32 %v4265, %v4305
      %v4346 = vmax.f32 %v4266, %v4306
      %v4347 = vmax.f32 %v4267, %v4307
      %v4348 = vmax.f32 %v4268, %v4308
      %v4349 = vmax.f32 %v4269, %v4309
      %v4350 = vmax.f32 %v4270, %v4310
      %v4351 = vmax.f32 %v4271, %v4311
      %v4352 = vmax.f32 %v4272, %v4312
      %v4353 = vmax.f32 %v4273, %v4313
      %v4354 = vmax.f32 %v4274, %v4314
      %v4355 = vmax.f32 %v4275, %v4315
      %v4356 = vmax.f32 %v4276, %v4316
      %v4357 = vmax.f32 %v4277, %v4317
      %v4358 = vmax.f32 %v4278, %v4318
      %v4359 = vmax.f32 %v4279, %v4319
      %v4360 = vmax.f32 %v4280, %v4320
      %v4361 = vmax.f32 %v4321, %v4323
      %v4362 = vmax.f32 %v4322, %v4324
      %v4363 = vmax.f32 %v4323, %v4325
      %v4364 = vmax.f32 %v4324, %v4326
      %v4365 = vmax.f32 %v4325, %v4327
      %v4366 = vmax.f32 %v4326, %v4328
      %v4367 = vmax.f32 %v4327, %v4329
      %v4368 = vmax.f32 %v4328, %v4330
      %v4369 = vmax.f32 %v4329, %v4331
      %v4370 = vmax.f32 %v4330, %v4332
      %v4371 = vmax.f32 %v4331, %v4333
      %v4372 = vmax.f32 %v4332, %v4334
      %v4373 = vmax.f32 %v4333, %v4335
      %v4374 = vmax.f32 %v4334, %v4336
      %v4375 = vmax.f32 %v4335, %v4337
      %v4376 = vmax.f32 %v4336, %v4338
      %v4377 = vmax.f32 %v4337, %v4339
      %v4378 = vmax.f32 %v4338, %v4340
      %v4379 = vmax.f32 %v4339, %v4341
      %v4380 = vmax.f32 %v4340, %v4342
      %v4381 = vmax.f32 %v4341, %v4343
      %v4382 = vmax.f32 %v4342, %v4344
      %v4383 = vmax.f32 %v4343, %v4345
      %v4384 = vmax.f32 %v4344, %v4346
      %v4385 = vmax.f32 %v4345, %v4347
      %v4386 = vmax.f32 %v4346, %v4348
      %v4387 = vmax.f32 %v4347, %v4349
      %v4388 = vmax.f32 %v4348, %v4350
      %v4389 = vmax.f32 %v4349, %v4351
      %v4390 = vmax.f32 %v4350, %v4352
      %v4391 = vmax.f32 %v4351, %v4353
      %v4392 = vmax.f32 %v4352, %v4354
      %v4393 = vmax.f32 %v4361, %v4325
      %v4394 = vmax.f32 %v4362, %v4326
      %v4395 = vmax.f32 %v4363, %v4327
      %v4396 = vmax.f32 %v4364, %v4328
      %v4397 = vmax.f32 %v4365, %v4329
      %v4398 = vmax.f32 %v4366, %v4330
      %v4399 = vmax.f32 %v4367, %v4331
      %v4400 = vmax.f32 %v4368, %v4332
      %v4401 = vmax.f32 %v4369, %v4333
      %v4402 = vmax.f32 %v4370, %v4334
      %v4403 = vmax.f32 %v4371, %v4335
      %v4404 = vmax.f32 %v4372, %v4336
      %v4405 = vmax.f32 %v4373, %v4337
      %v4406 = vmax.f32 %v4374, %v4338
      %v4407 = vmax.f32 %v4375, %v4339
      %v4408 = vmax.f32 %v4376, %v4340
      %v4409 = vmax.f32 %v4377, %v4341
      %v4410 = vmax.f32 %v4378, %v4342
      %v4411 = vmax.f32 %v4379, %v4343
      %v4412 = vmax.f32 %v4380, %v4344
      %v4413 = vmax.f32 %v4381, %v4345
      %v4414 = vmax.f32 %v4382, %v4346
      %v4415 = vmax.f32 %v4383, %v4347
      %v4416 = vmax.f32 %v4384, %v4348
      %v4417 = vmax.f32 %v4385, %v4349
      %v4418 = vmax.f32 %v4386, %v4350
      %v4419 = vmax.f32 %v4387, %v4351
      %v4420 = vmax.f32 %v4388, %v4352
      %v4421 = vmax.f32 %v4389, %v4353
      %v4422 = vmax.f32 %v4390, %v4354
      %v4423 = vmax.f32 %v4391, %v4355
      %v4424 = vmax.f32 %v4392, %v4356
      %v4425 = vmax.f32 %v4393, %v4327
      %v4426 = vmax.f32 %v4394, %v4328
      %v4427 = vmax.f32 %v4395, %v4329
      %v4428 = vmax.f32 %v4396, %v4330
      %v4429 = vmax.f32 %v4397, %v4331
      %v4430 = vmax.f32 %v4398, %v4332
      %v4431 = vmax.f32 %v4399, %v4333
      %v4432 = vmax.f32 %v4400, %v4334
      %v4433 = vmax.f32 %v4401, %v4335
      %v4434 = vmax.f32 %v4402, %v4336
      %v4435 = vmax.f32 %v4403, %v4337
      %v4436 = vmax.f32 %v4404, %v4338
      %v4437 = vmax.f32 %v4405, %v4339
      %v4438 = vmax.f32 %v4406, %v4340
      %v4439 = vmax.f32 %v4407, %v4341
      %v4440 = vmax.f32 %v4408, %v4342
      %v4441 = vmax.f32 %v4409, %v4343
      %v4442 = vmax.f32 %v4410, %v4344
      %v4443 = vmax.f32 %v4411, %v4345
      %v4444 = vmax.f32 %v4412, %v4346
      %v4445 = vmax.f32 %v4413, %v4347
      %v4446 = vmax.f32 %v4414, %v4348
      %v4447 = vmax.f32 %v4415, %v4349
      %v4448 = vmax.f32 %v4416, %v4350
      %v4449 = vmax.f32 %v4417, %v4351
      %v4450 = vmax.f32 %v4418, %v4352
      %v4451 = vmax.f32 %v4419, %v4353
      %v4452 = vmax.f32 %v4420, %v4354
      %v4453 = vmax.f32 %v4421, %v4355
      %v4454 = vmax.f32 %v4422, %v4356
      %v4455 = vmax.f32 %v4423, %v4357
      %v4456 = vmax.f32 %v4424, %v4358
      %v4457 = vmax.f32 %v4425, %v4329
      %v4458 = vmax.f32 %v4426, %v4330
      %v4459 = vmax.f32 %v4427, %v4331
      %v4460 = vmax.f32 %v4428, %v4332
      %v4461 = vmax.f32 %v4429, %v4333
      %v4462 = vmax.f32 %v4430, %v4334
      %v4463 = vmax.f32 %v4431, %v4335
      %v4464 = vmax.f32 %v4432, %v4336
      %v4465 = vmax.f32 %v4433, %v4337
      %v4466 = vmax.f32 %v4434, %v4338
      %v4467 = vmax.f32 %v4435, %v4339
      %v4468 = vmax.f32 %v4436, %v4340
      %v4469 = vmax.f32 %v4437, %v4341
      %v4470 = vmax.f32 %v4438, %v4342
      %v4471 = vmax.f32 %v4439, %v4343
      %v4472 = vmax.f32 %v4440, %v4344
      %v4473 = vmax.f32 %v4441, %v4345
      %v4474 = vmax.f32 %v4442, %v4346
      %v4475 = vmax.f32 %v4443, %v4347
      %v4476 = vmax.f32 %v4444, %v4348
      %v4477 = vmax.f32 %v4445, %v4349
      %v4478 = vmax.f32 %v4446, %v4350
      %v4479 = vmax.f32 %v4447, %v4351
      %v4480 = vmax.f32 %v4448, %v4352
      %v4481 = vmax.f32 %v4449, %v4353
      %v4482 = vmax.f32 %v4450, %v4354
      %v4483 = vmax.f32 %v4451, %v4355
      %v4484 = vmax.f32 %v4452, %v4356
      %v4485 = vmax.f32 %v4453, %v4357
      %v4486 = vmax.f32 %v4454, %v4358
      %v4487 = vmax.f32 %v4455, %v4359
      %v4488 = vmax.f32 %v4456, %v4360
      %v4489 = vpack.c.bf16 %v4458, %v4457
      %v4490 = vpack.c.bf16 %v4460, %v4459
      %v4491 = vpack.c.bf16 %v4462, %v4461
      %v4492 = vpack.c.bf16 %v4464, %v4463
      %v4493 = vpack.c.bf16 %v4466, %v4465
      %v4494 = vpack.c.bf16 %v4468, %v4467
      %v4495 = vpack.c.bf16 %v4470, %v4469
      %v4496 = vpack.c.bf16 %v4472, %v4471
      %v4497 = vpack.c.bf16 %v4474, %v4473
      %v4498 = vpack.c.bf16 %v4476, %v4475
      %v4499 = vpack.c.bf16 %v4478, %v4477
      %v4500 = vpack.c.bf16 %v4480, %v4479
      %v4501 = vpack.c.bf16 %v4482, %v4481
      %v4502 = vpack.c.bf16 %v4484, %v4483
      %v4503 = vpack.c.bf16 %v4486, %v4485
      %v4504 = vpack.c.bf16 %v4488, %v4487
      %s4505 = scalar_lea.vmem %s7, 3
      %v4506 = vld [vmem:[%s4505] sm:$0x1]
      %v4508 = vsel %vm485, %v4489, 0
      %v4511 = vsel %vm485, %v4490, 0
      %v4514 = vsel %vm485, %v4491, 0
      %v4517 = vsel %vm485, %v4492, 0
      %v4520 = vsel %vm485, %v4493, 0
      %v4523 = vsel %vm485, %v4494, 0
      %v4526 = vsel %vm485, %v4495, 0
      %v4529 = vsel %vm485, %v4496, 0
      %v4532 = vsel %vm485, %v4497, 0
      %v4535 = vsel %vm485, %v4498, 0
      %v4538 = vsel %vm485, %v4499, 0
      %v4541 = vsel %vm485, %v4500, 0
      %v4544 = vsel %vm485, %v4501, 0
      %v4547 = vsel %vm485, %v4502, 0
      %v4550 = vsel %vm485, %v4503, 0
      %v4553 = vsel %vm485, %v4504, 0
      %v4556 = vsel %vm2810, %v4506, 0
      %4558 = vmatprep.subr.bf16.mxu0 0
      %4559 = vmatpush1.bf16.msra.mxu0 0
      %4560 = vmatprep.subr.bf16.mxu0 0
      %4561 = vmatpush1.bf16.msra.mxu0 0
      %4562 = vmatprep.subr.bf16.mxu0 0
      %4563 = vmatpush1.bf16.msra.mxu0 0
      %4564 = vmatprep.subr.bf16.mxu0 0
      %4565 = vmatpush1.bf16.msra.mxu0 0
      %4566 = vmatprep.subr.bf16.mxu0 0
      %4567 = vmatpush1.bf16.msra.mxu0 0
      %4568 = vmatprep.subr.bf16.mxu0 0
      %4569 = vmatpush1.bf16.msra.mxu0 0
      %4570 = vmatprep.subr.bf16.mxu0 0
      %4571 = vmatpush1.bf16.msra.mxu0 0
      %4572 = vmatprep.subr.bf16.mxu0 0
      %4573 = vmatpush1.bf16.msra.mxu0 %v4556
      %4574 = vmatprep.subr.bf16.mxu0 0
      %4575 = vmatpush2.bf16.msra.mxu0 0
      %4576 = vmatprep.subr.bf16.mxu0 0
      %4577 = vmatpush2.bf16.msra.mxu0 0
      %4578 = vmatprep.subr.bf16.mxu0 0
      %4579 = vmatpush2.bf16.msra.mxu0 0
      %4580 = vmatprep.subr.bf16.mxu0 0
      %4581 = vmatpush2.bf16.msra.mxu0 0
      %4582 = vmatprep.subr.bf16.mxu0 0
      %4583 = vmatpush2.bf16.msra.mxu0 0
      %4584 = vmatprep.subr.bf16.mxu0 0
      %4585 = vmatpush2.bf16.msra.mxu0 0
      %4586 = vmatprep.subr.bf16.mxu0 0
      %4587 = vmatpush2.bf16.msra.mxu0 0
      %4588 = vmatprep.subr.bf16.mxu0 0
      %4589 = vmatpush2.bf16.msra.mxu0 0
      %4590 = vmatprep.mubr.bf16.mxu0 0
      %4591 = vmatmul.mubr.bf16.gmra.mxu0 %v4508
      %v4592 = vpop.f32.mrf.mxu0
      %v4593 = vadd.f32 0.0, %v4592
      %v4594 = vpop.f32.mrf.mxu0
      %v4595 = vpop.f32.mrf.mxu0
      %v4596 = vadd.f32 0.0, %v4595
      %v4597 = vpop.f32.mrf.mxu0
      %4598 = vmatprep.mubr.bf16.mxu0 0
      %4599 = vmatmul.mubr.bf16.gmra.mxu0 %v4511
      %v4600 = vpop.f32.mrf.mxu0
      %v4601 = vadd.f32 0.0, %v4600
      %v4602 = vpop.f32.mrf.mxu0
      %v4603 = vpop.f32.mrf.mxu0
      %v4604 = vadd.f32 0.0, %v4603
      %v4605 = vpop.f32.mrf.mxu0
      %4606 = vmatprep.mubr.bf16.mxu0 0
      %4607 = vmatmul.mubr.bf16.gmra.mxu0 %v4514
      %v4608 = vpop.f32.mrf.mxu0
      %v4609 = vadd.f32 0.0, %v4608
      %v4610 = vpop.f32.mrf.mxu0
      %v4611 = vpop.f32.mrf.mxu0
      %v4612 = vadd.f32 0.0, %v4611
      %v4613 = vpop.f32.mrf.mxu0
      %4614 = vmatprep.mubr.bf16.mxu0 0
      %4615 = vmatmul.mubr.bf16.gmra.mxu0 %v4517
      %v4616 = vpop.f32.mrf.mxu0
      %v4617 = vadd.f32 0.0, %v4616
      %v4618 = vpop.f32.mrf.mxu0
      %v4619 = vpop.f32.mrf.mxu0
      %v4620 = vadd.f32 0.0, %v4619
      %v4621 = vpop.f32.mrf.mxu0
      %4622 = vmatprep.mubr.bf16.mxu0 0
      %4623 = vmatmul.mubr.bf16.gmra.mxu0 %v4520
      %v4624 = vpop.f32.mrf.mxu0
      %v4625 = vadd.f32 0.0, %v4624
      %v4626 = vpop.f32.mrf.mxu0
      %v4627 = vpop.f32.mrf.mxu0
      %v4628 = vadd.f32 0.0, %v4627
      %v4629 = vpop.f32.mrf.mxu0
      %4630 = vmatprep.mubr.bf16.mxu0 0
      %4631 = vmatmul.mubr.bf16.gmra.mxu0 %v4523
      %v4632 = vpop.f32.mrf.mxu0
      %v4633 = vadd.f32 0.0, %v4632
      %v4634 = vpop.f32.mrf.mxu0
      %v4635 = vpop.f32.mrf.mxu0
      %v4636 = vadd.f32 0.0, %v4635
      %v4637 = vpop.f32.mrf.mxu0
      %4638 = vmatprep.mubr.bf16.mxu0 0
      %4639 = vmatmul.mubr.bf16.gmra.mxu0 %v4526
      %v4640 = vpop.f32.mrf.mxu0
      %v4641 = vadd.f32 0.0, %v4640
      %v4642 = vpop.f32.mrf.mxu0
      %v4643 = vpop.f32.mrf.mxu0
      %v4644 = vadd.f32 0.0, %v4643
      %v4645 = vpop.f32.mrf.mxu0
      %4646 = vmatprep.mubr.bf16.mxu0 0
      %4647 = vmatmul.mubr.bf16.gmra.mxu0 %v4529
      %v4648 = vpop.f32.mrf.mxu0
      %v4649 = vadd.f32 0.0, %v4648
      %v4650 = vpop.f32.mrf.mxu0
      %v4651 = vpop.f32.mrf.mxu0
      %v4652 = vadd.f32 0.0, %v4651
      %v4653 = vpop.f32.mrf.mxu0
      %4654 = vmatprep.mubr.bf16.mxu0 0
      %4655 = vmatmul.mubr.bf16.gmra.mxu0 %v4532
      %v4656 = vpop.f32.mrf.mxu0
      %v4657 = vadd.f32 0.0, %v4656
      %v4658 = vpop.f32.mrf.mxu0
      %v4659 = vpop.f32.mrf.mxu0
      %v4660 = vadd.f32 0.0, %v4659
      %v4661 = vpop.f32.mrf.mxu0
      %4662 = vmatprep.mubr.bf16.mxu0 0
      %4663 = vmatmul.mubr.bf16.gmra.mxu0 %v4535
      %v4664 = vpop.f32.mrf.mxu0
      %v4665 = vadd.f32 0.0, %v4664
      %v4666 = vpop.f32.mrf.mxu0
      %v4667 = vpop.f32.mrf.mxu0
      %v4668 = vadd.f32 0.0, %v4667
      %v4669 = vpop.f32.mrf.mxu0
      %4670 = vmatprep.mubr.bf16.mxu0 0
      %4671 = vmatmul.mubr.bf16.gmra.mxu0 %v4538
      %v4672 = vpop.f32.mrf.mxu0
      %v4673 = vadd.f32 0.0, %v4672
      %v4674 = vpop.f32.mrf.mxu0
      %v4675 = vpop.f32.mrf.mxu0
      %v4676 = vadd.f32 0.0, %v4675
      %v4677 = vpop.f32.mrf.mxu0
      %4678 = vmatprep.mubr.bf16.mxu0 0
      %4679 = vmatmul.mubr.bf16.gmra.mxu0 %v4541
      %v4680 = vpop.f32.mrf.mxu0
      %v4681 = vadd.f32 0.0, %v4680
      %v4682 = vpop.f32.mrf.mxu0
      %v4683 = vpop.f32.mrf.mxu0
      %v4684 = vadd.f32 0.0, %v4683
      %v4685 = vpop.f32.mrf.mxu0
      %4686 = vmatprep.mubr.bf16.mxu0 0
      %4687 = vmatmul.mubr.bf16.gmra.mxu0 %v4544
      %v4688 = vpop.f32.mrf.mxu0
      %v4689 = vadd.f32 0.0, %v4688
      %v4690 = vpop.f32.mrf.mxu0
      %v4691 = vpop.f32.mrf.mxu0
      %v4692 = vadd.f32 0.0, %v4691
      %v4693 = vpop.f32.mrf.mxu0
      %4694 = vmatprep.mubr.bf16.mxu0 0
      %4695 = vmatmul.mubr.bf16.gmra.mxu0 %v4547
      %v4696 = vpop.f32.mrf.mxu0
      %v4697 = vadd.f32 0.0, %v4696
      %v4698 = vpop.f32.mrf.mxu0
      %v4699 = vpop.f32.mrf.mxu0
      %v4700 = vadd.f32 0.0, %v4699
      %v4701 = vpop.f32.mrf.mxu0
      %4702 = vmatprep.mubr.bf16.mxu0 0
      %4703 = vmatmul.mubr.bf16.gmra.mxu0 %v4550
      %v4704 = vpop.f32.mrf.mxu0
      %v4705 = vadd.f32 0.0, %v4704
      %v4706 = vpop.f32.mrf.mxu0
      %v4707 = vpop.f32.mrf.mxu0
      %v4708 = vadd.f32 0.0, %v4707
      %v4709 = vpop.f32.mrf.mxu0
      %4710 = vmatprep.mubr.bf16.mxu0 0
      %4711 = vmatmul.mubr.bf16.gmra.mxu0 %v4553
      %v4712 = vpop.f32.mrf.mxu0
      %v4713 = vadd.f32 0.0, %v4712
      %v4714 = vpop.f32.mrf.mxu0
      %v4715 = vpop.f32.mrf.mxu0
      %v4716 = vadd.f32 0.0, %v4715
      %v4717 = vpop.f32.mrf.mxu0
      %4718 = vdwg.mxu0
      %v4719 = vadd.f32 %v3937, %v4593
      %v4720 = vadd.f32 %v3938, %v4596
      %v4721 = vadd.f32 %v3939, %v4601
      %v4722 = vadd.f32 %v3940, %v4604
      %v4723 = vadd.f32 %v3941, %v4609
      %v4724 = vadd.f32 %v3942, %v4612
      %v4725 = vadd.f32 %v3943, %v4617
      %v4726 = vadd.f32 %v3944, %v4620
      %v4727 = vadd.f32 %v3945, %v4625
      %v4728 = vadd.f32 %v3946, %v4628
      %v4729 = vadd.f32 %v3947, %v4633
      %v4730 = vadd.f32 %v3948, %v4636
      %v4731 = vadd.f32 %v3949, %v4641
      %v4732 = vadd.f32 %v3950, %v4644
      %v4733 = vadd.f32 %v3951, %v4649
      %v4734 = vadd.f32 %v3952, %v4652
      %v4735 = vadd.f32 %v3953, %v4657
      %v4736 = vadd.f32 %v3954, %v4660
      %v4737 = vadd.f32 %v3955, %v4665
      %v4738 = vadd.f32 %v3956, %v4668
      %v4739 = vadd.f32 %v3957, %v4673
      %v4740 = vadd.f32 %v3958, %v4676
      %v4741 = vadd.f32 %v3959, %v4681
      %v4742 = vadd.f32 %v3960, %v4684
      %v4743 = vadd.f32 %v3961, %v4689
      %v4744 = vadd.f32 %v3962, %v4692
      %v4745 = vadd.f32 %v3963, %v4697
      %v4746 = vadd.f32 %v3964, %v4700
      %v4747 = vadd.f32 %v3965, %v4705
      %v4748 = vadd.f32 %v3966, %v4708
      %v4749 = vadd.f32 %v3967, %v4713
      %v4750 = vadd.f32 %v3968, %v4716
      %v4751 = vld [vmem:[%s8] sm:$0x1]
      %v4753 = vlaneseq
      %v4754 = vshrl.u32 %v4753, 7
      %v4755 = vsub.s32 0, %v4754
      %v4756 = vrot.slane %v4751, %v4755
      %v4758 = vadd.f32 %v4719, %v4756
      %v4759 = vadd.f32 %v4720, %v4756
      %v4760 = vadd.f32 %v4721, %v4756
      %v4761 = vadd.f32 %v4722, %v4756
      %v4762 = vadd.f32 %v4723, %v4756
      %v4763 = vadd.f32 %v4724, %v4756
      %v4764 = vadd.f32 %v4725, %v4756
      %v4765 = vadd.f32 %v4726, %v4756
      %v4766 = vadd.f32 %v4727, %v4756
      %v4767 = vadd.f32 %v4728, %v4756
      %v4768 = vadd.f32 %v4729, %v4756
      %v4769 = vadd.f32 %v4730, %v4756
      %v4770 = vadd.f32 %v4731, %v4756
      %v4771 = vadd.f32 %v4732, %v4756
      %v4772 = vadd.f32 %v4733, %v4756
      %v4773 = vadd.f32 %v4734, %v4756
      %v4774 = vadd.f32 %v4735, %v4756
      %v4775 = vadd.f32 %v4736, %v4756
      %v4776 = vadd.f32 %v4737, %v4756
      %v4777 = vadd.f32 %v4738, %v4756
      %v4778 = vadd.f32 %v4739, %v4756
      %v4779 = vadd.f32 %v4740, %v4756
      %v4780 = vadd.f32 %v4741, %v4756
      %v4781 = vadd.f32 %v4742, %v4756
      %v4782 = vadd.f32 %v4743, %v4756
      %v4783 = vadd.f32 %v4744, %v4756
      %v4784 = vadd.f32 %v4745, %v4756
      %v4785 = vadd.f32 %v4746, %v4756
      %v4786 = vadd.f32 %v4747, %v4756
      %v4787 = vadd.f32 %v4748, %v4756
      %v4788 = vadd.f32 %v4749, %v4756
      %v4789 = vadd.f32 %v4750, %v4756
      %v4790 = vmul.f32 %v4758, 0.1
      %v4791 = vmul.f32 %v4759, 0.1
      %v4792 = vmul.f32 %v4760, 0.1
      %v4793 = vmul.f32 %v4761, 0.1
      %v4794 = vmul.f32 %v4762, 0.1
      %v4795 = vmul.f32 %v4763, 0.1
      %v4796 = vmul.f32 %v4764, 0.1
      %v4797 = vmul.f32 %v4765, 0.1
      %v4798 = vmul.f32 %v4766, 0.1
      %v4799 = vmul.f32 %v4767, 0.1
      %v4800 = vmul.f32 %v4768, 0.1
      %v4801 = vmul.f32 %v4769, 0.1
      %v4802 = vmul.f32 %v4770, 0.1
      %v4803 = vmul.f32 %v4771, 0.1
      %v4804 = vmul.f32 %v4772, 0.1
      %v4805 = vmul.f32 %v4773, 0.1
      %v4806 = vmul.f32 %v4774, 0.1
      %v4807 = vmul.f32 %v4775, 0.1
      %v4808 = vmul.f32 %v4776, 0.1
      %v4809 = vmul.f32 %v4777, 0.1
      %v4810 = vmul.f32 %v4778, 0.1
      %v4811 = vmul.f32 %v4779, 0.1
      %v4812 = vmul.f32 %v4780, 0.1
      %v4813 = vmul.f32 %v4781, 0.1
      %v4814 = vmul.f32 %v4782, 0.1
      %v4815 = vmul.f32 %v4783, 0.1
      %v4816 = vmul.f32 %v4784, 0.1
      %v4817 = vmul.f32 %v4785, 0.1
      %v4818 = vmul.f32 %v4786, 0.1
      %v4819 = vmul.f32 %v4787, 0.1
      %v4820 = vmul.f32 %v4788, 0.1
      %v4821 = vmul.f32 %v4789, 0.1
      %v4822 = vmax.f32 %v4758, %v4790
      %v4823 = vmax.f32 %v4759, %v4791
      %v4824 = vmax.f32 %v4760, %v4792
      %v4825 = vmax.f32 %v4761, %v4793
      %v4826 = vmax.f32 %v4762, %v4794
      %v4827 = vmax.f32 %v4763, %v4795
      %v4828 = vmax.f32 %v4764, %v4796
      %v4829 = vmax.f32 %v4765, %v4797
      %v4830 = vmax.f32 %v4766, %v4798
      %v4831 = vmax.f32 %v4767, %v4799
      %v4832 = vmax.f32 %v4768, %v4800
      %v4833 = vmax.f32 %v4769, %v4801
      %v4834 = vmax.f32 %v4770, %v4802
      %v4835 = vmax.f32 %v4771, %v4803
      %v4836 = vmax.f32 %v4772, %v4804
      %v4837 = vmax.f32 %v4773, %v4805
      %v4838 = vmax.f32 %v4774, %v4806
      %v4839 = vmax.f32 %v4775, %v4807
      %v4840 = vmax.f32 %v4776, %v4808
      %v4841 = vmax.f32 %v4777, %v4809
      %v4842 = vmax.f32 %v4778, %v4810
      %v4843 = vmax.f32 %v4779, %v4811
      %v4844 = vmax.f32 %v4780, %v4812
      %v4845 = vmax.f32 %v4781, %v4813
      %v4846 = vmax.f32 %v4782, %v4814
      %v4847 = vmax.f32 %v4783, %v4815
      %v4848 = vmax.f32 %v4784, %v4816
      %v4849 = vmax.f32 %v4785, %v4817
      %v4850 = vmax.f32 %v4786, %v4818
      %v4851 = vmax.f32 %v4787, %v4819
      %v4852 = vmax.f32 %v4788, %v4820
      %v4853 = vmax.f32 %v4789, %v4821
      %v4854 = vld [vmem:[%s9] sm:$0xff]
      %v4855 = vld [vmem:[%s9 + $0x8] sm:$0x1]
      %v4856 = vld [vmem:[%s10] sm:$0x1]
      %4857 = vst.msk [vmem:[%s451 + $0x1] sm:$0xff] %vm442, %v4822
      %4858 = vst.msk [vmem:[%s451 + $0x9] sm:$0xff] %vm442, %v4823
      %4859 = vst.msk [vmem:[%s451 + $0x19] sm:$0xff] %vm442, %v4824
      %4860 = vst.msk [vmem:[%s451 + $0x21] sm:$0xff] %vm442, %v4825
      %4861 = vst.msk [vmem:[%s451 + $0x31] sm:$0xff] %vm442, %v4826
      %4862 = vst.msk [vmem:[%s451 + $0x39] sm:$0xff] %vm442, %v4827
      %4863 = vst.msk [vmem:[%s451 + $0x49] sm:$0xff] %vm442, %v4828
      %4864 = vst.msk [vmem:[%s451 + $0x51] sm:$0xff] %vm442, %v4829
      %4865 = vst.msk [vmem:[%s451 + $0x61] sm:$0xff] %vm442, %v4830
      %4866 = vst.msk [vmem:[%s451 + $0x69] sm:$0xff] %vm442, %v4831
      %4867 = vst.msk [vmem:[%s451 + $0x79] sm:$0xff] %vm442, %v4832
      %4868 = vst.msk [vmem:[%s451 + $0x81] sm:$0xff] %vm442, %v4833
      %4869 = vst.msk [vmem:[%s451 + $0x91] sm:$0xff] %vm442, %v4834
      %4870 = vst.msk [vmem:[%s451 + $0x99] sm:$0xff] %vm442, %v4835
      %4871 = vst.msk [vmem:[%s451 + $0xa9] sm:$0xff] %vm442, %v4836
      %4872 = vst.msk [vmem:[%s451 + $0xb1] sm:$0xff] %vm442, %v4837
      %4873 = vst.msk [vmem:[%s451 + $0xc1] sm:$0xff] %vm442, %v4838
      %4874 = vst.msk [vmem:[%s451 + $0xc9] sm:$0xff] %vm442, %v4839
      %4875 = vst.msk [vmem:[%s451 + $0xd9] sm:$0xff] %vm442, %v4840
      %4876 = vst.msk [vmem:[%s451 + $0xe1] sm:$0xff] %vm442, %v4841
      %4877 = vst.msk [vmem:[%s451 + $0xf1] sm:$0xff] %vm442, %v4842
      %4878 = vst.msk [vmem:[%s451 + $0xf9] sm:$0xff] %vm442, %v4843
      %4879 = vst.msk [vmem:[%s451 + $0x109] sm:$0xff] %vm442, %v4844
      %4880 = vst.msk [vmem:[%s451 + $0x111] sm:$0xff] %vm442, %v4845
      %4881 = vst.msk [vmem:[%s451 + $0x121] sm:$0xff] %vm442, %v4846
      %4882 = vst.msk [vmem:[%s451 + $0x129] sm:$0xff] %vm442, %v4847
      %4883 = vst.msk [vmem:[%s451 + $0x139] sm:$0xff] %vm442, %v4848
      %4884 = vst.msk [vmem:[%s451 + $0x141] sm:$0xff] %vm442, %v4849
      %4885 = vst.msk [vmem:[%s451 + $0x151] sm:$0xff] %vm442, %v4850
      %4886 = vst.msk [vmem:[%s451 + $0x159] sm:$0xff] %vm442, %v4851
      %4887 = vst.msk [vmem:[%s451 + $0x169] sm:$0xff] %vm442, %v4852
      %4888 = vst.msk [vmem:[%s451 + $0x171] sm:$0xff] %vm442, %v4853
      %v4889 = vld [vmem:[#allocation2] sm:$0xff]
      %v4890 = vld [vmem:[#allocation2 + $0x8] sm:$0xff]
      %v4891 = vld [vmem:[#allocation2 + $0x18] sm:$0xff]
      %v4892 = vld [vmem:[#allocation2 + $0x20] sm:$0xff]
      %v4893 = vld [vmem:[#allocation2 + $0x30] sm:$0xff]
      %v4894 = vld [vmem:[#allocation2 + $0x38] sm:$0xff]
      %v4895 = vld [vmem:[#allocation2 + $0x48] sm:$0xff]
      %v4896 = vld [vmem:[#allocation2 + $0x50] sm:$0xff]
      %v4897 = vld [vmem:[#allocation2 + $0x60] sm:$0xff]
      %v4898 = vld [vmem:[#allocation2 + $0x68] sm:$0xff]
      %v4899 = vld [vmem:[#allocation2 + $0x78] sm:$0xff]
      %v4900 = vld [vmem:[#allocation2 + $0x80] sm:$0xff]
      %v4901 = vld [vmem:[#allocation2 + $0x90] sm:$0xff]
      %v4902 = vld [vmem:[#allocation2 + $0x98] sm:$0xff]
      %v4903 = vld [vmem:[#allocation2 + $0xa8] sm:$0xff]
      %v4904 = vld [vmem:[#allocation2 + $0xb0] sm:$0xff]
      %v4905 = vld [vmem:[#allocation2 + $0xc0] sm:$0xff]
      %v4906 = vld [vmem:[#allocation2 + $0xc8] sm:$0xff]
      %v4907 = vld [vmem:[#allocation2 + $0xd8] sm:$0xff]
      %v4908 = vld [vmem:[#allocation2 + $0xe0] sm:$0xff]
      %v4909 = vld [vmem:[#allocation2 + $0xf0] sm:$0xff]
      %v4910 = vld [vmem:[#allocation2 + $0xf8] sm:$0xff]
      %v4911 = vld [vmem:[#allocation2 + $0x108] sm:$0xff]
      %v4912 = vld [vmem:[#allocation2 + $0x110] sm:$0xff]
      %v4913 = vld [vmem:[#allocation2 + $0x120] sm:$0xff]
      %v4914 = vld [vmem:[#allocation2 + $0x128] sm:$0xff]
      %v4915 = vld [vmem:[#allocation2 + $0x138] sm:$0xff]
      %v4916 = vld [vmem:[#allocation2 + $0x140] sm:$0xff]
      %v4917 = vld [vmem:[#allocation2 + $0x150] sm:$0xff]
      %v4918 = vld [vmem:[#allocation2 + $0x158] sm:$0xff]
      %v4919 = vld [vmem:[#allocation2 + $0x168] sm:$0xff]
      %v4920 = vld [vmem:[#allocation2 + $0x170] sm:$0xff]
      %v4921 = vlaneseq
      %v4922 = vshrl.u32 %v4921, 7
      %v4923 = vsub.s32 0, %v4922
      %v4924 = vrot.slane %v4854, %v4923
      %v4925 = vmul.f32 %v4889, %v4924
      %v4926 = vmul.f32 %v4890, %v4924
      %v4927 = vmul.f32 %v4891, %v4924
      %v4928 = vmul.f32 %v4892, %v4924
      %v4929 = vmul.f32 %v4893, %v4924
      %v4930 = vmul.f32 %v4894, %v4924
      %v4931 = vmul.f32 %v4895, %v4924
      %v4932 = vmul.f32 %v4896, %v4924
      %v4933 = vmul.f32 %v4897, %v4924
      %v4934 = vmul.f32 %v4898, %v4924
      %v4935 = vmul.f32 %v4899, %v4924
      %v4936 = vmul.f32 %v4900, %v4924
      %v4937 = vmul.f32 %v4901, %v4924
      %v4938 = vmul.f32 %v4902, %v4924
      %v4939 = vmul.f32 %v4903, %v4924
      %v4940 = vmul.f32 %v4904, %v4924
      %v4941 = vmul.f32 %v4905, %v4924
      %v4942 = vmul.f32 %v4906, %v4924
      %v4943 = vmul.f32 %v4907, %v4924
      %v4944 = vmul.f32 %v4908, %v4924
      %v4945 = vmul.f32 %v4909, %v4924
      %v4946 = vmul.f32 %v4910, %v4924
      %v4947 = vmul.f32 %v4911, %v4924
      %v4948 = vmul.f32 %v4912, %v4924
      %v4949 = vmul.f32 %v4913, %v4924
      %v4950 = vmul.f32 %v4914, %v4924
      %v4951 = vmul.f32 %v4915, %v4924
      %v4952 = vmul.f32 %v4916, %v4924
      %v4953 = vmul.f32 %v4917, %v4924
      %v4954 = vmul.f32 %v4918, %v4924
      %v4955 = vmul.f32 %v4919, %v4924
      %v4956 = vmul.f32 %v4920, %v4924
      %v4957 = vadd.f32 %v4925, 0.0
      %v4958 = vadd.f32 %v4926, 0.0
      %v4959 = vadd.f32 %v4927, 0.0
      %v4960 = vadd.f32 %v4928, 0.0
      %v4961 = vadd.f32 %v4929, 0.0
      %v4962 = vadd.f32 %v4930, 0.0
      %v4963 = vadd.f32 %v4931, 0.0
      %v4964 = vadd.f32 %v4932, 0.0
      %v4965 = vadd.f32 %v4933, 0.0
      %v4966 = vadd.f32 %v4934, 0.0
      %v4967 = vadd.f32 %v4935, 0.0
      %v4968 = vadd.f32 %v4936, 0.0
      %v4969 = vadd.f32 %v4937, 0.0
      %v4970 = vadd.f32 %v4938, 0.0
      %v4971 = vadd.f32 %v4939, 0.0
      %v4972 = vadd.f32 %v4940, 0.0
      %v4973 = vadd.f32 %v4941, 0.0
      %v4974 = vadd.f32 %v4942, 0.0
      %v4975 = vadd.f32 %v4943, 0.0
      %v4976 = vadd.f32 %v4944, 0.0
      %v4977 = vadd.f32 %v4945, 0.0
      %v4978 = vadd.f32 %v4946, 0.0
      %v4979 = vadd.f32 %v4947, 0.0
      %v4980 = vadd.f32 %v4948, 0.0
      %v4981 = vadd.f32 %v4949, 0.0
      %v4982 = vadd.f32 %v4950, 0.0
      %v4983 = vadd.f32 %v4951, 0.0
      %v4984 = vadd.f32 %v4952, 0.0
      %v4985 = vadd.f32 %v4953, 0.0
      %v4986 = vadd.f32 %v4954, 0.0
      %v4987 = vadd.f32 %v4955, 0.0
      %v4988 = vadd.f32 %v4956, 0.0
      %v4989 = vld [vmem:[#allocation2 + $0x1] sm:$0xff]
      %v4990 = vld [vmem:[#allocation2 + $0x9] sm:$0xff]
      %v4991 = vld [vmem:[#allocation2 + $0x19] sm:$0xff]
      %v4992 = vld [vmem:[#allocation2 + $0x21] sm:$0xff]
      %v4993 = vld [vmem:[#allocation2 + $0x31] sm:$0xff]
      %v4994 = vld [vmem:[#allocation2 + $0x39] sm:$0xff]
      %v4995 = vld [vmem:[#allocation2 + $0x49] sm:$0xff]
      %v4996 = vld [vmem:[#allocation2 + $0x51] sm:$0xff]
      %v4997 = vld [vmem:[#allocation2 + $0x61] sm:$0xff]
      %v4998 = vld [vmem:[#allocation2 + $0x69] sm:$0xff]
      %v4999 = vld [vmem:[#allocation2 + $0x79] sm:$0xff]
      %v5000 = vld [vmem:[#allocation2 + $0x81] sm:$0xff]
      %v5001 = vld [vmem:[#allocation2 + $0x91] sm:$0xff]
      %v5002 = vld [vmem:[#allocation2 + $0x99] sm:$0xff]
      %v5003 = vld [vmem:[#allocation2 + $0xa9] sm:$0xff]
      %v5004 = vld [vmem:[#allocation2 + $0xb1] sm:$0xff]
      %v5005 = vld [vmem:[#allocation2 + $0xc1] sm:$0xff]
      %v5006 = vld [vmem:[#allocation2 + $0xc9] sm:$0xff]
      %v5007 = vld [vmem:[#allocation2 + $0xd9] sm:$0xff]
      %v5008 = vld [vmem:[#allocation2 + $0xe1] sm:$0xff]
      %v5009 = vld [vmem:[#allocation2 + $0xf1] sm:$0xff]
      %v5010 = vld [vmem:[#allocation2 + $0xf9] sm:$0xff]
      %v5011 = vld [vmem:[#allocation2 + $0x109] sm:$0xff]
      %v5012 = vld [vmem:[#allocation2 + $0x111] sm:$0xff]
      %v5013 = vld [vmem:[#allocation2 + $0x121] sm:$0xff]
      %v5014 = vld [vmem:[#allocation2 + $0x129] sm:$0xff]
      %v5015 = vld [vmem:[#allocation2 + $0x139] sm:$0xff]
      %v5016 = vld [vmem:[#allocation2 + $0x141] sm:$0xff]
      %v5017 = vld [vmem:[#allocation2 + $0x151] sm:$0xff]
      %v5018 = vld [vmem:[#allocation2 + $0x159] sm:$0xff]
      %v5019 = vld [vmem:[#allocation2 + $0x169] sm:$0xff]
      %v5020 = vld [vmem:[#allocation2 + $0x171] sm:$0xff]
      %v5021 = vlaneseq
      %v5022 = vshrl.u32 %v5021, 7
      %v5023 = vsub.s32 1, %v5022
      %v5024 = vrot.slane %v4854, %v5023
      %v5025 = vmul.f32 %v4989, %v5024
      %v5026 = vmul.f32 %v4990, %v5024
      %v5027 = vmul.f32 %v4991, %v5024
      %v5028 = vmul.f32 %v4992, %v5024
      %v5029 = vmul.f32 %v4993, %v5024
      %v5030 = vmul.f32 %v4994, %v5024
      %v5031 = vmul.f32 %v4995, %v5024
      %v5032 = vmul.f32 %v4996, %v5024
      %v5033 = vmul.f32 %v4997, %v5024
      %v5034 = vmul.f32 %v4998, %v5024
      %v5035 = vmul.f32 %v4999, %v5024
      %v5036 = vmul.f32 %v5000, %v5024
      %v5037 = vmul.f32 %v5001, %v5024
      %v5038 = vmul.f32 %v5002, %v5024
      %v5039 = vmul.f32 %v5003, %v5024
      %v5040 = vmul.f32 %v5004, %v5024
      %v5041 = vmul.f32 %v5005, %v5024
      %v5042 = vmul.f32 %v5006, %v5024
      %v5043 = vmul.f32 %v5007, %v5024
      %v5044 = vmul.f32 %v5008, %v5024
      %v5045 = vmul.f32 %v5009, %v5024
      %v5046 = vmul.f32 %v5010, %v5024
      %v5047 = vmul.f32 %v5011, %v5024
      %v5048 = vmul.f32 %v5012, %v5024
      %v5049 = vmul.f32 %v5013, %v5024
      %v5050 = vmul.f32 %v5014, %v5024
      %v5051 = vmul.f32 %v5015, %v5024
      %v5052 = vmul.f32 %v5016, %v5024
      %v5053 = vmul.f32 %v5017, %v5024
      %v5054 = vmul.f32 %v5018, %v5024
      %v5055 = vmul.f32 %v5019, %v5024
      %v5056 = vmul.f32 %v5020, %v5024
      %v5057 = vadd.f32 %v4957, %v5025
      %v5058 = vadd.f32 %v4958, %v5026
      %v5059 = vadd.f32 %v4959, %v5027
      %v5060 = vadd.f32 %v4960, %v5028
      %v5061 = vadd.f32 %v4961, %v5029
      %v5062 = vadd.f32 %v4962, %v5030
      %v5063 = vadd.f32 %v4963, %v5031
      %v5064 = vadd.f32 %v4964, %v5032
      %v5065 = vadd.f32 %v4965, %v5033
      %v5066 = vadd.f32 %v4966, %v5034
      %v5067 = vadd.f32 %v4967, %v5035
      %v5068 = vadd.f32 %v4968, %v5036
      %v5069 = vadd.f32 %v4969, %v5037
      %v5070 = vadd.f32 %v4970, %v5038
      %v5071 = vadd.f32 %v4971, %v5039
      %v5072 = vadd.f32 %v4972, %v5040
      %v5073 = vadd.f32 %v4973, %v5041
      %v5074 = vadd.f32 %v4974, %v5042
      %v5075 = vadd.f32 %v4975, %v5043
      %v5076 = vadd.f32 %v4976, %v5044
      %v5077 = vadd.f32 %v4977, %v5045
      %v5078 = vadd.f32 %v4978, %v5046
      %v5079 = vadd.f32 %v4979, %v5047
      %v5080 = vadd.f32 %v4980, %v5048
      %v5081 = vadd.f32 %v4981, %v5049
      %v5082 = vadd.f32 %v4982, %v5050
      %v5083 = vadd.f32 %v4983, %v5051
      %v5084 = vadd.f32 %v4984, %v5052
      %v5085 = vadd.f32 %v4985, %v5053
      %v5086 = vadd.f32 %v4986, %v5054
      %v5087 = vadd.f32 %v4987, %v5055
      %v5088 = vadd.f32 %v4988, %v5056
      %v5089 = vld [vmem:[#allocation2 + $0x2] sm:$0xff]
      %v5090 = vld [vmem:[#allocation2 + $0xa] sm:$0xff]
      %v5091 = vld [vmem:[#allocation2 + $0x1a] sm:$0xff]
      %v5092 = vld [vmem:[#allocation2 + $0x22] sm:$0xff]
      %v5093 = vld [vmem:[#allocation2 + $0x32] sm:$0xff]
      %v5094 = vld [vmem:[#allocation2 + $0x3a] sm:$0xff]
      %v5095 = vld [vmem:[#allocation2 + $0x4a] sm:$0xff]
      %v5096 = vld [vmem:[#allocation2 + $0x52] sm:$0xff]
      %v5097 = vld [vmem:[#allocation2 + $0x62] sm:$0xff]
      %v5098 = vld [vmem:[#allocation2 + $0x6a] sm:$0xff]
      %v5099 = vld [vmem:[#allocation2 + $0x7a] sm:$0xff]
      %v5100 = vld [vmem:[#allocation2 + $0x82] sm:$0xff]
      %v5101 = vld [vmem:[#allocation2 + $0x92] sm:$0xff]
      %v5102 = vld [vmem:[#allocation2 + $0x9a] sm:$0xff]
      %v5103 = vld [vmem:[#allocation2 + $0xaa] sm:$0xff]
      %v5104 = vld [vmem:[#allocation2 + $0xb2] sm:$0xff]
      %v5105 = vld [vmem:[#allocation2 + $0xc2] sm:$0xff]
      %v5106 = vld [vmem:[#allocation2 + $0xca] sm:$0xff]
      %v5107 = vld [vmem:[#allocation2 + $0xda] sm:$0xff]
      %v5108 = vld [vmem:[#allocation2 + $0xe2] sm:$0xff]
      %v5109 = vld [vmem:[#allocation2 + $0xf2] sm:$0xff]
      %v5110 = vld [vmem:[#allocation2 + $0xfa] sm:$0xff]
      %v5111 = vld [vmem:[#allocation2 + $0x10a] sm:$0xff]
      %v5112 = vld [vmem:[#allocation2 + $0x112] sm:$0xff]
      %v5113 = vld [vmem:[#allocation2 + $0x122] sm:$0xff]
      %v5114 = vld [vmem:[#allocation2 + $0x12a] sm:$0xff]
      %v5115 = vld [vmem:[#allocation2 + $0x13a] sm:$0xff]
      %v5116 = vld [vmem:[#allocation2 + $0x142] sm:$0xff]
      %v5117 = vld [vmem:[#allocation2 + $0x152] sm:$0xff]
      %v5118 = vld [vmem:[#allocation2 + $0x15a] sm:$0xff]
      %v5119 = vld [vmem:[#allocation2 + $0x16a] sm:$0xff]
      %v5120 = vld [vmem:[#allocation2 + $0x172] sm:$0xff]
      %v5121 = vlaneseq
      %v5122 = vshrl.u32 %v5121, 7
      %v5123 = vsub.s32 2, %v5122
      %v5124 = vrot.slane %v4854, %v5123
      %v5125 = vmul.f32 %v5089, %v5124
      %v5126 = vmul.f32 %v5090, %v5124
      %v5127 = vmul.f32 %v5091, %v5124
      %v5128 = vmul.f32 %v5092, %v5124
      %v5129 = vmul.f32 %v5093, %v5124
      %v5130 = vmul.f32 %v5094, %v5124
      %v5131 = vmul.f32 %v5095, %v5124
      %v5132 = vmul.f32 %v5096, %v5124
      %v5133 = vmul.f32 %v5097, %v5124
      %v5134 = vmul.f32 %v5098, %v5124
      %v5135 = vmul.f32 %v5099, %v5124
      %v5136 = vmul.f32 %v5100, %v5124
      %v5137 = vmul.f32 %v5101, %v5124
      %v5138 = vmul.f32 %v5102, %v5124
      %v5139 = vmul.f32 %v5103, %v5124
      %v5140 = vmul.f32 %v5104, %v5124
      %v5141 = vmul.f32 %v5105, %v5124
      %v5142 = vmul.f32 %v5106, %v5124
      %v5143 = vmul.f32 %v5107, %v5124
      %v5144 = vmul.f32 %v5108, %v5124
      %v5145 = vmul.f32 %v5109, %v5124
      %v5146 = vmul.f32 %v5110, %v5124
      %v5147 = vmul.f32 %v5111, %v5124
      %v5148 = vmul.f32 %v5112, %v5124
      %v5149 = vmul.f32 %v5113, %v5124
      %v5150 = vmul.f32 %v5114, %v5124
      %v5151 = vmul.f32 %v5115, %v5124
      %v5152 = vmul.f32 %v5116, %v5124
      %v5153 = vmul.f32 %v5117, %v5124
      %v5154 = vmul.f32 %v5118, %v5124
      %v5155 = vmul.f32 %v5119, %v5124
      %v5156 = vmul.f32 %v5120, %v5124
      %v5157 = vadd.f32 %v5057, %v5125
      %v5158 = vadd.f32 %v5058, %v5126
      %v5159 = vadd.f32 %v5059, %v5127
      %v5160 = vadd.f32 %v5060, %v5128
      %v5161 = vadd.f32 %v5061, %v5129
      %v5162 = vadd.f32 %v5062, %v5130
      %v5163 = vadd.f32 %v5063, %v5131
      %v5164 = vadd.f32 %v5064, %v5132
      %v5165 = vadd.f32 %v5065, %v5133
      %v5166 = vadd.f32 %v5066, %v5134
      %v5167 = vadd.f32 %v5067, %v5135
      %v5168 = vadd.f32 %v5068, %v5136
      %v5169 = vadd.f32 %v5069, %v5137
      %v5170 = vadd.f32 %v5070, %v5138
      %v5171 = vadd.f32 %v5071, %v5139
      %v5172 = vadd.f32 %v5072, %v5140
      %v5173 = vadd.f32 %v5073, %v5141
      %v5174 = vadd.f32 %v5074, %v5142
      %v5175 = vadd.f32 %v5075, %v5143
      %v5176 = vadd.f32 %v5076, %v5144
      %v5177 = vadd.f32 %v5077, %v5145
      %v5178 = vadd.f32 %v5078, %v5146
      %v5179 = vadd.f32 %v5079, %v5147
      %v5180 = vadd.f32 %v5080, %v5148
      %v5181 = vadd.f32 %v5081, %v5149
      %v5182 = vadd.f32 %v5082, %v5150
      %v5183 = vadd.f32 %v5083, %v5151
      %v5184 = vadd.f32 %v5084, %v5152
      %v5185 = vadd.f32 %v5085, %v5153
      %v5186 = vadd.f32 %v5086, %v5154
      %v5187 = vadd.f32 %v5087, %v5155
      %v5188 = vadd.f32 %v5088, %v5156
      %v5189 = vld [vmem:[%s451] sm:$0xff]
      %v5190 = vld [vmem:[%s451 + $0x8] sm:$0xff]
      %v5191 = vld [vmem:[%s451 + $0x18] sm:$0xff]
      %v5192 = vld [vmem:[%s451 + $0x20] sm:$0xff]
      %v5193 = vld [vmem:[%s451 + $0x30] sm:$0xff]
      %v5194 = vld [vmem:[%s451 + $0x38] sm:$0xff]
      %v5195 = vld [vmem:[%s451 + $0x48] sm:$0xff]
      %v5196 = vld [vmem:[%s451 + $0x50] sm:$0xff]
      %v5197 = vld [vmem:[%s451 + $0x60] sm:$0xff]
      %v5198 = vld [vmem:[%s451 + $0x68] sm:$0xff]
      %v5199 = vld [vmem:[%s451 + $0x78] sm:$0xff]
      %v5200 = vld [vmem:[%s451 + $0x80] sm:$0xff]
      %v5201 = vld [vmem:[%s451 + $0x90] sm:$0xff]
      %v5202 = vld [vmem:[%s451 + $0x98] sm:$0xff]
      %v5203 = vld [vmem:[%s451 + $0xa8] sm:$0xff]
      %v5204 = vld [vmem:[%s451 + $0xb0] sm:$0xff]
      %v5205 = vld [vmem:[%s451 + $0xc0] sm:$0xff]
      %v5206 = vld [vmem:[%s451 + $0xc8] sm:$0xff]
      %v5207 = vld [vmem:[%s451 + $0xd8] sm:$0xff]
      %v5208 = vld [vmem:[%s451 + $0xe0] sm:$0xff]
      %v5209 = vld [vmem:[%s451 + $0xf0] sm:$0xff]
      %v5210 = vld [vmem:[%s451 + $0xf8] sm:$0xff]
      %v5211 = vld [vmem:[%s451 + $0x108] sm:$0xff]
      %v5212 = vld [vmem:[%s451 + $0x110] sm:$0xff]
      %v5213 = vld [vmem:[%s451 + $0x120] sm:$0xff]
      %v5214 = vld [vmem:[%s451 + $0x128] sm:$0xff]
      %v5215 = vld [vmem:[%s451 + $0x138] sm:$0xff]
      %v5216 = vld [vmem:[%s451 + $0x140] sm:$0xff]
      %v5217 = vld [vmem:[%s451 + $0x150] sm:$0xff]
      %v5218 = vld [vmem:[%s451 + $0x158] sm:$0xff]
      %v5219 = vld [vmem:[%s451 + $0x168] sm:$0xff]
      %v5220 = vld [vmem:[%s451 + $0x170] sm:$0xff]
      %v5221 = vlaneseq
      %v5222 = vshrl.u32 %v5221, 7
      %v5223 = vsub.s32 3, %v5222
      %v5224 = vrot.slane %v4854, %v5223
      %v5225 = vmul.f32 %v5189, %v5224
      %v5226 = vmul.f32 %v5190, %v5224
      %v5227 = vmul.f32 %v5191, %v5224
      %v5228 = vmul.f32 %v5192, %v5224
      %v5229 = vmul.f32 %v5193, %v5224
      %v5230 = vmul.f32 %v5194, %v5224
      %v5231 = vmul.f32 %v5195, %v5224
      %v5232 = vmul.f32 %v5196, %v5224
      %v5233 = vmul.f32 %v5197, %v5224
      %v5234 = vmul.f32 %v5198, %v5224
      %v5235 = vmul.f32 %v5199, %v5224
      %v5236 = vmul.f32 %v5200, %v5224
      %v5237 = vmul.f32 %v5201, %v5224
      %v5238 = vmul.f32 %v5202, %v5224
      %v5239 = vmul.f32 %v5203, %v5224
      %v5240 = vmul.f32 %v5204, %v5224
      %v5241 = vmul.f32 %v5205, %v5224
      %v5242 = vmul.f32 %v5206, %v5224
      %v5243 = vmul.f32 %v5207, %v5224
      %v5244 = vmul.f32 %v5208, %v5224
      %v5245 = vmul.f32 %v5209, %v5224
      %v5246 = vmul.f32 %v5210, %v5224
      %v5247 = vmul.f32 %v5211, %v5224
      %v5248 = vmul.f32 %v5212, %v5224
      %v5249 = vmul.f32 %v5213, %v5224
      %v5250 = vmul.f32 %v5214, %v5224
      %v5251 = vmul.f32 %v5215, %v5224
      %v5252 = vmul.f32 %v5216, %v5224
      %v5253 = vmul.f32 %v5217, %v5224
      %v5254 = vmul.f32 %v5218, %v5224
      %v5255 = vmul.f32 %v5219, %v5224
      %v5256 = vmul.f32 %v5220, %v5224
      %v5257 = vadd.f32 %v5157, %v5225
      %v5258 = vadd.f32 %v5158, %v5226
      %v5259 = vadd.f32 %v5159, %v5227
      %v5260 = vadd.f32 %v5160, %v5228
      %v5261 = vadd.f32 %v5161, %v5229
      %v5262 = vadd.f32 %v5162, %v5230
      %v5263 = vadd.f32 %v5163, %v5231
      %v5264 = vadd.f32 %v5164, %v5232
      %v5265 = vadd.f32 %v5165, %v5233
      %v5266 = vadd.f32 %v5166, %v5234
      %v5267 = vadd.f32 %v5167, %v5235
      %v5268 = vadd.f32 %v5168, %v5236
      %v5269 = vadd.f32 %v5169, %v5237
      %v5270 = vadd.f32 %v5170, %v5238
      %v5271 = vadd.f32 %v5171, %v5239
      %v5272 = vadd.f32 %v5172, %v5240
      %v5273 = vadd.f32 %v5173, %v5241
      %v5274 = vadd.f32 %v5174, %v5242
      %v5275 = vadd.f32 %v5175, %v5243
      %v5276 = vadd.f32 %v5176, %v5244
      %v5277 = vadd.f32 %v5177, %v5245
      %v5278 = vadd.f32 %v5178, %v5246
      %v5279 = vadd.f32 %v5179, %v5247
      %v5280 = vadd.f32 %v5180, %v5248
      %v5281 = vadd.f32 %v5181, %v5249
      %v5282 = vadd.f32 %v5182, %v5250
      %v5283 = vadd.f32 %v5183, %v5251
      %v5284 = vadd.f32 %v5184, %v5252
      %v5285 = vadd.f32 %v5185, %v5253
      %v5286 = vadd.f32 %v5186, %v5254
      %v5287 = vadd.f32 %v5187, %v5255
      %v5288 = vadd.f32 %v5188, %v5256
      %v5289 = vld [vmem:[%s451 + $0x1] sm:$0xff]
      %v5290 = vld [vmem:[%s451 + $0x9] sm:$0xff]
      %v5291 = vld [vmem:[%s451 + $0x19] sm:$0xff]
      %v5292 = vld [vmem:[%s451 + $0x21] sm:$0xff]
      %v5293 = vld [vmem:[%s451 + $0x31] sm:$0xff]
      %v5294 = vld [vmem:[%s451 + $0x39] sm:$0xff]
      %v5295 = vld [vmem:[%s451 + $0x49] sm:$0xff]
      %v5296 = vld [vmem:[%s451 + $0x51] sm:$0xff]
      %v5297 = vld [vmem:[%s451 + $0x61] sm:$0xff]
      %v5298 = vld [vmem:[%s451 + $0x69] sm:$0xff]
      %v5299 = vld [vmem:[%s451 + $0x79] sm:$0xff]
      %v5300 = vld [vmem:[%s451 + $0x81] sm:$0xff]
      %v5301 = vld [vmem:[%s451 + $0x91] sm:$0xff]
      %v5302 = vld [vmem:[%s451 + $0x99] sm:$0xff]
      %v5303 = vld [vmem:[%s451 + $0xa9] sm:$0xff]
      %v5304 = vld [vmem:[%s451 + $0xb1] sm:$0xff]
      %v5305 = vld [vmem:[%s451 + $0xc1] sm:$0xff]
      %v5306 = vld [vmem:[%s451 + $0xc9] sm:$0xff]
      %v5307 = vld [vmem:[%s451 + $0xd9] sm:$0xff]
      %v5308 = vld [vmem:[%s451 + $0xe1] sm:$0xff]
      %v5309 = vld [vmem:[%s451 + $0xf1] sm:$0xff]
      %v5310 = vld [vmem:[%s451 + $0xf9] sm:$0xff]
      %v5311 = vld [vmem:[%s451 + $0x109] sm:$0xff]
      %v5312 = vld [vmem:[%s451 + $0x111] sm:$0xff]
      %v5313 = vld [vmem:[%s451 + $0x121] sm:$0xff]
      %v5314 = vld [vmem:[%s451 + $0x129] sm:$0xff]
      %v5315 = vld [vmem:[%s451 + $0x139] sm:$0xff]
      %v5316 = vld [vmem:[%s451 + $0x141] sm:$0xff]
      %v5317 = vld [vmem:[%s451 + $0x151] sm:$0xff]
      %v5318 = vld [vmem:[%s451 + $0x159] sm:$0xff]
      %v5319 = vld [vmem:[%s451 + $0x169] sm:$0xff]
      %v5320 = vld [vmem:[%s451 + $0x171] sm:$0xff]
      %v5321 = vlaneseq
      %v5322 = vshrl.u32 %v5321, 7
      %v5323 = vsub.s32 4, %v5322
      %v5324 = vrot.slane %v4854, %v5323
      %v5325 = vmul.f32 %v5289, %v5324
      %v5326 = vmul.f32 %v5290, %v5324
      %v5327 = vmul.f32 %v5291, %v5324
      %v5328 = vmul.f32 %v5292, %v5324
      %v5329 = vmul.f32 %v5293, %v5324
      %v5330 = vmul.f32 %v5294, %v5324
      %v5331 = vmul.f32 %v5295, %v5324
      %v5332 = vmul.f32 %v5296, %v5324
      %v5333 = vmul.f32 %v5297, %v5324
      %v5334 = vmul.f32 %v5298, %v5324
      %v5335 = vmul.f32 %v5299, %v5324
      %v5336 = vmul.f32 %v5300, %v5324
      %v5337 = vmul.f32 %v5301, %v5324
      %v5338 = vmul.f32 %v5302, %v5324
      %v5339 = vmul.f32 %v5303, %v5324
      %v5340 = vmul.f32 %v5304, %v5324
      %v5341 = vmul.f32 %v5305, %v5324
      %v5342 = vmul.f32 %v5306, %v5324
      %v5343 = vmul.f32 %v5307, %v5324
      %v5344 = vmul.f32 %v5308, %v5324
      %v5345 = vmul.f32 %v5309, %v5324
      %v5346 = vmul.f32 %v5310, %v5324
      %v5347 = vmul.f32 %v5311, %v5324
      %v5348 = vmul.f32 %v5312, %v5324
      %v5349 = vmul.f32 %v5313, %v5324
      %v5350 = vmul.f32 %v5314, %v5324
      %v5351 = vmul.f32 %v5315, %v5324
      %v5352 = vmul.f32 %v5316, %v5324
      %v5353 = vmul.f32 %v5317, %v5324
      %v5354 = vmul.f32 %v5318, %v5324
      %v5355 = vmul.f32 %v5319, %v5324
      %v5356 = vmul.f32 %v5320, %v5324
      %v5357 = vadd.f32 %v5257, %v5325
      %v5358 = vadd.f32 %v5258, %v5326
      %v5359 = vadd.f32 %v5259, %v5327
      %v5360 = vadd.f32 %v5260, %v5328
      %v5361 = vadd.f32 %v5261, %v5329
      %v5362 = vadd.f32 %v5262, %v5330
      %v5363 = vadd.f32 %v5263, %v5331
      %v5364 = vadd.f32 %v5264, %v5332
      %v5365 = vadd.f32 %v5265, %v5333
      %v5366 = vadd.f32 %v5266, %v5334
      %v5367 = vadd.f32 %v5267, %v5335
      %v5368 = vadd.f32 %v5268, %v5336
      %v5369 = vadd.f32 %v5269, %v5337
      %v5370 = vadd.f32 %v5270, %v5338
      %v5371 = vadd.f32 %v5271, %v5339
      %v5372 = vadd.f32 %v5272, %v5340
      %v5373 = vadd.f32 %v5273, %v5341
      %v5374 = vadd.f32 %v5274, %v5342
      %v5375 = vadd.f32 %v5275, %v5343
      %v5376 = vadd.f32 %v5276, %v5344
      %v5377 = vadd.f32 %v5277, %v5345
      %v5378 = vadd.f32 %v5278, %v5346
      %v5379 = vadd.f32 %v5279, %v5347
      %v5380 = vadd.f32 %v5280, %v5348
      %v5381 = vadd.f32 %v5281, %v5349
      %v5382 = vadd.f32 %v5282, %v5350
      %v5383 = vadd.f32 %v5283, %v5351
      %v5384 = vadd.f32 %v5284, %v5352
      %v5385 = vadd.f32 %v5285, %v5353
      %v5386 = vadd.f32 %v5286, %v5354
      %v5387 = vadd.f32 %v5287, %v5355
      %v5388 = vadd.f32 %v5288, %v5356
      %v5389 = vld [vmem:[%s451 + $0x2] sm:$0xff]
      %v5390 = vld [vmem:[%s451 + $0xa] sm:$0xff]
      %v5391 = vld [vmem:[%s451 + $0x1a] sm:$0xff]
      %v5392 = vld [vmem:[%s451 + $0x22] sm:$0xff]
      %v5393 = vld [vmem:[%s451 + $0x32] sm:$0xff]
      %v5394 = vld [vmem:[%s451 + $0x3a] sm:$0xff]
      %v5395 = vld [vmem:[%s451 + $0x4a] sm:$0xff]
      %v5396 = vld [vmem:[%s451 + $0x52] sm:$0xff]
      %v5397 = vld [vmem:[%s451 + $0x62] sm:$0xff]
      %v5398 = vld [vmem:[%s451 + $0x6a] sm:$0xff]
      %v5399 = vld [vmem:[%s451 + $0x7a] sm:$0xff]
      %v5400 = vld [vmem:[%s451 + $0x82] sm:$0xff]
      %v5401 = vld [vmem:[%s451 + $0x92] sm:$0xff]
      %v5402 = vld [vmem:[%s451 + $0x9a] sm:$0xff]
      %v5403 = vld [vmem:[%s451 + $0xaa] sm:$0xff]
      %v5404 = vld [vmem:[%s451 + $0xb2] sm:$0xff]
      %v5405 = vld [vmem:[%s451 + $0xc2] sm:$0xff]
      %v5406 = vld [vmem:[%s451 + $0xca] sm:$0xff]
      %v5407 = vld [vmem:[%s451 + $0xda] sm:$0xff]
      %v5408 = vld [vmem:[%s451 + $0xe2] sm:$0xff]
      %v5409 = vld [vmem:[%s451 + $0xf2] sm:$0xff]
      %v5410 = vld [vmem:[%s451 + $0xfa] sm:$0xff]
      %v5411 = vld [vmem:[%s451 + $0x10a] sm:$0xff]
      %v5412 = vld [vmem:[%s451 + $0x112] sm:$0xff]
      %v5413 = vld [vmem:[%s451 + $0x122] sm:$0xff]
      %v5414 = vld [vmem:[%s451 + $0x12a] sm:$0xff]
      %v5415 = vld [vmem:[%s451 + $0x13a] sm:$0xff]
      %v5416 = vld [vmem:[%s451 + $0x142] sm:$0xff]
      %v5417 = vld [vmem:[%s451 + $0x152] sm:$0xff]
      %v5418 = vld [vmem:[%s451 + $0x15a] sm:$0xff]
      %v5419 = vld [vmem:[%s451 + $0x16a] sm:$0xff]
      %v5420 = vld [vmem:[%s451 + $0x172] sm:$0xff]
      %v5421 = vlaneseq
      %v5422 = vshrl.u32 %v5421, 7
      %v5423 = vsub.s32 5, %v5422
      %v5424 = vrot.slane %v4854, %v5423
      %v5425 = vmul.f32 %v5389, %v5424
      %v5426 = vmul.f32 %v5390, %v5424
      %v5427 = vmul.f32 %v5391, %v5424
      %v5428 = vmul.f32 %v5392, %v5424
      %v5429 = vmul.f32 %v5393, %v5424
      %v5430 = vmul.f32 %v5394, %v5424
      %v5431 = vmul.f32 %v5395, %v5424
      %v5432 = vmul.f32 %v5396, %v5424
      %v5433 = vmul.f32 %v5397, %v5424
      %v5434 = vmul.f32 %v5398, %v5424
      %v5435 = vmul.f32 %v5399, %v5424
      %v5436 = vmul.f32 %v5400, %v5424
      %v5437 = vmul.f32 %v5401, %v5424
      %v5438 = vmul.f32 %v5402, %v5424
      %v5439 = vmul.f32 %v5403, %v5424
      %v5440 = vmul.f32 %v5404, %v5424
      %v5441 = vmul.f32 %v5405, %v5424
      %v5442 = vmul.f32 %v5406, %v5424
      %v5443 = vmul.f32 %v5407, %v5424
      %v5444 = vmul.f32 %v5408, %v5424
      %v5445 = vmul.f32 %v5409, %v5424
      %v5446 = vmul.f32 %v5410, %v5424
      %v5447 = vmul.f32 %v5411, %v5424
      %v5448 = vmul.f32 %v5412, %v5424
      %v5449 = vmul.f32 %v5413, %v5424
      %v5450 = vmul.f32 %v5414, %v5424
      %v5451 = vmul.f32 %v5415, %v5424
      %v5452 = vmul.f32 %v5416, %v5424
      %v5453 = vmul.f32 %v5417, %v5424
      %v5454 = vmul.f32 %v5418, %v5424
      %v5455 = vmul.f32 %v5419, %v5424
      %v5456 = vmul.f32 %v5420, %v5424
      %v5457 = vadd.f32 %v5357, %v5425
      %v5458 = vadd.f32 %v5358, %v5426
      %v5459 = vadd.f32 %v5359, %v5427
      %v5460 = vadd.f32 %v5360, %v5428
      %v5461 = vadd.f32 %v5361, %v5429
      %v5462 = vadd.f32 %v5362, %v5430
      %v5463 = vadd.f32 %v5363, %v5431
      %v5464 = vadd.f32 %v5364, %v5432
      %v5465 = vadd.f32 %v5365, %v5433
      %v5466 = vadd.f32 %v5366, %v5434
      %v5467 = vadd.f32 %v5367, %v5435
      %v5468 = vadd.f32 %v5368, %v5436
      %v5469 = vadd.f32 %v5369, %v5437
      %v5470 = vadd.f32 %v5370, %v5438
      %v5471 = vadd.f32 %v5371, %v5439
      %v5472 = vadd.f32 %v5372, %v5440
      %v5473 = vadd.f32 %v5373, %v5441
      %v5474 = vadd.f32 %v5374, %v5442
      %v5475 = vadd.f32 %v5375, %v5443
      %v5476 = vadd.f32 %v5376, %v5444
      %v5477 = vadd.f32 %v5377, %v5445
      %v5478 = vadd.f32 %v5378, %v5446
      %v5479 = vadd.f32 %v5379, %v5447
      %v5480 = vadd.f32 %v5380, %v5448
      %v5481 = vadd.f32 %v5381, %v5449
      %v5482 = vadd.f32 %v5382, %v5450
      %v5483 = vadd.f32 %v5383, %v5451
      %v5484 = vadd.f32 %v5384, %v5452
      %v5485 = vadd.f32 %v5385, %v5453
      %v5486 = vadd.f32 %v5386, %v5454
      %v5487 = vadd.f32 %v5387, %v5455
      %v5488 = vadd.f32 %v5388, %v5456
      %v5489 = vld [vmem:[%s1503] sm:$0xff]
      %v5490 = vld [vmem:[%s1503 + $0x8] sm:$0xff]
      %v5491 = vld [vmem:[%s1503 + $0x18] sm:$0xff]
      %v5492 = vld [vmem:[%s1503 + $0x20] sm:$0xff]
      %v5493 = vld [vmem:[%s1503 + $0x30] sm:$0xff]
      %v5494 = vld [vmem:[%s1503 + $0x38] sm:$0xff]
      %v5495 = vld [vmem:[%s1503 + $0x48] sm:$0xff]
      %v5496 = vld [vmem:[%s1503 + $0x50] sm:$0xff]
      %v5497 = vld [vmem:[%s1503 + $0x60] sm:$0xff]
      %v5498 = vld [vmem:[%s1503 + $0x68] sm:$0xff]
      %v5499 = vld [vmem:[%s1503 + $0x78] sm:$0xff]
      %v5500 = vld [vmem:[%s1503 + $0x80] sm:$0xff]
      %v5501 = vld [vmem:[%s1503 + $0x90] sm:$0xff]
      %v5502 = vld [vmem:[%s1503 + $0x98] sm:$0xff]
      %v5503 = vld [vmem:[%s1503 + $0xa8] sm:$0xff]
      %v5504 = vld [vmem:[%s1503 + $0xb0] sm:$0xff]
      %v5505 = vld [vmem:[%s1503 + $0xc0] sm:$0xff]
      %v5506 = vld [vmem:[%s1503 + $0xc8] sm:$0xff]
      %v5507 = vld [vmem:[%s1503 + $0xd8] sm:$0xff]
      %v5508 = vld [vmem:[%s1503 + $0xe0] sm:$0xff]
      %v5509 = vld [vmem:[%s1503 + $0xf0] sm:$0xff]
      %v5510 = vld [vmem:[%s1503 + $0xf8] sm:$0xff]
      %v5511 = vld [vmem:[%s1503 + $0x108] sm:$0xff]
      %v5512 = vld [vmem:[%s1503 + $0x110] sm:$0xff]
      %v5513 = vld [vmem:[%s1503 + $0x120] sm:$0xff]
      %v5514 = vld [vmem:[%s1503 + $0x128] sm:$0xff]
      %v5515 = vld [vmem:[%s1503 + $0x138] sm:$0xff]
      %v5516 = vld [vmem:[%s1503 + $0x140] sm:$0xff]
      %v5517 = vld [vmem:[%s1503 + $0x150] sm:$0xff]
      %v5518 = vld [vmem:[%s1503 + $0x158] sm:$0xff]
      %v5519 = vld [vmem:[%s1503 + $0x168] sm:$0xff]
      %v5520 = vld [vmem:[%s1503 + $0x170] sm:$0xff]
      %v5521 = vlaneseq
      %v5522 = vshrl.u32 %v5521, 7
      %v5523 = vsub.s32 6, %v5522
      %v5524 = vrot.slane %v4854, %v5523
      %v5525 = vmul.f32 %v5489, %v5524
      %v5526 = vmul.f32 %v5490, %v5524
      %v5527 = vmul.f32 %v5491, %v5524
      %v5528 = vmul.f32 %v5492, %v5524
      %v5529 = vmul.f32 %v5493, %v5524
      %v5530 = vmul.f32 %v5494, %v5524
      %v5531 = vmul.f32 %v5495, %v5524
      %v5532 = vmul.f32 %v5496, %v5524
      %v5533 = vmul.f32 %v5497, %v5524
      %v5534 = vmul.f32 %v5498, %v5524
      %v5535 = vmul.f32 %v5499, %v5524
      %v5536 = vmul.f32 %v5500, %v5524
      %v5537 = vmul.f32 %v5501, %v5524
      %v5538 = vmul.f32 %v5502, %v5524
      %v5539 = vmul.f32 %v5503, %v5524
      %v5540 = vmul.f32 %v5504, %v5524
      %v5541 = vmul.f32 %v5505, %v5524
      %v5542 = vmul.f32 %v5506, %v5524
      %v5543 = vmul.f32 %v5507, %v5524
      %v5544 = vmul.f32 %v5508, %v5524
      %v5545 = vmul.f32 %v5509, %v5524
      %v5546 = vmul.f32 %v5510, %v5524
      %v5547 = vmul.f32 %v5511, %v5524
      %v5548 = vmul.f32 %v5512, %v5524
      %v5549 = vmul.f32 %v5513, %v5524
      %v5550 = vmul.f32 %v5514, %v5524
      %v5551 = vmul.f32 %v5515, %v5524
      %v5552 = vmul.f32 %v5516, %v5524
      %v5553 = vmul.f32 %v5517, %v5524
      %v5554 = vmul.f32 %v5518, %v5524
      %v5555 = vmul.f32 %v5519, %v5524
      %v5556 = vmul.f32 %v5520, %v5524
      %v5557 = vadd.f32 %v5457, %v5525
      %v5558 = vadd.f32 %v5458, %v5526
      %v5559 = vadd.f32 %v5459, %v5527
      %v5560 = vadd.f32 %v5460, %v5528
      %v5561 = vadd.f32 %v5461, %v5529
      %v5562 = vadd.f32 %v5462, %v5530
      %v5563 = vadd.f32 %v5463, %v5531
      %v5564 = vadd.f32 %v5464, %v5532
      %v5565 = vadd.f32 %v5465, %v5533
      %v5566 = vadd.f32 %v5466, %v5534
      %v5567 = vadd.f32 %v5467, %v5535
      %v5568 = vadd.f32 %v5468, %v5536
      %v5569 = vadd.f32 %v5469, %v5537
      %v5570 = vadd.f32 %v5470, %v5538
      %v5571 = vadd.f32 %v5471, %v5539
      %v5572 = vadd.f32 %v5472, %v5540
      %v5573 = vadd.f32 %v5473, %v5541
      %v5574 = vadd.f32 %v5474, %v5542
      %v5575 = vadd.f32 %v5475, %v5543
      %v5576 = vadd.f32 %v5476, %v5544
      %v5577 = vadd.f32 %v5477, %v5545
      %v5578 = vadd.f32 %v5478, %v5546
      %v5579 = vadd.f32 %v5479, %v5547
      %v5580 = vadd.f32 %v5480, %v5548
      %v5581 = vadd.f32 %v5481, %v5549
      %v5582 = vadd.f32 %v5482, %v5550
      %v5583 = vadd.f32 %v5483, %v5551
      %v5584 = vadd.f32 %v5484, %v5552
      %v5585 = vadd.f32 %v5485, %v5553
      %v5586 = vadd.f32 %v5486, %v5554
      %v5587 = vadd.f32 %v5487, %v5555
      %v5588 = vadd.f32 %v5488, %v5556
      %v5589 = vld [vmem:[%s1503 + $0x1] sm:$0xff]
      %v5590 = vld [vmem:[%s1503 + $0x9] sm:$0xff]
      %v5591 = vld [vmem:[%s1503 + $0x19] sm:$0xff]
      %v5592 = vld [vmem:[%s1503 + $0x21] sm:$0xff]
      %v5593 = vld [vmem:[%s1503 + $0x31] sm:$0xff]
      %v5594 = vld [vmem:[%s1503 + $0x39] sm:$0xff]
      %v5595 = vld [vmem:[%s1503 + $0x49] sm:$0xff]
      %v5596 = vld [vmem:[%s1503 + $0x51] sm:$0xff]
      %v5597 = vld [vmem:[%s1503 + $0x61] sm:$0xff]
      %v5598 = vld [vmem:[%s1503 + $0x69] sm:$0xff]
      %v5599 = vld [vmem:[%s1503 + $0x79] sm:$0xff]
      %v5600 = vld [vmem:[%s1503 + $0x81] sm:$0xff]
      %v5601 = vld [vmem:[%s1503 + $0x91] sm:$0xff]
      %v5602 = vld [vmem:[%s1503 + $0x99] sm:$0xff]
      %v5603 = vld [vmem:[%s1503 + $0xa9] sm:$0xff]
      %v5604 = vld [vmem:[%s1503 + $0xb1] sm:$0xff]
      %v5605 = vld [vmem:[%s1503 + $0xc1] sm:$0xff]
      %v5606 = vld [vmem:[%s1503 + $0xc9] sm:$0xff]
      %v5607 = vld [vmem:[%s1503 + $0xd9] sm:$0xff]
      %v5608 = vld [vmem:[%s1503 + $0xe1] sm:$0xff]
      %v5609 = vld [vmem:[%s1503 + $0xf1] sm:$0xff]
      %v5610 = vld [vmem:[%s1503 + $0xf9] sm:$0xff]
      %v5611 = vld [vmem:[%s1503 + $0x109] sm:$0xff]
      %v5612 = vld [vmem:[%s1503 + $0x111] sm:$0xff]
      %v5613 = vld [vmem:[%s1503 + $0x121] sm:$0xff]
      %v5614 = vld [vmem:[%s1503 + $0x129] sm:$0xff]
      %v5615 = vld [vmem:[%s1503 + $0x139] sm:$0xff]
      %v5616 = vld [vmem:[%s1503 + $0x141] sm:$0xff]
      %v5617 = vld [vmem:[%s1503 + $0x151] sm:$0xff]
      %v5618 = vld [vmem:[%s1503 + $0x159] sm:$0xff]
      %v5619 = vld [vmem:[%s1503 + $0x169] sm:$0xff]
      %v5620 = vld [vmem:[%s1503 + $0x171] sm:$0xff]
      %v5621 = vlaneseq
      %v5622 = vshrl.u32 %v5621, 7
      %v5623 = vsub.s32 7, %v5622
      %v5624 = vrot.slane %v4854, %v5623
      %v5625 = vmul.f32 %v5589, %v5624
      %v5626 = vmul.f32 %v5590, %v5624
      %v5627 = vmul.f32 %v5591, %v5624
      %v5628 = vmul.f32 %v5592, %v5624
      %v5629 = vmul.f32 %v5593, %v5624
      %v5630 = vmul.f32 %v5594, %v5624
      %v5631 = vmul.f32 %v5595, %v5624
      %v5632 = vmul.f32 %v5596, %v5624
      %v5633 = vmul.f32 %v5597, %v5624
      %v5634 = vmul.f32 %v5598, %v5624
      %v5635 = vmul.f32 %v5599, %v5624
      %v5636 = vmul.f32 %v5600, %v5624
      %v5637 = vmul.f32 %v5601, %v5624
      %v5638 = vmul.f32 %v5602, %v5624
      %v5639 = vmul.f32 %v5603, %v5624
      %v5640 = vmul.f32 %v5604, %v5624
      %v5641 = vmul.f32 %v5605, %v5624
      %v5642 = vmul.f32 %v5606, %v5624
      %v5643 = vmul.f32 %v5607, %v5624
      %v5644 = vmul.f32 %v5608, %v5624
      %v5645 = vmul.f32 %v5609, %v5624
      %v5646 = vmul.f32 %v5610, %v5624
      %v5647 = vmul.f32 %v5611, %v5624
      %v5648 = vmul.f32 %v5612, %v5624
      %v5649 = vmul.f32 %v5613, %v5624
      %v5650 = vmul.f32 %v5614, %v5624
      %v5651 = vmul.f32 %v5615, %v5624
      %v5652 = vmul.f32 %v5616, %v5624
      %v5653 = vmul.f32 %v5617, %v5624
      %v5654 = vmul.f32 %v5618, %v5624
      %v5655 = vmul.f32 %v5619, %v5624
      %v5656 = vmul.f32 %v5620, %v5624
      %v5657 = vadd.f32 %v5557, %v5625
      %v5658 = vadd.f32 %v5558, %v5626
      %v5659 = vadd.f32 %v5559, %v5627
      %v5660 = vadd.f32 %v5560, %v5628
      %v5661 = vadd.f32 %v5561, %v5629
      %v5662 = vadd.f32 %v5562, %v5630
      %v5663 = vadd.f32 %v5563, %v5631
      %v5664 = vadd.f32 %v5564, %v5632
      %v5665 = vadd.f32 %v5565, %v5633
      %v5666 = vadd.f32 %v5566, %v5634
      %v5667 = vadd.f32 %v5567, %v5635
      %v5668 = vadd.f32 %v5568, %v5636
      %v5669 = vadd.f32 %v5569, %v5637
      %v5670 = vadd.f32 %v5570, %v5638
      %v5671 = vadd.f32 %v5571, %v5639
      %v5672 = vadd.f32 %v5572, %v5640
      %v5673 = vadd.f32 %v5573, %v5641
      %v5674 = vadd.f32 %v5574, %v5642
      %v5675 = vadd.f32 %v5575, %v5643
      %v5676 = vadd.f32 %v5576, %v5644
      %v5677 = vadd.f32 %v5577, %v5645
      %v5678 = vadd.f32 %v5578, %v5646
      %v5679 = vadd.f32 %v5579, %v5647
      %v5680 = vadd.f32 %v5580, %v5648
      %v5681 = vadd.f32 %v5581, %v5649
      %v5682 = vadd.f32 %v5582, %v5650
      %v5683 = vadd.f32 %v5583, %v5651
      %v5684 = vadd.f32 %v5584, %v5652
      %v5685 = vadd.f32 %v5585, %v5653
      %v5686 = vadd.f32 %v5586, %v5654
      %v5687 = vadd.f32 %v5587, %v5655
      %v5688 = vadd.f32 %v5588, %v5656
      %v5689 = vld [vmem:[%s1503 + $0x2] sm:$0xff]
      %v5690 = vld [vmem:[%s1503 + $0xa] sm:$0xff]
      %v5691 = vld [vmem:[%s1503 + $0x1a] sm:$0xff]
      %v5692 = vld [vmem:[%s1503 + $0x22] sm:$0xff]
      %v5693 = vld [vmem:[%s1503 + $0x32] sm:$0xff]
      %v5694 = vld [vmem:[%s1503 + $0x3a] sm:$0xff]
      %v5695 = vld [vmem:[%s1503 + $0x4a] sm:$0xff]
      %v5696 = vld [vmem:[%s1503 + $0x52] sm:$0xff]
      %v5697 = vld [vmem:[%s1503 + $0x62] sm:$0xff]
      %v5698 = vld [vmem:[%s1503 + $0x6a] sm:$0xff]
      %v5699 = vld [vmem:[%s1503 + $0x7a] sm:$0xff]
      %v5700 = vld [vmem:[%s1503 + $0x82] sm:$0xff]
      %v5701 = vld [vmem:[%s1503 + $0x92] sm:$0xff]
      %v5702 = vld [vmem:[%s1503 + $0x9a] sm:$0xff]
      %v5703 = vld [vmem:[%s1503 + $0xaa] sm:$0xff]
      %v5704 = vld [vmem:[%s1503 + $0xb2] sm:$0xff]
      %v5705 = vld [vmem:[%s1503 + $0xc2] sm:$0xff]
      %v5706 = vld [vmem:[%s1503 + $0xca] sm:$0xff]
      %v5707 = vld [vmem:[%s1503 + $0xda] sm:$0xff]
      %v5708 = vld [vmem:[%s1503 + $0xe2] sm:$0xff]
      %v5709 = vld [vmem:[%s1503 + $0xf2] sm:$0xff]
      %v5710 = vld [vmem:[%s1503 + $0xfa] sm:$0xff]
      %v5711 = vld [vmem:[%s1503 + $0x10a] sm:$0xff]
      %v5712 = vld [vmem:[%s1503 + $0x112] sm:$0xff]
      %v5713 = vld [vmem:[%s1503 + $0x122] sm:$0xff]
      %v5714 = vld [vmem:[%s1503 + $0x12a] sm:$0xff]
      %v5715 = vld [vmem:[%s1503 + $0x13a] sm:$0xff]
      %v5716 = vld [vmem:[%s1503 + $0x142] sm:$0xff]
      %v5717 = vld [vmem:[%s1503 + $0x152] sm:$0xff]
      %v5718 = vld [vmem:[%s1503 + $0x15a] sm:$0xff]
      %v5719 = vld [vmem:[%s1503 + $0x16a] sm:$0xff]
      %v5720 = vld [vmem:[%s1503 + $0x172] sm:$0xff]
      %v5721 = vlaneseq
      %v5722 = vshrl.u32 %v5721, 7
      %v5723 = vsub.s32 0, %v5722
      %v5724 = vrot.slane %v4855, %v5723
      %v5725 = vmul.f32 %v5689, %v5724
      %v5726 = vmul.f32 %v5690, %v5724
      %v5727 = vmul.f32 %v5691, %v5724
      %v5728 = vmul.f32 %v5692, %v5724
      %v5729 = vmul.f32 %v5693, %v5724
      %v5730 = vmul.f32 %v5694, %v5724
      %v5731 = vmul.f32 %v5695, %v5724
      %v5732 = vmul.f32 %v5696, %v5724
      %v5733 = vmul.f32 %v5697, %v5724
      %v5734 = vmul.f32 %v5698, %v5724
      %v5735 = vmul.f32 %v5699, %v5724
      %v5736 = vmul.f32 %v5700, %v5724
      %v5737 = vmul.f32 %v5701, %v5724
      %v5738 = vmul.f32 %v5702, %v5724
      %v5739 = vmul.f32 %v5703, %v5724
      %v5740 = vmul.f32 %v5704, %v5724
      %v5741 = vmul.f32 %v5705, %v5724
      %v5742 = vmul.f32 %v5706, %v5724
      %v5743 = vmul.f32 %v5707, %v5724
      %v5744 = vmul.f32 %v5708, %v5724
      %v5745 = vmul.f32 %v5709, %v5724
      %v5746 = vmul.f32 %v5710, %v5724
      %v5747 = vmul.f32 %v5711, %v5724
      %v5748 = vmul.f32 %v5712, %v5724
      %v5749 = vmul.f32 %v5713, %v5724
      %v5750 = vmul.f32 %v5714, %v5724
      %v5751 = vmul.f32 %v5715, %v5724
      %v5752 = vmul.f32 %v5716, %v5724
      %v5753 = vmul.f32 %v5717, %v5724
      %v5754 = vmul.f32 %v5718, %v5724
      %v5755 = vmul.f32 %v5719, %v5724
      %v5756 = vmul.f32 %v5720, %v5724
      %v5757 = vadd.f32 %v5657, %v5725
      %v5758 = vadd.f32 %v5658, %v5726
      %v5759 = vadd.f32 %v5659, %v5727
      %v5760 = vadd.f32 %v5660, %v5728
      %v5761 = vadd.f32 %v5661, %v5729
      %v5762 = vadd.f32 %v5662, %v5730
      %v5763 = vadd.f32 %v5663, %v5731
      %v5764 = vadd.f32 %v5664, %v5732
      %v5765 = vadd.f32 %v5665, %v5733
      %v5766 = vadd.f32 %v5666, %v5734
      %v5767 = vadd.f32 %v5667, %v5735
      %v5768 = vadd.f32 %v5668, %v5736
      %v5769 = vadd.f32 %v5669, %v5737
      %v5770 = vadd.f32 %v5670, %v5738
      %v5771 = vadd.f32 %v5671, %v5739
      %v5772 = vadd.f32 %v5672, %v5740
      %v5773 = vadd.f32 %v5673, %v5741
      %v5774 = vadd.f32 %v5674, %v5742
      %v5775 = vadd.f32 %v5675, %v5743
      %v5776 = vadd.f32 %v5676, %v5744
      %v5777 = vadd.f32 %v5677, %v5745
      %v5778 = vadd.f32 %v5678, %v5746
      %v5779 = vadd.f32 %v5679, %v5747
      %v5780 = vadd.f32 %v5680, %v5748
      %v5781 = vadd.f32 %v5681, %v5749
      %v5782 = vadd.f32 %v5682, %v5750
      %v5783 = vadd.f32 %v5683, %v5751
      %v5784 = vadd.f32 %v5684, %v5752
      %v5785 = vadd.f32 %v5685, %v5753
      %v5786 = vadd.f32 %v5686, %v5754
      %v5787 = vadd.f32 %v5687, %v5755
      %v5788 = vadd.f32 %v5688, %v5756
      %v5790 = vlaneseq
      %v5791 = vshrl.u32 %v5790, 7
      %v5792 = vsub.s32 0, %v5791
      %v5793 = vrot.slane %v4856, %v5792
      %v5795 = vadd.f32 %v5757, %v5793
      %v5796 = vadd.f32 %v5758, %v5793
      %v5797 = vadd.f32 %v5759, %v5793
      %v5798 = vadd.f32 %v5760, %v5793
      %v5799 = vadd.f32 %v5761, %v5793
      %v5800 = vadd.f32 %v5762, %v5793
      %v5801 = vadd.f32 %v5763, %v5793
      %v5802 = vadd.f32 %v5764, %v5793
      %v5803 = vadd.f32 %v5765, %v5793
      %v5804 = vadd.f32 %v5766, %v5793
      %v5805 = vadd.f32 %v5767, %v5793
      %v5806 = vadd.f32 %v5768, %v5793
      %v5807 = vadd.f32 %v5769, %v5793
      %v5808 = vadd.f32 %v5770, %v5793
      %v5809 = vadd.f32 %v5771, %v5793
      %v5810 = vadd.f32 %v5772, %v5793
      %v5811 = vadd.f32 %v5773, %v5793
      %v5812 = vadd.f32 %v5774, %v5793
      %v5813 = vadd.f32 %v5775, %v5793
      %v5814 = vadd.f32 %v5776, %v5793
      %v5815 = vadd.f32 %v5777, %v5793
      %v5816 = vadd.f32 %v5778, %v5793
      %v5817 = vadd.f32 %v5779, %v5793
      %v5818 = vadd.f32 %v5780, %v5793
      %v5819 = vadd.f32 %v5781, %v5793
      %v5820 = vadd.f32 %v5782, %v5793
      %v5821 = vadd.f32 %v5783, %v5793
      %v5822 = vadd.f32 %v5784, %v5793
      %v5823 = vadd.f32 %v5785, %v5793
      %v5824 = vadd.f32 %v5786, %v5793
      %v5825 = vadd.f32 %v5787, %v5793
      %v5826 = vadd.f32 %v5788, %v5793
      %v5827 = vmul.f32 %v5795, 0.1
      %v5828 = vmul.f32 %v5796, 0.1
      %v5829 = vmul.f32 %v5797, 0.1
      %v5830 = vmul.f32 %v5798, 0.1
      %v5831 = vmul.f32 %v5799, 0.1
      %v5832 = vmul.f32 %v5800, 0.1
      %v5833 = vmul.f32 %v5801, 0.1
      %v5834 = vmul.f32 %v5802, 0.1
      %v5835 = vmul.f32 %v5803, 0.1
      %v5836 = vmul.f32 %v5804, 0.1
      %v5837 = vmul.f32 %v5805, 0.1
      %v5838 = vmul.f32 %v5806, 0.1
      %v5839 = vmul.f32 %v5807, 0.1
      %v5840 = vmul.f32 %v5808, 0.1
      %v5841 = vmul.f32 %v5809, 0.1
      %v5842 = vmul.f32 %v5810, 0.1
      %v5843 = vmul.f32 %v5811, 0.1
      %v5844 = vmul.f32 %v5812, 0.1
      %v5845 = vmul.f32 %v5813, 0.1
      %v5846 = vmul.f32 %v5814, 0.1
      %v5847 = vmul.f32 %v5815, 0.1
      %v5848 = vmul.f32 %v5816, 0.1
      %v5849 = vmul.f32 %v5817, 0.1
      %v5850 = vmul.f32 %v5818, 0.1
      %v5851 = vmul.f32 %v5819, 0.1
      %v5852 = vmul.f32 %v5820, 0.1
      %v5853 = vmul.f32 %v5821, 0.1
      %v5854 = vmul.f32 %v5822, 0.1
      %v5855 = vmul.f32 %v5823, 0.1
      %v5856 = vmul.f32 %v5824, 0.1
      %v5857 = vmul.f32 %v5825, 0.1
      %v5858 = vmul.f32 %v5826, 0.1
      %v5859 = vmax.f32 %v5795, %v5827
      %v5860 = vmax.f32 %v5796, %v5828
      %v5861 = vmax.f32 %v5797, %v5829
      %v5862 = vmax.f32 %v5798, %v5830
      %v5863 = vmax.f32 %v5799, %v5831
      %v5864 = vmax.f32 %v5800, %v5832
      %v5865 = vmax.f32 %v5801, %v5833
      %v5866 = vmax.f32 %v5802, %v5834
      %v5867 = vmax.f32 %v5803, %v5835
      %v5868 = vmax.f32 %v5804, %v5836
      %v5869 = vmax.f32 %v5805, %v5837
      %v5870 = vmax.f32 %v5806, %v5838
      %v5871 = vmax.f32 %v5807, %v5839
      %v5872 = vmax.f32 %v5808, %v5840
      %v5873 = vmax.f32 %v5809, %v5841
      %v5874 = vmax.f32 %v5810, %v5842
      %v5875 = vmax.f32 %v5811, %v5843
      %v5876 = vmax.f32 %v5812, %v5844
      %v5877 = vmax.f32 %v5813, %v5845
      %v5878 = vmax.f32 %v5814, %v5846
      %v5879 = vmax.f32 %v5815, %v5847
      %v5880 = vmax.f32 %v5816, %v5848
      %v5881 = vmax.f32 %v5817, %v5849
      %v5882 = vmax.f32 %v5818, %v5850
      %v5883 = vmax.f32 %v5819, %v5851
      %v5884 = vmax.f32 %v5820, %v5852
      %v5885 = vmax.f32 %v5821, %v5853
      %v5886 = vmax.f32 %v5822, %v5854
      %v5887 = vmax.f32 %v5823, %v5855
      %v5888 = vmax.f32 %v5824, %v5856
      %v5889 = vmax.f32 %v5825, %v5857
      %v5890 = vmax.f32 %v5826, %v5858
      %v5891 = vld [vmem:[%s11] sm:$0x3]
      %v5892 = vld [vmem:[%s12] sm:$0x1]
      %v5893 = vpack.c.bf16 %v5860, %v5859
      %v5894 = vpack.c.bf16 %v5862, %v5861
      %v5895 = vpack.c.bf16 %v5864, %v5863
      %v5896 = vpack.c.bf16 %v5866, %v5865
      %v5897 = vpack.c.bf16 %v5868, %v5867
      %v5898 = vpack.c.bf16 %v5870, %v5869
      %v5899 = vpack.c.bf16 %v5872, %v5871
      %v5900 = vpack.c.bf16 %v5874, %v5873
      %v5901 = vpack.c.bf16 %v5876, %v5875
      %v5902 = vpack.c.bf16 %v5878, %v5877
      %v5903 = vpack.c.bf16 %v5880, %v5879
      %v5904 = vpack.c.bf16 %v5882, %v5881
      %v5905 = vpack.c.bf16 %v5884, %v5883
      %v5906 = vpack.c.bf16 %v5886, %v5885
      %v5907 = vpack.c.bf16 %v5888, %v5887
      %v5908 = vpack.c.bf16 %v5890, %v5889
      %v5910 = vlaneseq
      %v5911 = vshrl.u32 %v5910, 7
      %v5912 = vsub.s32 0, %v5911
      %v5913 = vrot.slane %v5892, %v5912
      %v5916 = vsel %vm442, %v5893, 0
      %v5919 = vsel %vm442, %v5894, 0
      %v5922 = vsel %vm442, %v5895, 0
      %v5925 = vsel %vm442, %v5896, 0
      %v5928 = vsel %vm442, %v5897, 0
      %v5931 = vsel %vm442, %v5898, 0
      %v5934 = vsel %vm442, %v5899, 0
      %v5937 = vsel %vm442, %v5900, 0
      %v5940 = vsel %vm442, %v5901, 0
      %v5943 = vsel %vm442, %v5902, 0
      %v5946 = vsel %vm442, %v5903, 0
      %v5949 = vsel %vm442, %v5904, 0
      %v5952 = vsel %vm442, %v5905, 0
      %v5955 = vsel %vm442, %v5906, 0
      %v5958 = vsel %vm442, %v5907, 0
      %v5961 = vsel %vm442, %v5908, 0
      %v5964 = vsel %vm1978, %v5891, 0
      %5966 = vmatprep.subr.bf16.mxu0 0
      %5967 = vmatpush1.bf16.msra.mxu0 0
      %5968 = vmatprep.subr.bf16.mxu0 0
      %5969 = vmatpush1.bf16.msra.mxu0 0
      %5970 = vmatprep.subr.bf16.mxu0 0
      %5971 = vmatpush1.bf16.msra.mxu0 0
      %5972 = vmatprep.subr.bf16.mxu0 0
      %5973 = vmatpush1.bf16.msra.mxu0 0
      %5974 = vmatprep.subr.bf16.mxu0 0
      %5975 = vmatpush1.bf16.msra.mxu0 0
      %5976 = vmatprep.subr.bf16.mxu0 0
      %5977 = vmatpush1.bf16.msra.mxu0 0
      %5978 = vmatprep.subr.bf16.mxu0 0
      %5979 = vmatpush1.bf16.msra.mxu0 0
      %5980 = vmatprep.subr.bf16.mxu0 0
      %5981 = vmatpush1.bf16.msra.mxu0 %v5964
      %5982 = vmatprep.subr.bf16.mxu0 0
      %5983 = vmatpush2.bf16.msra.mxu0 0
      %5984 = vmatprep.subr.bf16.mxu0 0
      %5985 = vmatpush2.bf16.msra.mxu0 0
      %5986 = vmatprep.subr.bf16.mxu0 0
      %5987 = vmatpush2.bf16.msra.mxu0 0
      %5988 = vmatprep.subr.bf16.mxu0 0
      %5989 = vmatpush2.bf16.msra.mxu0 0
      %5990 = vmatprep.subr.bf16.mxu0 0
      %5991 = vmatpush2.bf16.msra.mxu0 0
      %5992 = vmatprep.subr.bf16.mxu0 0
      %5993 = vmatpush2.bf16.msra.mxu0 0
      %5994 = vmatprep.subr.bf16.mxu0 0
      %5995 = vmatpush2.bf16.msra.mxu0 0
      %5996 = vmatprep.subr.bf16.mxu0 0
      %5997 = vmatpush2.bf16.msra.mxu0 0
      %5998 = vmatprep.mubr.bf16.mxu0 0
      %5999 = vmatmul.mubr.bf16.gmra.mxu0 %v5916
      %v6000 = vpop.f32.mrf.mxu0
      %v6001 = vadd.f32 %v5913, %v6000
      %v6002 = vpop.f32.mrf.mxu0
      %v6003 = vpop.f32.mrf.mxu0
      %v6004 = vadd.f32 %v5913, %v6003
      %v6005 = vpop.f32.mrf.mxu0
      %6006 = vmatprep.mubr.bf16.mxu0 0
      %6007 = vmatmul.mubr.bf16.gmra.mxu0 %v5919
      %v6008 = vpop.f32.mrf.mxu0
      %v6009 = vadd.f32 %v5913, %v6008
      %v6010 = vpop.f32.mrf.mxu0
      %v6011 = vpop.f32.mrf.mxu0
      %v6012 = vadd.f32 %v5913, %v6011
      %v6013 = vpop.f32.mrf.mxu0
      %6014 = vmatprep.mubr.bf16.mxu0 0
      %6015 = vmatmul.mubr.bf16.gmra.mxu0 %v5922
      %v6016 = vpop.f32.mrf.mxu0
      %v6017 = vadd.f32 %v5913, %v6016
      %v6018 = vpop.f32.mrf.mxu0
      %v6019 = vpop.f32.mrf.mxu0
      %v6020 = vadd.f32 %v5913, %v6019
      %v6021 = vpop.f32.mrf.mxu0
      %6022 = vmatprep.mubr.bf16.mxu0 0
      %6023 = vmatmul.mubr.bf16.gmra.mxu0 %v5925
      %v6024 = vpop.f32.mrf.mxu0
      %v6025 = vadd.f32 %v5913, %v6024
      %v6026 = vpop.f32.mrf.mxu0
      %v6027 = vpop.f32.mrf.mxu0
      %v6028 = vadd.f32 %v5913, %v6027
      %v6029 = vpop.f32.mrf.mxu0
      %6030 = vmatprep.mubr.bf16.mxu0 0
      %6031 = vmatmul.mubr.bf16.gmra.mxu0 %v5928
      %v6032 = vpop.f32.mrf.mxu0
      %v6033 = vadd.f32 %v5913, %v6032
      %v6034 = vpop.f32.mrf.mxu0
      %v6035 = vpop.f32.mrf.mxu0
      %v6036 = vadd.f32 %v5913, %v6035
      %v6037 = vpop.f32.mrf.mxu0
      %6038 = vmatprep.mubr.bf16.mxu0 0
      %6039 = vmatmul.mubr.bf16.gmra.mxu0 %v5931
      %v6040 = vpop.f32.mrf.mxu0
      %v6041 = vadd.f32 %v5913, %v6040
      %v6042 = vpop.f32.mrf.mxu0
      %v6043 = vpop.f32.mrf.mxu0
      %v6044 = vadd.f32 %v5913, %v6043
      %v6045 = vpop.f32.mrf.mxu0
      %6046 = vmatprep.mubr.bf16.mxu0 0
      %6047 = vmatmul.mubr.bf16.gmra.mxu0 %v5934
      %v6048 = vpop.f32.mrf.mxu0
      %v6049 = vadd.f32 %v5913, %v6048
      %v6050 = vpop.f32.mrf.mxu0
      %v6051 = vpop.f32.mrf.mxu0
      %v6052 = vadd.f32 %v5913, %v6051
      %v6053 = vpop.f32.mrf.mxu0
      %6054 = vmatprep.mubr.bf16.mxu0 0
      %6055 = vmatmul.mubr.bf16.gmra.mxu0 %v5937
      %v6056 = vpop.f32.mrf.mxu0
      %v6057 = vadd.f32 %v5913, %v6056
      %v6058 = vpop.f32.mrf.mxu0
      %v6059 = vpop.f32.mrf.mxu0
      %v6060 = vadd.f32 %v5913, %v6059
      %v6061 = vpop.f32.mrf.mxu0
      %6062 = vmatprep.mubr.bf16.mxu0 0
      %6063 = vmatmul.mubr.bf16.gmra.mxu0 %v5940
      %v6064 = vpop.f32.mrf.mxu0
      %v6065 = vadd.f32 %v5913, %v6064
      %v6066 = vpop.f32.mrf.mxu0
      %v6067 = vpop.f32.mrf.mxu0
      %v6068 = vadd.f32 %v5913, %v6067
      %v6069 = vpop.f32.mrf.mxu0
      %6070 = vmatprep.mubr.bf16.mxu0 0
      %6071 = vmatmul.mubr.bf16.gmra.mxu0 %v5943
      %v6072 = vpop.f32.mrf.mxu0
      %v6073 = vadd.f32 %v5913, %v6072
      %v6074 = vpop.f32.mrf.mxu0
      %v6075 = vpop.f32.mrf.mxu0
      %v6076 = vadd.f32 %v5913, %v6075
      %v6077 = vpop.f32.mrf.mxu0
      %6078 = vmatprep.mubr.bf16.mxu0 0
      %6079 = vmatmul.mubr.bf16.gmra.mxu0 %v5946
      %v6080 = vpop.f32.mrf.mxu0
      %v6081 = vadd.f32 %v5913, %v6080
      %v6082 = vpop.f32.mrf.mxu0
      %v6083 = vpop.f32.mrf.mxu0
      %v6084 = vadd.f32 %v5913, %v6083
      %v6085 = vpop.f32.mrf.mxu0
      %6086 = vmatprep.mubr.bf16.mxu0 0
      %6087 = vmatmul.mubr.bf16.gmra.mxu0 %v5949
      %v6088 = vpop.f32.mrf.mxu0
      %v6089 = vadd.f32 %v5913, %v6088
      %v6090 = vpop.f32.mrf.mxu0
      %v6091 = vpop.f32.mrf.mxu0
      %v6092 = vadd.f32 %v5913, %v6091
      %v6093 = vpop.f32.mrf.mxu0
      %6094 = vmatprep.mubr.bf16.mxu0 0
      %6095 = vmatmul.mubr.bf16.gmra.mxu0 %v5952
      %v6096 = vpop.f32.mrf.mxu0
      %v6097 = vadd.f32 %v5913, %v6096
      %v6098 = vpop.f32.mrf.mxu0
      %v6099 = vpop.f32.mrf.mxu0
      %v6100 = vadd.f32 %v5913, %v6099
      %v6101 = vpop.f32.mrf.mxu0
      %6102 = vmatprep.mubr.bf16.mxu0 0
      %6103 = vmatmul.mubr.bf16.gmra.mxu0 %v5955
      %v6104 = vpop.f32.mrf.mxu0
      %v6105 = vadd.f32 %v5913, %v6104
      %v6106 = vpop.f32.mrf.mxu0
      %v6107 = vpop.f32.mrf.mxu0
      %v6108 = vadd.f32 %v5913, %v6107
      %v6109 = vpop.f32.mrf.mxu0
      %6110 = vmatprep.mubr.bf16.mxu0 0
      %6111 = vmatmul.mubr.bf16.gmra.mxu0 %v5958
      %v6112 = vpop.f32.mrf.mxu0
      %v6113 = vadd.f32 %v5913, %v6112
      %v6114 = vpop.f32.mrf.mxu0
      %v6115 = vpop.f32.mrf.mxu0
      %v6116 = vadd.f32 %v5913, %v6115
      %v6117 = vpop.f32.mrf.mxu0
      %6118 = vmatprep.mubr.bf16.mxu0 0
      %6119 = vmatmul.mubr.bf16.gmra.mxu0 %v5961
      %v6120 = vpop.f32.mrf.mxu0
      %v6121 = vadd.f32 %v5913, %v6120
      %v6122 = vpop.f32.mrf.mxu0
      %v6123 = vpop.f32.mrf.mxu0
      %v6124 = vadd.f32 %v5913, %v6123
      %v6125 = vpop.f32.mrf.mxu0
      %6126 = vdwg.mxu0
      %v6127 = vmul.f32 %v6001, 0.1
      %v6128 = vmul.f32 %v6004, 0.1
      %v6129 = vmul.f32 %v6009, 0.1
      %v6130 = vmul.f32 %v6012, 0.1
      %v6131 = vmul.f32 %v6017, 0.1
      %v6132 = vmul.f32 %v6020, 0.1
      %v6133 = vmul.f32 %v6025, 0.1
      %v6134 = vmul.f32 %v6028, 0.1
      %v6135 = vmul.f32 %v6033, 0.1
      %v6136 = vmul.f32 %v6036, 0.1
      %v6137 = vmul.f32 %v6041, 0.1
      %v6138 = vmul.f32 %v6044, 0.1
      %v6139 = vmul.f32 %v6049, 0.1
      %v6140 = vmul.f32 %v6052, 0.1
      %v6141 = vmul.f32 %v6057, 0.1
      %v6142 = vmul.f32 %v6060, 0.1
      %v6143 = vmul.f32 %v6065, 0.1
      %v6144 = vmul.f32 %v6068, 0.1
      %v6145 = vmul.f32 %v6073, 0.1
      %v6146 = vmul.f32 %v6076, 0.1
      %v6147 = vmul.f32 %v6081, 0.1
      %v6148 = vmul.f32 %v6084, 0.1
      %v6149 = vmul.f32 %v6089, 0.1
      %v6150 = vmul.f32 %v6092, 0.1
      %v6151 = vmul.f32 %v6097, 0.1
      %v6152 = vmul.f32 %v6100, 0.1
      %v6153 = vmul.f32 %v6105, 0.1
      %v6154 = vmul.f32 %v6108, 0.1
      %v6155 = vmul.f32 %v6113, 0.1
      %v6156 = vmul.f32 %v6116, 0.1
      %v6157 = vmul.f32 %v6121, 0.1
      %v6158 = vmul.f32 %v6124, 0.1
      %v6159 = vmax.f32 %v6001, %v6127
      %v6160 = vmax.f32 %v6004, %v6128
      %v6161 = vmax.f32 %v6009, %v6129
      %v6162 = vmax.f32 %v6012, %v6130
      %v6163 = vmax.f32 %v6017, %v6131
      %v6164 = vmax.f32 %v6020, %v6132
      %v6165 = vmax.f32 %v6025, %v6133
      %v6166 = vmax.f32 %v6028, %v6134
      %v6167 = vmax.f32 %v6033, %v6135
      %v6168 = vmax.f32 %v6036, %v6136
      %v6169 = vmax.f32 %v6041, %v6137
      %v6170 = vmax.f32 %v6044, %v6138
      %v6171 = vmax.f32 %v6049, %v6139
      %v6172 = vmax.f32 %v6052, %v6140
      %v6173 = vmax.f32 %v6057, %v6141
      %v6174 = vmax.f32 %v6060, %v6142
      %v6175 = vmax.f32 %v6065, %v6143
      %v6176 = vmax.f32 %v6068, %v6144
      %v6177 = vmax.f32 %v6073, %v6145
      %v6178 = vmax.f32 %v6076, %v6146
      %v6179 = vmax.f32 %v6081, %v6147
      %v6180 = vmax.f32 %v6084, %v6148
      %v6181 = vmax.f32 %v6089, %v6149
      %v6182 = vmax.f32 %v6092, %v6150
      %v6183 = vmax.f32 %v6097, %v6151
      %v6184 = vmax.f32 %v6100, %v6152
      %v6185 = vmax.f32 %v6105, %v6153
      %v6186 = vmax.f32 %v6108, %v6154
      %v6187 = vmax.f32 %v6113, %v6155
      %v6188 = vmax.f32 %v6116, %v6156
      %v6189 = vmax.f32 %v6121, %v6157
      %v6190 = vmax.f32 %v6124, %v6158
      %6191 = vst.msk [vmem:[%s440] sm:$0xff] %vm590, %v6159
      %6192 = vst.msk [vmem:[%s440 + $0x8] sm:$0xff] %vm590, %v6160
      %6193 = vst.msk [vmem:[%s440 + $0x10] sm:$0xff] %vm590, %v6161
      %6194 = vst.msk [vmem:[%s440 + $0x18] sm:$0xff] %vm590, %v6162
      %6195 = vst.msk [vmem:[%s440 + $0x20] sm:$0xff] %vm590, %v6163
      %6196 = vst.msk [vmem:[%s440 + $0x28] sm:$0xff] %vm590, %v6164
      %6197 = vst.msk [vmem:[%s440 + $0x30] sm:$0xff] %vm590, %v6165
      %6198 = vst.msk [vmem:[%s440 + $0x38] sm:$0xff] %vm590, %v6166
      %6199 = vst.msk [vmem:[%s440 + $0x40] sm:$0xff] %vm590, %v6167
      %6200 = vst.msk [vmem:[%s440 + $0x48] sm:$0xff] %vm590, %v6168
      %6201 = vst.msk [vmem:[%s440 + $0x50] sm:$0xff] %vm590, %v6169
      %6202 = vst.msk [vmem:[%s440 + $0x58] sm:$0xff] %vm590, %v6170
      %6203 = vst.msk [vmem:[%s440 + $0x60] sm:$0xff] %vm590, %v6171
      %6204 = vst.msk [vmem:[%s440 + $0x68] sm:$0xff] %vm590, %v6172
      %6205 = vst.msk [vmem:[%s440 + $0x70] sm:$0xff] %vm590, %v6173
      %6206 = vst.msk [vmem:[%s440 + $0x78] sm:$0xff] %vm590, %v6174
      %6207 = vst.msk [vmem:[%s440 + $0x80] sm:$0xff] %vm590, %v6175
      %6208 = vst.msk [vmem:[%s440 + $0x88] sm:$0xff] %vm590, %v6176
      %6209 = vst.msk [vmem:[%s440 + $0x90] sm:$0xff] %vm590, %v6177
      %6210 = vst.msk [vmem:[%s440 + $0x98] sm:$0xff] %vm590, %v6178
      %6211 = vst.msk [vmem:[%s440 + $0xa0] sm:$0xff] %vm590, %v6179
      %6212 = vst.msk [vmem:[%s440 + $0xa8] sm:$0xff] %vm590, %v6180
      %6213 = vst.msk [vmem:[%s440 + $0xb0] sm:$0xff] %vm590, %v6181
      %6214 = vst.msk [vmem:[%s440 + $0xb8] sm:$0xff] %vm590, %v6182
      %6215 = vst.msk [vmem:[%s440 + $0xc0] sm:$0xff] %vm590, %v6183
      %6216 = vst.msk [vmem:[%s440 + $0xc8] sm:$0xff] %vm590, %v6184
      %6217 = vst.msk [vmem:[%s440 + $0xd0] sm:$0xff] %vm590, %v6185
      %6218 = vst.msk [vmem:[%s440 + $0xd8] sm:$0xff] %vm590, %v6186
      %6219 = vst.msk [vmem:[%s440 + $0xe0] sm:$0xff] %vm590, %v6187
      %6220 = vst.msk [vmem:[%s440 + $0xe8] sm:$0xff] %vm590, %v6188
      %6221 = vst.msk [vmem:[%s440 + $0xf0] sm:$0xff] %vm590, %v6189
      %6222 = vst.msk [vmem:[%s440 + $0xf8] sm:$0xff] %vm590, %v6190
      %p6223 = scmp.lt.s32.totalorder %s24, 1
      %s6224 = scalar_select %p6223, %s24, 1
      %s6225 = smul.addr %s6224, 32
      %s6226 = smul.addr %s6225, 8
      %s6227 = scalar_lea.vmem %s13, %s6226
      // Predicated region
      $region73: #{tpu_custom_call.1} parent=71 // pred_check
        %p6228 = pneg %p320
      $region74: #{tpu_custom_call.1} parent=71 // pred_check_branch
        %6230 = sbr.rel (%p6228) target = $region76
      $region75: #{tpu_custom_call.1} parent=71 // pred_region
        _
      $region76: #{tpu_custom_call.1} parent=71 // pred_fallthru
        _
    $region72: #{tpu_custom_call.1} parent=5 // pred_fallthru
      _
    %p6231 = scmp.le.s32.totalorder 2, %s19
    // Predicated region
    $region77: #{tpu_custom_call.1} parent=5 // pred_check
      %p6232 = pneg %p6231
    $region78: #{tpu_custom_call.1} parent=5 // pred_check_branch
      %6234 = sbr.rel (%p6232) target = $region80
    $region79: #{tpu_custom_call.1} parent=5 // pred_region
      %s6235 = ssub.s32 %s19, 2
      // Predicated region
      $region81: #{tpu_custom_call.1} parent=79 // pred_check
        %p6236 = pneg %p326
      $region82: #{tpu_custom_call.1} parent=79 // pred_check_branch
        %6238 = sbr.rel (%p6236) target = $region84
      $region83: #{tpu_custom_call.1} parent=79 // pred_region
        %p6239 = scmp.lt.s32.totalorder %s25, 1
        %s6240 = scalar_select %p6239, %s25, 1
        %s6241 = smul.addr %s6240, 32
        %s6242 = smul.addr %s6241, 8
        %s6243 = scalar_lea.vmem %s13, %s6242
      $region84: #{tpu_custom_call.1} parent=79 // pred_fallthru
        _
    $region80: #{tpu_custom_call.1} parent=5 // pred_fallthru
      _
  $region6: #{tpu_custom_call.1} parent=0 // loop_footer
    %s23 = sadd.s32 1, %s19
  $region7: #{tpu_custom_call.1} parent=0 // loop_footer_branch
    %18 = sbr.rel target = $region3
  $region8: #{tpu_custom_call.1} parent=0 // loop_exit
    _

</llo_original>
